<compile_context>
chip_gen: v6e
topology: v6e:2x2x1
jax: 0.10.0
libtpu: 0.0.40
codegen_flags: <defaults>
</compile_context>

<pallas_src>
import jax
import jax.numpy as jnp
from jax.experimental import pallas as pl
from jax.experimental.pallas import tpu as pltpu

N_EMBD = 384
N_HEAD = 6
HEAD_SIZE = N_EMBD // N_HEAD
LN_EPS = 1e-5
NEG_BIG = -1e30


def _layernorm(z, g, b):
    mu = jnp.mean(z, axis=-1, keepdims=True)
    var = jnp.mean((z - mu) ** 2, axis=-1, keepdims=True)
    return (z - mu) * jax.lax.rsqrt(var + LN_EPS) * g + b


def block_kernel(x_ref, g1_ref, b1_ref, wqkv_ref, wproj_ref, bproj_ref,
                 g2_ref, b2_ref, w1_ref, bf1_ref, w2_ref, bf2_ref, o_ref):
    BT, T, C = x_ref.shape
    M = BT * T

    x = x_ref[...].reshape(M, C)                       # (M, C) f32, rows = BT*T

    # ---- LayerNorm 1 (f32 VPU path) ----
    h1 = _layernorm(x, g1_ref[...], b1_ref[...])

    # ---- Fused QKV projection: one lane-dense bf16 matmul (M, C) x (C, 3C) ----
    qkv = jnp.dot(h1.astype(jnp.bfloat16), wqkv_ref[...],
                  preferred_element_type=jnp.float32)  # (M, 3C) f32
    q3 = qkv[:, 0:C].reshape(BT, T, C)
    k3 = qkv[:, C:2 * C].reshape(BT, T, C)
    v3 = qkv[:, 2 * C:3 * C].reshape(BT, T, C)

    # ---- Multi-head causal attention, output projection folded into the loop ----
    scale = 1.0 / (C ** 0.5)                           # matches `* C ** (-0.5)`, C = n_embd
    row = jax.lax.broadcasted_iota(jnp.int32, (T, T), 0)
    col = jax.lax.broadcasted_iota(jnp.int32, (T, T), 1)
    causal = (row >= col)[None, :, :]                  # hoisted out of the head loop

    sa = jnp.zeros((M, C), jnp.float32)                # f32 accumulator (lane-dense)
    for h in range(N_HEAD):                            # static 6-iteration loop
        sl = slice(h * HEAD_SIZE, (h + 1) * HEAD_SIZE)
        q = q3[:, :, sl].astype(jnp.bfloat16)
        k = k3[:, :, sl].astype(jnp.bfloat16)
        v = v3[:, :, sl].astype(jnp.bfloat16)

        s = jnp.einsum('bqd,bkd->bqk', q, k,
                       preferred_element_type=jnp.float32) * scale
        s = jnp.where(causal, s, NEG_BIG)
        s = s - jnp.max(s, axis=-1, keepdims=True)
        p = jnp.exp(s)
        p = p * pl.reciprocal(jnp.sum(p, axis=-1, keepdims=True), approx=True)

        o_h = jnp.einsum('bqk,bkd->bqd', p.astype(jnp.bfloat16), v,
                         preferred_element_type=jnp.float32)     # (BT, T, HS)
        # Projection slab for this head: (HS, C) rows of wproj. The matmul
        # output is (M, 384) -> lane-dense accumulate, no 64-lane stores.
        sa = sa + jnp.dot(o_h.reshape(M, HEAD_SIZE).astype(jnp.bfloat16),
                          wproj_ref[sl, :],
                          preferred_element_type=jnp.float32)

    x2 = x + sa + bproj_ref[...]

    # ---- LayerNorm 2 + FeedForward ----
    h2 = _layernorm(x2, g2_ref[...], b2_ref[...])
    ff = jnp.dot(h2.astype(jnp.bfloat16), w1_ref[...],
                 preferred_element_type=jnp.float32) + bf1_ref[...]
    ff = jnp.maximum(ff, 0.0)
    ff = jnp.dot(ff.astype(jnp.bfloat16), w2_ref[...],
                 preferred_element_type=jnp.float32) + bf2_ref[...]

    o_ref[...] = (x2 + ff).reshape(BT, T, C).astype(o_ref.dtype)


def _pick_batch_tile(B, T, target_rows=512):
    """Batch tile so M = bt*T targets ~512 MXU rows, while keeping >= 2 grid
    steps whenever B > 1 (both v7x TensorCores get work via 'parallel')."""
    bt = max(1, min(B, target_rows // max(T, 1)))
    if B > 1 and pl.cdiv(B, bt) < 2:
        bt = pl.cdiv(B, 2)
    return bt


def _vmem_limit_bytes():
    """Generation-keyed VMEM ceiling: ~75% of physical (96 MiB on v5e/v6e's
    128 MiB, 48 MiB on v7x's 64 MiB); safe fallback if the query fails."""
    try:
        cap = pltpu.get_tpu_info().vmem_capacity_bytes
        return int(min(cap * 3 // 4, 100 << 20))
    except Exception:
        return 32 << 20


def prepare_params(p):
    """One-time weight prep (kept OUT of the per-call jitted wrapper):
    fuse + pre-transpose QKV weights and pre-cast matmul weights to bf16."""
    C = N_EMBD
    wq = jnp.transpose(p["wq"], (1, 0, 2)).reshape(C, C)
    wk = jnp.transpose(p["wk"], (1, 0, 2)).reshape(C, C)
    wv = jnp.transpose(p["wv"], (1, 0, 2)).reshape(C, C)
    return {
        "g1": p["g1"], "b1": p["b1"],
        "wqkv": jnp.concatenate([wq, wk, wv], axis=-1).astype(jnp.bfloat16),
        "wproj": p["wproj"].astype(jnp.bfloat16),
        "bproj": p["bproj"],
        "g2": p["g2"], "b2": p["b2"],
        "w1": p["w1"].astype(jnp.bfloat16),
        "bf1": p["bf1"],
        "w2": p["w2"].astype(jnp.bfloat16),
        "bf2": p["bf2"],
    }


@jax.jit
def transformer_block(x, pp):
    B, T, C = x.shape
    assert C == N_EMBD

    bt = _pick_batch_tile(B, T)
    steps = pl.cdiv(B, bt)
    Bp = steps * bt
    if Bp != B:                         # robust to non-divisor B: static pad
        x = jnp.pad(x, ((0, Bp - B), (0, 0), (0, 0)))

    def full(shape):
        nd = len(shape)
        return pl.BlockSpec(shape, lambda i, _nd=nd: (0,) * _nd)

    in_specs = [
        pl.BlockSpec((bt, T, C), lambda i: (i, 0, 0)),                 # x
        full(pp["g1"].shape), full(pp["b1"].shape),                    # ln1
        full(pp["wqkv"].shape), full(pp["wproj"].shape),               # attn
        full(pp["bproj"].shape),
        full(pp["g2"].shape), full(pp["b2"].shape),                    # ln2
        full(pp["w1"].shape), full(pp["bf1"].shape),                   # ffn
        full(pp["w2"].shape), full(pp["bf2"].shape),
    ]

    out = pl.pallas_call(
        block_kernel,
        out_shape=jax.ShapeDtypeStruct((Bp, T, C), x.dtype),
        grid_spec=pltpu.PrefetchScalarGridSpec(
            num_scalar_prefetch=0,
            grid=(steps,),
            in_specs=in_specs,
            out_specs=pl.BlockSpec((bt, T, C), lambda i: (i, 0, 0)),
        ),
        compiler_params=pltpu.CompilerParams(
            dimension_semantics=("parallel",),
            vmem_limit_bytes=_vmem_limit_bytes(),
        ),
    )(x, pp["g1"], pp["b1"], pp["wqkv"], pp["wproj"], pp["bproj"],
      pp["g2"], pp["b2"], pp["w1"], pp["bf1"], pp["w2"], pp["bf2"])

    return out[:B] if Bp != B else out


def init_params(key):
    ks = jax.random.split(key, 8)
    s = 0.02
    C, H, HS = N_EMBD, N_HEAD, HEAD_SIZE
    return {
        "g1": jnp.ones((1, C), jnp.float32),
        "b1": jnp.zeros((1, C), jnp.float32),
        "wq": jax.random.normal(ks[0], (H, C, HS), jnp.float32) * s,
        "wk": jax.random.normal(ks[1], (H, C, HS), jnp.float32) * s,
        "wv": jax.random.normal(ks[2], (H, C, HS), jnp.float32) * s,
        "wproj": jax.random.normal(ks[3], (C, C), jnp.float32) * s,
        "bproj": jax.random.normal(ks[4], (1, C), jnp.float32) * s,
        "g2": jnp.ones((1, C), jnp.float32),
        "b2": jnp.zeros((1, C), jnp.float32),
        "w1": jax.random.normal(ks[5], (C, 4 * C), jnp.float32) * s,
        "bf1": jnp.zeros((1, 4 * C), jnp.float32),
        "w2": jax.random.normal(ks[6], (4 * C, C), jnp.float32) * s,
        "bf2": jnp.zeros((1, C), jnp.float32),
    }


def reference_block(x, p):
    """Pure-JAX f32 reference mirroring the PyTorch forward (dropout = identity)."""
    def ln(z, g, b):
        mu = jnp.mean(z, -1, keepdims=True)
        var = jnp.mean((z - mu) ** 2, -1, keepdims=True)
        return (z - mu) / jnp.sqrt(var + LN_EPS) * g + b

    B, T, C = x.shape
    h1 = ln(x, p["g1"], p["b1"])
    scale = C ** -0.5
    tril = jnp.tril(jnp.ones((T, T), bool))
    outs = []
    for h in range(N_HEAD):
        q = h1 @ p["wq"][h]
        k = h1 @ p["wk"][h]
        v = h1 @ p["wv"][h]
        wei = (q @ jnp.swapaxes(k, -1, -2)) * scale
        wei = jnp.where(tril, wei, -jnp.inf)
        wei = jax.nn.softmax(wei, axis=-1)
        outs.append(wei @ v)
    cat = jnp.concatenate(outs, axis=-1)
    x2 = x + cat @ p["wproj"] + p["bproj"]
    h2 = ln(x2, p["g2"], p["b2"])
    ff = jax.nn.relu(h2 @ p["w1"] + p["bf1"]) @ p["w2"] + p["bf2"]
    return x2 + ff


if __name__ == "__main__":
    key = jax.random.PRNGKey(0)
    kx, kp = jax.random.split(key)

    B, T = 2, 8                      # small sequence; C fixed by module (n_embd=384)
    x = jax.random.normal(kx, (B, T, N_EMBD), jnp.float32)
    params = init_params(kp)
    prepped = prepare_params(params)   # one-time weight fuse/cast (not per call)

    out = transformer_block(x, prepped)
    out = jax.block_until_ready(out)

    ref = reference_block(x, params)
    assert out.shape == (B, T, N_EMBD)
    # bf16 matmul operands vs f32 reference -> loosened tolerance.
    assert jnp.allclose(out, ref, atol=3e-2, rtol=3e-2), "mismatch vs JAX reference"

    print("KERNEL_OK")
</pallas_src>

<mosaic_0001>
module attributes {stable_mosaic.version = 11 : i64} {
  func.func @block_kernel(%arg0: i32, %arg1: memref<1x8x384xf32, #tpu.memory_space<vmem>>, %arg2: memref<1x384xf32, #tpu.memory_space<vmem>>, %arg3: memref<1x384xf32, #tpu.memory_space<vmem>>, %arg4: memref<384x1152xbf16, #tpu.memory_space<vmem>>, %arg5: memref<384x384xbf16, #tpu.memory_space<vmem>>, %arg6: memref<1x384xf32, #tpu.memory_space<vmem>>, %arg7: memref<1x384xf32, #tpu.memory_space<vmem>>, %arg8: memref<1x384xf32, #tpu.memory_space<vmem>>, %arg9: memref<384x1536xbf16, #tpu.memory_space<vmem>>, %arg10: memref<1x1536xf32, #tpu.memory_space<vmem>>, %arg11: memref<1536x384xbf16, #tpu.memory_space<vmem>>, %arg12: memref<1x384xf32, #tpu.memory_space<vmem>>, %arg13: memref<1x8x384xf32, #tpu.memory_space<vmem>>) attributes {dimension_semantics = [#tpu.dimension_semantics<parallel>], iteration_bounds = array<i64: 2>, scalar_prefetch = 0 : i64, scratch_operands = 0 : i64, tpu.core_type = #tpu.core_type<tc>, window_params = [{transform_indices = @transform_0, window_bounds = array<i64: 1, 8, 384>}, {pipeline_mode = #tpu.pipeline_mode<synchronous>, transform_indices = @transform_1, window_bounds = array<i64: 1, 384>}, {pipeline_mode = #tpu.pipeline_mode<synchronous>, transform_indices = @transform_2, window_bounds = array<i64: 1, 384>}, {pipeline_mode = #tpu.pipeline_mode<synchronous>, transform_indices = @transform_3, window_bounds = array<i64: 384, 1152>}, {pipeline_mode = #tpu.pipeline_mode<synchronous>, transform_indices = @transform_4, window_bounds = array<i64: 384, 384>}, {pipeline_mode = #tpu.pipeline_mode<synchronous>, transform_indices = @transform_5, window_bounds = array<i64: 1, 384>}, {pipeline_mode = #tpu.pipeline_mode<synchronous>, transform_indices = @transform_6, window_bounds = array<i64: 1, 384>}, {pipeline_mode = #tpu.pipeline_mode<synchronous>, transform_indices = @transform_7, window_bounds = array<i64: 1, 384>}, {pipeline_mode = #tpu.pipeline_mode<synchronous>, transform_indices = @transform_8, window_bounds = array<i64: 384, 1536>}, {pipeline_mode = #tpu.pipeline_mode<synchronous>, transform_indices = @transform_9, window_bounds = array<i64: 1, 1536>}, {pipeline_mode = #tpu.pipeline_mode<synchronous>, transform_indices = @transform_10, window_bounds = array<i64: 1536, 384>}, {pipeline_mode = #tpu.pipeline_mode<synchronous>, transform_indices = @transform_11, window_bounds = array<i64: 1, 384>}, {transform_indices = @transform_12, window_bounds = array<i64: 1, 8, 384>}]} {
    %c0 = arith.constant 0 : index
    %c0_0 = arith.constant 0 : index
    %c0_1 = arith.constant 0 : index
    %0 = vector.load %arg1[%c0, %c0_0, %c0_1] : memref<1x8x384xf32, #tpu.memory_space<vmem>>, vector<1x8x384xf32>
    %1 = vector.shape_cast %0 : vector<1x8x384xf32> to vector<8x384xf32>
    %c0_2 = arith.constant 0 : index
    %c0_3 = arith.constant 0 : index
    %2 = vector.load %arg2[%c0_2, %c0_3] : memref<1x384xf32, #tpu.memory_space<vmem>>, vector<1x384xf32>
    %c0_4 = arith.constant 0 : index
    %c0_5 = arith.constant 0 : index
    %3 = vector.load %arg3[%c0_4, %c0_5] : memref<1x384xf32, #tpu.memory_space<vmem>>, vector<1x384xf32>
    %cst = arith.constant dense<0.000000e+00> : vector<8xf32>
    %4 = vector.multi_reduction <add>, %1, %cst [1] : vector<8x384xf32> to vector<8xf32>
    %5 = vector.shape_cast %4 : vector<8xf32> to vector<8x1xf32>
    %cst_6 = arith.constant 3.840000e+02 : f32
    %6 = vector.broadcast %cst_6 : f32 to vector<8x1xf32>
    %7 = arith.divf %5, %6 : vector<8x1xf32>
    %8 = vector.broadcast %7 : vector<8x1xf32> to vector<8x384xf32>
    %9 = arith.subf %1, %8 : vector<8x384xf32>
    %10 = arith.mulf %9, %9 : vector<8x384xf32>
    %cst_7 = arith.constant dense<0.000000e+00> : vector<8xf32>
    %11 = vector.multi_reduction <add>, %10, %cst_7 [1] : vector<8x384xf32> to vector<8xf32>
    %12 = vector.shape_cast %11 : vector<8xf32> to vector<8x1xf32>
    %cst_8 = arith.constant 3.840000e+02 : f32
    %13 = vector.broadcast %cst_8 : f32 to vector<8x1xf32>
    %14 = arith.divf %12, %13 : vector<8x1xf32>
    %15 = vector.broadcast %7 : vector<8x1xf32> to vector<8x384xf32>
    %16 = arith.subf %1, %15 : vector<8x384xf32>
    %cst_9 = arith.constant 9.99999974E-6 : f32
    %17 = vector.broadcast %cst_9 : f32 to vector<8x1xf32>
    %18 = arith.addf %14, %17 : vector<8x1xf32>
    %19 = math.rsqrt %18 : vector<8x1xf32>
    %20 = vector.broadcast %19 : vector<8x1xf32> to vector<8x384xf32>
    %21 = arith.mulf %16, %20 : vector<8x384xf32>
    %22 = vector.broadcast %2 : vector<1x384xf32> to vector<8x384xf32>
    %23 = arith.mulf %21, %22 : vector<8x384xf32>
    %24 = vector.broadcast %3 : vector<1x384xf32> to vector<8x384xf32>
    %25 = arith.addf %23, %24 : vector<8x384xf32>
    %26 = arith.truncf %25 : vector<8x384xf32> to vector<8x384xbf16>
    %c0_10 = arith.constant 0 : index
    %c0_11 = arith.constant 0 : index
    %27 = vector.load %arg4[%c0_10, %c0_11] : memref<384x1152xbf16, #tpu.memory_space<vmem>>, vector<384x1152xbf16>
    %cst_12 = arith.constant dense<0.000000e+00> : vector<8x1152xf32>
    %28 = tpu.matmul %26, %27, %cst_12 {dimension_numbers = #tpu.dot_dimension_numbers<[1], [0], [0], [1], [0, 0, 1, 1], [], []>} : vector<8x384xbf16>, vector<384x1152xbf16>, vector<8x1152xf32> -> vector<8x1152xf32>
    %29 = vector.extract_strided_slice %28 {offsets = [0, 0], sizes = [8, 384], strides = [1, 1]} : vector<8x1152xf32> to vector<8x384xf32>
    %30 = vector.shape_cast %29 : vector<8x384xf32> to vector<1x8x384xf32>
    %31 = vector.extract_strided_slice %28 {offsets = [0, 384], sizes = [8, 384], strides = [1, 1]} : vector<8x1152xf32> to vector<8x384xf32>
    %32 = vector.shape_cast %31 : vector<8x384xf32> to vector<1x8x384xf32>
    %33 = vector.extract_strided_slice %28 {offsets = [0, 768], sizes = [8, 384], strides = [1, 1]} : vector<8x1152xf32> to vector<8x384xf32>
    %34 = vector.shape_cast %33 : vector<8x384xf32> to vector<1x8x384xf32>
    %35 = tpu.iota {dimensions = array<i32: 0>} : vector<8x8xi32>
    %36 = tpu.iota {dimensions = array<i32: 1>} : vector<8x8xi32>
    %37 = arith.cmpi sge, %35, %36 : vector<8x8xi32>
    %38 = vector.shape_cast %37 : vector<8x8xi1> to vector<1x8x8xi1>
    %cst_13 = arith.constant 0.000000e+00 : f32
    %39 = vector.broadcast %cst_13 : f32 to vector<8x384xf32>
    %40 = vector.extract_strided_slice %30 {offsets = [0, 0, 0], sizes = [1, 8, 64], strides = [1, 1, 1]} : vector<1x8x384xf32> to vector<1x8x64xf32>
    %41 = arith.truncf %40 : vector<1x8x64xf32> to vector<1x8x64xbf16>
    %42 = vector.extract_strided_slice %32 {offsets = [0, 0, 0], sizes = [1, 8, 64], strides = [1, 1, 1]} : vector<1x8x384xf32> to vector<1x8x64xf32>
    %43 = arith.truncf %42 : vector<1x8x64xf32> to vector<1x8x64xbf16>
    %44 = vector.extract_strided_slice %34 {offsets = [0, 0, 0], sizes = [1, 8, 64], strides = [1, 1, 1]} : vector<1x8x384xf32> to vector<1x8x64xf32>
    %45 = arith.truncf %44 : vector<1x8x64xf32> to vector<1x8x64xbf16>
    "tpu.trace_start"() <{level = 10 : i32, message = "bqd,bkd->bqk"}> : () -> ()
    %cst_14 = arith.constant dense<0.000000e+00> : vector<1x8x8xf32>
    %46 = tpu.matmul %41, %43, %cst_14 {dimension_numbers = #tpu.dot_dimension_numbers<[2], [2], [1], [1], [0, 0, 0, 1, 1, 1], [0], [0]>} : vector<1x8x64xbf16>, vector<1x8x64xbf16>, vector<1x8x8xf32> -> vector<1x8x8xf32>
    "tpu.trace_stop"() : () -> ()
    %cst_15 = arith.constant 0.0510310382 : f32
    %47 = vector.broadcast %cst_15 : f32 to vector<1x8x8xf32>
    %48 = arith.mulf %46, %47 : vector<1x8x8xf32>
    %cst_16 = arith.constant -1.000000e+30 : f32
    %49 = vector.broadcast %cst_16 : f32 to vector<1x8x8xf32>
    %50 = arith.select %38, %48, %49 : vector<1x8x8xi1>, vector<1x8x8xf32>
    %cst_17 = arith.constant dense<0xFF800000> : vector<1x8xf32>
    %51 = vector.multi_reduction <maximumf>, %50, %cst_17 [2] : vector<1x8x8xf32> to vector<1x8xf32>
    %52 = vector.shape_cast %51 : vector<1x8xf32> to vector<1x8x1xf32>
    %53 = vector.broadcast %52 : vector<1x8x1xf32> to vector<1x8x8xf32>
    %54 = arith.subf %50, %53 : vector<1x8x8xf32>
    %55 = math.exp %54 : vector<1x8x8xf32>
    %cst_18 = arith.constant dense<0.000000e+00> : vector<1x8xf32>
    %56 = vector.multi_reduction <add>, %55, %cst_18 [2] : vector<1x8x8xf32> to vector<1x8xf32>
    %57 = vector.shape_cast %56 : vector<1x8xf32> to vector<1x8x1xf32>
    %58 = tpu.reciprocal %57 {approx = true} : vector<1x8x1xf32> -> vector<1x8x1xf32>
    %59 = vector.broadcast %58 : vector<1x8x1xf32> to vector<1x8x8xf32>
    %60 = arith.mulf %55, %59 : vector<1x8x8xf32>
    %61 = arith.truncf %60 : vector<1x8x8xf32> to vector<1x8x8xbf16>
    "tpu.trace_start"() <{level = 10 : i32, message = "bqk,bkd->bqd"}> : () -> ()
    %cst_19 = arith.constant dense<0.000000e+00> : vector<1x8x64xf32>
    %62 = tpu.matmul %61, %45, %cst_19 {dimension_numbers = #tpu.dot_dimension_numbers<[2], [1], [1], [2], [0, 0, 0, 1, 1, 2], [0], [0]>} : vector<1x8x8xbf16>, vector<1x8x64xbf16>, vector<1x8x64xf32> -> vector<1x8x64xf32>
    "tpu.trace_stop"() : () -> ()
    %63 = vector.shape_cast %62 : vector<1x8x64xf32> to vector<8x64xf32>
    %64 = arith.truncf %63 : vector<8x64xf32> to vector<8x64xbf16>
    %c0_20 = arith.constant 0 : index
    %c0_21 = arith.constant 0 : index
    %65 = vector.load %arg5[%c0_20, %c0_21] : memref<384x384xbf16, #tpu.memory_space<vmem>>, vector<64x384xbf16>
    %cst_22 = arith.constant dense<0.000000e+00> : vector<8x384xf32>
    %66 = tpu.matmul %64, %65, %cst_22 {dimension_numbers = #tpu.dot_dimension_numbers<[1], [0], [0], [1], [0, 0, 1, 1], [], []>} : vector<8x64xbf16>, vector<64x384xbf16>, vector<8x384xf32> -> vector<8x384xf32>
    %67 = arith.addf %39, %66 : vector<8x384xf32>
    %68 = vector.extract_strided_slice %30 {offsets = [0, 0, 64], sizes = [1, 8, 64], strides = [1, 1, 1]} : vector<1x8x384xf32> to vector<1x8x64xf32>
    %69 = arith.truncf %68 : vector<1x8x64xf32> to vector<1x8x64xbf16>
    %70 = vector.extract_strided_slice %32 {offsets = [0, 0, 64], sizes = [1, 8, 64], strides = [1, 1, 1]} : vector<1x8x384xf32> to vector<1x8x64xf32>
    %71 = arith.truncf %70 : vector<1x8x64xf32> to vector<1x8x64xbf16>
    %72 = vector.extract_strided_slice %34 {offsets = [0, 0, 64], sizes = [1, 8, 64], strides = [1, 1, 1]} : vector<1x8x384xf32> to vector<1x8x64xf32>
    %73 = arith.truncf %72 : vector<1x8x64xf32> to vector<1x8x64xbf16>
    "tpu.trace_start"() <{level = 10 : i32, message = "bqd,bkd->bqk"}> : () -> ()
    %cst_23 = arith.constant dense<0.000000e+00> : vector<1x8x8xf32>
    %74 = tpu.matmul %69, %71, %cst_23 {dimension_numbers = #tpu.dot_dimension_numbers<[2], [2], [1], [1], [0, 0, 0, 1, 1, 1], [0], [0]>} : vector<1x8x64xbf16>, vector<1x8x64xbf16>, vector<1x8x8xf32> -> vector<1x8x8xf32>
    "tpu.trace_stop"() : () -> ()
    %cst_24 = arith.constant 0.0510310382 : f32
    %75 = vector.broadcast %cst_24 : f32 to vector<1x8x8xf32>
    %76 = arith.mulf %74, %75 : vector<1x8x8xf32>
    %cst_25 = arith.constant -1.000000e+30 : f32
    %77 = vector.broadcast %cst_25 : f32 to vector<1x8x8xf32>
    %78 = arith.select %38, %76, %77 : vector<1x8x8xi1>, vector<1x8x8xf32>
    %cst_26 = arith.constant dense<0xFF800000> : vector<1x8xf32>
    %79 = vector.multi_reduction <maximumf>, %78, %cst_26 [2] : vector<1x8x8xf32> to vector<1x8xf32>
    %80 = vector.shape_cast %79 : vector<1x8xf32> to vector<1x8x1xf32>
    %81 = vector.broadcast %80 : vector<1x8x1xf32> to vector<1x8x8xf32>
    %82 = arith.subf %78, %81 : vector<1x8x8xf32>
    %83 = math.exp %82 : vector<1x8x8xf32>
    %cst_27 = arith.constant dense<0.000000e+00> : vector<1x8xf32>
    %84 = vector.multi_reduction <add>, %83, %cst_27 [2] : vector<1x8x8xf32> to vector<1x8xf32>
    %85 = vector.shape_cast %84 : vector<1x8xf32> to vector<1x8x1xf32>
    %86 = tpu.reciprocal %85 {approx = true} : vector<1x8x1xf32> -> vector<1x8x1xf32>
    %87 = vector.broadcast %86 : vector<1x8x1xf32> to vector<1x8x8xf32>
    %88 = arith.mulf %83, %87 : vector<1x8x8xf32>
    %89 = arith.truncf %88 : vector<1x8x8xf32> to vector<1x8x8xbf16>
    "tpu.trace_start"() <{level = 10 : i32, message = "bqk,bkd->bqd"}> : () -> ()
    %cst_28 = arith.constant dense<0.000000e+00> : vector<1x8x64xf32>
    %90 = tpu.matmul %89, %73, %cst_28 {dimension_numbers = #tpu.dot_dimension_numbers<[2], [1], [1], [2], [0, 0, 0, 1, 1, 2], [0], [0]>} : vector<1x8x8xbf16>, vector<1x8x64xbf16>, vector<1x8x64xf32> -> vector<1x8x64xf32>
    "tpu.trace_stop"() : () -> ()
    %91 = vector.shape_cast %90 : vector<1x8x64xf32> to vector<8x64xf32>
    %92 = arith.truncf %91 : vector<8x64xf32> to vector<8x64xbf16>
    %c64 = arith.constant 64 : index
    %c0_29 = arith.constant 0 : index
    %93 = vector.load %arg5[%c64, %c0_29] : memref<384x384xbf16, #tpu.memory_space<vmem>>, vector<64x384xbf16>
    %cst_30 = arith.constant dense<0.000000e+00> : vector<8x384xf32>
    %94 = tpu.matmul %92, %93, %cst_30 {dimension_numbers = #tpu.dot_dimension_numbers<[1], [0], [0], [1], [0, 0, 1, 1], [], []>} : vector<8x64xbf16>, vector<64x384xbf16>, vector<8x384xf32> -> vector<8x384xf32>
    %95 = arith.addf %67, %94 : vector<8x384xf32>
    %96 = vector.extract_strided_slice %30 {offsets = [0, 0, 128], sizes = [1, 8, 64], strides = [1, 1, 1]} : vector<1x8x384xf32> to vector<1x8x64xf32>
    %97 = arith.truncf %96 : vector<1x8x64xf32> to vector<1x8x64xbf16>
    %98 = vector.extract_strided_slice %32 {offsets = [0, 0, 128], sizes = [1, 8, 64], strides = [1, 1, 1]} : vector<1x8x384xf32> to vector<1x8x64xf32>
    %99 = arith.truncf %98 : vector<1x8x64xf32> to vector<1x8x64xbf16>
    %100 = vector.extract_strided_slice %34 {offsets = [0, 0, 128], sizes = [1, 8, 64], strides = [1, 1, 1]} : vector<1x8x384xf32> to vector<1x8x64xf32>
    %101 = arith.truncf %100 : vector<1x8x64xf32> to vector<1x8x64xbf16>
    "tpu.trace_start"() <{level = 10 : i32, message = "bqd,bkd->bqk"}> : () -> ()
    %cst_31 = arith.constant dense<0.000000e+00> : vector<1x8x8xf32>
    %102 = tpu.matmul %97, %99, %cst_31 {dimension_numbers = #tpu.dot_dimension_numbers<[2], [2], [1], [1], [0, 0, 0, 1, 1, 1], [0], [0]>} : vector<1x8x64xbf16>, vector<1x8x64xbf16>, vector<1x8x8xf32> -> vector<1x8x8xf32>
    "tpu.trace_stop"() : () -> ()
    %cst_32 = arith.constant 0.0510310382 : f32
    %103 = vector.broadcast %cst_32 : f32 to vector<1x8x8xf32>
    %104 = arith.mulf %102, %103 : vector<1x8x8xf32>
    %cst_33 = arith.constant -1.000000e+30 : f32
    %105 = vector.broadcast %cst_33 : f32 to vector<1x8x8xf32>
    %106 = arith.select %38, %104, %105 : vector<1x8x8xi1>, vector<1x8x8xf32>
    %cst_34 = arith.constant dense<0xFF800000> : vector<1x8xf32>
    %107 = vector.multi_reduction <maximumf>, %106, %cst_34 [2] : vector<1x8x8xf32> to vector<1x8xf32>
    %108 = vector.shape_cast %107 : vector<1x8xf32> to vector<1x8x1xf32>
    %109 = vector.broadcast %108 : vector<1x8x1xf32> to vector<1x8x8xf32>
    %110 = arith.subf %106, %109 : vector<1x8x8xf32>
    %111 = math.exp %110 : vector<1x8x8xf32>
    %cst_35 = arith.constant dense<0.000000e+00> : vector<1x8xf32>
    %112 = vector.multi_reduction <add>, %111, %cst_35 [2] : vector<1x8x8xf32> to vector<1x8xf32>
    %113 = vector.shape_cast %112 : vector<1x8xf32> to vector<1x8x1xf32>
    %114 = tpu.reciprocal %113 {approx = true} : vector<1x8x1xf32> -> vector<1x8x1xf32>
    %115 = vector.broadcast %114 : vector<1x8x1xf32> to vector<1x8x8xf32>
    %116 = arith.mulf %111, %115 : vector<1x8x8xf32>
    %117 = arith.truncf %116 : vector<1x8x8xf32> to vector<1x8x8xbf16>
    "tpu.trace_start"() <{level = 10 : i32, message = "bqk,bkd->bqd"}> : () -> ()
    %cst_36 = arith.constant dense<0.000000e+00> : vector<1x8x64xf32>
    %118 = tpu.matmul %117, %101, %cst_36 {dimension_numbers = #tpu.dot_dimension_numbers<[2], [1], [1], [2], [0, 0, 0, 1, 1, 2], [0], [0]>} : vector<1x8x8xbf16>, vector<1x8x64xbf16>, vector<1x8x64xf32> -> vector<1x8x64xf32>
    "tpu.trace_stop"() : () -> ()
    %119 = vector.shape_cast %118 : vector<1x8x64xf32> to vector<8x64xf32>
    %120 = arith.truncf %119 : vector<8x64xf32> to vector<8x64xbf16>
    %c128 = arith.constant 128 : index
    %c0_37 = arith.constant 0 : index
    %121 = vector.load %arg5[%c128, %c0_37] : memref<384x384xbf16, #tpu.memory_space<vmem>>, vector<64x384xbf16>
    %cst_38 = arith.constant dense<0.000000e+00> : vector<8x384xf32>
    %122 = tpu.matmul %120, %121, %cst_38 {dimension_numbers = #tpu.dot_dimension_numbers<[1], [0], [0], [1], [0, 0, 1, 1], [], []>} : vector<8x64xbf16>, vector<64x384xbf16>, vector<8x384xf32> -> vector<8x384xf32>
    %123 = arith.addf %95, %122 : vector<8x384xf32>
    %124 = vector.extract_strided_slice %30 {offsets = [0, 0, 192], sizes = [1, 8, 64], strides = [1, 1, 1]} : vector<1x8x384xf32> to vector<1x8x64xf32>
    %125 = arith.truncf %124 : vector<1x8x64xf32> to vector<1x8x64xbf16>
    %126 = vector.extract_strided_slice %32 {offsets = [0, 0, 192], sizes = [1, 8, 64], strides = [1, 1, 1]} : vector<1x8x384xf32> to vector<1x8x64xf32>
    %127 = arith.truncf %126 : vector<1x8x64xf32> to vector<1x8x64xbf16>
    %128 = vector.extract_strided_slice %34 {offsets = [0, 0, 192], sizes = [1, 8, 64], strides = [1, 1, 1]} : vector<1x8x384xf32> to vector<1x8x64xf32>
    %129 = arith.truncf %128 : vector<1x8x64xf32> to vector<1x8x64xbf16>
    "tpu.trace_start"() <{level = 10 : i32, message = "bqd,bkd->bqk"}> : () -> ()
    %cst_39 = arith.constant dense<0.000000e+00> : vector<1x8x8xf32>
    %130 = tpu.matmul %125, %127, %cst_39 {dimension_numbers = #tpu.dot_dimension_numbers<[2], [2], [1], [1], [0, 0, 0, 1, 1, 1], [0], [0]>} : vector<1x8x64xbf16>, vector<1x8x64xbf16>, vector<1x8x8xf32> -> vector<1x8x8xf32>
    "tpu.trace_stop"() : () -> ()
    %cst_40 = arith.constant 0.0510310382 : f32
    %131 = vector.broadcast %cst_40 : f32 to vector<1x8x8xf32>
    %132 = arith.mulf %130, %131 : vector<1x8x8xf32>
    %cst_41 = arith.constant -1.000000e+30 : f32
    %133 = vector.broadcast %cst_41 : f32 to vector<1x8x8xf32>
    %134 = arith.select %38, %132, %133 : vector<1x8x8xi1>, vector<1x8x8xf32>
    %cst_42 = arith.constant dense<0xFF800000> : vector<1x8xf32>
    %135 = vector.multi_reduction <maximumf>, %134, %cst_42 [2] : vector<1x8x8xf32> to vector<1x8xf32>
    %136 = vector.shape_cast %135 : vector<1x8xf32> to vector<1x8x1xf32>
    %137 = vector.broadcast %136 : vector<1x8x1xf32> to vector<1x8x8xf32>
    %138 = arith.subf %134, %137 : vector<1x8x8xf32>
    %139 = math.exp %138 : vector<1x8x8xf32>
    %cst_43 = arith.constant dense<0.000000e+00> : vector<1x8xf32>
    %140 = vector.multi_reduction <add>, %139, %cst_43 [2] : vector<1x8x8xf32> to vector<1x8xf32>
    %141 = vector.shape_cast %140 : vector<1x8xf32> to vector<1x8x1xf32>
    %142 = tpu.reciprocal %141 {approx = true} : vector<1x8x1xf32> -> vector<1x8x1xf32>
    %143 = vector.broadcast %142 : vector<1x8x1xf32> to vector<1x8x8xf32>
    %144 = arith.mulf %139, %143 : vector<1x8x8xf32>
    %145 = arith.truncf %144 : vector<1x8x8xf32> to vector<1x8x8xbf16>
    "tpu.trace_start"() <{level = 10 : i32, message = "bqk,bkd->bqd"}> : () -> ()
    %cst_44 = arith.constant dense<0.000000e+00> : vector<1x8x64xf32>
    %146 = tpu.matmul %145, %129, %cst_44 {dimension_numbers = #tpu.dot_dimension_numbers<[2], [1], [1], [2], [0, 0, 0, 1, 1, 2], [0], [0]>} : vector<1x8x8xbf16>, vector<1x8x64xbf16>, vector<1x8x64xf32> -> vector<1x8x64xf32>
    "tpu.trace_stop"() : () -> ()
    %147 = vector.shape_cast %146 : vector<1x8x64xf32> to vector<8x64xf32>
    %148 = arith.truncf %147 : vector<8x64xf32> to vector<8x64xbf16>
    %c192 = arith.constant 192 : index
    %c0_45 = arith.constant 0 : index
    %149 = vector.load %arg5[%c192, %c0_45] : memref<384x384xbf16, #tpu.memory_space<vmem>>, vector<64x384xbf16>
    %cst_46 = arith.constant dense<0.000000e+00> : vector<8x384xf32>
    %150 = tpu.matmul %148, %149, %cst_46 {dimension_numbers = #tpu.dot_dimension_numbers<[1], [0], [0], [1], [0, 0, 1, 1], [], []>} : vector<8x64xbf16>, vector<64x384xbf16>, vector<8x384xf32> -> vector<8x384xf32>
    %151 = arith.addf %123, %150 : vector<8x384xf32>
    %152 = vector.extract_strided_slice %30 {offsets = [0, 0, 256], sizes = [1, 8, 64], strides = [1, 1, 1]} : vector<1x8x384xf32> to vector<1x8x64xf32>
    %153 = arith.truncf %152 : vector<1x8x64xf32> to vector<1x8x64xbf16>
    %154 = vector.extract_strided_slice %32 {offsets = [0, 0, 256], sizes = [1, 8, 64], strides = [1, 1, 1]} : vector<1x8x384xf32> to vector<1x8x64xf32>
    %155 = arith.truncf %154 : vector<1x8x64xf32> to vector<1x8x64xbf16>
    %156 = vector.extract_strided_slice %34 {offsets = [0, 0, 256], sizes = [1, 8, 64], strides = [1, 1, 1]} : vector<1x8x384xf32> to vector<1x8x64xf32>
    %157 = arith.truncf %156 : vector<1x8x64xf32> to vector<1x8x64xbf16>
    "tpu.trace_start"() <{level = 10 : i32, message = "bqd,bkd->bqk"}> : () -> ()
    %cst_47 = arith.constant dense<0.000000e+00> : vector<1x8x8xf32>
    %158 = tpu.matmul %153, %155, %cst_47 {dimension_numbers = #tpu.dot_dimension_numbers<[2], [2], [1], [1], [0, 0, 0, 1, 1, 1], [0], [0]>} : vector<1x8x64xbf16>, vector<1x8x64xbf16>, vector<1x8x8xf32> -> vector<1x8x8xf32>
    "tpu.trace_stop"() : () -> ()
    %cst_48 = arith.constant 0.0510310382 : f32
    %159 = vector.broadcast %cst_48 : f32 to vector<1x8x8xf32>
    %160 = arith.mulf %158, %159 : vector<1x8x8xf32>
    %cst_49 = arith.constant -1.000000e+30 : f32
    %161 = vector.broadcast %cst_49 : f32 to vector<1x8x8xf32>
    %162 = arith.select %38, %160, %161 : vector<1x8x8xi1>, vector<1x8x8xf32>
    %cst_50 = arith.constant dense<0xFF800000> : vector<1x8xf32>
    %163 = vector.multi_reduction <maximumf>, %162, %cst_50 [2] : vector<1x8x8xf32> to vector<1x8xf32>
    %164 = vector.shape_cast %163 : vector<1x8xf32> to vector<1x8x1xf32>
    %165 = vector.broadcast %164 : vector<1x8x1xf32> to vector<1x8x8xf32>
    %166 = arith.subf %162, %165 : vector<1x8x8xf32>
    %167 = math.exp %166 : vector<1x8x8xf32>
    %cst_51 = arith.constant dense<0.000000e+00> : vector<1x8xf32>
    %168 = vector.multi_reduction <add>, %167, %cst_51 [2] : vector<1x8x8xf32> to vector<1x8xf32>
    %169 = vector.shape_cast %168 : vector<1x8xf32> to vector<1x8x1xf32>
    %170 = tpu.reciprocal %169 {approx = true} : vector<1x8x1xf32> -> vector<1x8x1xf32>
    %171 = vector.broadcast %170 : vector<1x8x1xf32> to vector<1x8x8xf32>
    %172 = arith.mulf %167, %171 : vector<1x8x8xf32>
    %173 = arith.truncf %172 : vector<1x8x8xf32> to vector<1x8x8xbf16>
    "tpu.trace_start"() <{level = 10 : i32, message = "bqk,bkd->bqd"}> : () -> ()
    %cst_52 = arith.constant dense<0.000000e+00> : vector<1x8x64xf32>
    %174 = tpu.matmul %173, %157, %cst_52 {dimension_numbers = #tpu.dot_dimension_numbers<[2], [1], [1], [2], [0, 0, 0, 1, 1, 2], [0], [0]>} : vector<1x8x8xbf16>, vector<1x8x64xbf16>, vector<1x8x64xf32> -> vector<1x8x64xf32>
    "tpu.trace_stop"() : () -> ()
    %175 = vector.shape_cast %174 : vector<1x8x64xf32> to vector<8x64xf32>
    %176 = arith.truncf %175 : vector<8x64xf32> to vector<8x64xbf16>
    %c256 = arith.constant 256 : index
    %c0_53 = arith.constant 0 : index
    %177 = vector.load %arg5[%c256, %c0_53] : memref<384x384xbf16, #tpu.memory_space<vmem>>, vector<64x384xbf16>
    %cst_54 = arith.constant dense<0.000000e+00> : vector<8x384xf32>
    %178 = tpu.matmul %176, %177, %cst_54 {dimension_numbers = #tpu.dot_dimension_numbers<[1], [0], [0], [1], [0, 0, 1, 1], [], []>} : vector<8x64xbf16>, vector<64x384xbf16>, vector<8x384xf32> -> vector<8x384xf32>
    %179 = arith.addf %151, %178 : vector<8x384xf32>
    %180 = vector.extract_strided_slice %30 {offsets = [0, 0, 320], sizes = [1, 8, 64], strides = [1, 1, 1]} : vector<1x8x384xf32> to vector<1x8x64xf32>
    %181 = arith.truncf %180 : vector<1x8x64xf32> to vector<1x8x64xbf16>
    %182 = vector.extract_strided_slice %32 {offsets = [0, 0, 320], sizes = [1, 8, 64], strides = [1, 1, 1]} : vector<1x8x384xf32> to vector<1x8x64xf32>
    %183 = arith.truncf %182 : vector<1x8x64xf32> to vector<1x8x64xbf16>
    %184 = vector.extract_strided_slice %34 {offsets = [0, 0, 320], sizes = [1, 8, 64], strides = [1, 1, 1]} : vector<1x8x384xf32> to vector<1x8x64xf32>
    %185 = arith.truncf %184 : vector<1x8x64xf32> to vector<1x8x64xbf16>
    "tpu.trace_start"() <{level = 10 : i32, message = "bqd,bkd->bqk"}> : () -> ()
    %cst_55 = arith.constant dense<0.000000e+00> : vector<1x8x8xf32>
    %186 = tpu.matmul %181, %183, %cst_55 {dimension_numbers = #tpu.dot_dimension_numbers<[2], [2], [1], [1], [0, 0, 0, 1, 1, 1], [0], [0]>} : vector<1x8x64xbf16>, vector<1x8x64xbf16>, vector<1x8x8xf32> -> vector<1x8x8xf32>
    "tpu.trace_stop"() : () -> ()
    %cst_56 = arith.constant 0.0510310382 : f32
    %187 = vector.broadcast %cst_56 : f32 to vector<1x8x8xf32>
    %188 = arith.mulf %186, %187 : vector<1x8x8xf32>
    %cst_57 = arith.constant -1.000000e+30 : f32
    %189 = vector.broadcast %cst_57 : f32 to vector<1x8x8xf32>
    %190 = arith.select %38, %188, %189 : vector<1x8x8xi1>, vector<1x8x8xf32>
    %cst_58 = arith.constant dense<0xFF800000> : vector<1x8xf32>
    %191 = vector.multi_reduction <maximumf>, %190, %cst_58 [2] : vector<1x8x8xf32> to vector<1x8xf32>
    %192 = vector.shape_cast %191 : vector<1x8xf32> to vector<1x8x1xf32>
    %193 = vector.broadcast %192 : vector<1x8x1xf32> to vector<1x8x8xf32>
    %194 = arith.subf %190, %193 : vector<1x8x8xf32>
    %195 = math.exp %194 : vector<1x8x8xf32>
    %cst_59 = arith.constant dense<0.000000e+00> : vector<1x8xf32>
    %196 = vector.multi_reduction <add>, %195, %cst_59 [2] : vector<1x8x8xf32> to vector<1x8xf32>
    %197 = vector.shape_cast %196 : vector<1x8xf32> to vector<1x8x1xf32>
    %198 = tpu.reciprocal %197 {approx = true} : vector<1x8x1xf32> -> vector<1x8x1xf32>
    %199 = vector.broadcast %198 : vector<1x8x1xf32> to vector<1x8x8xf32>
    %200 = arith.mulf %195, %199 : vector<1x8x8xf32>
    %201 = arith.truncf %200 : vector<1x8x8xf32> to vector<1x8x8xbf16>
    "tpu.trace_start"() <{level = 10 : i32, message = "bqk,bkd->bqd"}> : () -> ()
    %cst_60 = arith.constant dense<0.000000e+00> : vector<1x8x64xf32>
    %202 = tpu.matmul %201, %185, %cst_60 {dimension_numbers = #tpu.dot_dimension_numbers<[2], [1], [1], [2], [0, 0, 0, 1, 1, 2], [0], [0]>} : vector<1x8x8xbf16>, vector<1x8x64xbf16>, vector<1x8x64xf32> -> vector<1x8x64xf32>
    "tpu.trace_stop"() : () -> ()
    %203 = vector.shape_cast %202 : vector<1x8x64xf32> to vector<8x64xf32>
    %204 = arith.truncf %203 : vector<8x64xf32> to vector<8x64xbf16>
    %c320 = arith.constant 320 : index
    %c0_61 = arith.constant 0 : index
    %205 = vector.load %arg5[%c320, %c0_61] : memref<384x384xbf16, #tpu.memory_space<vmem>>, vector<64x384xbf16>
    %cst_62 = arith.constant dense<0.000000e+00> : vector<8x384xf32>
    %206 = tpu.matmul %204, %205, %cst_62 {dimension_numbers = #tpu.dot_dimension_numbers<[1], [0], [0], [1], [0, 0, 1, 1], [], []>} : vector<8x64xbf16>, vector<64x384xbf16>, vector<8x384xf32> -> vector<8x384xf32>
    %207 = arith.addf %179, %206 : vector<8x384xf32>
    %208 = arith.addf %1, %207 : vector<8x384xf32>
    %c0_63 = arith.constant 0 : index
    %c0_64 = arith.constant 0 : index
    %209 = vector.load %arg6[%c0_63, %c0_64] : memref<1x384xf32, #tpu.memory_space<vmem>>, vector<1x384xf32>
    %210 = vector.broadcast %209 : vector<1x384xf32> to vector<8x384xf32>
    %211 = arith.addf %208, %210 : vector<8x384xf32>
    %c0_65 = arith.constant 0 : index
    %c0_66 = arith.constant 0 : index
    %212 = vector.load %arg7[%c0_65, %c0_66] : memref<1x384xf32, #tpu.memory_space<vmem>>, vector<1x384xf32>
    %c0_67 = arith.constant 0 : index
    %c0_68 = arith.constant 0 : index
    %213 = vector.load %arg8[%c0_67, %c0_68] : memref<1x384xf32, #tpu.memory_space<vmem>>, vector<1x384xf32>
    %cst_69 = arith.constant dense<0.000000e+00> : vector<8xf32>
    %214 = vector.multi_reduction <add>, %211, %cst_69 [1] : vector<8x384xf32> to vector<8xf32>
    %215 = vector.shape_cast %214 : vector<8xf32> to vector<8x1xf32>
    %cst_70 = arith.constant 3.840000e+02 : f32
    %216 = vector.broadcast %cst_70 : f32 to vector<8x1xf32>
    %217 = arith.divf %215, %216 : vector<8x1xf32>
    %218 = vector.broadcast %217 : vector<8x1xf32> to vector<8x384xf32>
    %219 = arith.subf %211, %218 : vector<8x384xf32>
    %220 = arith.mulf %219, %219 : vector<8x384xf32>
    %cst_71 = arith.constant dense<0.000000e+00> : vector<8xf32>
    %221 = vector.multi_reduction <add>, %220, %cst_71 [1] : vector<8x384xf32> to vector<8xf32>
    %222 = vector.shape_cast %221 : vector<8xf32> to vector<8x1xf32>
    %cst_72 = arith.constant 3.840000e+02 : f32
    %223 = vector.broadcast %cst_72 : f32 to vector<8x1xf32>
    %224 = arith.divf %222, %223 : vector<8x1xf32>
    %225 = vector.broadcast %217 : vector<8x1xf32> to vector<8x384xf32>
    %226 = arith.subf %211, %225 : vector<8x384xf32>
    %cst_73 = arith.constant 9.99999974E-6 : f32
    %227 = vector.broadcast %cst_73 : f32 to vector<8x1xf32>
    %228 = arith.addf %224, %227 : vector<8x1xf32>
    %229 = math.rsqrt %228 : vector<8x1xf32>
    %230 = vector.broadcast %229 : vector<8x1xf32> to vector<8x384xf32>
    %231 = arith.mulf %226, %230 : vector<8x384xf32>
    %232 = vector.broadcast %212 : vector<1x384xf32> to vector<8x384xf32>
    %233 = arith.mulf %231, %232 : vector<8x384xf32>
    %234 = vector.broadcast %213 : vector<1x384xf32> to vector<8x384xf32>
    %235 = arith.addf %233, %234 : vector<8x384xf32>
    %236 = arith.truncf %235 : vector<8x384xf32> to vector<8x384xbf16>
    %c0_74 = arith.constant 0 : index
    %c0_75 = arith.constant 0 : index
    %237 = vector.load %arg9[%c0_74, %c0_75] : memref<384x1536xbf16, #tpu.memory_space<vmem>>, vector<384x1536xbf16>
    %cst_76 = arith.constant dense<0.000000e+00> : vector<8x1536xf32>
    %238 = tpu.matmul %236, %237, %cst_76 {dimension_numbers = #tpu.dot_dimension_numbers<[1], [0], [0], [1], [0, 0, 1, 1], [], []>} : vector<8x384xbf16>, vector<384x1536xbf16>, vector<8x1536xf32> -> vector<8x1536xf32>
    %c0_77 = arith.constant 0 : index
    %c0_78 = arith.constant 0 : index
    %239 = vector.load %arg10[%c0_77, %c0_78] : memref<1x1536xf32, #tpu.memory_space<vmem>>, vector<1x1536xf32>
    %240 = vector.broadcast %239 : vector<1x1536xf32> to vector<8x1536xf32>
    %241 = arith.addf %238, %240 : vector<8x1536xf32>
    %cst_79 = arith.constant 0.000000e+00 : f32
    %242 = vector.broadcast %cst_79 : f32 to vector<8x1536xf32>
    %243 = arith.maximumf %241, %242 : vector<8x1536xf32>
    %244 = arith.truncf %243 : vector<8x1536xf32> to vector<8x1536xbf16>
    %c0_80 = arith.constant 0 : index
    %c0_81 = arith.constant 0 : index
    %245 = vector.load %arg11[%c0_80, %c0_81] : memref<1536x384xbf16, #tpu.memory_space<vmem>>, vector<1536x384xbf16>
    %cst_82 = arith.constant dense<0.000000e+00> : vector<8x384xf32>
    %246 = tpu.matmul %244, %245, %cst_82 {dimension_numbers = #tpu.dot_dimension_numbers<[1], [0], [0], [1], [0, 0, 1, 1], [], []>} : vector<8x1536xbf16>, vector<1536x384xbf16>, vector<8x384xf32> -> vector<8x384xf32>
    %c0_83 = arith.constant 0 : index
    %c0_84 = arith.constant 0 : index
    %247 = vector.load %arg12[%c0_83, %c0_84] : memref<1x384xf32, #tpu.memory_space<vmem>>, vector<1x384xf32>
    %248 = vector.broadcast %247 : vector<1x384xf32> to vector<8x384xf32>
    %249 = arith.addf %246, %248 : vector<8x384xf32>
    %250 = arith.addf %211, %249 : vector<8x384xf32>
    %251 = vector.shape_cast %250 : vector<8x384xf32> to vector<1x8x384xf32>
    %c0_85 = arith.constant 0 : index
    %c0_86 = arith.constant 0 : index
    %c0_87 = arith.constant 0 : index
    %252 = vector.load %arg13[%c0_85, %c0_86, %c0_87] : memref<1x8x384xf32, #tpu.memory_space<vmem>>, vector<1x8x384xf32>
    tpu.vector_store %arg13[%c0_85, %c0_86, %c0_87], %251 {strides = array<i32>} : memref<1x8x384xf32, #tpu.memory_space<vmem>>, vector<1x8x384xf32>,
    return
  }
  func.func @transform_0(%arg0: i32) -> (i32, i32, i32) {
    %c0_i32 = arith.constant 0 : i32
    %c0_i32_0 = arith.constant 0 : i32
    %c0_i32_1 = arith.constant 0 : i32
    return %arg0, %c0_i32, %c0_i32_0 : i32, i32, i32
  }
  func.func @transform_1(%arg0: i32) -> (i32, i32) {
    %c0_i32 = arith.constant 0 : i32
    %c0_i32_0 = arith.constant 0 : i32
    %c0_i32_1 = arith.constant 0 : i32
    return %c0_i32, %c0_i32_0 : i32, i32
  }
  func.func @transform_2(%arg0: i32) -> (i32, i32) {
    %c0_i32 = arith.constant 0 : i32
    %c0_i32_0 = arith.constant 0 : i32
    %c0_i32_1 = arith.constant 0 : i32
    return %c0_i32, %c0_i32_0 : i32, i32
  }
  func.func @transform_3(%arg0: i32) -> (i32, i32) {
    %c0_i32 = arith.constant 0 : i32
    %c0_i32_0 = arith.constant 0 : i32
    %c0_i32_1 = arith.constant 0 : i32
    return %c0_i32, %c0_i32_0 : i32, i32
  }
  func.func @transform_4(%arg0: i32) -> (i32, i32) {
    %c0_i32 = arith.constant 0 : i32
    %c0_i32_0 = arith.constant 0 : i32
    %c0_i32_1 = arith.constant 0 : i32
    return %c0_i32, %c0_i32_0 : i32, i32
  }
  func.func @transform_5(%arg0: i32) -> (i32, i32) {
    %c0_i32 = arith.constant 0 : i32
    %c0_i32_0 = arith.constant 0 : i32
    %c0_i32_1 = arith.constant 0 : i32
    return %c0_i32, %c0_i32_0 : i32, i32
  }
  func.func @transform_6(%arg0: i32) -> (i32, i32) {
    %c0_i32 = arith.constant 0 : i32
    %c0_i32_0 = arith.constant 0 : i32
    %c0_i32_1 = arith.constant 0 : i32
    return %c0_i32, %c0_i32_0 : i32, i32
  }
  func.func @transform_7(%arg0: i32) -> (i32, i32) {
    %c0_i32 = arith.constant 0 : i32
    %c0_i32_0 = arith.constant 0 : i32
    %c0_i32_1 = arith.constant 0 : i32
    return %c0_i32, %c0_i32_0 : i32, i32
  }
  func.func @transform_8(%arg0: i32) -> (i32, i32) {
    %c0_i32 = arith.constant 0 : i32
    %c0_i32_0 = arith.constant 0 : i32
    %c0_i32_1 = arith.constant 0 : i32
    return %c0_i32, %c0_i32_0 : i32, i32
  }
  func.func @transform_9(%arg0: i32) -> (i32, i32) {
    %c0_i32 = arith.constant 0 : i32
    %c0_i32_0 = arith.constant 0 : i32
    %c0_i32_1 = arith.constant 0 : i32
    return %c0_i32, %c0_i32_0 : i32, i32
  }
  func.func @transform_10(%arg0: i32) -> (i32, i32) {
    %c0_i32 = arith.constant 0 : i32
    %c0_i32_0 = arith.constant 0 : i32
    %c0_i32_1 = arith.constant 0 : i32
    return %c0_i32, %c0_i32_0 : i32, i32
  }
  func.func @transform_11(%arg0: i32) -> (i32, i32) {
    %c0_i32 = arith.constant 0 : i32
    %c0_i32_0 = arith.constant 0 : i32
    %c0_i32_1 = arith.constant 0 : i32
    return %c0_i32, %c0_i32_0 : i32, i32
  }
  func.func @transform_12(%arg0: i32) -> (i32, i32, i32) {
    %c0_i32 = arith.constant 0 : i32
    %c0_i32_0 = arith.constant 0 : i32
    %c0_i32_1 = arith.constant 0 : i32
    return %arg0, %c0_i32, %c0_i32_0 : i32, i32, i32
  }
}

</mosaic_0001>

<llo_original>
// kernel: transformer_block.1
$region0: #{transformer_block.1}
  #allocation0 [shape = 'u32[]', space=smem, size = 0x4, offset = 0x4, fixed_abs, tag = 'smem constant byte address 0x4 - core index']
  #allocation1 [shape = 'u32[144,128]{1,0:T(1,128)}', space=vmem, size = 0x12000, scoped, tag = 'internal scratch']
  %s0 = inlined_call_operand.hbm [shape: f32[2,8,384], index: 0, kind: input, shape index: {}]
  %s1 = inlined_call_operand.hbm [shape: f32[1,384], index: 1, kind: input, shape index: {}]
  %s2 = inlined_call_operand.hbm [shape: f32[1,384], index: 2, kind: input, shape index: {}]
  %s3 = inlined_call_operand.hbm [shape: bf16[384,1152], index: 3, kind: input, shape index: {}]
  %s4 = inlined_call_operand.hbm [shape: bf16[384,384], index: 4, kind: input, shape index: {}]
  %s5 = inlined_call_operand.hbm [shape: f32[1,384], index: 5, kind: input, shape index: {}]
  %s6 = inlined_call_operand.hbm [shape: f32[1,384], index: 6, kind: input, shape index: {}]
  %s7 = inlined_call_operand.hbm [shape: f32[1,384], index: 7, kind: input, shape index: {}]
  %s8 = inlined_call_operand.hbm [shape: bf16[384,1536], index: 8, kind: input, shape index: {}]
  %s9 = inlined_call_operand.hbm [shape: f32[1,1536], index: 9, kind: input, shape index: {}]
  %s10 = inlined_call_operand.hbm [shape: bf16[1536,384], index: 10, kind: input, shape index: {}]
  %s11 = inlined_call_operand.hbm [shape: f32[1,384], index: 11, kind: input, shape index: {}]
  %s12 = inlined_call_operand.hbm [shape: f32[2,8,384], index: 12, kind: output, shape index: {}]
  %s13 = sld [smem:[#allocation0]]
  $region129: #{transformer_block.1} parent=0
    _
  %s15 = ssub.s32 1, %s13
  %s16 = scalar_select 0, %s15, %s13
  $region1: #{transformer_block.1} parent=0
    #allocation2 [shape = 'u8[24576]{0}', space=vmem, size = 0x6000, scoped, tag = 'input window, operand 0']
    #allocation3 [shape = 's32[2]{0}', space=sflag, size = 0x8, scoped, tag = 'scoped memory for transformer_block.1']
    #allocation4 [shape = 's32[2]{0}', space=sflag, size = 0x8, scoped, tag = 'scoped memory for transformer_block.1']
    #allocation5 [shape = 'u8[1536]{0}', space=vmem, size = 0x800, scoped, tag = 'input window, operand 1, single buffered']
    #allocation6 [shape = 's32[1]{0}', space=sflag, size = 0x4, scoped, tag = 'scoped memory for transformer_block.1']
    #allocation7 [shape = 'u8[1536]{0}', space=vmem, size = 0x800, scoped, tag = 'input window, operand 2, single buffered']
    #allocation8 [shape = 'u8[884736]{0}', space=vmem, size = 0xd8000, scoped, tag = 'input window, operand 3, single buffered']
    #allocation9 [shape = 's32[1]{0}', space=sflag, size = 0x4, scoped, tag = 'scoped memory for transformer_block.1']
    #allocation10 [shape = 'u8[294912]{0}', space=vmem, size = 0x48000, scoped, tag = 'input window, operand 4, single buffered']
    #allocation11 [shape = 'u8[1536]{0}', space=vmem, size = 0x800, scoped, tag = 'input window, operand 5, single buffered']
    #allocation12 [shape = 's32[1]{0}', space=sflag, size = 0x4, scoped, tag = 'scoped memory for transformer_block.1']
    #allocation13 [shape = 'u8[1536]{0}', space=vmem, size = 0x800, scoped, tag = 'input window, operand 6, single buffered']
    #allocation14 [shape = 'u8[1536]{0}', space=vmem, size = 0x800, scoped, tag = 'input window, operand 7, single buffered']
    #allocation15 [shape = 's32[1]{0}', space=sflag, size = 0x4, scoped, tag = 'scoped memory for transformer_block.1']
    #allocation16 [shape = 'u8[1179648]{0}', space=vmem, size = 0x120000, scoped, tag = 'input window, operand 8, single buffered']
    #allocation17 [shape = 'u8[6144]{0}', space=vmem, size = 0x1800, scoped, tag = 'input window, operand 9, single buffered']
    #allocation18 [shape = 's32[1]{0}', space=sflag, size = 0x4, scoped, tag = 'scoped memory for transformer_block.1']
    #allocation19 [shape = 'u8[1179648]{0}', space=vmem, size = 0x120000, scoped, tag = 'input window, operand 10, single buffered']
    #allocation20 [shape = 'u8[1536]{0}', space=vmem, size = 0x800, scoped, tag = 'input window, operand 11, single buffered']
    #allocation21 [shape = 's32[1]{0}', space=sflag, size = 0x4, scoped, tag = 'scoped memory for transformer_block.1']
    #allocation22 [shape = 'u8[24576]{0}', space=vmem, size = 0x6000, scoped, tag = 'output window, operand 0']
    %17 = vsyncpa [#allocation3], 0
    %s18 = scalar_lea.sflag [#allocation3], 1
    %19 = vsyncpa %s18, 0
    %20 = vsyncpa [#allocation6], 0
    %21 = vsyncpa [#allocation9], 0
    %22 = vsyncpa [#allocation12], 0
    %23 = vsyncpa [#allocation15], 0
    %24 = vsyncpa [#allocation18], 0
    %25 = vsyncpa [#allocation21], 0
    %26 = vsyncpa [#allocation4], 0
    %s27 = scalar_lea.sflag [#allocation4], 1
    %28 = vsyncpa %s27, 0
    loop: start=0, step=1, limit=4
    $region2: #{transformer_block.1} parent=1 // loop_pre_header
      _
    $region3: #{transformer_block.1} parent=1 // loop_header
      %s30 = sphi 0, %s34
      %p31 = scmp.ge.s32.totalorder %s30, 4
      %s40 = sphi 0, %s42
      %s43 = sphi 0, %s40
      %s44 = sphi 0, %s43
      %s60 = sphi 0, %s44
      %s64 = sphi 0, %s64
      %s66 = sphi 0, %s64
      %s67 = sphi 0, %s66
      %s81 = sphi 0, %s67
      %s85 = sphi 0, %s85
      %s87 = sphi 0, %s85
      %s88 = sphi 0, %s87
      %s102 = sphi 0, %s88
      %s106 = sphi 0, %s106
      %s108 = sphi 0, %s106
      %s109 = sphi 0, %s108
      %s123 = sphi 0, %s109
      %s127 = sphi 0, %s127
      %s129 = sphi 0, %s127
      %s130 = sphi 0, %s129
      %s144 = sphi 0, %s130
      %s148 = sphi 0, %s148
      %s150 = sphi 0, %s148
      %s151 = sphi 0, %s150
      %s165 = sphi 0, %s151
      %s169 = sphi 0, %s169
      %s171 = sphi 0, %s169
      %s172 = sphi 0, %s171
      %s186 = sphi 0, %s172
      %s190 = sphi 0, %s190
      %s192 = sphi 0, %s190
      %s193 = sphi 0, %s192
      %s207 = sphi 0, %s193
      %s211 = sphi 0, %s211
      %s213 = sphi 0, %s211
      %s214 = sphi 0, %s213
      %s228 = sphi 0, %s214
      %s232 = sphi 0, %s232
      %s234 = sphi 0, %s232
      %s235 = sphi 0, %s234
      %s249 = sphi 0, %s235
      %s253 = sphi 0, %s253
      %s255 = sphi 0, %s253
      %s256 = sphi 0, %s255
      %s270 = sphi 0, %s256
      %s274 = sphi 0, %s274
      %s276 = sphi 0, %s274
      %s277 = sphi 0, %s276
      %s291 = sphi 0, %s277
      %s297 = sphi 0, %s299
      %s300 = sphi 0, %s297
      %s301 = sphi 0, %s300
      %s317 = sphi 0, %s301
    $region4: #{transformer_block.1} parent=1 // loop_header_branch
      %33 = sbr.rel (%p31) target = $region8
    $region5: #{transformer_block.1} parent=1 // loop_body
      %s35 = ssub.s32 %s30, 1
      %s36 = ssub.s32 %s30, 2
      %s37 = sadd.s32 %s30, 1
      %s38 = ssub.s32 %s30, %s37
      %p39 = scmp.eq.s32.totalorder %s38, 0
      %s41 = sadd.s32 %s40, 1
      %s42 = scalar_select %p39, %s40, %s41
      %p45 = pneg %p39
      %p46 = scmp.eq.s32.totalorder %s30, 1
      %p47 = por %p45, %p46
      %p48 = scmp.ne.s32.totalorder %s40, %s43
      %p49 = scmp.eq.s32.totalorder %s30, 0
      %p50 = por %p48, %p49
      %p51 = scmp.ne.s32.totalorder %s40, %s43
      %p52 = scmp.eq.s32.totalorder %s35, 1
      %p53 = por %p51, %p52
      %p54 = scmp.ne.s32.totalorder %s43, %s44
      %p55 = scmp.eq.s32.totalorder %s35, 0
      %p56 = por %p54, %p55
      %p57 = scmp.ne.s32.totalorder %s43, %s44
      %p58 = scmp.eq.s32.totalorder %s36, 1
      %p59 = por %p57, %p58
      %p61 = scmp.ne.s32.totalorder %s44, %s60
      %p62 = scmp.eq.s32.totalorder %s36, 0
      %p63 = por %p61, %p62
      %s65 = sadd.s32 %s64, 1
      %p68 = scmp.eq.s32.totalorder %s30, 1
      %p69 = scmp.ne.s32.totalorder %s64, %s66
      %p70 = scmp.eq.s32.totalorder %s30, 0
      %p71 = por %p69, %p70
      %p72 = scmp.ne.s32.totalorder %s64, %s66
      %p73 = scmp.eq.s32.totalorder %s35, 1
      %p74 = por %p72, %p73
      %p75 = scmp.ne.s32.totalorder %s66, %s67
      %p76 = scmp.eq.s32.totalorder %s35, 0
      %p77 = por %p75, %p76
      %p78 = scmp.ne.s32.totalorder %s66, %s67
      %p79 = scmp.eq.s32.totalorder %s36, 1
      %p80 = por %p78, %p79
      %p82 = scmp.ne.s32.totalorder %s67, %s81
      %p83 = scmp.eq.s32.totalorder %s36, 0
      %p84 = por %p82, %p83
      %s86 = sadd.s32 %s85, 1
      %p89 = scmp.eq.s32.totalorder %s30, 1
      %p90 = scmp.ne.s32.totalorder %s85, %s87
      %p91 = scmp.eq.s32.totalorder %s30, 0
      %p92 = por %p90, %p91
      %p93 = scmp.ne.s32.totalorder %s85, %s87
      %p94 = scmp.eq.s32.totalorder %s35, 1
      %p95 = por %p93, %p94
      %p96 = scmp.ne.s32.totalorder %s87, %s88
      %p97 = scmp.eq.s32.totalorder %s35, 0
      %p98 = por %p96, %p97
      %p99 = scmp.ne.s32.totalorder %s87, %s88
      %p100 = scmp.eq.s32.totalorder %s36, 1
      %p101 = por %p99, %p100
      %p103 = scmp.ne.s32.totalorder %s88, %s102
      %p104 = scmp.eq.s32.totalorder %s36, 0
      %p105 = por %p103, %p104
      %s107 = sadd.s32 %s106, 1
      %p110 = scmp.eq.s32.totalorder %s30, 1
      %p111 = scmp.ne.s32.totalorder %s106, %s108
      %p112 = scmp.eq.s32.totalorder %s30, 0
      %p113 = por %p111, %p112
      %p114 = scmp.ne.s32.totalorder %s106, %s108
      %p115 = scmp.eq.s32.totalorder %s35, 1
      %p116 = por %p114, %p115
      %p117 = scmp.ne.s32.totalorder %s108, %s109
      %p118 = scmp.eq.s32.totalorder %s35, 0
      %p119 = por %p117, %p118
      %p120 = scmp.ne.s32.totalorder %s108, %s109
      %p121 = scmp.eq.s32.totalorder %s36, 1
      %p122 = por %p120, %p121
      %p124 = scmp.ne.s32.totalorder %s109, %s123
      %p125 = scmp.eq.s32.totalorder %s36, 0
      %p126 = por %p124, %p125
      %s128 = sadd.s32 %s127, 1
      %p131 = scmp.eq.s32.totalorder %s30, 1
      %p132 = scmp.ne.s32.totalorder %s127, %s129
      %p133 = scmp.eq.s32.totalorder %s30, 0
      %p134 = por %p132, %p133
      %p135 = scmp.ne.s32.totalorder %s127, %s129
      %p136 = scmp.eq.s32.totalorder %s35, 1
      %p137 = por %p135, %p136
      %p138 = scmp.ne.s32.totalorder %s129, %s130
      %p139 = scmp.eq.s32.totalorder %s35, 0
      %p140 = por %p138, %p139
      %p141 = scmp.ne.s32.totalorder %s129, %s130
      %p142 = scmp.eq.s32.totalorder %s36, 1
      %p143 = por %p141, %p142
      %p145 = scmp.ne.s32.totalorder %s130, %s144
      %p146 = scmp.eq.s32.totalorder %s36, 0
      %p147 = por %p145, %p146
      %s149 = sadd.s32 %s148, 1
      %p152 = scmp.eq.s32.totalorder %s30, 1
      %p153 = scmp.ne.s32.totalorder %s148, %s150
      %p154 = scmp.eq.s32.totalorder %s30, 0
      %p155 = por %p153, %p154
      %p156 = scmp.ne.s32.totalorder %s148, %s150
      %p157 = scmp.eq.s32.totalorder %s35, 1
      %p158 = por %p156, %p157
      %p159 = scmp.ne.s32.totalorder %s150, %s151
      %p160 = scmp.eq.s32.totalorder %s35, 0
      %p161 = por %p159, %p160
      %p162 = scmp.ne.s32.totalorder %s150, %s151
      %p163 = scmp.eq.s32.totalorder %s36, 1
      %p164 = por %p162, %p163
      %p166 = scmp.ne.s32.totalorder %s151, %s165
      %p167 = scmp.eq.s32.totalorder %s36, 0
      %p168 = por %p166, %p167
      %s170 = sadd.s32 %s169, 1
      %p173 = scmp.eq.s32.totalorder %s30, 1
      %p174 = scmp.ne.s32.totalorder %s169, %s171
      %p175 = scmp.eq.s32.totalorder %s30, 0
      %p176 = por %p174, %p175
      %p177 = scmp.ne.s32.totalorder %s169, %s171
      %p178 = scmp.eq.s32.totalorder %s35, 1
      %p179 = por %p177, %p178
      %p180 = scmp.ne.s32.totalorder %s171, %s172
      %p181 = scmp.eq.s32.totalorder %s35, 0
      %p182 = por %p180, %p181
      %p183 = scmp.ne.s32.totalorder %s171, %s172
      %p184 = scmp.eq.s32.totalorder %s36, 1
      %p185 = por %p183, %p184
      %p187 = scmp.ne.s32.totalorder %s172, %s186
      %p188 = scmp.eq.s32.totalorder %s36, 0
      %p189 = por %p187, %p188
      %s191 = sadd.s32 %s190, 1
      %p194 = scmp.eq.s32.totalorder %s30, 1
      %p195 = scmp.ne.s32.totalorder %s190, %s192
      %p196 = scmp.eq.s32.totalorder %s30, 0
      %p197 = por %p195, %p196
      %p198 = scmp.ne.s32.totalorder %s190, %s192
      %p199 = scmp.eq.s32.totalorder %s35, 1
      %p200 = por %p198, %p199
      %p201 = scmp.ne.s32.totalorder %s192, %s193
      %p202 = scmp.eq.s32.totalorder %s35, 0
      %p203 = por %p201, %p202
      %p204 = scmp.ne.s32.totalorder %s192, %s193
      %p205 = scmp.eq.s32.totalorder %s36, 1
      %p206 = por %p204, %p205
      %p208 = scmp.ne.s32.totalorder %s193, %s207
      %p209 = scmp.eq.s32.totalorder %s36, 0
      %p210 = por %p208, %p209
      %s212 = sadd.s32 %s211, 1
      %p215 = scmp.eq.s32.totalorder %s30, 1
      %p216 = scmp.ne.s32.totalorder %s211, %s213
      %p217 = scmp.eq.s32.totalorder %s30, 0
      %p218 = por %p216, %p217
      %p219 = scmp.ne.s32.totalorder %s211, %s213
      %p220 = scmp.eq.s32.totalorder %s35, 1
      %p221 = por %p219, %p220
      %p222 = scmp.ne.s32.totalorder %s213, %s214
      %p223 = scmp.eq.s32.totalorder %s35, 0
      %p224 = por %p222, %p223
      %p225 = scmp.ne.s32.totalorder %s213, %s214
      %p226 = scmp.eq.s32.totalorder %s36, 1
      %p227 = por %p225, %p226
      %p229 = scmp.ne.s32.totalorder %s214, %s228
      %p230 = scmp.eq.s32.totalorder %s36, 0
      %p231 = por %p229, %p230
      %s233 = sadd.s32 %s232, 1
      %p236 = scmp.eq.s32.totalorder %s30, 1
      %p237 = scmp.ne.s32.totalorder %s232, %s234
      %p238 = scmp.eq.s32.totalorder %s30, 0
      %p239 = por %p237, %p238
      %p240 = scmp.ne.s32.totalorder %s232, %s234
      %p241 = scmp.eq.s32.totalorder %s35, 1
      %p242 = por %p240, %p241
      %p243 = scmp.ne.s32.totalorder %s234, %s235
      %p244 = scmp.eq.s32.totalorder %s35, 0
      %p245 = por %p243, %p244
      %p246 = scmp.ne.s32.totalorder %s234, %s235
      %p247 = scmp.eq.s32.totalorder %s36, 1
      %p248 = por %p246, %p247
      %p250 = scmp.ne.s32.totalorder %s235, %s249
      %p251 = scmp.eq.s32.totalorder %s36, 0
      %p252 = por %p250, %p251
      %s254 = sadd.s32 %s253, 1
      %p257 = scmp.eq.s32.totalorder %s30, 1
      %p258 = scmp.ne.s32.totalorder %s253, %s255
      %p259 = scmp.eq.s32.totalorder %s30, 0
      %p260 = por %p258, %p259
      %p261 = scmp.ne.s32.totalorder %s253, %s255
      %p262 = scmp.eq.s32.totalorder %s35, 1
      %p263 = por %p261, %p262
      %p264 = scmp.ne.s32.totalorder %s255, %s256
      %p265 = scmp.eq.s32.totalorder %s35, 0
      %p266 = por %p264, %p265
      %p267 = scmp.ne.s32.totalorder %s255, %s256
      %p268 = scmp.eq.s32.totalorder %s36, 1
      %p269 = por %p267, %p268
      %p271 = scmp.ne.s32.totalorder %s256, %s270
      %p272 = scmp.eq.s32.totalorder %s36, 0
      %p273 = por %p271, %p272
      %s275 = sadd.s32 %s274, 1
      %p278 = scmp.eq.s32.totalorder %s30, 1
      %p279 = scmp.ne.s32.totalorder %s274, %s276
      %p280 = scmp.eq.s32.totalorder %s30, 0
      %p281 = por %p279, %p280
      %p282 = scmp.ne.s32.totalorder %s274, %s276
      %p283 = scmp.eq.s32.totalorder %s35, 1
      %p284 = por %p282, %p283
      %p285 = scmp.ne.s32.totalorder %s276, %s277
      %p286 = scmp.eq.s32.totalorder %s35, 0
      %p287 = por %p285, %p286
      %p288 = scmp.ne.s32.totalorder %s276, %s277
      %p289 = scmp.eq.s32.totalorder %s36, 1
      %p290 = por %p288, %p289
      %p292 = scmp.ne.s32.totalorder %s277, %s291
      %p293 = scmp.eq.s32.totalorder %s36, 0
      %p294 = por %p292, %p293
      %s295 = ssub.s32 %s30, %s37
      %p296 = scmp.eq.s32.totalorder %s295, 0
      %s298 = sadd.s32 %s297, 1
      %s299 = scalar_select %p296, %s297, %s298
      %p302 = pneg %p296
      %p303 = scmp.eq.s32.totalorder %s30, 1
      %p304 = por %p302, %p303
      %p305 = scmp.ne.s32.totalorder %s297, %s300
      %p306 = scmp.eq.s32.totalorder %s30, 0
      %p307 = por %p305, %p306
      %p308 = scmp.ne.s32.totalorder %s297, %s300
      %p309 = scmp.eq.s32.totalorder %s35, 1
      %p310 = por %p308, %p309
      %p311 = scmp.ne.s32.totalorder %s300, %s301
      %p312 = scmp.eq.s32.totalorder %s35, 0
      %p313 = por %p311, %p312
      %p314 = scmp.ne.s32.totalorder %s300, %s301
      %p315 = scmp.eq.s32.totalorder %s36, 1
      %p316 = por %p314, %p315
      %p318 = scmp.ne.s32.totalorder %s301, %s317
      %p319 = scmp.eq.s32.totalorder %s36, 0
      %p320 = por %p318, %p319
      %p321 = scmp.le.s32.totalorder 1, %s30
      %p322 = scmp.lt.s32.totalorder %s30, 3
      %p323 = pnand %p321, %p322
      %p324 = pneg %p323
      // Predicated region
      $region9: #{transformer_block.1} parent=5 // pred_check
        _
      $region10: #{transformer_block.1} parent=5 // pred_check_branch
        %326 = sbr.rel (%p323) target = $region12
      $region11: #{transformer_block.1} parent=5 // pred_region
        %s327 = ssub.s32 %s30, 1
        // Predicated region
        $region13: #{transformer_block.1} parent=11 // pred_check
          %p328 = pneg %p77
        $region14: #{transformer_block.1} parent=11 // pred_check_branch
          %330 = sbr.rel (%p328) target = $region16
        $region15: #{transformer_block.1} parent=11 // pred_region
          %s332 = ssub.s32 48, 48
          %333 = vsyncadd [#allocation6], %s332
          %s335 = sshll.u32 [#allocation5], 4
          %s336 = int_to_ptr.vmem [resolvable:$true] %s335
          %338 = dma.hbm_to_vmem [thread:$0]  %s1, 48, %s336, [#allocation6]
        $region16: #{transformer_block.1} parent=11 // pred_fallthru
          _
        // Predicated region
        $region17: #{transformer_block.1} parent=11 // pred_check
          %p339 = pneg %p98
        $region18: #{transformer_block.1} parent=11 // pred_check_branch
          %341 = sbr.rel (%p339) target = $region20
        $region19: #{transformer_block.1} parent=11 // pred_region
          %s343 = ssub.s32 48, 48
          %344 = vsyncadd [#allocation6], %s343
          %s346 = sshll.u32 [#allocation7], 4
          %s347 = int_to_ptr.vmem [resolvable:$true] %s346
          %349 = dma.hbm_to_vmem [thread:$0]  %s2, 48, %s347, [#allocation6]
        $region20: #{transformer_block.1} parent=11 // pred_fallthru
          _
        // Predicated region
        $region21: #{transformer_block.1} parent=11 // pred_check
          %p350 = pneg %p119
        $region22: #{transformer_block.1} parent=11 // pred_check_branch
          %352 = sbr.rel (%p350) target = $region24
        $region23: #{transformer_block.1} parent=11 // pred_region
          %s354 = ssub.s32 27648, 27648
          %355 = vsyncadd [#allocation9], %s354
          %s356 = sshll.u32 [#allocation8], 4
          %s357 = int_to_ptr.vmem [resolvable:$true] %s356
          %362 = dma.hbm_to_vmem [thread:$0]  %s3, 27648, %s357, [#allocation9], 576, 576, 36
        $region24: #{transformer_block.1} parent=11 // pred_fallthru
          _
        // Predicated region
        $region25: #{transformer_block.1} parent=11 // pred_check
          %p363 = pneg %p140
        $region26: #{transformer_block.1} parent=11 // pred_check_branch
          %365 = sbr.rel (%p363) target = $region28
        $region27: #{transformer_block.1} parent=11 // pred_region
          %s367 = ssub.s32 9216, 9216
          %368 = vsyncadd [#allocation9], %s367
          %s369 = sshll.u32 [#allocation10], 4
          %s370 = int_to_ptr.vmem [resolvable:$true] %s369
          %375 = dma.hbm_to_vmem [thread:$0]  %s4, 9216, %s370, [#allocation9], 192, 192, 12
        $region28: #{transformer_block.1} parent=11 // pred_fallthru
          _
        // Predicated region
        $region29: #{transformer_block.1} parent=11 // pred_check
          %p376 = pneg %p161
        $region30: #{transformer_block.1} parent=11 // pred_check_branch
          %378 = sbr.rel (%p376) target = $region32
        $region31: #{transformer_block.1} parent=11 // pred_region
          %s380 = ssub.s32 48, 48
          %381 = vsyncadd [#allocation12], %s380
          %s383 = sshll.u32 [#allocation11], 4
          %s384 = int_to_ptr.vmem [resolvable:$true] %s383
          %386 = dma.hbm_to_vmem [thread:$0]  %s5, 48, %s384, [#allocation12]
        $region32: #{transformer_block.1} parent=11 // pred_fallthru
          _
        // Predicated region
        $region33: #{transformer_block.1} parent=11 // pred_check
          %p387 = pneg %p182
        $region34: #{transformer_block.1} parent=11 // pred_check_branch
          %389 = sbr.rel (%p387) target = $region36
        $region35: #{transformer_block.1} parent=11 // pred_region
          %s391 = ssub.s32 48, 48
          %392 = vsyncadd [#allocation12], %s391
          %s394 = sshll.u32 [#allocation13], 4
          %s395 = int_to_ptr.vmem [resolvable:$true] %s394
          %397 = dma.hbm_to_vmem [thread:$0]  %s6, 48, %s395, [#allocation12]
        $region36: #{transformer_block.1} parent=11 // pred_fallthru
          _
        // Predicated region
        $region37: #{transformer_block.1} parent=11 // pred_check
          %p398 = pneg %p203
        $region38: #{transformer_block.1} parent=11 // pred_check_branch
          %400 = sbr.rel (%p398) target = $region40
        $region39: #{transformer_block.1} parent=11 // pred_region
          %s402 = ssub.s32 48, 48
          %403 = vsyncadd [#allocation15], %s402
          %s405 = sshll.u32 [#allocation14], 4
          %s406 = int_to_ptr.vmem [resolvable:$true] %s405
          %408 = dma.hbm_to_vmem [thread:$0]  %s7, 48, %s406, [#allocation15]
        $region40: #{transformer_block.1} parent=11 // pred_fallthru
          _
        // Predicated region
        $region41: #{transformer_block.1} parent=11 // pred_check
          %p409 = pneg %p224
        $region42: #{transformer_block.1} parent=11 // pred_check_branch
          %411 = sbr.rel (%p409) target = $region44
        $region43: #{transformer_block.1} parent=11 // pred_region
          %s413 = ssub.s32 36864, 36864
          %414 = vsyncadd [#allocation15], %s413
          %s415 = sshll.u32 [#allocation16], 4
          %s416 = int_to_ptr.vmem [resolvable:$true] %s415
          %421 = dma.hbm_to_vmem [thread:$0]  %s8, 36864, %s416, [#allocation15], 768, 768, 48
        $region44: #{transformer_block.1} parent=11 // pred_fallthru
          _
        // Predicated region
        $region45: #{transformer_block.1} parent=11 // pred_check
          %p422 = pneg %p245
        $region46: #{transformer_block.1} parent=11 // pred_check_branch
          %424 = sbr.rel (%p422) target = $region48
        $region47: #{transformer_block.1} parent=11 // pred_region
          %s426 = ssub.s32 192, 192
          %427 = vsyncadd [#allocation18], %s426
          %s429 = sshll.u32 [#allocation17], 4
          %s430 = int_to_ptr.vmem [resolvable:$true] %s429
          %432 = dma.hbm_to_vmem [thread:$0]  %s9, 192, %s430, [#allocation18]
        $region48: #{transformer_block.1} parent=11 // pred_fallthru
          _
        // Predicated region
        $region49: #{transformer_block.1} parent=11 // pred_check
          %p433 = pneg %p266
        $region50: #{transformer_block.1} parent=11 // pred_check_branch
          %435 = sbr.rel (%p433) target = $region52
        $region51: #{transformer_block.1} parent=11 // pred_region
          %s437 = ssub.s32 36864, 36864
          %438 = vsyncadd [#allocation18], %s437
          %s439 = sshll.u32 [#allocation19], 4
          %s440 = int_to_ptr.vmem [resolvable:$true] %s439
          %445 = dma.hbm_to_vmem [thread:$0]  %s10, 36864, %s440, [#allocation18], 192, 192, 12
        $region52: #{transformer_block.1} parent=11 // pred_fallthru
          _
        // Predicated region
        $region53: #{transformer_block.1} parent=11 // pred_check
          %p446 = pneg %p287
        $region54: #{transformer_block.1} parent=11 // pred_check_branch
          %448 = sbr.rel (%p446) target = $region56
        $region55: #{transformer_block.1} parent=11 // pred_region
          %s450 = ssub.s32 48, 48
          %451 = vsyncadd [#allocation21], %s450
          %s453 = sshll.u32 [#allocation20], 4
          %s454 = int_to_ptr.vmem [resolvable:$true] %s453
          %456 = dma.hbm_to_vmem [thread:$0]  %s11, 48, %s454, [#allocation21]
        $region56: #{transformer_block.1} parent=11 // pred_fallthru
          _
      $region12: #{transformer_block.1} parent=5 // pred_fallthru
        _
      %p457 = scmp.lt.s32.totalorder %s30, 2
      // Predicated region
      $region57: #{transformer_block.1} parent=5 // pred_check
        %p458 = pneg %p457
      $region58: #{transformer_block.1} parent=5 // pred_check_branch
        %460 = sbr.rel (%p458) target = $region60
      $region59: #{transformer_block.1} parent=5 // pred_region
        // Predicated region
        $region61: #{transformer_block.1} parent=59 // pred_check
          %p461 = pneg %p50
        $region62: #{transformer_block.1} parent=59 // pred_check_branch
          %463 = sbr.rel (%p461) target = $region64
        $region63: #{transformer_block.1} parent=59 // pred_region
          %s464 = sand.u32 %s40, 1
          %s465 = scalar_lea.sflag [#allocation3], %s464
          %s466 = sand.u32 %s40, 1
          %s467 = smul.addr %s466, 24
          %s468 = scalar_lea.vmem [#allocation2], %s467
          %s470 = ssub.s32 384, 384
          %471 = vsyncadd %s465, %s470
          %s472 = smul.addr %s30, 3
          %s473 = smul.addr %s472, 128
          %s474 = scalar_lea.hbm %s0, %s473
          %s476 = sshll.u32 %s468, 4
          %s477 = int_to_ptr.vmem [resolvable:$true] %s476
          %479 = dma.hbm_to_vmem [thread:$0]  %s474, 384, %s477, %s465
        $region64: #{transformer_block.1} parent=59 // pred_fallthru
          _
      $region60: #{transformer_block.1} parent=5 // pred_fallthru
        _
      %p480 = scmp.le.s32.totalorder 1, %s30
      %p481 = scmp.lt.s32.totalorder %s30, 3
      %p482 = pnand %p480, %p481
      %p483 = pneg %p482
      // Predicated region
      $region65: #{transformer_block.1} parent=5 // pred_check
        _
      $region66: #{transformer_block.1} parent=5 // pred_check_branch
        %485 = sbr.rel (%p482) target = $region68
      $region67: #{transformer_block.1} parent=5 // pred_region
        %s486 = ssub.s32 %s30, 1
        %s487 = sand.u32 %s43, 1
        %s488 = scalar_lea.sflag [#allocation3], %s487
        %s489 = sand.u32 %s43, 1
        %s490 = smul.addr %s489, 24
        %s491 = scalar_lea.vmem [#allocation2], %s490
        // Predicated region
        $region69: #{transformer_block.1} parent=67 // pred_check
          %p492 = pneg %p56
        $region70: #{transformer_block.1} parent=67 // pred_check_branch
          %494 = sbr.rel (%p492) target = $region72
        $region71: #{transformer_block.1} parent=67 // pred_region
          %495 = dma.done %s488, 384
        $region72: #{transformer_block.1} parent=67 // pred_fallthru
          _
        // Predicated region
        $region73: #{transformer_block.1} parent=67 // pred_check
          %p496 = pneg %p77
        $region74: #{transformer_block.1} parent=67 // pred_check_branch
          %498 = sbr.rel (%p496) target = $region76
        $region75: #{transformer_block.1} parent=67 // pred_region
          %499 = dma.done [#allocation6], 48
        $region76: #{transformer_block.1} parent=67 // pred_fallthru
          _
        // Predicated region
        $region77: #{transformer_block.1} parent=67 // pred_check
          %p500 = pneg %p98
        $region78: #{transformer_block.1} parent=67 // pred_check_branch
          %502 = sbr.rel (%p500) target = $region80
        $region79: #{transformer_block.1} parent=67 // pred_region
          %503 = dma.done [#allocation6], 48
        $region80: #{transformer_block.1} parent=67 // pred_fallthru
          _
        // Predicated region
        $region81: #{transformer_block.1} parent=67 // pred_check
          %p504 = pneg %p119
        $region82: #{transformer_block.1} parent=67 // pred_check_branch
          %506 = sbr.rel (%p504) target = $region84
        $region83: #{transformer_block.1} parent=67 // pred_region
          %507 = dma.done [#allocation9], 27648
        $region84: #{transformer_block.1} parent=67 // pred_fallthru
          _
        // Predicated region
        $region85: #{transformer_block.1} parent=67 // pred_check
          %p508 = pneg %p140
        $region86: #{transformer_block.1} parent=67 // pred_check_branch
          %510 = sbr.rel (%p508) target = $region88
        $region87: #{transformer_block.1} parent=67 // pred_region
          %511 = dma.done [#allocation9], 9216
        $region88: #{transformer_block.1} parent=67 // pred_fallthru
          _
        // Predicated region
        $region89: #{transformer_block.1} parent=67 // pred_check
          %p512 = pneg %p161
        $region90: #{transformer_block.1} parent=67 // pred_check_branch
          %514 = sbr.rel (%p512) target = $region92
        $region91: #{transformer_block.1} parent=67 // pred_region
          %515 = dma.done [#allocation12], 48
        $region92: #{transformer_block.1} parent=67 // pred_fallthru
          _
        // Predicated region
        $region93: #{transformer_block.1} parent=67 // pred_check
          %p516 = pneg %p182
        $region94: #{transformer_block.1} parent=67 // pred_check_branch
          %518 = sbr.rel (%p516) target = $region96
        $region95: #{transformer_block.1} parent=67 // pred_region
          %519 = dma.done [#allocation12], 48
        $region96: #{transformer_block.1} parent=67 // pred_fallthru
          _
        // Predicated region
        $region97: #{transformer_block.1} parent=67 // pred_check
          %p520 = pneg %p203
        $region98: #{transformer_block.1} parent=67 // pred_check_branch
          %522 = sbr.rel (%p520) target = $region100
        $region99: #{transformer_block.1} parent=67 // pred_region
          %523 = dma.done [#allocation15], 48
        $region100: #{transformer_block.1} parent=67 // pred_fallthru
          _
        // Predicated region
        $region101: #{transformer_block.1} parent=67 // pred_check
          %p524 = pneg %p224
        $region102: #{transformer_block.1} parent=67 // pred_check_branch
          %526 = sbr.rel (%p524) target = $region104
        $region103: #{transformer_block.1} parent=67 // pred_region
          %527 = dma.done [#allocation15], 36864
        $region104: #{transformer_block.1} parent=67 // pred_fallthru
          _
        // Predicated region
        $region105: #{transformer_block.1} parent=67 // pred_check
          %p528 = pneg %p245
        $region106: #{transformer_block.1} parent=67 // pred_check_branch
          %530 = sbr.rel (%p528) target = $region108
        $region107: #{transformer_block.1} parent=67 // pred_region
          %531 = dma.done [#allocation18], 192
        $region108: #{transformer_block.1} parent=67 // pred_fallthru
          _
        // Predicated region
        $region109: #{transformer_block.1} parent=67 // pred_check
          %p532 = pneg %p266
        $region110: #{transformer_block.1} parent=67 // pred_check_branch
          %534 = sbr.rel (%p532) target = $region112
        $region111: #{transformer_block.1} parent=67 // pred_region
          %535 = dma.done [#allocation18], 36864
        $region112: #{transformer_block.1} parent=67 // pred_fallthru
          _
        // Predicated region
        $region113: #{transformer_block.1} parent=67 // pred_check
          %p536 = pneg %p287
        $region114: #{transformer_block.1} parent=67 // pred_check_branch
          %538 = sbr.rel (%p536) target = $region116
        $region115: #{transformer_block.1} parent=67 // pred_region
          %539 = dma.done [#allocation21], 48
        $region116: #{transformer_block.1} parent=67 // pred_fallthru
          _
        %s540 = sand.u32 %s43, 1
        %s541 = scalar_lea.sflag [#allocation3], %s540
        %s542 = sand.u32 %s43, 1
        %s543 = smul.addr %s542, 24
        %s544 = scalar_lea.vmem [#allocation2], %s543
        %p545 = pneg %p56
        %p546 = pneg %p53
        %p547 = pneg %p77
        %p548 = pneg %p74
        %p549 = pneg %p98
        %p550 = pneg %p95
        %p551 = pneg %p119
        %p552 = pneg %p116
        %p553 = pneg %p140
        %p554 = pneg %p137
        %p555 = pneg %p161
        %p556 = pneg %p158
        %p557 = pneg %p182
        %p558 = pneg %p179
        %p559 = pneg %p203
        %p560 = pneg %p200
        %p561 = pneg %p224
        %p562 = pneg %p221
        %p563 = pneg %p245
        %p564 = pneg %p242
        %p565 = pneg %p266
        %p566 = pneg %p263
        %p567 = pneg %p287
        %p568 = pneg %p284
        %p569 = pneg %p313
        %p570 = pneg %p310
        %s571 = sand.u32 %s300, 1
        %s572 = scalar_lea.sflag [#allocation4], %s571
        %s573 = sand.u32 %s300, 1
        %s574 = smul.addr %s573, 24
        %s575 = scalar_lea.vmem [#allocation22], %s574
        %v577 = vld [vmem:[%s491] sm:$0xff]
        %v578 = vld [vmem:[%s491 + $0x8] sm:$0xff]
        %v579 = vld [vmem:[%s491 + $0x10] sm:$0xff]
        %v580 = vld [vmem:[#allocation5] sm:$0x7]
        %v581 = vld [vmem:[#allocation7] sm:$0x7]
        %v582 = vadd.f32 %v577, %v578
        %v583 = vadd.f32 %v582, %v579
        %584 = vadd.xlane.f32.xlu0 %v583
        %v585 = vpop.xlane.xlu0 %584
        %v586 = vrcp.pop 384.0
        %v587 = vmul.f32 %v585, %v586
        %v588 = vsub.f32 %v577, %v587
        %v589 = vsub.f32 %v578, %v587
        %v590 = vsub.f32 %v579, %v587
        %v591 = vmul.f32 %v588, %v588
        %v592 = vmul.f32 %v589, %v589
        %v593 = vmul.f32 %v590, %v590
        %v594 = vadd.f32 %v591, %v592
        %v595 = vadd.f32 %v594, %v593
        %596 = vadd.xlane.f32.xlu0 %v595
        %v597 = vpop.xlane.xlu0 %596
        %v598 = vmul.f32 %v597, %v586
        %v599 = vadd.f32 %v598, 1e-05
        %v600 = vrsqrt.pop %v599
        %v601 = vmul.f32 %v588, %v600
        %v602 = vmul.f32 %v589, %v600
        %v603 = vmul.f32 %v590, %v600
        %v605 = vlaneseq
        %v606 = vshrl.u32 %v605, 7
        %v607 = vsub.s32 0, %v606
        %v608 = vrot.slane %v580, %v607
        %v609 = vlaneseq
        %v610 = vshrl.u32 %v609, 7
        %v611 = vsub.s32 1, %v610
        %v612 = vrot.slane %v580, %v611
        %v613 = vlaneseq
        %v614 = vshrl.u32 %v613, 7
        %v615 = vsub.s32 2, %v614
        %v616 = vrot.slane %v580, %v615
        %v620 = vmul.f32 %v601, %v608
        %v621 = vmul.f32 %v602, %v612
        %v622 = vmul.f32 %v603, %v616
        %v624 = vlaneseq
        %v625 = vshrl.u32 %v624, 7
        %v626 = vsub.s32 0, %v625
        %v627 = vrot.slane %v581, %v626
        %v628 = vlaneseq
        %v629 = vshrl.u32 %v628, 7
        %v630 = vsub.s32 1, %v629
        %v631 = vrot.slane %v581, %v630
        %v632 = vlaneseq
        %v633 = vshrl.u32 %v632, 7
        %v634 = vsub.s32 2, %v633
        %v635 = vrot.slane %v581, %v634
        %v639 = vadd.f32 %v620, %v627
        %v640 = vadd.f32 %v621, %v631
        %v641 = vadd.f32 %v622, %v635
        %v642 = vpack.c.bf16 %v639, %v639
        %v643 = vpack.c.bf16 %v640, %v640
        %v644 = vpack.c.bf16 %v641, %v641
        %v645 = vld [vmem:[#allocation8] sm:$0xff]
        %v646 = vld [vmem:[#allocation8 + $0x8] sm:$0xff]
        %v647 = vld [vmem:[#allocation8 + $0x10] sm:$0xff]
        %v648 = vld [vmem:[#allocation8 + $0x18] sm:$0xff]
        %v649 = vld [vmem:[#allocation8 + $0x20] sm:$0xf]
        %v650 = vld [vmem:[#allocation8 + $0x24] sm:$0xff]
        %v651 = vld [vmem:[#allocation8 + $0x2c] sm:$0xff]
        %v652 = vld [vmem:[#allocation8 + $0x34] sm:$0xff]
        %v653 = vld [vmem:[#allocation8 + $0x3c] sm:$0xff]
        %v654 = vld [vmem:[#allocation8 + $0x44] sm:$0xf]
        %v655 = vld [vmem:[#allocation8 + $0x48] sm:$0xff]
        %v656 = vld [vmem:[#allocation8 + $0x50] sm:$0xff]
        %v657 = vld [vmem:[#allocation8 + $0x58] sm:$0xff]
        %v658 = vld [vmem:[#allocation8 + $0x60] sm:$0xff]
        %v659 = vld [vmem:[#allocation8 + $0x68] sm:$0xf]
        %v660 = vld [vmem:[#allocation8 + $0x6c] sm:$0xff]
        %v661 = vld [vmem:[#allocation8 + $0x74] sm:$0xff]
        %v662 = vld [vmem:[#allocation8 + $0x7c] sm:$0xff]
        %v663 = vld [vmem:[#allocation8 + $0x84] sm:$0xff]
        %v664 = vld [vmem:[#allocation8 + $0x8c] sm:$0xf]
        %v665 = vld [vmem:[#allocation8 + $0x90] sm:$0xff]
        %v666 = vld [vmem:[#allocation8 + $0x98] sm:$0xff]
        %v667 = vld [vmem:[#allocation8 + $0xa0] sm:$0xff]
        %v668 = vld [vmem:[#allocation8 + $0xa8] sm:$0xff]
        %v669 = vld [vmem:[#allocation8 + $0xb0] sm:$0xf]
        %v670 = vld [vmem:[#allocation8 + $0xb4] sm:$0xff]
        %v671 = vld [vmem:[#allocation8 + $0xbc] sm:$0xff]
        %v672 = vld [vmem:[#allocation8 + $0xc4] sm:$0xff]
        %v673 = vld [vmem:[#allocation8 + $0xcc] sm:$0xff]
        %v674 = vld [vmem:[#allocation8 + $0xd4] sm:$0xf]
        %v675 = vld [vmem:[#allocation8 + $0xd8] sm:$0xff]
        %v676 = vld [vmem:[#allocation8 + $0xe0] sm:$0xff]
        %v677 = vld [vmem:[#allocation8 + $0xe8] sm:$0xff]
        %v678 = vld [vmem:[#allocation8 + $0xf0] sm:$0xff]
        %v679 = vld [vmem:[#allocation8 + $0xf8] sm:$0xf]
        %v680 = vld [vmem:[#allocation8 + $0xfc] sm:$0xff]
        %v681 = vld [vmem:[#allocation8 + $0x104] sm:$0xff]
        %v682 = vld [vmem:[#allocation8 + $0x10c] sm:$0xff]
        %v683 = vld [vmem:[#allocation8 + $0x114] sm:$0xff]
        %v684 = vld [vmem:[#allocation8 + $0x11c] sm:$0xf]
        %v685 = vld [vmem:[#allocation8 + $0x120] sm:$0xff]
        %v686 = vld [vmem:[#allocation8 + $0x128] sm:$0xff]
        %v687 = vld [vmem:[#allocation8 + $0x130] sm:$0xff]
        %v688 = vld [vmem:[#allocation8 + $0x138] sm:$0xff]
        %v689 = vld [vmem:[#allocation8 + $0x140] sm:$0xf]
        %v690 = vld [vmem:[#allocation8 + $0x144] sm:$0xff]
        %v691 = vld [vmem:[#allocation8 + $0x14c] sm:$0xff]
        %v692 = vld [vmem:[#allocation8 + $0x154] sm:$0xff]
        %v693 = vld [vmem:[#allocation8 + $0x15c] sm:$0xff]
        %v694 = vld [vmem:[#allocation8 + $0x164] sm:$0xf]
        %v695 = vld [vmem:[#allocation8 + $0x168] sm:$0xff]
        %v696 = vld [vmem:[#allocation8 + $0x170] sm:$0xff]
        %v697 = vld [vmem:[#allocation8 + $0x178] sm:$0xff]
        %v698 = vld [vmem:[#allocation8 + $0x180] sm:$0xff]
        %v699 = vld [vmem:[#allocation8 + $0x188] sm:$0xf]
        %v700 = vld [vmem:[#allocation8 + $0x18c] sm:$0xff]
        %v701 = vld [vmem:[#allocation8 + $0x194] sm:$0xff]
        %v702 = vld [vmem:[#allocation8 + $0x19c] sm:$0xff]
        %v703 = vld [vmem:[#allocation8 + $0x1a4] sm:$0xff]
        %v704 = vld [vmem:[#allocation8 + $0x1ac] sm:$0xf]
        %v705 = vld [vmem:[#allocation8 + $0x1b0] sm:$0xff]
        %v706 = vld [vmem:[#allocation8 + $0x1b8] sm:$0xff]
        %v707 = vld [vmem:[#allocation8 + $0x1c0] sm:$0xff]
        %v708 = vld [vmem:[#allocation8 + $0x1c8] sm:$0xff]
        %v709 = vld [vmem:[#allocation8 + $0x1d0] sm:$0xf]
        %v710 = vld [vmem:[#allocation8 + $0x1d4] sm:$0xff]
        %v711 = vld [vmem:[#allocation8 + $0x1dc] sm:$0xff]
        %v712 = vld [vmem:[#allocation8 + $0x1e4] sm:$0xff]
        %v713 = vld [vmem:[#allocation8 + $0x1ec] sm:$0xff]
        %v714 = vld [vmem:[#allocation8 + $0x1f4] sm:$0xf]
        %v715 = vld [vmem:[#allocation8 + $0x1f8] sm:$0xff]
        %v716 = vld [vmem:[#allocation8 + $0x200] sm:$0xff]
        %v717 = vld [vmem:[#allocation8 + $0x208] sm:$0xff]
        %v718 = vld [vmem:[#allocation8 + $0x210] sm:$0xff]
        %v719 = vld [vmem:[#allocation8 + $0x218] sm:$0xf]
        %v720 = vld [vmem:[#allocation8 + $0x21c] sm:$0xff]
        %v721 = vld [vmem:[#allocation8 + $0x224] sm:$0xff]
        %v722 = vld [vmem:[#allocation8 + $0x22c] sm:$0xff]
        %v723 = vld [vmem:[#allocation8 + $0x234] sm:$0xff]
        %v724 = vld [vmem:[#allocation8 + $0x23c] sm:$0xf]
        %v725 = vld [vmem:[#allocation8 + $0x240] sm:$0xff]
        %v726 = vld [vmem:[#allocation8 + $0x248] sm:$0xff]
        %v727 = vld [vmem:[#allocation8 + $0x250] sm:$0xff]
        %v728 = vld [vmem:[#allocation8 + $0x258] sm:$0xff]
        %v729 = vld [vmem:[#allocation8 + $0x260] sm:$0xf]
        %v730 = vld [vmem:[#allocation8 + $0x264] sm:$0xff]
        %v731 = vld [vmem:[#allocation8 + $0x26c] sm:$0xff]
        %v732 = vld [vmem:[#allocation8 + $0x274] sm:$0xff]
        %v733 = vld [vmem:[#allocation8 + $0x27c] sm:$0xff]
        %v734 = vld [vmem:[#allocation8 + $0x284] sm:$0xf]
        %v735 = vld [vmem:[#allocation8 + $0x288] sm:$0xff]
        %v736 = vld [vmem:[#allocation8 + $0x290] sm:$0xff]
        %v737 = vld [vmem:[#allocation8 + $0x298] sm:$0xff]
        %v738 = vld [vmem:[#allocation8 + $0x2a0] sm:$0xff]
        %v739 = vld [vmem:[#allocation8 + $0x2a8] sm:$0xf]
        %v740 = vld [vmem:[#allocation8 + $0x2ac] sm:$0xff]
        %v741 = vld [vmem:[#allocation8 + $0x2b4] sm:$0xff]
        %v742 = vld [vmem:[#allocation8 + $0x2bc] sm:$0xff]
        %v743 = vld [vmem:[#allocation8 + $0x2c4] sm:$0xff]
        %v744 = vld [vmem:[#allocation8 + $0x2cc] sm:$0xf]
        %v745 = vld [vmem:[#allocation8 + $0x2d0] sm:$0xff]
        %v746 = vld [vmem:[#allocation8 + $0x2d8] sm:$0xff]
        %v747 = vld [vmem:[#allocation8 + $0x2e0] sm:$0xff]
        %v748 = vld [vmem:[#allocation8 + $0x2e8] sm:$0xff]
        %v749 = vld [vmem:[#allocation8 + $0x2f0] sm:$0xf]
        %v750 = vld [vmem:[#allocation8 + $0x2f4] sm:$0xff]
        %v751 = vld [vmem:[#allocation8 + $0x2fc] sm:$0xff]
        %v752 = vld [vmem:[#allocation8 + $0x304] sm:$0xff]
        %v753 = vld [vmem:[#allocation8 + $0x30c] sm:$0xff]
        %v754 = vld [vmem:[#allocation8 + $0x314] sm:$0xf]
        %v755 = vld [vmem:[#allocation8 + $0x318] sm:$0xff]
        %v756 = vld [vmem:[#allocation8 + $0x320] sm:$0xff]
        %v757 = vld [vmem:[#allocation8 + $0x328] sm:$0xff]
        %v758 = vld [vmem:[#allocation8 + $0x330] sm:$0xff]
        %v759 = vld [vmem:[#allocation8 + $0x338] sm:$0xf]
        %v760 = vld [vmem:[#allocation8 + $0x33c] sm:$0xff]
        %v761 = vld [vmem:[#allocation8 + $0x344] sm:$0xff]
        %v762 = vld [vmem:[#allocation8 + $0x34c] sm:$0xff]
        %v763 = vld [vmem:[#allocation8 + $0x354] sm:$0xff]
        %v764 = vld [vmem:[#allocation8 + $0x35c] sm:$0xf]
        %v765 = vld [vmem:[#allocation8 + $0x360] sm:$0xff]
        %v766 = vld [vmem:[#allocation8 + $0x368] sm:$0xff]
        %v767 = vld [vmem:[#allocation8 + $0x370] sm:$0xff]
        %v768 = vld [vmem:[#allocation8 + $0x378] sm:$0xff]
        %v769 = vld [vmem:[#allocation8 + $0x380] sm:$0xf]
        %v770 = vld [vmem:[#allocation8 + $0x384] sm:$0xff]
        %v771 = vld [vmem:[#allocation8 + $0x38c] sm:$0xff]
        %v772 = vld [vmem:[#allocation8 + $0x394] sm:$0xff]
        %v773 = vld [vmem:[#allocation8 + $0x39c] sm:$0xff]
        %v774 = vld [vmem:[#allocation8 + $0x3a4] sm:$0xf]
        %v775 = vld [vmem:[#allocation8 + $0x3a8] sm:$0xff]
        %v776 = vld [vmem:[#allocation8 + $0x3b0] sm:$0xff]
        %v777 = vld [vmem:[#allocation8 + $0x3b8] sm:$0xff]
        %v778 = vld [vmem:[#allocation8 + $0x3c0] sm:$0xff]
        %v779 = vld [vmem:[#allocation8 + $0x3c8] sm:$0xf]
        %v780 = vld [vmem:[#allocation8 + $0x3cc] sm:$0xff]
        %v781 = vld [vmem:[#allocation8 + $0x3d4] sm:$0xff]
        %v782 = vld [vmem:[#allocation8 + $0x3dc] sm:$0xff]
        %v783 = vld [vmem:[#allocation8 + $0x3e4] sm:$0xff]
        %v784 = vld [vmem:[#allocation8 + $0x3ec] sm:$0xf]
        %v785 = vld [vmem:[#allocation8 + $0x3f0] sm:$0xff]
        %v786 = vld [vmem:[#allocation8 + $0x3f8] sm:$0xff]
        %v787 = vld [vmem:[#allocation8 + $0x400] sm:$0xff]
        %v788 = vld [vmem:[#allocation8 + $0x408] sm:$0xff]
        %v789 = vld [vmem:[#allocation8 + $0x410] sm:$0xf]
        %v790 = vld [vmem:[#allocation8 + $0x414] sm:$0xff]
        %v791 = vld [vmem:[#allocation8 + $0x41c] sm:$0xff]
        %v792 = vld [vmem:[#allocation8 + $0x424] sm:$0xff]
        %v793 = vld [vmem:[#allocation8 + $0x42c] sm:$0xff]
        %v794 = vld [vmem:[#allocation8 + $0x434] sm:$0xf]
        %v795 = vld [vmem:[#allocation8 + $0x438] sm:$0xff]
        %v796 = vld [vmem:[#allocation8 + $0x440] sm:$0xff]
        %v797 = vld [vmem:[#allocation8 + $0x448] sm:$0xff]
        %v798 = vld [vmem:[#allocation8 + $0x450] sm:$0xff]
        %v799 = vld [vmem:[#allocation8 + $0x458] sm:$0xf]
        %v800 = vld [vmem:[#allocation8 + $0x45c] sm:$0xff]
        %v801 = vld [vmem:[#allocation8 + $0x464] sm:$0xff]
        %v802 = vld [vmem:[#allocation8 + $0x46c] sm:$0xff]
        %v803 = vld [vmem:[#allocation8 + $0x474] sm:$0xff]
        %v804 = vld [vmem:[#allocation8 + $0x47c] sm:$0xf]
        %v805 = vld [vmem:[#allocation8 + $0x480] sm:$0xff]
        %v806 = vld [vmem:[#allocation8 + $0x488] sm:$0xff]
        %v807 = vld [vmem:[#allocation8 + $0x490] sm:$0xff]
        %v808 = vld [vmem:[#allocation8 + $0x498] sm:$0xff]
        %v809 = vld [vmem:[#allocation8 + $0x4a0] sm:$0xf]
        %v810 = vld [vmem:[#allocation8 + $0x4a4] sm:$0xff]
        %v811 = vld [vmem:[#allocation8 + $0x4ac] sm:$0xff]
        %v812 = vld [vmem:[#allocation8 + $0x4b4] sm:$0xff]
        %v813 = vld [vmem:[#allocation8 + $0x4bc] sm:$0xff]
        %v814 = vld [vmem:[#allocation8 + $0x4c4] sm:$0xf]
        %v815 = vld [vmem:[#allocation8 + $0x4c8] sm:$0xff]
        %v816 = vld [vmem:[#allocation8 + $0x4d0] sm:$0xff]
        %v817 = vld [vmem:[#allocation8 + $0x4d8] sm:$0xff]
        %v818 = vld [vmem:[#allocation8 + $0x4e0] sm:$0xff]
        %v819 = vld [vmem:[#allocation8 + $0x4e8] sm:$0xf]
        %v820 = vld [vmem:[#allocation8 + $0x4ec] sm:$0xff]
        %v821 = vld [vmem:[#allocation8 + $0x4f4] sm:$0xff]
        %v822 = vld [vmem:[#allocation8 + $0x4fc] sm:$0xff]
        %v823 = vld [vmem:[#allocation8 + $0x504] sm:$0xff]
        %v824 = vld [vmem:[#allocation8 + $0x50c] sm:$0xf]
        %v825 = vld [vmem:[#allocation8 + $0x510] sm:$0xff]
        %v826 = vld [vmem:[#allocation8 + $0x518] sm:$0xff]
        %v827 = vld [vmem:[#allocation8 + $0x520] sm:$0xff]
        %v828 = vld [vmem:[#allocation8 + $0x528] sm:$0xff]
        %v829 = vld [vmem:[#allocation8 + $0x530] sm:$0xf]
        %v830 = vld [vmem:[#allocation8 + $0x534] sm:$0xff]
        %v831 = vld [vmem:[#allocation8 + $0x53c] sm:$0xff]
        %v832 = vld [vmem:[#allocation8 + $0x544] sm:$0xff]
        %v833 = vld [vmem:[#allocation8 + $0x54c] sm:$0xff]
        %v834 = vld [vmem:[#allocation8 + $0x554] sm:$0xf]
        %v835 = vld [vmem:[#allocation8 + $0x558] sm:$0xff]
        %v836 = vld [vmem:[#allocation8 + $0x560] sm:$0xff]
        %v837 = vld [vmem:[#allocation8 + $0x568] sm:$0xff]
        %v838 = vld [vmem:[#allocation8 + $0x570] sm:$0xff]
        %v839 = vld [vmem:[#allocation8 + $0x578] sm:$0xf]
        %v840 = vld [vmem:[#allocation8 + $0x57c] sm:$0xff]
        %v841 = vld [vmem:[#allocation8 + $0x584] sm:$0xff]
        %v842 = vld [vmem:[#allocation8 + $0x58c] sm:$0xff]
        %v843 = vld [vmem:[#allocation8 + $0x594] sm:$0xff]
        %v844 = vld [vmem:[#allocation8 + $0x59c] sm:$0xf]
        %v845 = vld [vmem:[#allocation8 + $0x5a0] sm:$0xff]
        %v846 = vld [vmem:[#allocation8 + $0x5a8] sm:$0xff]
        %v847 = vld [vmem:[#allocation8 + $0x5b0] sm:$0xff]
        %v848 = vld [vmem:[#allocation8 + $0x5b8] sm:$0xff]
        %v849 = vld [vmem:[#allocation8 + $0x5c0] sm:$0xf]
        %v850 = vld [vmem:[#allocation8 + $0x5c4] sm:$0xff]
        %v851 = vld [vmem:[#allocation8 + $0x5cc] sm:$0xff]
        %v852 = vld [vmem:[#allocation8 + $0x5d4] sm:$0xff]
        %v853 = vld [vmem:[#allocation8 + $0x5dc] sm:$0xff]
        %v854 = vld [vmem:[#allocation8 + $0x5e4] sm:$0xf]
        %v855 = vld [vmem:[#allocation8 + $0x5e8] sm:$0xff]
        %v856 = vld [vmem:[#allocation8 + $0x5f0] sm:$0xff]
        %v857 = vld [vmem:[#allocation8 + $0x5f8] sm:$0xff]
        %v858 = vld [vmem:[#allocation8 + $0x600] sm:$0xff]
        %v859 = vld [vmem:[#allocation8 + $0x608] sm:$0xf]
        %v860 = vld [vmem:[#allocation8 + $0x60c] sm:$0xff]
        %v861 = vld [vmem:[#allocation8 + $0x614] sm:$0xff]
        %v862 = vld [vmem:[#allocation8 + $0x61c] sm:$0xff]
        %v863 = vld [vmem:[#allocation8 + $0x624] sm:$0xff]
        %v864 = vld [vmem:[#allocation8 + $0x62c] sm:$0xf]
        %v865 = vld [vmem:[#allocation8 + $0x630] sm:$0xff]
        %v866 = vld [vmem:[#allocation8 + $0x638] sm:$0xff]
        %v867 = vld [vmem:[#allocation8 + $0x640] sm:$0xff]
        %v868 = vld [vmem:[#allocation8 + $0x648] sm:$0xff]
        %v869 = vld [vmem:[#allocation8 + $0x650] sm:$0xf]
        %v870 = vld [vmem:[#allocation8 + $0x654] sm:$0xff]
        %v871 = vld [vmem:[#allocation8 + $0x65c] sm:$0xff]
        %v872 = vld [vmem:[#allocation8 + $0x664] sm:$0xff]
        %v873 = vld [vmem:[#allocation8 + $0x66c] sm:$0xff]
        %v874 = vld [vmem:[#allocation8 + $0x674] sm:$0xf]
        %v875 = vld [vmem:[#allocation8 + $0x678] sm:$0xff]
        %v876 = vld [vmem:[#allocation8 + $0x680] sm:$0xff]
        %v877 = vld [vmem:[#allocation8 + $0x688] sm:$0xff]
        %v878 = vld [vmem:[#allocation8 + $0x690] sm:$0xff]
        %v879 = vld [vmem:[#allocation8 + $0x698] sm:$0xf]
        %v880 = vld [vmem:[#allocation8 + $0x69c] sm:$0xff]
        %v881 = vld [vmem:[#allocation8 + $0x6a4] sm:$0xff]
        %v882 = vld [vmem:[#allocation8 + $0x6ac] sm:$0xff]
        %v883 = vld [vmem:[#allocation8 + $0x6b4] sm:$0xff]
        %v884 = vld [vmem:[#allocation8 + $0x6bc] sm:$0xf]
        %v1125 = vunpack.c.l.b16 %v645
        %v1126 = vunpack.c.h.b16 %v645
        %v1127 = vunpack.c.l.b16 %v646
        %v1128 = vunpack.c.h.b16 %v646
        %v1129 = vunpack.c.l.b16 %v647
        %v1130 = vunpack.c.h.b16 %v647
        %v1131 = vunpack.c.l.b16 %v648
        %v1132 = vunpack.c.h.b16 %v648
        %v1133 = vunpack.c.l.b16 %v649
        %v1134 = vunpack.c.l.b16 %v650
        %v1135 = vunpack.c.h.b16 %v650
        %v1136 = vunpack.c.l.b16 %v651
        %v1137 = vunpack.c.h.b16 %v651
        %v1138 = vunpack.c.l.b16 %v652
        %v1139 = vunpack.c.h.b16 %v652
        %v1140 = vunpack.c.l.b16 %v653
        %v1141 = vunpack.c.h.b16 %v653
        %v1142 = vunpack.c.l.b16 %v654
        %v1143 = vunpack.c.l.b16 %v655
        %v1144 = vunpack.c.h.b16 %v655
        %v1145 = vunpack.c.l.b16 %v656
        %v1146 = vunpack.c.h.b16 %v656
        %v1147 = vunpack.c.l.b16 %v657
        %v1148 = vunpack.c.h.b16 %v657
        %v1149 = vunpack.c.l.b16 %v658
        %v1150 = vunpack.c.h.b16 %v658
        %v1151 = vunpack.c.l.b16 %v659
        %v1152 = vunpack.c.l.b16 %v660
        %v1153 = vunpack.c.h.b16 %v660
        %v1154 = vunpack.c.l.b16 %v661
        %v1155 = vunpack.c.h.b16 %v661
        %v1156 = vunpack.c.l.b16 %v662
        %v1157 = vunpack.c.h.b16 %v662
        %v1158 = vunpack.c.l.b16 %v663
        %v1159 = vunpack.c.h.b16 %v663
        %v1160 = vunpack.c.l.b16 %v664
        %v1161 = vunpack.c.l.b16 %v665
        %v1162 = vunpack.c.h.b16 %v665
        %v1163 = vunpack.c.l.b16 %v666
        %v1164 = vunpack.c.h.b16 %v666
        %v1165 = vunpack.c.l.b16 %v667
        %v1166 = vunpack.c.h.b16 %v667
        %v1167 = vunpack.c.l.b16 %v668
        %v1168 = vunpack.c.h.b16 %v668
        %v1169 = vunpack.c.l.b16 %v669
        %v1170 = vunpack.c.l.b16 %v670
        %v1171 = vunpack.c.h.b16 %v670
        %v1172 = vunpack.c.l.b16 %v671
        %v1173 = vunpack.c.h.b16 %v671
        %v1174 = vunpack.c.l.b16 %v672
        %v1175 = vunpack.c.h.b16 %v672
        %v1176 = vunpack.c.l.b16 %v673
        %v1177 = vunpack.c.h.b16 %v673
        %v1178 = vunpack.c.l.b16 %v674
        %v1179 = vunpack.c.l.b16 %v675
        %v1180 = vunpack.c.h.b16 %v675
        %v1181 = vunpack.c.l.b16 %v676
        %v1182 = vunpack.c.h.b16 %v676
        %v1183 = vunpack.c.l.b16 %v677
        %v1184 = vunpack.c.h.b16 %v677
        %v1185 = vunpack.c.l.b16 %v678
        %v1186 = vunpack.c.h.b16 %v678
        %v1187 = vunpack.c.l.b16 %v679
        %v1188 = vunpack.c.l.b16 %v680
        %v1189 = vunpack.c.h.b16 %v680
        %v1190 = vunpack.c.l.b16 %v681
        %v1191 = vunpack.c.h.b16 %v681
        %v1192 = vunpack.c.l.b16 %v682
        %v1193 = vunpack.c.h.b16 %v682
        %v1194 = vunpack.c.l.b16 %v683
        %v1195 = vunpack.c.h.b16 %v683
        %v1196 = vunpack.c.l.b16 %v684
        %v1197 = vunpack.c.l.b16 %v685
        %v1198 = vunpack.c.h.b16 %v685
        %v1199 = vunpack.c.l.b16 %v686
        %v1200 = vunpack.c.h.b16 %v686
        %v1201 = vunpack.c.l.b16 %v687
        %v1202 = vunpack.c.h.b16 %v687
        %v1203 = vunpack.c.l.b16 %v688
        %v1204 = vunpack.c.h.b16 %v688
        %v1205 = vunpack.c.l.b16 %v689
        %v1206 = vunpack.c.l.b16 %v690
        %v1207 = vunpack.c.h.b16 %v690
        %v1208 = vunpack.c.l.b16 %v691
        %v1209 = vunpack.c.h.b16 %v691
        %v1210 = vunpack.c.l.b16 %v692
        %v1211 = vunpack.c.h.b16 %v692
        %v1212 = vunpack.c.l.b16 %v693
        %v1213 = vunpack.c.h.b16 %v693
        %v1214 = vunpack.c.l.b16 %v694
        %v1215 = vunpack.c.l.b16 %v695
        %v1216 = vunpack.c.h.b16 %v695
        %v1217 = vunpack.c.l.b16 %v696
        %v1218 = vunpack.c.h.b16 %v696
        %v1219 = vunpack.c.l.b16 %v697
        %v1220 = vunpack.c.h.b16 %v697
        %v1221 = vunpack.c.l.b16 %v698
        %v1222 = vunpack.c.h.b16 %v698
        %v1223 = vunpack.c.l.b16 %v699
        %v1224 = vunpack.c.l.b16 %v700
        %v1225 = vunpack.c.h.b16 %v700
        %v1226 = vunpack.c.l.b16 %v701
        %v1227 = vunpack.c.h.b16 %v701
        %v1228 = vunpack.c.l.b16 %v702
        %v1229 = vunpack.c.h.b16 %v702
        %v1230 = vunpack.c.l.b16 %v703
        %v1231 = vunpack.c.h.b16 %v703
        %v1232 = vunpack.c.l.b16 %v704
        %v1233 = vunpack.c.l.b16 %v705
        %v1234 = vunpack.c.h.b16 %v705
        %v1235 = vunpack.c.l.b16 %v706
        %v1236 = vunpack.c.h.b16 %v706
        %v1237 = vunpack.c.l.b16 %v707
        %v1238 = vunpack.c.h.b16 %v707
        %v1239 = vunpack.c.l.b16 %v708
        %v1240 = vunpack.c.h.b16 %v708
        %v1241 = vunpack.c.l.b16 %v709
        %v1242 = vunpack.c.l.b16 %v710
        %v1243 = vunpack.c.h.b16 %v710
        %v1244 = vunpack.c.l.b16 %v711
        %v1245 = vunpack.c.h.b16 %v711
        %v1246 = vunpack.c.l.b16 %v712
        %v1247 = vunpack.c.h.b16 %v712
        %v1248 = vunpack.c.l.b16 %v713
        %v1249 = vunpack.c.h.b16 %v713
        %v1250 = vunpack.c.l.b16 %v714
        %v1251 = vunpack.c.l.b16 %v715
        %v1252 = vunpack.c.h.b16 %v715
        %v1253 = vunpack.c.l.b16 %v716
        %v1254 = vunpack.c.h.b16 %v716
        %v1255 = vunpack.c.l.b16 %v717
        %v1256 = vunpack.c.h.b16 %v717
        %v1257 = vunpack.c.l.b16 %v718
        %v1258 = vunpack.c.h.b16 %v718
        %v1259 = vunpack.c.l.b16 %v719
        %v1260 = vunpack.c.l.b16 %v720
        %v1261 = vunpack.c.h.b16 %v720
        %v1262 = vunpack.c.l.b16 %v721
        %v1263 = vunpack.c.h.b16 %v721
        %v1264 = vunpack.c.l.b16 %v722
        %v1265 = vunpack.c.h.b16 %v722
        %v1266 = vunpack.c.l.b16 %v723
        %v1267 = vunpack.c.h.b16 %v723
        %v1268 = vunpack.c.l.b16 %v724
        %v1269 = vunpack.c.l.b16 %v725
        %v1270 = vunpack.c.h.b16 %v725
        %v1271 = vunpack.c.l.b16 %v726
        %v1272 = vunpack.c.h.b16 %v726
        %v1273 = vunpack.c.l.b16 %v727
        %v1274 = vunpack.c.h.b16 %v727
        %v1275 = vunpack.c.l.b16 %v728
        %v1276 = vunpack.c.h.b16 %v728
        %v1277 = vunpack.c.l.b16 %v729
        %v1278 = vunpack.c.l.b16 %v730
        %v1279 = vunpack.c.h.b16 %v730
        %v1280 = vunpack.c.l.b16 %v731
        %v1281 = vunpack.c.h.b16 %v731
        %v1282 = vunpack.c.l.b16 %v732
        %v1283 = vunpack.c.h.b16 %v732
        %v1284 = vunpack.c.l.b16 %v733
        %v1285 = vunpack.c.h.b16 %v733
        %v1286 = vunpack.c.l.b16 %v734
        %v1287 = vunpack.c.l.b16 %v735
        %v1288 = vunpack.c.h.b16 %v735
        %v1289 = vunpack.c.l.b16 %v736
        %v1290 = vunpack.c.h.b16 %v736
        %v1291 = vunpack.c.l.b16 %v737
        %v1292 = vunpack.c.h.b16 %v737
        %v1293 = vunpack.c.l.b16 %v738
        %v1294 = vunpack.c.h.b16 %v738
        %v1295 = vunpack.c.l.b16 %v739
        %v1296 = vunpack.c.l.b16 %v740
        %v1297 = vunpack.c.h.b16 %v740
        %v1298 = vunpack.c.l.b16 %v741
        %v1299 = vunpack.c.h.b16 %v741
        %v1300 = vunpack.c.l.b16 %v742
        %v1301 = vunpack.c.h.b16 %v742
        %v1302 = vunpack.c.l.b16 %v743
        %v1303 = vunpack.c.h.b16 %v743
        %v1304 = vunpack.c.l.b16 %v744
        %v1305 = vunpack.c.l.b16 %v745
        %v1306 = vunpack.c.h.b16 %v745
        %v1307 = vunpack.c.l.b16 %v746
        %v1308 = vunpack.c.h.b16 %v746
        %v1309 = vunpack.c.l.b16 %v747
        %v1310 = vunpack.c.h.b16 %v747
        %v1311 = vunpack.c.l.b16 %v748
        %v1312 = vunpack.c.h.b16 %v748
        %v1313 = vunpack.c.l.b16 %v749
        %v1314 = vunpack.c.l.b16 %v750
        %v1315 = vunpack.c.h.b16 %v750
        %v1316 = vunpack.c.l.b16 %v751
        %v1317 = vunpack.c.h.b16 %v751
        %v1318 = vunpack.c.l.b16 %v752
        %v1319 = vunpack.c.h.b16 %v752
        %v1320 = vunpack.c.l.b16 %v753
        %v1321 = vunpack.c.h.b16 %v753
        %v1322 = vunpack.c.l.b16 %v754
        %v1323 = vunpack.c.l.b16 %v755
        %v1324 = vunpack.c.h.b16 %v755
        %v1325 = vunpack.c.l.b16 %v756
        %v1326 = vunpack.c.h.b16 %v756
        %v1327 = vunpack.c.l.b16 %v757
        %v1328 = vunpack.c.h.b16 %v757
        %v1329 = vunpack.c.l.b16 %v758
        %v1330 = vunpack.c.h.b16 %v758
        %v1331 = vunpack.c.l.b16 %v759
        %v1332 = vunpack.c.l.b16 %v760
        %v1333 = vunpack.c.h.b16 %v760
        %v1334 = vunpack.c.l.b16 %v761
        %v1335 = vunpack.c.h.b16 %v761
        %v1336 = vunpack.c.l.b16 %v762
        %v1337 = vunpack.c.h.b16 %v762
        %v1338 = vunpack.c.l.b16 %v763
        %v1339 = vunpack.c.h.b16 %v763
        %v1340 = vunpack.c.l.b16 %v764
        %v1341 = vunpack.c.l.b16 %v765
        %v1342 = vunpack.c.h.b16 %v765
        %v1343 = vunpack.c.l.b16 %v766
        %v1344 = vunpack.c.h.b16 %v766
        %v1345 = vunpack.c.l.b16 %v767
        %v1346 = vunpack.c.h.b16 %v767
        %v1347 = vunpack.c.l.b16 %v768
        %v1348 = vunpack.c.h.b16 %v768
        %v1349 = vunpack.c.l.b16 %v769
        %v1350 = vunpack.c.l.b16 %v770
        %v1351 = vunpack.c.h.b16 %v770
        %v1352 = vunpack.c.l.b16 %v771
        %v1353 = vunpack.c.h.b16 %v771
        %v1354 = vunpack.c.l.b16 %v772
        %v1355 = vunpack.c.h.b16 %v772
        %v1356 = vunpack.c.l.b16 %v773
        %v1357 = vunpack.c.h.b16 %v773
        %v1358 = vunpack.c.l.b16 %v774
        %v1359 = vunpack.c.l.b16 %v775
        %v1360 = vunpack.c.h.b16 %v775
        %v1361 = vunpack.c.l.b16 %v776
        %v1362 = vunpack.c.h.b16 %v776
        %v1363 = vunpack.c.l.b16 %v777
        %v1364 = vunpack.c.h.b16 %v777
        %v1365 = vunpack.c.l.b16 %v778
        %v1366 = vunpack.c.h.b16 %v778
        %v1367 = vunpack.c.l.b16 %v779
        %v1368 = vunpack.c.l.b16 %v780
        %v1369 = vunpack.c.h.b16 %v780
        %v1370 = vunpack.c.l.b16 %v781
        %v1371 = vunpack.c.h.b16 %v781
        %v1372 = vunpack.c.l.b16 %v782
        %v1373 = vunpack.c.h.b16 %v782
        %v1374 = vunpack.c.l.b16 %v783
        %v1375 = vunpack.c.h.b16 %v783
        %v1376 = vunpack.c.l.b16 %v784
        %v1377 = vunpack.c.l.b16 %v785
        %v1378 = vunpack.c.h.b16 %v785
        %v1379 = vunpack.c.l.b16 %v786
        %v1380 = vunpack.c.h.b16 %v786
        %v1381 = vunpack.c.l.b16 %v787
        %v1382 = vunpack.c.h.b16 %v787
        %v1383 = vunpack.c.l.b16 %v788
        %v1384 = vunpack.c.h.b16 %v788
        %v1385 = vunpack.c.l.b16 %v789
        %v1386 = vunpack.c.l.b16 %v790
        %v1387 = vunpack.c.h.b16 %v790
        %v1388 = vunpack.c.l.b16 %v791
        %v1389 = vunpack.c.h.b16 %v791
        %v1390 = vunpack.c.l.b16 %v792
        %v1391 = vunpack.c.h.b16 %v792
        %v1392 = vunpack.c.l.b16 %v793
        %v1393 = vunpack.c.h.b16 %v793
        %v1394 = vunpack.c.l.b16 %v794
        %v1395 = vunpack.c.l.b16 %v795
        %v1396 = vunpack.c.h.b16 %v795
        %v1397 = vunpack.c.l.b16 %v796
        %v1398 = vunpack.c.h.b16 %v796
        %v1399 = vunpack.c.l.b16 %v797
        %v1400 = vunpack.c.h.b16 %v797
        %v1401 = vunpack.c.l.b16 %v798
        %v1402 = vunpack.c.h.b16 %v798
        %v1403 = vunpack.c.l.b16 %v799
        %v1404 = vunpack.c.l.b16 %v800
        %v1405 = vunpack.c.h.b16 %v800
        %v1406 = vunpack.c.l.b16 %v801
        %v1407 = vunpack.c.h.b16 %v801
        %v1408 = vunpack.c.l.b16 %v802
        %v1409 = vunpack.c.h.b16 %v802
        %v1410 = vunpack.c.l.b16 %v803
        %v1411 = vunpack.c.h.b16 %v803
        %v1412 = vunpack.c.l.b16 %v804
        %v1413 = vunpack.c.l.b16 %v805
        %v1414 = vunpack.c.h.b16 %v805
        %v1415 = vunpack.c.l.b16 %v806
        %v1416 = vunpack.c.h.b16 %v806
        %v1417 = vunpack.c.l.b16 %v807
        %v1418 = vunpack.c.h.b16 %v807
        %v1419 = vunpack.c.l.b16 %v808
        %v1420 = vunpack.c.h.b16 %v808
        %v1421 = vunpack.c.l.b16 %v809
        %v1422 = vunpack.c.l.b16 %v810
        %v1423 = vunpack.c.h.b16 %v810
        %v1424 = vunpack.c.l.b16 %v811
        %v1425 = vunpack.c.h.b16 %v811
        %v1426 = vunpack.c.l.b16 %v812
        %v1427 = vunpack.c.h.b16 %v812
        %v1428 = vunpack.c.l.b16 %v813
        %v1429 = vunpack.c.h.b16 %v813
        %v1430 = vunpack.c.l.b16 %v814
        %v1431 = vunpack.c.l.b16 %v815
        %v1432 = vunpack.c.h.b16 %v815
        %v1433 = vunpack.c.l.b16 %v816
        %v1434 = vunpack.c.h.b16 %v816
        %v1435 = vunpack.c.l.b16 %v817
        %v1436 = vunpack.c.h.b16 %v817
        %v1437 = vunpack.c.l.b16 %v818
        %v1438 = vunpack.c.h.b16 %v818
        %v1439 = vunpack.c.l.b16 %v819
        %v1440 = vunpack.c.l.b16 %v820
        %v1441 = vunpack.c.h.b16 %v820
        %v1442 = vunpack.c.l.b16 %v821
        %v1443 = vunpack.c.h.b16 %v821
        %v1444 = vunpack.c.l.b16 %v822
        %v1445 = vunpack.c.h.b16 %v822
        %v1446 = vunpack.c.l.b16 %v823
        %v1447 = vunpack.c.h.b16 %v823
        %v1448 = vunpack.c.l.b16 %v824
        %v1449 = vunpack.c.l.b16 %v825
        %v1450 = vunpack.c.h.b16 %v825
        %v1451 = vunpack.c.l.b16 %v826
        %v1452 = vunpack.c.h.b16 %v826
        %v1453 = vunpack.c.l.b16 %v827
        %v1454 = vunpack.c.h.b16 %v827
        %v1455 = vunpack.c.l.b16 %v828
        %v1456 = vunpack.c.h.b16 %v828
        %v1457 = vunpack.c.l.b16 %v829
        %v1458 = vunpack.c.l.b16 %v830
        %v1459 = vunpack.c.h.b16 %v830
        %v1460 = vunpack.c.l.b16 %v831
        %v1461 = vunpack.c.h.b16 %v831
        %v1462 = vunpack.c.l.b16 %v832
        %v1463 = vunpack.c.h.b16 %v832
        %v1464 = vunpack.c.l.b16 %v833
        %v1465 = vunpack.c.h.b16 %v833
        %v1466 = vunpack.c.l.b16 %v834
        %v1467 = vunpack.c.l.b16 %v835
        %v1468 = vunpack.c.h.b16 %v835
        %v1469 = vunpack.c.l.b16 %v836
        %v1470 = vunpack.c.h.b16 %v836
        %v1471 = vunpack.c.l.b16 %v837
        %v1472 = vunpack.c.h.b16 %v837
        %v1473 = vunpack.c.l.b16 %v838
        %v1474 = vunpack.c.h.b16 %v838
        %v1475 = vunpack.c.l.b16 %v839
        %v1476 = vunpack.c.l.b16 %v840
        %v1477 = vunpack.c.h.b16 %v840
        %v1478 = vunpack.c.l.b16 %v841
        %v1479 = vunpack.c.h.b16 %v841
        %v1480 = vunpack.c.l.b16 %v842
        %v1481 = vunpack.c.h.b16 %v842
        %v1482 = vunpack.c.l.b16 %v843
        %v1483 = vunpack.c.h.b16 %v843
        %v1484 = vunpack.c.l.b16 %v844
        %v1485 = vunpack.c.l.b16 %v845
        %v1486 = vunpack.c.h.b16 %v845
        %v1487 = vunpack.c.l.b16 %v846
        %v1488 = vunpack.c.h.b16 %v846
        %v1489 = vunpack.c.l.b16 %v847
        %v1490 = vunpack.c.h.b16 %v847
        %v1491 = vunpack.c.l.b16 %v848
        %v1492 = vunpack.c.h.b16 %v848
        %v1493 = vunpack.c.l.b16 %v849
        %v1494 = vunpack.c.l.b16 %v850
        %v1495 = vunpack.c.h.b16 %v850
        %v1496 = vunpack.c.l.b16 %v851
        %v1497 = vunpack.c.h.b16 %v851
        %v1498 = vunpack.c.l.b16 %v852
        %v1499 = vunpack.c.h.b16 %v852
        %v1500 = vunpack.c.l.b16 %v853
        %v1501 = vunpack.c.h.b16 %v853
        %v1502 = vunpack.c.l.b16 %v854
        %v1503 = vunpack.c.l.b16 %v855
        %v1504 = vunpack.c.h.b16 %v855
        %v1505 = vunpack.c.l.b16 %v856
        %v1506 = vunpack.c.h.b16 %v856
        %v1507 = vunpack.c.l.b16 %v857
        %v1508 = vunpack.c.h.b16 %v857
        %v1509 = vunpack.c.l.b16 %v858
        %v1510 = vunpack.c.h.b16 %v858
        %v1511 = vunpack.c.l.b16 %v859
        %v1512 = vunpack.c.l.b16 %v860
        %v1513 = vunpack.c.h.b16 %v860
        %v1514 = vunpack.c.l.b16 %v861
        %v1515 = vunpack.c.h.b16 %v861
        %v1516 = vunpack.c.l.b16 %v862
        %v1517 = vunpack.c.h.b16 %v862
        %v1518 = vunpack.c.l.b16 %v863
        %v1519 = vunpack.c.h.b16 %v863
        %v1520 = vunpack.c.l.b16 %v864
        %v1521 = vunpack.c.l.b16 %v865
        %v1522 = vunpack.c.h.b16 %v865
        %v1523 = vunpack.c.l.b16 %v866
        %v1524 = vunpack.c.h.b16 %v866
        %v1525 = vunpack.c.l.b16 %v867
        %v1526 = vunpack.c.h.b16 %v867
        %v1527 = vunpack.c.l.b16 %v868
        %v1528 = vunpack.c.h.b16 %v868
        %v1529 = vunpack.c.l.b16 %v869
        %v1530 = vunpack.c.l.b16 %v870
        %v1531 = vunpack.c.h.b16 %v870
        %v1532 = vunpack.c.l.b16 %v871
        %v1533 = vunpack.c.h.b16 %v871
        %v1534 = vunpack.c.l.b16 %v872
        %v1535 = vunpack.c.h.b16 %v872
        %v1536 = vunpack.c.l.b16 %v873
        %v1537 = vunpack.c.h.b16 %v873
        %v1538 = vunpack.c.l.b16 %v874
        %v1539 = vunpack.c.l.b16 %v875
        %v1540 = vunpack.c.h.b16 %v875
        %v1541 = vunpack.c.l.b16 %v876
        %v1542 = vunpack.c.h.b16 %v876
        %v1543 = vunpack.c.l.b16 %v877
        %v1544 = vunpack.c.h.b16 %v877
        %v1545 = vunpack.c.l.b16 %v878
        %v1546 = vunpack.c.h.b16 %v878
        %v1547 = vunpack.c.l.b16 %v879
        %v1548 = vunpack.c.l.b16 %v880
        %v1549 = vunpack.c.h.b16 %v880
        %v1550 = vunpack.c.l.b16 %v881
        %v1551 = vunpack.c.h.b16 %v881
        %v1552 = vunpack.c.l.b16 %v882
        %v1553 = vunpack.c.h.b16 %v882
        %v1554 = vunpack.c.l.b16 %v883
        %v1555 = vunpack.c.h.b16 %v883
        %v1556 = vunpack.c.l.b16 %v884
        %v1557 = vpack.c.b16 %v1134, %v1125
        %v1558 = vpack.c.b16 %v1135, %v1126
        %v1559 = vpack.c.b16 %v1136, %v1127
        %v1560 = vpack.c.b16 %v1137, %v1128
        %v1561 = vpack.c.b16 %v1138, %v1129
        %v1562 = vpack.c.b16 %v1139, %v1130
        %v1563 = vpack.c.b16 %v1140, %v1131
        %v1564 = vpack.c.b16 %v1141, %v1132
        %v1565 = vpack.c.b16 %v1142, %v1133
        %v1566 = vpack.c.b16 %v1152, %v1143
        %v1567 = vpack.c.b16 %v1153, %v1144
        %v1568 = vpack.c.b16 %v1154, %v1145
        %v1569 = vpack.c.b16 %v1155, %v1146
        %v1570 = vpack.c.b16 %v1156, %v1147
        %v1571 = vpack.c.b16 %v1157, %v1148
        %v1572 = vpack.c.b16 %v1158, %v1149
        %v1573 = vpack.c.b16 %v1159, %v1150
        %v1574 = vpack.c.b16 %v1160, %v1151
        %v1575 = vpack.c.b16 %v1170, %v1161
        %v1576 = vpack.c.b16 %v1171, %v1162
        %v1577 = vpack.c.b16 %v1172, %v1163
        %v1578 = vpack.c.b16 %v1173, %v1164
        %v1579 = vpack.c.b16 %v1174, %v1165
        %v1580 = vpack.c.b16 %v1175, %v1166
        %v1581 = vpack.c.b16 %v1176, %v1167
        %v1582 = vpack.c.b16 %v1177, %v1168
        %v1583 = vpack.c.b16 %v1178, %v1169
        %v1584 = vpack.c.b16 %v1188, %v1179
        %v1585 = vpack.c.b16 %v1189, %v1180
        %v1586 = vpack.c.b16 %v1190, %v1181
        %v1587 = vpack.c.b16 %v1191, %v1182
        %v1588 = vpack.c.b16 %v1192, %v1183
        %v1589 = vpack.c.b16 %v1193, %v1184
        %v1590 = vpack.c.b16 %v1194, %v1185
        %v1591 = vpack.c.b16 %v1195, %v1186
        %v1592 = vpack.c.b16 %v1196, %v1187
        %v1593 = vpack.c.b16 %v1206, %v1197
        %v1594 = vpack.c.b16 %v1207, %v1198
        %v1595 = vpack.c.b16 %v1208, %v1199
        %v1596 = vpack.c.b16 %v1209, %v1200
        %v1597 = vpack.c.b16 %v1210, %v1201
        %v1598 = vpack.c.b16 %v1211, %v1202
        %v1599 = vpack.c.b16 %v1212, %v1203
        %v1600 = vpack.c.b16 %v1213, %v1204
        %v1601 = vpack.c.b16 %v1214, %v1205
        %v1602 = vpack.c.b16 %v1224, %v1215
        %v1603 = vpack.c.b16 %v1225, %v1216
        %v1604 = vpack.c.b16 %v1226, %v1217
        %v1605 = vpack.c.b16 %v1227, %v1218
        %v1606 = vpack.c.b16 %v1228, %v1219
        %v1607 = vpack.c.b16 %v1229, %v1220
        %v1608 = vpack.c.b16 %v1230, %v1221
        %v1609 = vpack.c.b16 %v1231, %v1222
        %v1610 = vpack.c.b16 %v1232, %v1223
        %v1611 = vpack.c.b16 %v1242, %v1233
        %v1612 = vpack.c.b16 %v1243, %v1234
        %v1613 = vpack.c.b16 %v1244, %v1235
        %v1614 = vpack.c.b16 %v1245, %v1236
        %v1615 = vpack.c.b16 %v1246, %v1237
        %v1616 = vpack.c.b16 %v1247, %v1238
        %v1617 = vpack.c.b16 %v1248, %v1239
        %v1618 = vpack.c.b16 %v1249, %v1240
        %v1619 = vpack.c.b16 %v1250, %v1241
        %v1620 = vpack.c.b16 %v1260, %v1251
        %v1621 = vpack.c.b16 %v1261, %v1252
        %v1622 = vpack.c.b16 %v1262, %v1253
        %v1623 = vpack.c.b16 %v1263, %v1254
        %v1624 = vpack.c.b16 %v1264, %v1255
        %v1625 = vpack.c.b16 %v1265, %v1256
        %v1626 = vpack.c.b16 %v1266, %v1257
        %v1627 = vpack.c.b16 %v1267, %v1258
        %v1628 = vpack.c.b16 %v1268, %v1259
        %v1629 = vpack.c.b16 %v1278, %v1269
        %v1630 = vpack.c.b16 %v1279, %v1270
        %v1631 = vpack.c.b16 %v1280, %v1271
        %v1632 = vpack.c.b16 %v1281, %v1272
        %v1633 = vpack.c.b16 %v1282, %v1273
        %v1634 = vpack.c.b16 %v1283, %v1274
        %v1635 = vpack.c.b16 %v1284, %v1275
        %v1636 = vpack.c.b16 %v1285, %v1276
        %v1637 = vpack.c.b16 %v1286, %v1277
        %v1638 = vpack.c.b16 %v1296, %v1287
        %v1639 = vpack.c.b16 %v1297, %v1288
        %v1640 = vpack.c.b16 %v1298, %v1289
        %v1641 = vpack.c.b16 %v1299, %v1290
        %v1642 = vpack.c.b16 %v1300, %v1291
        %v1643 = vpack.c.b16 %v1301, %v1292
        %v1644 = vpack.c.b16 %v1302, %v1293
        %v1645 = vpack.c.b16 %v1303, %v1294
        %v1646 = vpack.c.b16 %v1304, %v1295
        %v1647 = vpack.c.b16 %v1314, %v1305
        %v1648 = vpack.c.b16 %v1315, %v1306
        %v1649 = vpack.c.b16 %v1316, %v1307
        %v1650 = vpack.c.b16 %v1317, %v1308
        %v1651 = vpack.c.b16 %v1318, %v1309
        %v1652 = vpack.c.b16 %v1319, %v1310
        %v1653 = vpack.c.b16 %v1320, %v1311
        %v1654 = vpack.c.b16 %v1321, %v1312
        %v1655 = vpack.c.b16 %v1322, %v1313
        %v1656 = vpack.c.b16 %v1332, %v1323
        %v1657 = vpack.c.b16 %v1333, %v1324
        %v1658 = vpack.c.b16 %v1334, %v1325
        %v1659 = vpack.c.b16 %v1335, %v1326
        %v1660 = vpack.c.b16 %v1336, %v1327
        %v1661 = vpack.c.b16 %v1337, %v1328
        %v1662 = vpack.c.b16 %v1338, %v1329
        %v1663 = vpack.c.b16 %v1339, %v1330
        %v1664 = vpack.c.b16 %v1340, %v1331
        %v1665 = vpack.c.b16 %v1350, %v1341
        %v1666 = vpack.c.b16 %v1351, %v1342
        %v1667 = vpack.c.b16 %v1352, %v1343
        %v1668 = vpack.c.b16 %v1353, %v1344
        %v1669 = vpack.c.b16 %v1354, %v1345
        %v1670 = vpack.c.b16 %v1355, %v1346
        %v1671 = vpack.c.b16 %v1356, %v1347
        %v1672 = vpack.c.b16 %v1357, %v1348
        %v1673 = vpack.c.b16 %v1358, %v1349
        %v1674 = vpack.c.b16 %v1368, %v1359
        %v1675 = vpack.c.b16 %v1369, %v1360
        %v1676 = vpack.c.b16 %v1370, %v1361
        %v1677 = vpack.c.b16 %v1371, %v1362
        %v1678 = vpack.c.b16 %v1372, %v1363
        %v1679 = vpack.c.b16 %v1373, %v1364
        %v1680 = vpack.c.b16 %v1374, %v1365
        %v1681 = vpack.c.b16 %v1375, %v1366
        %v1682 = vpack.c.b16 %v1376, %v1367
        %v1683 = vpack.c.b16 %v1386, %v1377
        %v1684 = vpack.c.b16 %v1387, %v1378
        %v1685 = vpack.c.b16 %v1388, %v1379
        %v1686 = vpack.c.b16 %v1389, %v1380
        %v1687 = vpack.c.b16 %v1390, %v1381
        %v1688 = vpack.c.b16 %v1391, %v1382
        %v1689 = vpack.c.b16 %v1392, %v1383
        %v1690 = vpack.c.b16 %v1393, %v1384
        %v1691 = vpack.c.b16 %v1394, %v1385
        %v1692 = vpack.c.b16 %v1404, %v1395
        %v1693 = vpack.c.b16 %v1405, %v1396
        %v1694 = vpack.c.b16 %v1406, %v1397
        %v1695 = vpack.c.b16 %v1407, %v1398
        %v1696 = vpack.c.b16 %v1408, %v1399
        %v1697 = vpack.c.b16 %v1409, %v1400
        %v1698 = vpack.c.b16 %v1410, %v1401
        %v1699 = vpack.c.b16 %v1411, %v1402
        %v1700 = vpack.c.b16 %v1412, %v1403
        %v1701 = vpack.c.b16 %v1422, %v1413
        %v1702 = vpack.c.b16 %v1423, %v1414
        %v1703 = vpack.c.b16 %v1424, %v1415
        %v1704 = vpack.c.b16 %v1425, %v1416
        %v1705 = vpack.c.b16 %v1426, %v1417
        %v1706 = vpack.c.b16 %v1427, %v1418
        %v1707 = vpack.c.b16 %v1428, %v1419
        %v1708 = vpack.c.b16 %v1429, %v1420
        %v1709 = vpack.c.b16 %v1430, %v1421
        %v1710 = vpack.c.b16 %v1440, %v1431
        %v1711 = vpack.c.b16 %v1441, %v1432
        %v1712 = vpack.c.b16 %v1442, %v1433
        %v1713 = vpack.c.b16 %v1443, %v1434
        %v1714 = vpack.c.b16 %v1444, %v1435
        %v1715 = vpack.c.b16 %v1445, %v1436
        %v1716 = vpack.c.b16 %v1446, %v1437
        %v1717 = vpack.c.b16 %v1447, %v1438
        %v1718 = vpack.c.b16 %v1448, %v1439
        %v1719 = vpack.c.b16 %v1458, %v1449
        %v1720 = vpack.c.b16 %v1459, %v1450
        %v1721 = vpack.c.b16 %v1460, %v1451
        %v1722 = vpack.c.b16 %v1461, %v1452
        %v1723 = vpack.c.b16 %v1462, %v1453
        %v1724 = vpack.c.b16 %v1463, %v1454
        %v1725 = vpack.c.b16 %v1464, %v1455
        %v1726 = vpack.c.b16 %v1465, %v1456
        %v1727 = vpack.c.b16 %v1466, %v1457
        %v1728 = vpack.c.b16 %v1476, %v1467
        %v1729 = vpack.c.b16 %v1477, %v1468
        %v1730 = vpack.c.b16 %v1478, %v1469
        %v1731 = vpack.c.b16 %v1479, %v1470
        %v1732 = vpack.c.b16 %v1480, %v1471
        %v1733 = vpack.c.b16 %v1481, %v1472
        %v1734 = vpack.c.b16 %v1482, %v1473
        %v1735 = vpack.c.b16 %v1483, %v1474
        %v1736 = vpack.c.b16 %v1484, %v1475
        %v1737 = vpack.c.b16 %v1494, %v1485
        %v1738 = vpack.c.b16 %v1495, %v1486
        %v1739 = vpack.c.b16 %v1496, %v1487
        %v1740 = vpack.c.b16 %v1497, %v1488
        %v1741 = vpack.c.b16 %v1498, %v1489
        %v1742 = vpack.c.b16 %v1499, %v1490
        %v1743 = vpack.c.b16 %v1500, %v1491
        %v1744 = vpack.c.b16 %v1501, %v1492
        %v1745 = vpack.c.b16 %v1502, %v1493
        %v1746 = vpack.c.b16 %v1512, %v1503
        %v1747 = vpack.c.b16 %v1513, %v1504
        %v1748 = vpack.c.b16 %v1514, %v1505
        %v1749 = vpack.c.b16 %v1515, %v1506
        %v1750 = vpack.c.b16 %v1516, %v1507
        %v1751 = vpack.c.b16 %v1517, %v1508
        %v1752 = vpack.c.b16 %v1518, %v1509
        %v1753 = vpack.c.b16 %v1519, %v1510
        %v1754 = vpack.c.b16 %v1520, %v1511
        %v1755 = vpack.c.b16 %v1530, %v1521
        %v1756 = vpack.c.b16 %v1531, %v1522
        %v1757 = vpack.c.b16 %v1532, %v1523
        %v1758 = vpack.c.b16 %v1533, %v1524
        %v1759 = vpack.c.b16 %v1534, %v1525
        %v1760 = vpack.c.b16 %v1535, %v1526
        %v1761 = vpack.c.b16 %v1536, %v1527
        %v1762 = vpack.c.b16 %v1537, %v1528
        %v1763 = vpack.c.b16 %v1538, %v1529
        %v1764 = vpack.c.b16 %v1548, %v1539
        %v1765 = vpack.c.b16 %v1549, %v1540
        %v1766 = vpack.c.b16 %v1550, %v1541
        %v1767 = vpack.c.b16 %v1551, %v1542
        %v1768 = vpack.c.b16 %v1552, %v1543
        %v1769 = vpack.c.b16 %v1553, %v1544
        %v1770 = vpack.c.b16 %v1554, %v1545
        %v1771 = vpack.c.b16 %v1555, %v1546
        %v1772 = vpack.c.b16 %v1556, %v1547
        %1989 = vmatprep.subr.bf16.mxu0 %v1621
        %1990 = vmatpush1.bf16.msra.mxu0 %v1620
        %1991 = vmatprep.subr.bf16.mxu0 %v1612
        %1992 = vmatpush1.bf16.msra.mxu0 %v1611
        %1993 = vmatprep.subr.bf16.mxu0 %v1603
        %1994 = vmatpush1.bf16.msra.mxu0 %v1602
        %1995 = vmatprep.subr.bf16.mxu0 %v1594
        %1996 = vmatpush1.bf16.msra.mxu0 %v1593
        %1997 = vmatprep.subr.bf16.mxu0 %v1585
        %1998 = vmatpush1.bf16.msra.mxu0 %v1584
        %1999 = vmatprep.subr.bf16.mxu0 %v1576
        %2000 = vmatpush1.bf16.msra.mxu0 %v1575
        %2001 = vmatprep.subr.bf16.mxu0 %v1567
        %2002 = vmatpush1.bf16.msra.mxu0 %v1566
        %2003 = vmatprep.subr.bf16.mxu0 %v1558
        %2004 = vmatpush1.bf16.msra.mxu0 %v1557
        %2005 = vmatprep.subr.bf16.mxu0 %v1693
        %2006 = vmatpush2.bf16.msra.mxu0 %v1692
        %2007 = vmatprep.subr.bf16.mxu0 %v1684
        %2008 = vmatpush2.bf16.msra.mxu0 %v1683
        %2009 = vmatprep.subr.bf16.mxu0 %v1675
        %2010 = vmatpush2.bf16.msra.mxu0 %v1674
        %2011 = vmatprep.subr.bf16.mxu0 %v1666
        %2012 = vmatpush2.bf16.msra.mxu0 %v1665
        %2013 = vmatprep.subr.bf16.mxu0 %v1657
        %2014 = vmatpush2.bf16.msra.mxu0 %v1656
        %2015 = vmatprep.subr.bf16.mxu0 %v1648
        %2016 = vmatpush2.bf16.msra.mxu0 %v1647
        %2017 = vmatprep.subr.bf16.mxu0 %v1639
        %2018 = vmatpush2.bf16.msra.mxu0 %v1638
        %2019 = vmatprep.subr.bf16.mxu0 %v1630
        %2020 = vmatpush2.bf16.msra.mxu0 %v1629
        %2021 = vmatprep.mubr.bf16.mxu0 %v643
        %2022 = vmatmul.mubr.bf16.gmra.mxu0 %v642
        %v2023 = vpop.f32.mrf.mxu0
        %v2024 = vadd.f32 0.0, %v2023
        %v2025 = vpop.f32.mrf.mxu0
        %v2026 = vadd.f32 0.0, %v2025
        %v2027 = vpop.f32.mrf.mxu0
        %v2028 = vpop.f32.mrf.mxu0
        %2029 = vdwg.mxu0
        %2030 = vmatprep.subr.bf16.mxu0 %v1765
        %2031 = vmatpush1.bf16.msra.mxu0 %v1764
        %2032 = vmatprep.subr.bf16.mxu0 %v1756
        %2033 = vmatpush1.bf16.msra.mxu0 %v1755
        %2034 = vmatprep.subr.bf16.mxu0 %v1747
        %2035 = vmatpush1.bf16.msra.mxu0 %v1746
        %2036 = vmatprep.subr.bf16.mxu0 %v1738
        %2037 = vmatpush1.bf16.msra.mxu0 %v1737
        %2038 = vmatprep.subr.bf16.mxu0 %v1729
        %2039 = vmatpush1.bf16.msra.mxu0 %v1728
        %2040 = vmatprep.subr.bf16.mxu0 %v1720
        %2041 = vmatpush1.bf16.msra.mxu0 %v1719
        %2042 = vmatprep.subr.bf16.mxu0 %v1711
        %2043 = vmatpush1.bf16.msra.mxu0 %v1710
        %2044 = vmatprep.subr.bf16.mxu0 %v1702
        %2045 = vmatpush1.bf16.msra.mxu0 %v1701
        %2046 = vmatprep.subr.bf16.mxu0 0
        %2047 = vmatpush2.bf16.msra.mxu0 0
        %2048 = vmatprep.subr.bf16.mxu0 0
        %2049 = vmatpush2.bf16.msra.mxu0 0
        %2050 = vmatprep.subr.bf16.mxu0 0
        %2051 = vmatpush2.bf16.msra.mxu0 0
        %2052 = vmatprep.subr.bf16.mxu0 0
        %2053 = vmatpush2.bf16.msra.mxu0 0
        %2054 = vmatprep.subr.bf16.mxu0 0
        %2055 = vmatpush2.bf16.msra.mxu0 0
        %2056 = vmatprep.subr.bf16.mxu0 0
        %2057 = vmatpush2.bf16.msra.mxu0 0
        %2058 = vmatprep.subr.bf16.mxu0 0
        %2059 = vmatpush2.bf16.msra.mxu0 0
        %2060 = vmatprep.subr.bf16.mxu0 0
        %2061 = vmatpush2.bf16.msra.mxu0 0
        %2062 = vmatprep.mubr.bf16.mxu0 0
        %2063 = vmatmul.mubr.bf16.gmra.mxu0 %v644
        %v2064 = vpop.f32.mrf.mxu0
        %v2065 = vadd.f32 %v2024, %v2064
        %v2066 = vpop.f32.mrf.mxu0
        %v2067 = vadd.f32 %v2026, %v2066
        %v2068 = vpop.f32.mrf.mxu0
        %v2069 = vpop.f32.mrf.mxu0
        %2070 = vdwg.mxu0
        %2071 = vmatprep.subr.bf16.mxu0 %v1623
        %2072 = vmatpush1.bf16.msra.mxu0 %v1622
        %2073 = vmatprep.subr.bf16.mxu0 %v1614
        %2074 = vmatpush1.bf16.msra.mxu0 %v1613
        %2075 = vmatprep.subr.bf16.mxu0 %v1605
        %2076 = vmatpush1.bf16.msra.mxu0 %v1604
        %2077 = vmatprep.subr.bf16.mxu0 %v1596
        %2078 = vmatpush1.bf16.msra.mxu0 %v1595
        %2079 = vmatprep.subr.bf16.mxu0 %v1587
        %2080 = vmatpush1.bf16.msra.mxu0 %v1586
        %2081 = vmatprep.subr.bf16.mxu0 %v1578
        %2082 = vmatpush1.bf16.msra.mxu0 %v1577
        %2083 = vmatprep.subr.bf16.mxu0 %v1569
        %2084 = vmatpush1.bf16.msra.mxu0 %v1568
        %2085 = vmatprep.subr.bf16.mxu0 %v1560
        %2086 = vmatpush1.bf16.msra.mxu0 %v1559
        %2087 = vmatprep.subr.bf16.mxu0 %v1695
        %2088 = vmatpush2.bf16.msra.mxu0 %v1694
        %2089 = vmatprep.subr.bf16.mxu0 %v1686
        %2090 = vmatpush2.bf16.msra.mxu0 %v1685
        %2091 = vmatprep.subr.bf16.mxu0 %v1677
        %2092 = vmatpush2.bf16.msra.mxu0 %v1676
        %2093 = vmatprep.subr.bf16.mxu0 %v1668
        %2094 = vmatpush2.bf16.msra.mxu0 %v1667
        %2095 = vmatprep.subr.bf16.mxu0 %v1659
        %2096 = vmatpush2.bf16.msra.mxu0 %v1658
        %2097 = vmatprep.subr.bf16.mxu0 %v1650
        %2098 = vmatpush2.bf16.msra.mxu0 %v1649
        %2099 = vmatprep.subr.bf16.mxu0 %v1641
        %2100 = vmatpush2.bf16.msra.mxu0 %v1640
        %2101 = vmatprep.subr.bf16.mxu0 %v1632
        %2102 = vmatpush2.bf16.msra.mxu0 %v1631
        %2103 = vmatprep.mubr.bf16.mxu0 %v643
        %2104 = vmatmul.mubr.bf16.gmra.mxu0 %v642
        %v2105 = vpop.f32.mrf.mxu0
        %v2106 = vadd.f32 0.0, %v2105
        %v2107 = vpop.f32.mrf.mxu0
        %v2108 = vadd.f32 0.0, %v2107
        %v2109 = vpop.f32.mrf.mxu0
        %v2110 = vpop.f32.mrf.mxu0
        %2111 = vdwg.mxu0
        %2112 = vmatprep.subr.bf16.mxu0 %v1767
        %2113 = vmatpush1.bf16.msra.mxu0 %v1766
        %2114 = vmatprep.subr.bf16.mxu0 %v1758
        %2115 = vmatpush1.bf16.msra.mxu0 %v1757
        %2116 = vmatprep.subr.bf16.mxu0 %v1749
        %2117 = vmatpush1.bf16.msra.mxu0 %v1748
        %2118 = vmatprep.subr.bf16.mxu0 %v1740
        %2119 = vmatpush1.bf16.msra.mxu0 %v1739
        %2120 = vmatprep.subr.bf16.mxu0 %v1731
        %2121 = vmatpush1.bf16.msra.mxu0 %v1730
        %2122 = vmatprep.subr.bf16.mxu0 %v1722
        %2123 = vmatpush1.bf16.msra.mxu0 %v1721
        %2124 = vmatprep.subr.bf16.mxu0 %v1713
        %2125 = vmatpush1.bf16.msra.mxu0 %v1712
        %2126 = vmatprep.subr.bf16.mxu0 %v1704
        %2127 = vmatpush1.bf16.msra.mxu0 %v1703
        %2128 = vmatprep.subr.bf16.mxu0 0
        %2129 = vmatpush2.bf16.msra.mxu0 0
        %2130 = vmatprep.subr.bf16.mxu0 0
        %2131 = vmatpush2.bf16.msra.mxu0 0
        %2132 = vmatprep.subr.bf16.mxu0 0
        %2133 = vmatpush2.bf16.msra.mxu0 0
        %2134 = vmatprep.subr.bf16.mxu0 0
        %2135 = vmatpush2.bf16.msra.mxu0 0
        %2136 = vmatprep.subr.bf16.mxu0 0
        %2137 = vmatpush2.bf16.msra.mxu0 0
        %2138 = vmatprep.subr.bf16.mxu0 0
        %2139 = vmatpush2.bf16.msra.mxu0 0
        %2140 = vmatprep.subr.bf16.mxu0 0
        %2141 = vmatpush2.bf16.msra.mxu0 0
        %2142 = vmatprep.subr.bf16.mxu0 0
        %2143 = vmatpush2.bf16.msra.mxu0 0
        %2144 = vmatprep.mubr.bf16.mxu0 0
        %2145 = vmatmul.mubr.bf16.gmra.mxu0 %v644
        %v2146 = vpop.f32.mrf.mxu0
        %v2147 = vadd.f32 %v2106, %v2146
        %v2148 = vpop.f32.mrf.mxu0
        %v2149 = vadd.f32 %v2108, %v2148
        %v2150 = vpop.f32.mrf.mxu0
        %v2151 = vpop.f32.mrf.mxu0
        %2152 = vdwg.mxu0
        %2153 = vmatprep.subr.bf16.mxu0 %v1625
        %2154 = vmatpush1.bf16.msra.mxu0 %v1624
        %2155 = vmatprep.subr.bf16.mxu0 %v1616
        %2156 = vmatpush1.bf16.msra.mxu0 %v1615
        %2157 = vmatprep.subr.bf16.mxu0 %v1607
        %2158 = vmatpush1.bf16.msra.mxu0 %v1606
        %2159 = vmatprep.subr.bf16.mxu0 %v1598
        %2160 = vmatpush1.bf16.msra.mxu0 %v1597
        %2161 = vmatprep.subr.bf16.mxu0 %v1589
        %2162 = vmatpush1.bf16.msra.mxu0 %v1588
        %2163 = vmatprep.subr.bf16.mxu0 %v1580
        %2164 = vmatpush1.bf16.msra.mxu0 %v1579
        %2165 = vmatprep.subr.bf16.mxu0 %v1571
        %2166 = vmatpush1.bf16.msra.mxu0 %v1570
        %2167 = vmatprep.subr.bf16.mxu0 %v1562
        %2168 = vmatpush1.bf16.msra.mxu0 %v1561
        %2169 = vmatprep.subr.bf16.mxu0 %v1697
        %2170 = vmatpush2.bf16.msra.mxu0 %v1696
        %2171 = vmatprep.subr.bf16.mxu0 %v1688
        %2172 = vmatpush2.bf16.msra.mxu0 %v1687
        %2173 = vmatprep.subr.bf16.mxu0 %v1679
        %2174 = vmatpush2.bf16.msra.mxu0 %v1678
        %2175 = vmatprep.subr.bf16.mxu0 %v1670
        %2176 = vmatpush2.bf16.msra.mxu0 %v1669
        %2177 = vmatprep.subr.bf16.mxu0 %v1661
        %2178 = vmatpush2.bf16.msra.mxu0 %v1660
        %2179 = vmatprep.subr.bf16.mxu0 %v1652
        %2180 = vmatpush2.bf16.msra.mxu0 %v1651
        %2181 = vmatprep.subr.bf16.mxu0 %v1643
        %2182 = vmatpush2.bf16.msra.mxu0 %v1642
        %2183 = vmatprep.subr.bf16.mxu0 %v1634
        %2184 = vmatpush2.bf16.msra.mxu0 %v1633
        %2185 = vmatprep.mubr.bf16.mxu0 %v643
        %2186 = vmatmul.mubr.bf16.gmra.mxu0 %v642
        %v2187 = vpop.f32.mrf.mxu0
        %v2188 = vadd.f32 0.0, %v2187
        %v2189 = vpop.f32.mrf.mxu0
        %v2190 = vadd.f32 0.0, %v2189
        %v2191 = vpop.f32.mrf.mxu0
        %v2192 = vpop.f32.mrf.mxu0
        %2193 = vdwg.mxu0
        %2194 = vmatprep.subr.bf16.mxu0 %v1769
        %2195 = vmatpush1.bf16.msra.mxu0 %v1768
        %2196 = vmatprep.subr.bf16.mxu0 %v1760
        %2197 = vmatpush1.bf16.msra.mxu0 %v1759
        %2198 = vmatprep.subr.bf16.mxu0 %v1751
        %2199 = vmatpush1.bf16.msra.mxu0 %v1750
        %2200 = vmatprep.subr.bf16.mxu0 %v1742
        %2201 = vmatpush1.bf16.msra.mxu0 %v1741
        %2202 = vmatprep.subr.bf16.mxu0 %v1733
        %2203 = vmatpush1.bf16.msra.mxu0 %v1732
        %2204 = vmatprep.subr.bf16.mxu0 %v1724
        %2205 = vmatpush1.bf16.msra.mxu0 %v1723
        %2206 = vmatprep.subr.bf16.mxu0 %v1715
        %2207 = vmatpush1.bf16.msra.mxu0 %v1714
        %2208 = vmatprep.subr.bf16.mxu0 %v1706
        %2209 = vmatpush1.bf16.msra.mxu0 %v1705
        %2210 = vmatprep.subr.bf16.mxu0 0
        %2211 = vmatpush2.bf16.msra.mxu0 0
        %2212 = vmatprep.subr.bf16.mxu0 0
        %2213 = vmatpush2.bf16.msra.mxu0 0
        %2214 = vmatprep.subr.bf16.mxu0 0
        %2215 = vmatpush2.bf16.msra.mxu0 0
        %2216 = vmatprep.subr.bf16.mxu0 0
        %2217 = vmatpush2.bf16.msra.mxu0 0
        %2218 = vmatprep.subr.bf16.mxu0 0
        %2219 = vmatpush2.bf16.msra.mxu0 0
        %2220 = vmatprep.subr.bf16.mxu0 0
        %2221 = vmatpush2.bf16.msra.mxu0 0
        %2222 = vmatprep.subr.bf16.mxu0 0
        %2223 = vmatpush2.bf16.msra.mxu0 0
        %2224 = vmatprep.subr.bf16.mxu0 0
        %2225 = vmatpush2.bf16.msra.mxu0 0
        %2226 = vmatprep.mubr.bf16.mxu0 0
        %2227 = vmatmul.mubr.bf16.gmra.mxu0 %v644
        %v2228 = vpop.f32.mrf.mxu0
        %v2229 = vadd.f32 %v2188, %v2228
        %v2230 = vpop.f32.mrf.mxu0
        %v2231 = vadd.f32 %v2190, %v2230
        %v2232 = vpop.f32.mrf.mxu0
        %v2233 = vpop.f32.mrf.mxu0
        %2234 = vdwg.mxu0
        %2235 = vmatprep.subr.bf16.mxu0 %v1627
        %2236 = vmatpush1.bf16.msra.mxu0 %v1626
        %2237 = vmatprep.subr.bf16.mxu0 %v1618
        %2238 = vmatpush1.bf16.msra.mxu0 %v1617
        %2239 = vmatprep.subr.bf16.mxu0 %v1609
        %2240 = vmatpush1.bf16.msra.mxu0 %v1608
        %2241 = vmatprep.subr.bf16.mxu0 %v1600
        %2242 = vmatpush1.bf16.msra.mxu0 %v1599
        %2243 = vmatprep.subr.bf16.mxu0 %v1591
        %2244 = vmatpush1.bf16.msra.mxu0 %v1590
        %2245 = vmatprep.subr.bf16.mxu0 %v1582
        %2246 = vmatpush1.bf16.msra.mxu0 %v1581
        %2247 = vmatprep.subr.bf16.mxu0 %v1573
        %2248 = vmatpush1.bf16.msra.mxu0 %v1572
        %2249 = vmatprep.subr.bf16.mxu0 %v1564
        %2250 = vmatpush1.bf16.msra.mxu0 %v1563
        %2251 = vmatprep.subr.bf16.mxu0 %v1699
        %2252 = vmatpush2.bf16.msra.mxu0 %v1698
        %2253 = vmatprep.subr.bf16.mxu0 %v1690
        %2254 = vmatpush2.bf16.msra.mxu0 %v1689
        %2255 = vmatprep.subr.bf16.mxu0 %v1681
        %2256 = vmatpush2.bf16.msra.mxu0 %v1680
        %2257 = vmatprep.subr.bf16.mxu0 %v1672
        %2258 = vmatpush2.bf16.msra.mxu0 %v1671
        %2259 = vmatprep.subr.bf16.mxu0 %v1663
        %2260 = vmatpush2.bf16.msra.mxu0 %v1662
        %2261 = vmatprep.subr.bf16.mxu0 %v1654
        %2262 = vmatpush2.bf16.msra.mxu0 %v1653
        %2263 = vmatprep.subr.bf16.mxu0 %v1645
        %2264 = vmatpush2.bf16.msra.mxu0 %v1644
        %2265 = vmatprep.subr.bf16.mxu0 %v1636
        %2266 = vmatpush2.bf16.msra.mxu0 %v1635
        %2267 = vmatprep.mubr.bf16.mxu0 %v643
        %2268 = vmatmul.mubr.bf16.gmra.mxu0 %v642
        %v2269 = vpop.f32.mrf.mxu0
        %v2270 = vadd.f32 0.0, %v2269
        %v2271 = vpop.f32.mrf.mxu0
        %v2272 = vadd.f32 0.0, %v2271
        %v2273 = vpop.f32.mrf.mxu0
        %v2274 = vpop.f32.mrf.mxu0
        %2275 = vdwg.mxu0
        %2276 = vmatprep.subr.bf16.mxu0 %v1771
        %2277 = vmatpush1.bf16.msra.mxu0 %v1770
        %2278 = vmatprep.subr.bf16.mxu0 %v1762
        %2279 = vmatpush1.bf16.msra.mxu0 %v1761
        %2280 = vmatprep.subr.bf16.mxu0 %v1753
        %2281 = vmatpush1.bf16.msra.mxu0 %v1752
        %2282 = vmatprep.subr.bf16.mxu0 %v1744
        %2283 = vmatpush1.bf16.msra.mxu0 %v1743
        %2284 = vmatprep.subr.bf16.mxu0 %v1735
        %2285 = vmatpush1.bf16.msra.mxu0 %v1734
        %2286 = vmatprep.subr.bf16.mxu0 %v1726
        %2287 = vmatpush1.bf16.msra.mxu0 %v1725
        %2288 = vmatprep.subr.bf16.mxu0 %v1717
        %2289 = vmatpush1.bf16.msra.mxu0 %v1716
        %2290 = vmatprep.subr.bf16.mxu0 %v1708
        %2291 = vmatpush1.bf16.msra.mxu0 %v1707
        %2292 = vmatprep.subr.bf16.mxu0 0
        %2293 = vmatpush2.bf16.msra.mxu0 0
        %2294 = vmatprep.subr.bf16.mxu0 0
        %2295 = vmatpush2.bf16.msra.mxu0 0
        %2296 = vmatprep.subr.bf16.mxu0 0
        %2297 = vmatpush2.bf16.msra.mxu0 0
        %2298 = vmatprep.subr.bf16.mxu0 0
        %2299 = vmatpush2.bf16.msra.mxu0 0
        %2300 = vmatprep.subr.bf16.mxu0 0
        %2301 = vmatpush2.bf16.msra.mxu0 0
        %2302 = vmatprep.subr.bf16.mxu0 0
        %2303 = vmatpush2.bf16.msra.mxu0 0
        %2304 = vmatprep.subr.bf16.mxu0 0
        %2305 = vmatpush2.bf16.msra.mxu0 0
        %2306 = vmatprep.subr.bf16.mxu0 0
        %2307 = vmatpush2.bf16.msra.mxu0 0
        %2308 = vmatprep.mubr.bf16.mxu0 0
        %2309 = vmatmul.mubr.bf16.gmra.mxu0 %v644
        %v2310 = vpop.f32.mrf.mxu0
        %v2311 = vadd.f32 %v2270, %v2310
        %v2312 = vpop.f32.mrf.mxu0
        %v2313 = vadd.f32 %v2272, %v2312
        %v2314 = vpop.f32.mrf.mxu0
        %v2315 = vpop.f32.mrf.mxu0
        %2316 = vdwg.mxu0
        %2317 = vmatprep.subr.bf16.mxu0 0
        %2318 = vmatpush1.bf16.msra.mxu0 %v1628
        %2319 = vmatprep.subr.bf16.mxu0 0
        %2320 = vmatpush1.bf16.msra.mxu0 %v1619
        %2321 = vmatprep.subr.bf16.mxu0 0
        %2322 = vmatpush1.bf16.msra.mxu0 %v1610
        %2323 = vmatprep.subr.bf16.mxu0 0
        %2324 = vmatpush1.bf16.msra.mxu0 %v1601
        %2325 = vmatprep.subr.bf16.mxu0 0
        %2326 = vmatpush1.bf16.msra.mxu0 %v1592
        %2327 = vmatprep.subr.bf16.mxu0 0
        %2328 = vmatpush1.bf16.msra.mxu0 %v1583
        %2329 = vmatprep.subr.bf16.mxu0 0
        %2330 = vmatpush1.bf16.msra.mxu0 %v1574
        %2331 = vmatprep.subr.bf16.mxu0 0
        %2332 = vmatpush1.bf16.msra.mxu0 %v1565
        %2333 = vmatprep.subr.bf16.mxu0 0
        %2334 = vmatpush2.bf16.msra.mxu0 %v1700
        %2335 = vmatprep.subr.bf16.mxu0 0
        %2336 = vmatpush2.bf16.msra.mxu0 %v1691
        %2337 = vmatprep.subr.bf16.mxu0 0
        %2338 = vmatpush2.bf16.msra.mxu0 %v1682
        %2339 = vmatprep.subr.bf16.mxu0 0
        %2340 = vmatpush2.bf16.msra.mxu0 %v1673
        %2341 = vmatprep.subr.bf16.mxu0 0
        %2342 = vmatpush2.bf16.msra.mxu0 %v1664
        %2343 = vmatprep.subr.bf16.mxu0 0
        %2344 = vmatpush2.bf16.msra.mxu0 %v1655
        %2345 = vmatprep.subr.bf16.mxu0 0
        %2346 = vmatpush2.bf16.msra.mxu0 %v1646
        %2347 = vmatprep.subr.bf16.mxu0 0
        %2348 = vmatpush2.bf16.msra.mxu0 %v1637
        %2349 = vmatprep.mubr.bf16.mxu0 %v643
        %2350 = vmatmul.mubr.bf16.gmra.mxu0 %v642
        %v2351 = vpop.f32.mrf.mxu0
        %v2352 = vadd.f32 0.0, %v2351
        %v2353 = vpop.f32.mrf.mxu0
        %v2354 = vpop.f32.mrf.mxu0
        %v2355 = vpop.f32.mrf.mxu0
        %2356 = vdwg.mxu0
        %2357 = vmatprep.subr.bf16.mxu0 0
        %2358 = vmatpush1.bf16.msra.mxu0 %v1772
        %2359 = vmatprep.subr.bf16.mxu0 0
        %2360 = vmatpush1.bf16.msra.mxu0 %v1763
        %2361 = vmatprep.subr.bf16.mxu0 0
        %2362 = vmatpush1.bf16.msra.mxu0 %v1754
        %2363 = vmatprep.subr.bf16.mxu0 0
        %2364 = vmatpush1.bf16.msra.mxu0 %v1745
        %2365 = vmatprep.subr.bf16.mxu0 0
        %2366 = vmatpush1.bf16.msra.mxu0 %v1736
        %2367 = vmatprep.subr.bf16.mxu0 0
        %2368 = vmatpush1.bf16.msra.mxu0 %v1727
        %2369 = vmatprep.subr.bf16.mxu0 0
        %2370 = vmatpush1.bf16.msra.mxu0 %v1718
        %2371 = vmatprep.subr.bf16.mxu0 0
        %2372 = vmatpush1.bf16.msra.mxu0 %v1709
        %2373 = vmatprep.subr.bf16.mxu0 0
        %2374 = vmatpush2.bf16.msra.mxu0 0
        %2375 = vmatprep.subr.bf16.mxu0 0
        %2376 = vmatpush2.bf16.msra.mxu0 0
        %2377 = vmatprep.subr.bf16.mxu0 0
        %2378 = vmatpush2.bf16.msra.mxu0 0
        %2379 = vmatprep.subr.bf16.mxu0 0
        %2380 = vmatpush2.bf16.msra.mxu0 0
        %2381 = vmatprep.subr.bf16.mxu0 0
        %2382 = vmatpush2.bf16.msra.mxu0 0
        %2383 = vmatprep.subr.bf16.mxu0 0
        %2384 = vmatpush2.bf16.msra.mxu0 0
        %2385 = vmatprep.subr.bf16.mxu0 0
        %2386 = vmatpush2.bf16.msra.mxu0 0
        %2387 = vmatprep.subr.bf16.mxu0 0
        %2388 = vmatpush2.bf16.msra.mxu0 0
        %2389 = vmatprep.mubr.bf16.mxu0 0
        %2390 = vmatmul.mubr.bf16.gmra.mxu0 %v644
        %v2391 = vpop.f32.mrf.mxu0
        %v2392 = vadd.f32 %v2352, %v2391
        %v2393 = vpop.f32.mrf.mxu0
        %v2394 = vpop.f32.mrf.mxu0
        %v2395 = vpop.f32.mrf.mxu0
        %2396 = vdwg.mxu0
        %v2397 = vlaneseq
        %v2398 = vshrl.u32 %v2397, 7
        %v2399 = vlaneseq
        %v2400 = vand.u32 %v2399, 127
        %vm2401 = vcmp.ge.s32.totalorder %v2398, %v2400
        %v2402 = vpack.c.bf16 %v2065, %v2065
        %v2403 = vpack.c.bf16 %v2149, %v2149
        %v2404 = vpack.c.bf16 %v2311, %v2311
        %vm2405 = vcmask 523264
        %v2407 = vsel %vm2405, %v2402, 0
        %v2410 = vsel %vm2405, %v2403, 0
        %2412 = vmatprep.subr.bf16.mxu0 0
        %2413 = vmatpush1.bf16.xpose.msra.mxu0 0
        %2414 = vmatprep.subr.bf16.mxu0 0
        %2415 = vmatpush1.bf16.xpose.msra.mxu0 0
        %2416 = vmatprep.subr.bf16.mxu0 0
        %2417 = vmatpush1.bf16.xpose.msra.mxu0 0
        %2418 = vmatprep.subr.bf16.mxu0 0
        %2419 = vmatpush1.bf16.xpose.msra.mxu0 0
        %2420 = vmatprep.subr.bf16.mxu0 0
        %2421 = vmatpush1.bf16.xpose.msra.mxu0 0
        %2422 = vmatprep.subr.bf16.mxu0 0
        %2423 = vmatpush1.bf16.xpose.msra.mxu0 0
        %2424 = vmatprep.subr.bf16.mxu0 0
        %2425 = vmatpush1.bf16.xpose.msra.mxu0 0
        %2426 = vmatprep.subr.bf16.mxu0 0
        %2427 = vmatpush1.bf16.xpose.msra.mxu0 %v2410
        %2428 = vmatprep.subr.bf16.mxu0 0
        %2429 = vmatpush2.bf16.xpose.msra.mxu0 0
        %2430 = vmatprep.subr.bf16.mxu0 0
        %2431 = vmatpush2.bf16.xpose.msra.mxu0 0
        %2432 = vmatprep.subr.bf16.mxu0 0
        %2433 = vmatpush2.bf16.xpose.msra.mxu0 0
        %2434 = vmatprep.subr.bf16.mxu0 0
        %2435 = vmatpush2.bf16.xpose.msra.mxu0 0
        %2436 = vmatprep.subr.bf16.mxu0 0
        %2437 = vmatpush2.bf16.xpose.msra.mxu0 0
        %2438 = vmatprep.subr.bf16.mxu0 0
        %2439 = vmatpush2.bf16.xpose.msra.mxu0 0
        %2440 = vmatprep.subr.bf16.mxu0 0
        %2441 = vmatpush2.bf16.xpose.msra.mxu0 0
        %2442 = vmatprep.subr.bf16.mxu0 0
        %2443 = vmatpush2.bf16.xpose.msra.mxu0 0
        %2444 = vmatprep.mubr.bf16.mxu0 0
        %2445 = vmatmul.mubr.bf16.gmra.mxu0 %v2407
        %v2446 = vpop.f32.mrf.mxu0
        %v2447 = vadd.f32 0.0, %v2446
        %v2448 = vpop.f32.mrf.mxu0
        %v2449 = vpop.f32.mrf.mxu0
        %v2450 = vpop.f32.mrf.mxu0
        %2451 = vdwg.mxu0
        %v2452 = vmul.f32 %v2447, 0.05103104
        %v2453 = vsel %vm2401, %v2452, -1e+30
        %vm2454 = vcmask 64512
        %v2455 = vsel %vm2454, %v2453, -inf
        %2456 = vmax.xlane.f32.xlu0 %v2455
        %v2457 = vpop.xlane.xlu0 %2456
        %v2458 = vsub.f32 %v2453, %v2457
        %v2459 = vmul.f32 %v2458, 1.442695
        %v2460 = vpow.pop %v2459
        %v2461 = vsel %vm2454, %v2460, 0.0
        %2462 = vadd.xlane.f32.xlu0 %v2461
        %v2463 = vpop.xlane.xlu0 %2462
        %v2464 = vrcp.pop %v2463
        %v2465 = vmul.f32 %v2460, %v2464
        %v2466 = vpack.c.bf16 %v2465, %v2465
        %v2468 = vsel %vm2454, %v2466, 0
        %vm2470 = vcmask 1043456
        %v2472 = vsel %vm2470, %v2404, 0
        %2474 = vmatprep.subr.bf16.mxu0 0
        %2475 = vmatpush1.bf16.msra.mxu0 0
        %2476 = vmatprep.subr.bf16.mxu0 0
        %2477 = vmatpush1.bf16.msra.mxu0 0
        %2478 = vmatprep.subr.bf16.mxu0 0
        %2479 = vmatpush1.bf16.msra.mxu0 0
        %2480 = vmatprep.subr.bf16.mxu0 0
        %2481 = vmatpush1.bf16.msra.mxu0 0
        %2482 = vmatprep.subr.bf16.mxu0 0
        %2483 = vmatpush1.bf16.msra.mxu0 0
        %2484 = vmatprep.subr.bf16.mxu0 0
        %2485 = vmatpush1.bf16.msra.mxu0 0
        %2486 = vmatprep.subr.bf16.mxu0 0
        %2487 = vmatpush1.bf16.msra.mxu0 0
        %2488 = vmatprep.subr.bf16.mxu0 0
        %2489 = vmatpush1.bf16.msra.mxu0 %v2472
        %2490 = vmatprep.subr.bf16.mxu0 0
        %2491 = vmatpush2.bf16.msra.mxu0 0
        %2492 = vmatprep.subr.bf16.mxu0 0
        %2493 = vmatpush2.bf16.msra.mxu0 0
        %2494 = vmatprep.subr.bf16.mxu0 0
        %2495 = vmatpush2.bf16.msra.mxu0 0
        %2496 = vmatprep.subr.bf16.mxu0 0
        %2497 = vmatpush2.bf16.msra.mxu0 0
        %2498 = vmatprep.subr.bf16.mxu0 0
        %2499 = vmatpush2.bf16.msra.mxu0 0
        %2500 = vmatprep.subr.bf16.mxu0 0
        %2501 = vmatpush2.bf16.msra.mxu0 0
        %2502 = vmatprep.subr.bf16.mxu0 0
        %2503 = vmatpush2.bf16.msra.mxu0 0
        %2504 = vmatprep.subr.bf16.mxu0 0
        %2505 = vmatpush2.bf16.msra.mxu0 0
        %2506 = vmatprep.mubr.bf16.mxu0 0
        %2507 = vmatmul.mubr.bf16.gmra.mxu0 %v2468
        %v2508 = vpop.f32.mrf.mxu0
        %v2509 = vadd.f32 0.0, %v2508
        %v2510 = vpop.f32.mrf.mxu0
        %v2511 = vpop.f32.mrf.mxu0
        %v2512 = vpop.f32.mrf.mxu0
        %2513 = vdwg.mxu0
        %v2514 = vpack.c.bf16 %v2509, %v2509
        %v2515 = vld [vmem:[#allocation10] sm:$0xff]
        %v2516 = vld [vmem:[#allocation10 + $0x8] sm:$0xf]
        %v2517 = vld [vmem:[#allocation10 + $0xc] sm:$0xff]
        %v2518 = vld [vmem:[#allocation10 + $0x14] sm:$0xf]
        %v2519 = vld [vmem:[#allocation10 + $0x18] sm:$0xff]
        %v2520 = vld [vmem:[#allocation10 + $0x20] sm:$0xf]
        %v2521 = vld [vmem:[#allocation10 + $0x24] sm:$0xff]
        %v2522 = vld [vmem:[#allocation10 + $0x2c] sm:$0xf]
        %v2523 = vld [vmem:[#allocation10 + $0x30] sm:$0xff]
        %v2524 = vld [vmem:[#allocation10 + $0x38] sm:$0xf]
        %v2525 = vld [vmem:[#allocation10 + $0x3c] sm:$0xff]
        %v2526 = vld [vmem:[#allocation10 + $0x44] sm:$0xf]
        %v2527 = vld [vmem:[#allocation10 + $0x48] sm:$0xff]
        %v2528 = vld [vmem:[#allocation10 + $0x50] sm:$0xf]
        %v2529 = vld [vmem:[#allocation10 + $0x54] sm:$0xff]
        %v2530 = vld [vmem:[#allocation10 + $0x5c] sm:$0xf]
        %2532 = vrot.lane.b32.xlu0 %v2402, 64
        %v2533 = vpop.permute.xlu0 %2532
        %2535 = vrot.lane.b32.xlu0 %v2403, 64
        %v2536 = vpop.permute.xlu0 %2535
        %v2538 = vsel %vm2405, %v2533, 0
        %v2541 = vsel %vm2405, %v2536, 0
        %2543 = vmatprep.subr.bf16.mxu0 0
        %2544 = vmatpush1.bf16.xpose.msra.mxu0 0
        %2545 = vmatprep.subr.bf16.mxu0 0
        %2546 = vmatpush1.bf16.xpose.msra.mxu0 0
        %2547 = vmatprep.subr.bf16.mxu0 0
        %2548 = vmatpush1.bf16.xpose.msra.mxu0 0
        %2549 = vmatprep.subr.bf16.mxu0 0
        %2550 = vmatpush1.bf16.xpose.msra.mxu0 0
        %2551 = vmatprep.subr.bf16.mxu0 0
        %2552 = vmatpush1.bf16.xpose.msra.mxu0 0
        %2553 = vmatprep.subr.bf16.mxu0 0
        %2554 = vmatpush1.bf16.xpose.msra.mxu0 0
        %2555 = vmatprep.subr.bf16.mxu0 0
        %2556 = vmatpush1.bf16.xpose.msra.mxu0 0
        %2557 = vmatprep.subr.bf16.mxu0 0
        %2558 = vmatpush1.bf16.xpose.msra.mxu0 %v2541
        %2559 = vmatprep.subr.bf16.mxu0 0
        %2560 = vmatpush2.bf16.xpose.msra.mxu0 0
        %2561 = vmatprep.subr.bf16.mxu0 0
        %2562 = vmatpush2.bf16.xpose.msra.mxu0 0
        %2563 = vmatprep.subr.bf16.mxu0 0
        %2564 = vmatpush2.bf16.xpose.msra.mxu0 0
        %2565 = vmatprep.subr.bf16.mxu0 0
        %2566 = vmatpush2.bf16.xpose.msra.mxu0 0
        %2567 = vmatprep.subr.bf16.mxu0 0
        %2568 = vmatpush2.bf16.xpose.msra.mxu0 0
        %2569 = vmatprep.subr.bf16.mxu0 0
        %2570 = vmatpush2.bf16.xpose.msra.mxu0 0
        %2571 = vmatprep.subr.bf16.mxu0 0
        %2572 = vmatpush2.bf16.xpose.msra.mxu0 0
        %2573 = vmatprep.subr.bf16.mxu0 0
        %2574 = vmatpush2.bf16.xpose.msra.mxu0 0
        %2575 = vmatprep.mubr.bf16.mxu0 0
        %2576 = vmatmul.mubr.bf16.gmra.mxu0 %v2538
        %v2577 = vpop.f32.mrf.mxu0
        %v2578 = vadd.f32 0.0, %v2577
        %v2579 = vpop.f32.mrf.mxu0
        %v2580 = vpop.f32.mrf.mxu0
        %v2581 = vpop.f32.mrf.mxu0
        %2582 = vdwg.mxu0
        %v2583 = vmul.f32 %v2578, 0.05103104
        %v2584 = vsel %vm2401, %v2583, -1e+30
        %v2585 = vsel %vm2454, %v2584, -inf
        %2586 = vmax.xlane.f32.xlu0 %v2585
        %v2587 = vpop.xlane.xlu0 %2586
        %v2588 = vsub.f32 %v2584, %v2587
        %v2589 = vmul.f32 %v2588, 1.442695
        %v2590 = vpow.pop %v2589
        %v2591 = vsel %vm2454, %v2590, 0.0
        %2592 = vadd.xlane.f32.xlu0 %v2591
        %v2593 = vpop.xlane.xlu0 %2592
        %v2594 = vrcp.pop %v2593
        %v2595 = vmul.f32 %v2590, %v2594
        %v2596 = vpack.c.bf16 %v2595, %v2595
        %2598 = vrot.lane.b32.xlu0 %v2404, 64
        %v2599 = vpop.permute.xlu0 %2598
        %v2601 = vsel %vm2454, %v2596, 0
        %v2604 = vsel %vm2470, %v2599, 0
        %2606 = vmatprep.subr.bf16.mxu0 0
        %2607 = vmatpush1.bf16.msra.mxu0 0
        %2608 = vmatprep.subr.bf16.mxu0 0
        %2609 = vmatpush1.bf16.msra.mxu0 0
        %2610 = vmatprep.subr.bf16.mxu0 0
        %2611 = vmatpush1.bf16.msra.mxu0 0
        %2612 = vmatprep.subr.bf16.mxu0 0
        %2613 = vmatpush1.bf16.msra.mxu0 0
        %2614 = vmatprep.subr.bf16.mxu0 0
        %2615 = vmatpush1.bf16.msra.mxu0 0
        %2616 = vmatprep.subr.bf16.mxu0 0
        %2617 = vmatpush1.bf16.msra.mxu0 0
        %2618 = vmatprep.subr.bf16.mxu0 0
        %2619 = vmatpush1.bf16.msra.mxu0 0
        %2620 = vmatprep.subr.bf16.mxu0 0
        %2621 = vmatpush1.bf16.msra.mxu0 %v2604
        %2622 = vmatprep.subr.bf16.mxu0 0
        %2623 = vmatpush2.bf16.msra.mxu0 0
        %2624 = vmatprep.subr.bf16.mxu0 0
        %2625 = vmatpush2.bf16.msra.mxu0 0
        %2626 = vmatprep.subr.bf16.mxu0 0
        %2627 = vmatpush2.bf16.msra.mxu0 0
        %2628 = vmatprep.subr.bf16.mxu0 0
        %2629 = vmatpush2.bf16.msra.mxu0 0
        %2630 = vmatprep.subr.bf16.mxu0 0
        %2631 = vmatpush2.bf16.msra.mxu0 0
        %2632 = vmatprep.subr.bf16.mxu0 0
        %2633 = vmatpush2.bf16.msra.mxu0 0
        %2634 = vmatprep.subr.bf16.mxu0 0
        %2635 = vmatpush2.bf16.msra.mxu0 0
        %2636 = vmatprep.subr.bf16.mxu0 0
        %2637 = vmatpush2.bf16.msra.mxu0 0
        %2638 = vmatprep.mubr.bf16.mxu0 0
        %2639 = vmatmul.mubr.bf16.gmra.mxu0 %v2601
        %v2640 = vpop.f32.mrf.mxu0
        %v2641 = vadd.f32 0.0, %v2640
        %v2642 = vpop.f32.mrf.mxu0
        %v2643 = vpop.f32.mrf.mxu0
        %v2644 = vpop.f32.mrf.mxu0
        %2645 = vdwg.mxu0
        %v2646 = vpack.c.bf16 %v2641, %v2641
        %v2647 = vld [vmem:[#allocation10 + $0x60] sm:$0xff]
        %v2648 = vld [vmem:[#allocation10 + $0x68] sm:$0xf]
        %v2649 = vld [vmem:[#allocation10 + $0x6c] sm:$0xff]
        %v2650 = vld [vmem:[#allocation10 + $0x74] sm:$0xf]
        %v2651 = vld [vmem:[#allocation10 + $0x78] sm:$0xff]
        %v2652 = vld [vmem:[#allocation10 + $0x80] sm:$0xf]
        %v2653 = vld [vmem:[#allocation10 + $0x84] sm:$0xff]
        %v2654 = vld [vmem:[#allocation10 + $0x8c] sm:$0xf]
        %v2655 = vld [vmem:[#allocation10 + $0x90] sm:$0xff]
        %v2656 = vld [vmem:[#allocation10 + $0x98] sm:$0xf]
        %v2657 = vld [vmem:[#allocation10 + $0x9c] sm:$0xff]
        %v2658 = vld [vmem:[#allocation10 + $0xa4] sm:$0xf]
        %v2659 = vld [vmem:[#allocation10 + $0xa8] sm:$0xff]
        %v2660 = vld [vmem:[#allocation10 + $0xb0] sm:$0xf]
        %v2661 = vld [vmem:[#allocation10 + $0xb4] sm:$0xff]
        %v2662 = vld [vmem:[#allocation10 + $0xbc] sm:$0xf]
        %v2679 = vunpack.c.l.b16 %v2647
        %v2680 = vunpack.c.h.b16 %v2647
        %v2681 = vunpack.c.l.b16 %v2648
        %v2682 = vunpack.c.l.b16 %v2649
        %v2683 = vunpack.c.h.b16 %v2649
        %v2684 = vunpack.c.l.b16 %v2650
        %v2685 = vunpack.c.l.b16 %v2651
        %v2686 = vunpack.c.h.b16 %v2651
        %v2687 = vunpack.c.l.b16 %v2652
        %v2688 = vunpack.c.l.b16 %v2653
        %v2689 = vunpack.c.h.b16 %v2653
        %v2690 = vunpack.c.l.b16 %v2654
        %v2691 = vunpack.c.l.b16 %v2655
        %v2692 = vunpack.c.h.b16 %v2655
        %v2693 = vunpack.c.l.b16 %v2656
        %v2694 = vunpack.c.l.b16 %v2657
        %v2695 = vunpack.c.h.b16 %v2657
        %v2696 = vunpack.c.l.b16 %v2658
        %v2697 = vunpack.c.l.b16 %v2659
        %v2698 = vunpack.c.h.b16 %v2659
        %v2699 = vunpack.c.l.b16 %v2660
        %v2700 = vunpack.c.l.b16 %v2661
        %v2701 = vunpack.c.h.b16 %v2661
        %v2702 = vunpack.c.l.b16 %v2662
        %v2703 = vpack.c.b16 %v2682, %v2679
        %v2704 = vpack.c.b16 %v2683, %v2680
        %v2705 = vpack.c.b16 %v2684, %v2681
        %v2706 = vpack.c.b16 %v2688, %v2685
        %v2707 = vpack.c.b16 %v2689, %v2686
        %v2708 = vpack.c.b16 %v2690, %v2687
        %v2709 = vpack.c.b16 %v2694, %v2691
        %v2710 = vpack.c.b16 %v2695, %v2692
        %v2711 = vpack.c.b16 %v2696, %v2693
        %v2712 = vpack.c.b16 %v2700, %v2697
        %v2713 = vpack.c.b16 %v2701, %v2698
        %v2714 = vpack.c.b16 %v2702, %v2699
        %v2728 = vsel %vm2405, %v2646, 0
        %2730 = vmatprep.subr.bf16.mxu0 0
        %2731 = vmatpush1.bf16.msra.mxu0 0
        %2732 = vmatprep.subr.bf16.mxu0 0
        %2733 = vmatpush1.bf16.msra.mxu0 0
        %2734 = vmatprep.subr.bf16.mxu0 0
        %2735 = vmatpush1.bf16.msra.mxu0 0
        %2736 = vmatprep.subr.bf16.mxu0 0
        %2737 = vmatpush1.bf16.msra.mxu0 0
        %2738 = vmatprep.subr.bf16.mxu0 %v2713
        %2739 = vmatpush1.bf16.msra.mxu0 %v2712
        %2740 = vmatprep.subr.bf16.mxu0 %v2710
        %2741 = vmatpush1.bf16.msra.mxu0 %v2709
        %2742 = vmatprep.subr.bf16.mxu0 %v2707
        %2743 = vmatpush1.bf16.msra.mxu0 %v2706
        %2744 = vmatprep.subr.bf16.mxu0 %v2704
        %2745 = vmatpush1.bf16.msra.mxu0 %v2703
        %2746 = vmatprep.subr.bf16.mxu0 0
        %2747 = vmatpush2.bf16.msra.mxu0 0
        %2748 = vmatprep.subr.bf16.mxu0 0
        %2749 = vmatpush2.bf16.msra.mxu0 0
        %2750 = vmatprep.subr.bf16.mxu0 0
        %2751 = vmatpush2.bf16.msra.mxu0 0
        %2752 = vmatprep.subr.bf16.mxu0 0
        %2753 = vmatpush2.bf16.msra.mxu0 0
        %2754 = vmatprep.subr.bf16.mxu0 0
        %2755 = vmatpush2.bf16.msra.mxu0 0
        %2756 = vmatprep.subr.bf16.mxu0 0
        %2757 = vmatpush2.bf16.msra.mxu0 0
        %2758 = vmatprep.subr.bf16.mxu0 0
        %2759 = vmatpush2.bf16.msra.mxu0 0
        %2760 = vmatprep.subr.bf16.mxu0 0
        %2761 = vmatpush2.bf16.msra.mxu0 0
        %2762 = vmatprep.mubr.bf16.mxu0 0
        %2763 = vmatmul.mubr.bf16.gmra.mxu0 %v2728
        %v2764 = vpop.f32.mrf.mxu0
        %v2765 = vadd.f32 0.0, %v2764
        %v2766 = vpop.f32.mrf.mxu0
        %v2767 = vadd.f32 0.0, %v2766
        %v2768 = vpop.f32.mrf.mxu0
        %v2769 = vpop.f32.mrf.mxu0
        %2770 = vdwg.mxu0
        %2771 = vmatprep.subr.bf16.mxu0 0
        %2772 = vmatpush1.bf16.msra.mxu0 0
        %2773 = vmatprep.subr.bf16.mxu0 0
        %2774 = vmatpush1.bf16.msra.mxu0 0
        %2775 = vmatprep.subr.bf16.mxu0 0
        %2776 = vmatpush1.bf16.msra.mxu0 0
        %2777 = vmatprep.subr.bf16.mxu0 0
        %2778 = vmatpush1.bf16.msra.mxu0 0
        %2779 = vmatprep.subr.bf16.mxu0 0
        %2780 = vmatpush1.bf16.msra.mxu0 %v2714
        %2781 = vmatprep.subr.bf16.mxu0 0
        %2782 = vmatpush1.bf16.msra.mxu0 %v2711
        %2783 = vmatprep.subr.bf16.mxu0 0
        %2784 = vmatpush1.bf16.msra.mxu0 %v2708
        %2785 = vmatprep.subr.bf16.mxu0 0
        %2786 = vmatpush1.bf16.msra.mxu0 %v2705
        %2787 = vmatprep.subr.bf16.mxu0 0
        %2788 = vmatpush2.bf16.msra.mxu0 0
        %2789 = vmatprep.subr.bf16.mxu0 0
        %2790 = vmatpush2.bf16.msra.mxu0 0
        %2791 = vmatprep.subr.bf16.mxu0 0
        %2792 = vmatpush2.bf16.msra.mxu0 0
        %2793 = vmatprep.subr.bf16.mxu0 0
        %2794 = vmatpush2.bf16.msra.mxu0 0
        %2795 = vmatprep.subr.bf16.mxu0 0
        %2796 = vmatpush2.bf16.msra.mxu0 0
        %2797 = vmatprep.subr.bf16.mxu0 0
        %2798 = vmatpush2.bf16.msra.mxu0 0
        %2799 = vmatprep.subr.bf16.mxu0 0
        %2800 = vmatpush2.bf16.msra.mxu0 0
        %2801 = vmatprep.subr.bf16.mxu0 0
        %2802 = vmatpush2.bf16.msra.mxu0 0
        %2803 = vmatprep.mubr.bf16.mxu0 0
        %2804 = vmatmul.mubr.bf16.gmra.mxu0 %v2728
        %v2805 = vpop.f32.mrf.mxu0
        %v2806 = vadd.f32 0.0, %v2805
        %v2807 = vpop.f32.mrf.mxu0
        %v2808 = vpop.f32.mrf.mxu0
        %v2809 = vpop.f32.mrf.mxu0
        %2810 = vdwg.mxu0
        %v2827 = vunpack.c.l.b16 %v2515
        %v2828 = vunpack.c.h.b16 %v2515
        %v2829 = vunpack.c.l.b16 %v2516
        %v2830 = vunpack.c.l.b16 %v2517
        %v2831 = vunpack.c.h.b16 %v2517
        %v2832 = vunpack.c.l.b16 %v2518
        %v2833 = vunpack.c.l.b16 %v2519
        %v2834 = vunpack.c.h.b16 %v2519
        %v2835 = vunpack.c.l.b16 %v2520
        %v2836 = vunpack.c.l.b16 %v2521
        %v2837 = vunpack.c.h.b16 %v2521
        %v2838 = vunpack.c.l.b16 %v2522
        %v2839 = vunpack.c.l.b16 %v2523
        %v2840 = vunpack.c.h.b16 %v2523
        %v2841 = vunpack.c.l.b16 %v2524
        %v2842 = vunpack.c.l.b16 %v2525
        %v2843 = vunpack.c.h.b16 %v2525
        %v2844 = vunpack.c.l.b16 %v2526
        %v2845 = vunpack.c.l.b16 %v2527
        %v2846 = vunpack.c.h.b16 %v2527
        %v2847 = vunpack.c.l.b16 %v2528
        %v2848 = vunpack.c.l.b16 %v2529
        %v2849 = vunpack.c.h.b16 %v2529
        %v2850 = vunpack.c.l.b16 %v2530
        %v2851 = vpack.c.b16 %v2830, %v2827
        %v2852 = vpack.c.b16 %v2831, %v2828
        %v2853 = vpack.c.b16 %v2832, %v2829
        %v2854 = vpack.c.b16 %v2836, %v2833
        %v2855 = vpack.c.b16 %v2837, %v2834
        %v2856 = vpack.c.b16 %v2838, %v2835
        %v2857 = vpack.c.b16 %v2842, %v2839
        %v2858 = vpack.c.b16 %v2843, %v2840
        %v2859 = vpack.c.b16 %v2844, %v2841
        %v2860 = vpack.c.b16 %v2848, %v2845
        %v2861 = vpack.c.b16 %v2849, %v2846
        %v2862 = vpack.c.b16 %v2850, %v2847
        %v2876 = vsel %vm2405, %v2514, 0
        %2878 = vmatprep.subr.bf16.mxu0 0
        %2879 = vmatpush1.bf16.msra.mxu0 0
        %2880 = vmatprep.subr.bf16.mxu0 0
        %2881 = vmatpush1.bf16.msra.mxu0 0
        %2882 = vmatprep.subr.bf16.mxu0 0
        %2883 = vmatpush1.bf16.msra.mxu0 0
        %2884 = vmatprep.subr.bf16.mxu0 0
        %2885 = vmatpush1.bf16.msra.mxu0 0
        %2886 = vmatprep.subr.bf16.mxu0 %v2861
        %2887 = vmatpush1.bf16.msra.mxu0 %v2860
        %2888 = vmatprep.subr.bf16.mxu0 %v2858
        %2889 = vmatpush1.bf16.msra.mxu0 %v2857
        %2890 = vmatprep.subr.bf16.mxu0 %v2855
        %2891 = vmatpush1.bf16.msra.mxu0 %v2854
        %2892 = vmatprep.subr.bf16.mxu0 %v2852
        %2893 = vmatpush1.bf16.msra.mxu0 %v2851
        %2894 = vmatprep.subr.bf16.mxu0 0
        %2895 = vmatpush2.bf16.msra.mxu0 0
        %2896 = vmatprep.subr.bf16.mxu0 0
        %2897 = vmatpush2.bf16.msra.mxu0 0
        %2898 = vmatprep.subr.bf16.mxu0 0
        %2899 = vmatpush2.bf16.msra.mxu0 0
        %2900 = vmatprep.subr.bf16.mxu0 0
        %2901 = vmatpush2.bf16.msra.mxu0 0
        %2902 = vmatprep.subr.bf16.mxu0 0
        %2903 = vmatpush2.bf16.msra.mxu0 0
        %2904 = vmatprep.subr.bf16.mxu0 0
        %2905 = vmatpush2.bf16.msra.mxu0 0
        %2906 = vmatprep.subr.bf16.mxu0 0
        %2907 = vmatpush2.bf16.msra.mxu0 0
        %2908 = vmatprep.subr.bf16.mxu0 0
        %2909 = vmatpush2.bf16.msra.mxu0 0
        %2910 = vmatprep.mubr.bf16.mxu0 0
        %2911 = vmatmul.mubr.bf16.gmra.mxu0 %v2876
        %v2912 = vpop.f32.mrf.mxu0
        %v2913 = vadd.f32 %v2765, %v2912
        %v2914 = vpop.f32.mrf.mxu0
        %v2915 = vadd.f32 %v2767, %v2914
        %v2916 = vpop.f32.mrf.mxu0
        %v2917 = vpop.f32.mrf.mxu0
        %2918 = vdwg.mxu0
        %2919 = vmatprep.subr.bf16.mxu0 0
        %2920 = vmatpush1.bf16.msra.mxu0 0
        %2921 = vmatprep.subr.bf16.mxu0 0
        %2922 = vmatpush1.bf16.msra.mxu0 0
        %2923 = vmatprep.subr.bf16.mxu0 0
        %2924 = vmatpush1.bf16.msra.mxu0 0
        %2925 = vmatprep.subr.bf16.mxu0 0
        %2926 = vmatpush1.bf16.msra.mxu0 0
        %2927 = vmatprep.subr.bf16.mxu0 0
        %2928 = vmatpush1.bf16.msra.mxu0 %v2862
        %2929 = vmatprep.subr.bf16.mxu0 0
        %2930 = vmatpush1.bf16.msra.mxu0 %v2859
        %2931 = vmatprep.subr.bf16.mxu0 0
        %2932 = vmatpush1.bf16.msra.mxu0 %v2856
        %2933 = vmatprep.subr.bf16.mxu0 0
        %2934 = vmatpush1.bf16.msra.mxu0 %v2853
        %2935 = vmatprep.subr.bf16.mxu0 0
        %2936 = vmatpush2.bf16.msra.mxu0 0
        %2937 = vmatprep.subr.bf16.mxu0 0
        %2938 = vmatpush2.bf16.msra.mxu0 0
        %2939 = vmatprep.subr.bf16.mxu0 0
        %2940 = vmatpush2.bf16.msra.mxu0 0
        %2941 = vmatprep.subr.bf16.mxu0 0
        %2942 = vmatpush2.bf16.msra.mxu0 0
        %2943 = vmatprep.subr.bf16.mxu0 0
        %2944 = vmatpush2.bf16.msra.mxu0 0
        %2945 = vmatprep.subr.bf16.mxu0 0
        %2946 = vmatpush2.bf16.msra.mxu0 0
        %2947 = vmatprep.subr.bf16.mxu0 0
        %2948 = vmatpush2.bf16.msra.mxu0 0
        %2949 = vmatprep.subr.bf16.mxu0 0
        %2950 = vmatpush2.bf16.msra.mxu0 0
        %2951 = vmatprep.mubr.bf16.mxu0 0
        %2952 = vmatmul.mubr.bf16.gmra.mxu0 %v2876
        %v2953 = vpop.f32.mrf.mxu0
        %v2954 = vadd.f32 %v2806, %v2953
        %v2955 = vpop.f32.mrf.mxu0
        %v2956 = vpop.f32.mrf.mxu0
        %v2957 = vpop.f32.mrf.mxu0
        %2958 = vdwg.mxu0
        %v2959 = vpack.c.bf16 %v2067, %v2067
        %v2960 = vpack.c.bf16 %v2229, %v2229
        %v2961 = vpack.c.bf16 %v2313, %v2313
        %v2963 = vsel %vm2405, %v2959, 0
        %v2966 = vsel %vm2405, %v2960, 0
        %2968 = vmatprep.subr.bf16.mxu0 0
        %2969 = vmatpush1.bf16.xpose.msra.mxu0 0
        %2970 = vmatprep.subr.bf16.mxu0 0
        %2971 = vmatpush1.bf16.xpose.msra.mxu0 0
        %2972 = vmatprep.subr.bf16.mxu0 0
        %2973 = vmatpush1.bf16.xpose.msra.mxu0 0
        %2974 = vmatprep.subr.bf16.mxu0 0
        %2975 = vmatpush1.bf16.xpose.msra.mxu0 0
        %2976 = vmatprep.subr.bf16.mxu0 0
        %2977 = vmatpush1.bf16.xpose.msra.mxu0 0
        %2978 = vmatprep.subr.bf16.mxu0 0
        %2979 = vmatpush1.bf16.xpose.msra.mxu0 0
        %2980 = vmatprep.subr.bf16.mxu0 0
        %2981 = vmatpush1.bf16.xpose.msra.mxu0 0
        %2982 = vmatprep.subr.bf16.mxu0 0
        %2983 = vmatpush1.bf16.xpose.msra.mxu0 %v2966
        %2984 = vmatprep.subr.bf16.mxu0 0
        %2985 = vmatpush2.bf16.xpose.msra.mxu0 0
        %2986 = vmatprep.subr.bf16.mxu0 0
        %2987 = vmatpush2.bf16.xpose.msra.mxu0 0
        %2988 = vmatprep.subr.bf16.mxu0 0
        %2989 = vmatpush2.bf16.xpose.msra.mxu0 0
        %2990 = vmatprep.subr.bf16.mxu0 0
        %2991 = vmatpush2.bf16.xpose.msra.mxu0 0
        %2992 = vmatprep.subr.bf16.mxu0 0
        %2993 = vmatpush2.bf16.xpose.msra.mxu0 0
        %2994 = vmatprep.subr.bf16.mxu0 0
        %2995 = vmatpush2.bf16.xpose.msra.mxu0 0
        %2996 = vmatprep.subr.bf16.mxu0 0
        %2997 = vmatpush2.bf16.xpose.msra.mxu0 0
        %2998 = vmatprep.subr.bf16.mxu0 0
        %2999 = vmatpush2.bf16.xpose.msra.mxu0 0
        %3000 = vmatprep.mubr.bf16.mxu0 0
        %3001 = vmatmul.mubr.bf16.gmra.mxu0 %v2963
        %v3002 = vpop.f32.mrf.mxu0
        %v3003 = vadd.f32 0.0, %v3002
        %v3004 = vpop.f32.mrf.mxu0
        %v3005 = vpop.f32.mrf.mxu0
        %v3006 = vpop.f32.mrf.mxu0
        %3007 = vdwg.mxu0
        %v3008 = vmul.f32 %v3003, 0.05103104
        %v3009 = vsel %vm2401, %v3008, -1e+30
        %v3010 = vsel %vm2454, %v3009, -inf
        %3011 = vmax.xlane.f32.xlu0 %v3010
        %v3012 = vpop.xlane.xlu0 %3011
        %v3013 = vsub.f32 %v3009, %v3012
        %v3014 = vmul.f32 %v3013, 1.442695
        %v3015 = vpow.pop %v3014
        %v3016 = vsel %vm2454, %v3015, 0.0
        %3017 = vadd.xlane.f32.xlu0 %v3016
        %v3018 = vpop.xlane.xlu0 %3017
        %v3019 = vrcp.pop %v3018
        %v3020 = vmul.f32 %v3015, %v3019
        %v3021 = vpack.c.bf16 %v3020, %v3020
        %v3023 = vsel %vm2454, %v3021, 0
        %v3026 = vsel %vm2470, %v2961, 0
        %3028 = vmatprep.subr.bf16.mxu0 0
        %3029 = vmatpush1.bf16.msra.mxu0 0
        %3030 = vmatprep.subr.bf16.mxu0 0
        %3031 = vmatpush1.bf16.msra.mxu0 0
        %3032 = vmatprep.subr.bf16.mxu0 0
        %3033 = vmatpush1.bf16.msra.mxu0 0
        %3034 = vmatprep.subr.bf16.mxu0 0
        %3035 = vmatpush1.bf16.msra.mxu0 0
        %3036 = vmatprep.subr.bf16.mxu0 0
        %3037 = vmatpush1.bf16.msra.mxu0 0
        %3038 = vmatprep.subr.bf16.mxu0 0
        %3039 = vmatpush1.bf16.msra.mxu0 0
        %3040 = vmatprep.subr.bf16.mxu0 0
        %3041 = vmatpush1.bf16.msra.mxu0 0
        %3042 = vmatprep.subr.bf16.mxu0 0
        %3043 = vmatpush1.bf16.msra.mxu0 %v3026
        %3044 = vmatprep.subr.bf16.mxu0 0
        %3045 = vmatpush2.bf16.msra.mxu0 0
        %3046 = vmatprep.subr.bf16.mxu0 0
        %3047 = vmatpush2.bf16.msra.mxu0 0
        %3048 = vmatprep.subr.bf16.mxu0 0
        %3049 = vmatpush2.bf16.msra.mxu0 0
        %3050 = vmatprep.subr.bf16.mxu0 0
        %3051 = vmatpush2.bf16.msra.mxu0 0
        %3052 = vmatprep.subr.bf16.mxu0 0
        %3053 = vmatpush2.bf16.msra.mxu0 0
        %3054 = vmatprep.subr.bf16.mxu0 0
        %3055 = vmatpush2.bf16.msra.mxu0 0
        %3056 = vmatprep.subr.bf16.mxu0 0
        %3057 = vmatpush2.bf16.msra.mxu0 0
        %3058 = vmatprep.subr.bf16.mxu0 0
        %3059 = vmatpush2.bf16.msra.mxu0 0
        %3060 = vmatprep.mubr.bf16.mxu0 0
        %3061 = vmatmul.mubr.bf16.gmra.mxu0 %v3023
        %v3062 = vpop.f32.mrf.mxu0
        %v3063 = vadd.f32 0.0, %v3062
        %v3064 = vpop.f32.mrf.mxu0
        %v3065 = vpop.f32.mrf.mxu0
        %v3066 = vpop.f32.mrf.mxu0
        %3067 = vdwg.mxu0
        %v3068 = vpack.c.bf16 %v3063, %v3063
        %v3069 = vld [vmem:[#allocation10 + $0xc0] sm:$0xff]
        %v3070 = vld [vmem:[#allocation10 + $0xc8] sm:$0xf]
        %v3071 = vld [vmem:[#allocation10 + $0xcc] sm:$0xff]
        %v3072 = vld [vmem:[#allocation10 + $0xd4] sm:$0xf]
        %v3073 = vld [vmem:[#allocation10 + $0xd8] sm:$0xff]
        %v3074 = vld [vmem:[#allocation10 + $0xe0] sm:$0xf]
        %v3075 = vld [vmem:[#allocation10 + $0xe4] sm:$0xff]
        %v3076 = vld [vmem:[#allocation10 + $0xec] sm:$0xf]
        %v3077 = vld [vmem:[#allocation10 + $0xf0] sm:$0xff]
        %v3078 = vld [vmem:[#allocation10 + $0xf8] sm:$0xf]
        %v3079 = vld [vmem:[#allocation10 + $0xfc] sm:$0xff]
        %v3080 = vld [vmem:[#allocation10 + $0x104] sm:$0xf]
        %v3081 = vld [vmem:[#allocation10 + $0x108] sm:$0xff]
        %v3082 = vld [vmem:[#allocation10 + $0x110] sm:$0xf]
        %v3083 = vld [vmem:[#allocation10 + $0x114] sm:$0xff]
        %v3084 = vld [vmem:[#allocation10 + $0x11c] sm:$0xf]
        %v3101 = vunpack.c.l.b16 %v3069
        %v3102 = vunpack.c.h.b16 %v3069
        %v3103 = vunpack.c.l.b16 %v3070
        %v3104 = vunpack.c.l.b16 %v3071
        %v3105 = vunpack.c.h.b16 %v3071
        %v3106 = vunpack.c.l.b16 %v3072
        %v3107 = vunpack.c.l.b16 %v3073
        %v3108 = vunpack.c.h.b16 %v3073
        %v3109 = vunpack.c.l.b16 %v3074
        %v3110 = vunpack.c.l.b16 %v3075
        %v3111 = vunpack.c.h.b16 %v3075
        %v3112 = vunpack.c.l.b16 %v3076
        %v3113 = vunpack.c.l.b16 %v3077
        %v3114 = vunpack.c.h.b16 %v3077
        %v3115 = vunpack.c.l.b16 %v3078
        %v3116 = vunpack.c.l.b16 %v3079
        %v3117 = vunpack.c.h.b16 %v3079
        %v3118 = vunpack.c.l.b16 %v3080
        %v3119 = vunpack.c.l.b16 %v3081
        %v3120 = vunpack.c.h.b16 %v3081
        %v3121 = vunpack.c.l.b16 %v3082
        %v3122 = vunpack.c.l.b16 %v3083
        %v3123 = vunpack.c.h.b16 %v3083
        %v3124 = vunpack.c.l.b16 %v3084
        %v3125 = vpack.c.b16 %v3104, %v3101
        %v3126 = vpack.c.b16 %v3105, %v3102
        %v3127 = vpack.c.b16 %v3106, %v3103
        %v3128 = vpack.c.b16 %v3110, %v3107
        %v3129 = vpack.c.b16 %v3111, %v3108
        %v3130 = vpack.c.b16 %v3112, %v3109
        %v3131 = vpack.c.b16 %v3116, %v3113
        %v3132 = vpack.c.b16 %v3117, %v3114
        %v3133 = vpack.c.b16 %v3118, %v3115
        %v3134 = vpack.c.b16 %v3122, %v3119
        %v3135 = vpack.c.b16 %v3123, %v3120
        %v3136 = vpack.c.b16 %v3124, %v3121
        %v3150 = vsel %vm2405, %v3068, 0
        %3152 = vmatprep.subr.bf16.mxu0 0
        %3153 = vmatpush1.bf16.msra.mxu0 0
        %3154 = vmatprep.subr.bf16.mxu0 0
        %3155 = vmatpush1.bf16.msra.mxu0 0
        %3156 = vmatprep.subr.bf16.mxu0 0
        %3157 = vmatpush1.bf16.msra.mxu0 0
        %3158 = vmatprep.subr.bf16.mxu0 0
        %3159 = vmatpush1.bf16.msra.mxu0 0
        %3160 = vmatprep.subr.bf16.mxu0 %v3135
        %3161 = vmatpush1.bf16.msra.mxu0 %v3134
        %3162 = vmatprep.subr.bf16.mxu0 %v3132
        %3163 = vmatpush1.bf16.msra.mxu0 %v3131
        %3164 = vmatprep.subr.bf16.mxu0 %v3129
        %3165 = vmatpush1.bf16.msra.mxu0 %v3128
        %3166 = vmatprep.subr.bf16.mxu0 %v3126
        %3167 = vmatpush1.bf16.msra.mxu0 %v3125
        %3168 = vmatprep.subr.bf16.mxu0 0
        %3169 = vmatpush2.bf16.msra.mxu0 0
        %3170 = vmatprep.subr.bf16.mxu0 0
        %3171 = vmatpush2.bf16.msra.mxu0 0
        %3172 = vmatprep.subr.bf16.mxu0 0
        %3173 = vmatpush2.bf16.msra.mxu0 0
        %3174 = vmatprep.subr.bf16.mxu0 0
        %3175 = vmatpush2.bf16.msra.mxu0 0
        %3176 = vmatprep.subr.bf16.mxu0 0
        %3177 = vmatpush2.bf16.msra.mxu0 0
        %3178 = vmatprep.subr.bf16.mxu0 0
        %3179 = vmatpush2.bf16.msra.mxu0 0
        %3180 = vmatprep.subr.bf16.mxu0 0
        %3181 = vmatpush2.bf16.msra.mxu0 0
        %3182 = vmatprep.subr.bf16.mxu0 0
        %3183 = vmatpush2.bf16.msra.mxu0 0
        %3184 = vmatprep.mubr.bf16.mxu0 0
        %3185 = vmatmul.mubr.bf16.gmra.mxu0 %v3150
        %v3186 = vpop.f32.mrf.mxu0
        %v3187 = vadd.f32 0.0, %v3186
        %v3188 = vpop.f32.mrf.mxu0
        %v3189 = vadd.f32 0.0, %v3188
        %v3190 = vpop.f32.mrf.mxu0
        %v3191 = vpop.f32.mrf.mxu0
        %3192 = vdwg.mxu0
        %3193 = vmatprep.subr.bf16.mxu0 0
        %3194 = vmatpush1.bf16.msra.mxu0 0
        %3195 = vmatprep.subr.bf16.mxu0 0
        %3196 = vmatpush1.bf16.msra.mxu0 0
        %3197 = vmatprep.subr.bf16.mxu0 0
        %3198 = vmatpush1.bf16.msra.mxu0 0
        %3199 = vmatprep.subr.bf16.mxu0 0
        %3200 = vmatpush1.bf16.msra.mxu0 0
        %3201 = vmatprep.subr.bf16.mxu0 0
        %3202 = vmatpush1.bf16.msra.mxu0 %v3136
        %3203 = vmatprep.subr.bf16.mxu0 0
        %3204 = vmatpush1.bf16.msra.mxu0 %v3133
        %3205 = vmatprep.subr.bf16.mxu0 0
        %3206 = vmatpush1.bf16.msra.mxu0 %v3130
        %3207 = vmatprep.subr.bf16.mxu0 0
        %3208 = vmatpush1.bf16.msra.mxu0 %v3127
        %3209 = vmatprep.subr.bf16.mxu0 0
        %3210 = vmatpush2.bf16.msra.mxu0 0
        %3211 = vmatprep.subr.bf16.mxu0 0
        %3212 = vmatpush2.bf16.msra.mxu0 0
        %3213 = vmatprep.subr.bf16.mxu0 0
        %3214 = vmatpush2.bf16.msra.mxu0 0
        %3215 = vmatprep.subr.bf16.mxu0 0
        %3216 = vmatpush2.bf16.msra.mxu0 0
        %3217 = vmatprep.subr.bf16.mxu0 0
        %3218 = vmatpush2.bf16.msra.mxu0 0
        %3219 = vmatprep.subr.bf16.mxu0 0
        %3220 = vmatpush2.bf16.msra.mxu0 0
        %3221 = vmatprep.subr.bf16.mxu0 0
        %3222 = vmatpush2.bf16.msra.mxu0 0
        %3223 = vmatprep.subr.bf16.mxu0 0
        %3224 = vmatpush2.bf16.msra.mxu0 0
        %3225 = vmatprep.mubr.bf16.mxu0 0
        %3226 = vmatmul.mubr.bf16.gmra.mxu0 %v3150
        %v3227 = vpop.f32.mrf.mxu0
        %v3228 = vadd.f32 0.0, %v3227
        %v3229 = vpop.f32.mrf.mxu0
        %v3230 = vpop.f32.mrf.mxu0
        %v3231 = vpop.f32.mrf.mxu0
        %3232 = vdwg.mxu0
        %v3233 = vadd.f32 %v2913, %v3187
        %v3234 = vadd.f32 %v2915, %v3189
        %v3235 = vadd.f32 %v2954, %v3228
        %3237 = vrot.lane.b32.xlu0 %v2959, 64
        %v3238 = vpop.permute.xlu0 %3237
        %3240 = vrot.lane.b32.xlu0 %v2960, 64
        %v3241 = vpop.permute.xlu0 %3240
        %v3243 = vsel %vm2405, %v3238, 0
        %v3246 = vsel %vm2405, %v3241, 0
        %3248 = vmatprep.subr.bf16.mxu0 0
        %3249 = vmatpush1.bf16.xpose.msra.mxu0 0
        %3250 = vmatprep.subr.bf16.mxu0 0
        %3251 = vmatpush1.bf16.xpose.msra.mxu0 0
        %3252 = vmatprep.subr.bf16.mxu0 0
        %3253 = vmatpush1.bf16.xpose.msra.mxu0 0
        %3254 = vmatprep.subr.bf16.mxu0 0
        %3255 = vmatpush1.bf16.xpose.msra.mxu0 0
        %3256 = vmatprep.subr.bf16.mxu0 0
        %3257 = vmatpush1.bf16.xpose.msra.mxu0 0
        %3258 = vmatprep.subr.bf16.mxu0 0
        %3259 = vmatpush1.bf16.xpose.msra.mxu0 0
        %3260 = vmatprep.subr.bf16.mxu0 0
        %3261 = vmatpush1.bf16.xpose.msra.mxu0 0
        %3262 = vmatprep.subr.bf16.mxu0 0
        %3263 = vmatpush1.bf16.xpose.msra.mxu0 %v3246
        %3264 = vmatprep.subr.bf16.mxu0 0
        %3265 = vmatpush2.bf16.xpose.msra.mxu0 0
        %3266 = vmatprep.subr.bf16.mxu0 0
        %3267 = vmatpush2.bf16.xpose.msra.mxu0 0
        %3268 = vmatprep.subr.bf16.mxu0 0
        %3269 = vmatpush2.bf16.xpose.msra.mxu0 0
        %3270 = vmatprep.subr.bf16.mxu0 0
        %3271 = vmatpush2.bf16.xpose.msra.mxu0 0
        %3272 = vmatprep.subr.bf16.mxu0 0
        %3273 = vmatpush2.bf16.xpose.msra.mxu0 0
        %3274 = vmatprep.subr.bf16.mxu0 0
        %3275 = vmatpush2.bf16.xpose.msra.mxu0 0
        %3276 = vmatprep.subr.bf16.mxu0 0
        %3277 = vmatpush2.bf16.xpose.msra.mxu0 0
        %3278 = vmatprep.subr.bf16.mxu0 0
        %3279 = vmatpush2.bf16.xpose.msra.mxu0 0
        %3280 = vmatprep.mubr.bf16.mxu0 0
        %3281 = vmatmul.mubr.bf16.gmra.mxu0 %v3243
        %v3282 = vpop.f32.mrf.mxu0
        %v3283 = vadd.f32 0.0, %v3282
        %v3284 = vpop.f32.mrf.mxu0
        %v3285 = vpop.f32.mrf.mxu0
        %v3286 = vpop.f32.mrf.mxu0
        %3287 = vdwg.mxu0
        %v3288 = vmul.f32 %v3283, 0.05103104
        %v3289 = vsel %vm2401, %v3288, -1e+30
        %v3290 = vsel %vm2454, %v3289, -inf
        %3291 = vmax.xlane.f32.xlu0 %v3290
        %v3292 = vpop.xlane.xlu0 %3291
        %v3293 = vsub.f32 %v3289, %v3292
        %v3294 = vmul.f32 %v3293, 1.442695
        %v3295 = vpow.pop %v3294
        %v3296 = vsel %vm2454, %v3295, 0.0
        %3297 = vadd.xlane.f32.xlu0 %v3296
        %v3298 = vpop.xlane.xlu0 %3297
        %v3299 = vrcp.pop %v3298
        %v3300 = vmul.f32 %v3295, %v3299
        %v3301 = vpack.c.bf16 %v3300, %v3300
        %3303 = vrot.lane.b32.xlu0 %v2961, 64
        %v3304 = vpop.permute.xlu0 %3303
        %v3306 = vsel %vm2454, %v3301, 0
        %v3309 = vsel %vm2470, %v3304, 0
        %3311 = vmatprep.subr.bf16.mxu0 0
        %3312 = vmatpush1.bf16.msra.mxu0 0
        %3313 = vmatprep.subr.bf16.mxu0 0
        %3314 = vmatpush1.bf16.msra.mxu0 0
        %3315 = vmatprep.subr.bf16.mxu0 0
        %3316 = vmatpush1.bf16.msra.mxu0 0
        %3317 = vmatprep.subr.bf16.mxu0 0
        %3318 = vmatpush1.bf16.msra.mxu0 0
        %3319 = vmatprep.subr.bf16.mxu0 0
        %3320 = vmatpush1.bf16.msra.mxu0 0
        %3321 = vmatprep.subr.bf16.mxu0 0
        %3322 = vmatpush1.bf16.msra.mxu0 0
        %3323 = vmatprep.subr.bf16.mxu0 0
        %3324 = vmatpush1.bf16.msra.mxu0 0
        %3325 = vmatprep.subr.bf16.mxu0 0
        %3326 = vmatpush1.bf16.msra.mxu0 %v3309
        %3327 = vmatprep.subr.bf16.mxu0 0
        %3328 = vmatpush2.bf16.msra.mxu0 0
        %3329 = vmatprep.subr.bf16.mxu0 0
        %3330 = vmatpush2.bf16.msra.mxu0 0
        %3331 = vmatprep.subr.bf16.mxu0 0
        %3332 = vmatpush2.bf16.msra.mxu0 0
        %3333 = vmatprep.subr.bf16.mxu0 0
        %3334 = vmatpush2.bf16.msra.mxu0 0
        %3335 = vmatprep.subr.bf16.mxu0 0
        %3336 = vmatpush2.bf16.msra.mxu0 0
        %3337 = vmatprep.subr.bf16.mxu0 0
        %3338 = vmatpush2.bf16.msra.mxu0 0
        %3339 = vmatprep.subr.bf16.mxu0 0
        %3340 = vmatpush2.bf16.msra.mxu0 0
        %3341 = vmatprep.subr.bf16.mxu0 0
        %3342 = vmatpush2.bf16.msra.mxu0 0
        %3343 = vmatprep.mubr.bf16.mxu0 0
        %3344 = vmatmul.mubr.bf16.gmra.mxu0 %v3306
        %v3345 = vpop.f32.mrf.mxu0
        %v3346 = vadd.f32 0.0, %v3345
        %v3347 = vpop.f32.mrf.mxu0
        %v3348 = vpop.f32.mrf.mxu0
        %v3349 = vpop.f32.mrf.mxu0
        %3350 = vdwg.mxu0
        %v3351 = vpack.c.bf16 %v3346, %v3346
        %v3352 = vld [vmem:[#allocation10 + $0x120] sm:$0xff]
        %v3353 = vld [vmem:[#allocation10 + $0x128] sm:$0xf]
        %v3354 = vld [vmem:[#allocation10 + $0x12c] sm:$0xff]
        %v3355 = vld [vmem:[#allocation10 + $0x134] sm:$0xf]
        %v3356 = vld [vmem:[#allocation10 + $0x138] sm:$0xff]
        %v3357 = vld [vmem:[#allocation10 + $0x140] sm:$0xf]
        %v3358 = vld [vmem:[#allocation10 + $0x144] sm:$0xff]
        %v3359 = vld [vmem:[#allocation10 + $0x14c] sm:$0xf]
        %v3360 = vld [vmem:[#allocation10 + $0x150] sm:$0xff]
        %v3361 = vld [vmem:[#allocation10 + $0x158] sm:$0xf]
        %v3362 = vld [vmem:[#allocation10 + $0x15c] sm:$0xff]
        %v3363 = vld [vmem:[#allocation10 + $0x164] sm:$0xf]
        %v3364 = vld [vmem:[#allocation10 + $0x168] sm:$0xff]
        %v3365 = vld [vmem:[#allocation10 + $0x170] sm:$0xf]
        %v3366 = vld [vmem:[#allocation10 + $0x174] sm:$0xff]
        %v3367 = vld [vmem:[#allocation10 + $0x17c] sm:$0xf]
        %v3384 = vunpack.c.l.b16 %v3352
        %v3385 = vunpack.c.h.b16 %v3352
        %v3386 = vunpack.c.l.b16 %v3353
        %v3387 = vunpack.c.l.b16 %v3354
        %v3388 = vunpack.c.h.b16 %v3354
        %v3389 = vunpack.c.l.b16 %v3355
        %v3390 = vunpack.c.l.b16 %v3356
        %v3391 = vunpack.c.h.b16 %v3356
        %v3392 = vunpack.c.l.b16 %v3357
        %v3393 = vunpack.c.l.b16 %v3358
        %v3394 = vunpack.c.h.b16 %v3358
        %v3395 = vunpack.c.l.b16 %v3359
        %v3396 = vunpack.c.l.b16 %v3360
        %v3397 = vunpack.c.h.b16 %v3360
        %v3398 = vunpack.c.l.b16 %v3361
        %v3399 = vunpack.c.l.b16 %v3362
        %v3400 = vunpack.c.h.b16 %v3362
        %v3401 = vunpack.c.l.b16 %v3363
        %v3402 = vunpack.c.l.b16 %v3364
        %v3403 = vunpack.c.h.b16 %v3364
        %v3404 = vunpack.c.l.b16 %v3365
        %v3405 = vunpack.c.l.b16 %v3366
        %v3406 = vunpack.c.h.b16 %v3366
        %v3407 = vunpack.c.l.b16 %v3367
        %v3408 = vpack.c.b16 %v3387, %v3384
        %v3409 = vpack.c.b16 %v3388, %v3385
        %v3410 = vpack.c.b16 %v3389, %v3386
        %v3411 = vpack.c.b16 %v3393, %v3390
        %v3412 = vpack.c.b16 %v3394, %v3391
        %v3413 = vpack.c.b16 %v3395, %v3392
        %v3414 = vpack.c.b16 %v3399, %v3396
        %v3415 = vpack.c.b16 %v3400, %v3397
        %v3416 = vpack.c.b16 %v3401, %v3398
        %v3417 = vpack.c.b16 %v3405, %v3402
        %v3418 = vpack.c.b16 %v3406, %v3403
        %v3419 = vpack.c.b16 %v3407, %v3404
        %v3433 = vsel %vm2405, %v3351, 0
        %3435 = vmatprep.subr.bf16.mxu0 0
        %3436 = vmatpush1.bf16.msra.mxu0 0
        %3437 = vmatprep.subr.bf16.mxu0 0
        %3438 = vmatpush1.bf16.msra.mxu0 0
        %3439 = vmatprep.subr.bf16.mxu0 0
        %3440 = vmatpush1.bf16.msra.mxu0 0
        %3441 = vmatprep.subr.bf16.mxu0 0
        %3442 = vmatpush1.bf16.msra.mxu0 0
        %3443 = vmatprep.subr.bf16.mxu0 %v3418
        %3444 = vmatpush1.bf16.msra.mxu0 %v3417
        %3445 = vmatprep.subr.bf16.mxu0 %v3415
        %3446 = vmatpush1.bf16.msra.mxu0 %v3414
        %3447 = vmatprep.subr.bf16.mxu0 %v3412
        %3448 = vmatpush1.bf16.msra.mxu0 %v3411
        %3449 = vmatprep.subr.bf16.mxu0 %v3409
        %3450 = vmatpush1.bf16.msra.mxu0 %v3408
        %3451 = vmatprep.subr.bf16.mxu0 0
        %3452 = vmatpush2.bf16.msra.mxu0 0
        %3453 = vmatprep.subr.bf16.mxu0 0
        %3454 = vmatpush2.bf16.msra.mxu0 0
        %3455 = vmatprep.subr.bf16.mxu0 0
        %3456 = vmatpush2.bf16.msra.mxu0 0
        %3457 = vmatprep.subr.bf16.mxu0 0
        %3458 = vmatpush2.bf16.msra.mxu0 0
        %3459 = vmatprep.subr.bf16.mxu0 0
        %3460 = vmatpush2.bf16.msra.mxu0 0
        %3461 = vmatprep.subr.bf16.mxu0 0
        %3462 = vmatpush2.bf16.msra.mxu0 0
        %3463 = vmatprep.subr.bf16.mxu0 0
        %3464 = vmatpush2.bf16.msra.mxu0 0
        %3465 = vmatprep.subr.bf16.mxu0 0
        %3466 = vmatpush2.bf16.msra.mxu0 0
        %3467 = vmatprep.mubr.bf16.mxu0 0
        %3468 = vmatmul.mubr.bf16.gmra.mxu0 %v3433
        %v3469 = vpop.f32.mrf.mxu0
        %v3470 = vadd.f32 0.0, %v3469
        %v3471 = vpop.f32.mrf.mxu0
        %v3472 = vadd.f32 0.0, %v3471
        %v3473 = vpop.f32.mrf.mxu0
        %v3474 = vpop.f32.mrf.mxu0
        %3475 = vdwg.mxu0
        %3476 = vmatprep.subr.bf16.mxu0 0
        %3477 = vmatpush1.bf16.msra.mxu0 0
        %3478 = vmatprep.subr.bf16.mxu0 0
        %3479 = vmatpush1.bf16.msra.mxu0 0
        %3480 = vmatprep.subr.bf16.mxu0 0
        %3481 = vmatpush1.bf16.msra.mxu0 0
        %3482 = vmatprep.subr.bf16.mxu0 0
        %3483 = vmatpush1.bf16.msra.mxu0 0
        %3484 = vmatprep.subr.bf16.mxu0 0
        %3485 = vmatpush1.bf16.msra.mxu0 %v3419
        %3486 = vmatprep.subr.bf16.mxu0 0
        %3487 = vmatpush1.bf16.msra.mxu0 %v3416
        %3488 = vmatprep.subr.bf16.mxu0 0
        %3489 = vmatpush1.bf16.msra.mxu0 %v3413
        %3490 = vmatprep.subr.bf16.mxu0 0
        %3491 = vmatpush1.bf16.msra.mxu0 %v3410
        %3492 = vmatprep.subr.bf16.mxu0 0
        %3493 = vmatpush2.bf16.msra.mxu0 0
        %3494 = vmatprep.subr.bf16.mxu0 0
        %3495 = vmatpush2.bf16.msra.mxu0 0
        %3496 = vmatprep.subr.bf16.mxu0 0
        %3497 = vmatpush2.bf16.msra.mxu0 0
        %3498 = vmatprep.subr.bf16.mxu0 0
        %3499 = vmatpush2.bf16.msra.mxu0 0
        %3500 = vmatprep.subr.bf16.mxu0 0
        %3501 = vmatpush2.bf16.msra.mxu0 0
        %3502 = vmatprep.subr.bf16.mxu0 0
        %3503 = vmatpush2.bf16.msra.mxu0 0
        %3504 = vmatprep.subr.bf16.mxu0 0
        %3505 = vmatpush2.bf16.msra.mxu0 0
        %3506 = vmatprep.subr.bf16.mxu0 0
        %3507 = vmatpush2.bf16.msra.mxu0 0
        %3508 = vmatprep.mubr.bf16.mxu0 0
        %3509 = vmatmul.mubr.bf16.gmra.mxu0 %v3433
        %v3510 = vpop.f32.mrf.mxu0
        %v3511 = vadd.f32 0.0, %v3510
        %v3512 = vpop.f32.mrf.mxu0
        %v3513 = vpop.f32.mrf.mxu0
        %v3514 = vpop.f32.mrf.mxu0
        %3515 = vdwg.mxu0
        %v3516 = vadd.f32 %v3233, %v3470
        %v3517 = vadd.f32 %v3234, %v3472
        %v3518 = vadd.f32 %v3235, %v3511
        %v3519 = vpack.c.bf16 %v2147, %v2147
        %v3520 = vpack.c.bf16 %v2231, %v2231
        %v3521 = vpack.c.bf16 %v2392, %v2392
        %v3523 = vsel %vm2405, %v3519, 0
        %v3526 = vsel %vm2405, %v3520, 0
        %3528 = vmatprep.subr.bf16.mxu0 0
        %3529 = vmatpush1.bf16.xpose.msra.mxu0 0
        %3530 = vmatprep.subr.bf16.mxu0 0
        %3531 = vmatpush1.bf16.xpose.msra.mxu0 0
        %3532 = vmatprep.subr.bf16.mxu0 0
        %3533 = vmatpush1.bf16.xpose.msra.mxu0 0
        %3534 = vmatprep.subr.bf16.mxu0 0
        %3535 = vmatpush1.bf16.xpose.msra.mxu0 0
        %3536 = vmatprep.subr.bf16.mxu0 0
        %3537 = vmatpush1.bf16.xpose.msra.mxu0 0
        %3538 = vmatprep.subr.bf16.mxu0 0
        %3539 = vmatpush1.bf16.xpose.msra.mxu0 0
        %3540 = vmatprep.subr.bf16.mxu0 0
        %3541 = vmatpush1.bf16.xpose.msra.mxu0 0
        %3542 = vmatprep.subr.bf16.mxu0 0
        %3543 = vmatpush1.bf16.xpose.msra.mxu0 %v3526
        %3544 = vmatprep.subr.bf16.mxu0 0
        %3545 = vmatpush2.bf16.xpose.msra.mxu0 0
        %3546 = vmatprep.subr.bf16.mxu0 0
        %3547 = vmatpush2.bf16.xpose.msra.mxu0 0
        %3548 = vmatprep.subr.bf16.mxu0 0
        %3549 = vmatpush2.bf16.xpose.msra.mxu0 0
        %3550 = vmatprep.subr.bf16.mxu0 0
        %3551 = vmatpush2.bf16.xpose.msra.mxu0 0
        %3552 = vmatprep.subr.bf16.mxu0 0
        %3553 = vmatpush2.bf16.xpose.msra.mxu0 0
        %3554 = vmatprep.subr.bf16.mxu0 0
        %3555 = vmatpush2.bf16.xpose.msra.mxu0 0
        %3556 = vmatprep.subr.bf16.mxu0 0
        %3557 = vmatpush2.bf16.xpose.msra.mxu0 0
        %3558 = vmatprep.subr.bf16.mxu0 0
        %3559 = vmatpush2.bf16.xpose.msra.mxu0 0
        %3560 = vmatprep.mubr.bf16.mxu0 0
        %3561 = vmatmul.mubr.bf16.gmra.mxu0 %v3523
        %v3562 = vpop.f32.mrf.mxu0
        %v3563 = vadd.f32 0.0, %v3562
        %v3564 = vpop.f32.mrf.mxu0
        %v3565 = vpop.f32.mrf.mxu0
        %v3566 = vpop.f32.mrf.mxu0
        %3567 = vdwg.mxu0
        %v3568 = vmul.f32 %v3563, 0.05103104
        %v3569 = vsel %vm2401, %v3568, -1e+30
        %v3570 = vsel %vm2454, %v3569, -inf
        %3571 = vmax.xlane.f32.xlu0 %v3570
        %v3572 = vpop.xlane.xlu0 %3571
        %v3573 = vsub.f32 %v3569, %v3572
        %v3574 = vmul.f32 %v3573, 1.442695
        %v3575 = vpow.pop %v3574
        %v3576 = vsel %vm2454, %v3575, 0.0
        %3577 = vadd.xlane.f32.xlu0 %v3576
        %v3578 = vpop.xlane.xlu0 %3577
        %v3579 = vrcp.pop %v3578
        %v3580 = vmul.f32 %v3575, %v3579
        %v3581 = vpack.c.bf16 %v3580, %v3580
        %v3583 = vsel %vm2454, %v3581, 0
        %v3586 = vsel %vm2470, %v3521, 0
        %3588 = vmatprep.subr.bf16.mxu0 0
        %3589 = vmatpush1.bf16.msra.mxu0 0
        %3590 = vmatprep.subr.bf16.mxu0 0
        %3591 = vmatpush1.bf16.msra.mxu0 0
        %3592 = vmatprep.subr.bf16.mxu0 0
        %3593 = vmatpush1.bf16.msra.mxu0 0
        %3594 = vmatprep.subr.bf16.mxu0 0
        %3595 = vmatpush1.bf16.msra.mxu0 0
        %3596 = vmatprep.subr.bf16.mxu0 0
        %3597 = vmatpush1.bf16.msra.mxu0 0
        %3598 = vmatprep.subr.bf16.mxu0 0
        %3599 = vmatpush1.bf16.msra.mxu0 0
        %3600 = vmatprep.subr.bf16.mxu0 0
        %3601 = vmatpush1.bf16.msra.mxu0 0
        %3602 = vmatprep.subr.bf16.mxu0 0
        %3603 = vmatpush1.bf16.msra.mxu0 %v3586
        %3604 = vmatprep.subr.bf16.mxu0 0
        %3605 = vmatpush2.bf16.msra.mxu0 0
        %3606 = vmatprep.subr.bf16.mxu0 0
        %3607 = vmatpush2.bf16.msra.mxu0 0
        %3608 = vmatprep.subr.bf16.mxu0 0
        %3609 = vmatpush2.bf16.msra.mxu0 0
        %3610 = vmatprep.subr.bf16.mxu0 0
        %3611 = vmatpush2.bf16.msra.mxu0 0
        %3612 = vmatprep.subr.bf16.mxu0 0
        %3613 = vmatpush2.bf16.msra.mxu0 0
        %3614 = vmatprep.subr.bf16.mxu0 0
        %3615 = vmatpush2.bf16.msra.mxu0 0
        %3616 = vmatprep.subr.bf16.mxu0 0
        %3617 = vmatpush2.bf16.msra.mxu0 0
        %3618 = vmatprep.subr.bf16.mxu0 0
        %3619 = vmatpush2.bf16.msra.mxu0 0
        %3620 = vmatprep.mubr.bf16.mxu0 0
        %3621 = vmatmul.mubr.bf16.gmra.mxu0 %v3583
        %v3622 = vpop.f32.mrf.mxu0
        %v3623 = vadd.f32 0.0, %v3622
        %v3624 = vpop.f32.mrf.mxu0
        %v3625 = vpop.f32.mrf.mxu0
        %v3626 = vpop.f32.mrf.mxu0
        %3627 = vdwg.mxu0
        %v3628 = vpack.c.bf16 %v3623, %v3623
        %v3629 = vld [vmem:[#allocation10 + $0x180] sm:$0xff]
        %v3630 = vld [vmem:[#allocation10 + $0x188] sm:$0xf]
        %v3631 = vld [vmem:[#allocation10 + $0x18c] sm:$0xff]
        %v3632 = vld [vmem:[#allocation10 + $0x194] sm:$0xf]
        %v3633 = vld [vmem:[#allocation10 + $0x198] sm:$0xff]
        %v3634 = vld [vmem:[#allocation10 + $0x1a0] sm:$0xf]
        %v3635 = vld [vmem:[#allocation10 + $0x1a4] sm:$0xff]
        %v3636 = vld [vmem:[#allocation10 + $0x1ac] sm:$0xf]
        %v3637 = vld [vmem:[#allocation10 + $0x1b0] sm:$0xff]
        %v3638 = vld [vmem:[#allocation10 + $0x1b8] sm:$0xf]
        %v3639 = vld [vmem:[#allocation10 + $0x1bc] sm:$0xff]
        %v3640 = vld [vmem:[#allocation10 + $0x1c4] sm:$0xf]
        %v3641 = vld [vmem:[#allocation10 + $0x1c8] sm:$0xff]
        %v3642 = vld [vmem:[#allocation10 + $0x1d0] sm:$0xf]
        %v3643 = vld [vmem:[#allocation10 + $0x1d4] sm:$0xff]
        %v3644 = vld [vmem:[#allocation10 + $0x1dc] sm:$0xf]
        %v3661 = vunpack.c.l.b16 %v3629
        %v3662 = vunpack.c.h.b16 %v3629
        %v3663 = vunpack.c.l.b16 %v3630
        %v3664 = vunpack.c.l.b16 %v3631
        %v3665 = vunpack.c.h.b16 %v3631
        %v3666 = vunpack.c.l.b16 %v3632
        %v3667 = vunpack.c.l.b16 %v3633
        %v3668 = vunpack.c.h.b16 %v3633
        %v3669 = vunpack.c.l.b16 %v3634
        %v3670 = vunpack.c.l.b16 %v3635
        %v3671 = vunpack.c.h.b16 %v3635
        %v3672 = vunpack.c.l.b16 %v3636
        %v3673 = vunpack.c.l.b16 %v3637
        %v3674 = vunpack.c.h.b16 %v3637
        %v3675 = vunpack.c.l.b16 %v3638
        %v3676 = vunpack.c.l.b16 %v3639
        %v3677 = vunpack.c.h.b16 %v3639
        %v3678 = vunpack.c.l.b16 %v3640
        %v3679 = vunpack.c.l.b16 %v3641
        %v3680 = vunpack.c.h.b16 %v3641
        %v3681 = vunpack.c.l.b16 %v3642
        %v3682 = vunpack.c.l.b16 %v3643
        %v3683 = vunpack.c.h.b16 %v3643
        %v3684 = vunpack.c.l.b16 %v3644
        %v3685 = vpack.c.b16 %v3664, %v3661
        %v3686 = vpack.c.b16 %v3665, %v3662
        %v3687 = vpack.c.b16 %v3666, %v3663
        %v3688 = vpack.c.b16 %v3670, %v3667
        %v3689 = vpack.c.b16 %v3671, %v3668
        %v3690 = vpack.c.b16 %v3672, %v3669
        %v3691 = vpack.c.b16 %v3676, %v3673
        %v3692 = vpack.c.b16 %v3677, %v3674
        %v3693 = vpack.c.b16 %v3678, %v3675
        %v3694 = vpack.c.b16 %v3682, %v3679
        %v3695 = vpack.c.b16 %v3683, %v3680
        %v3696 = vpack.c.b16 %v3684, %v3681
        %v3710 = vsel %vm2405, %v3628, 0
        %3712 = vmatprep.subr.bf16.mxu0 0
        %3713 = vmatpush1.bf16.msra.mxu0 0
        %3714 = vmatprep.subr.bf16.mxu0 0
        %3715 = vmatpush1.bf16.msra.mxu0 0
        %3716 = vmatprep.subr.bf16.mxu0 0
        %3717 = vmatpush1.bf16.msra.mxu0 0
        %3718 = vmatprep.subr.bf16.mxu0 0
        %3719 = vmatpush1.bf16.msra.mxu0 0
        %3720 = vmatprep.subr.bf16.mxu0 %v3695
        %3721 = vmatpush1.bf16.msra.mxu0 %v3694
        %3722 = vmatprep.subr.bf16.mxu0 %v3692
        %3723 = vmatpush1.bf16.msra.mxu0 %v3691
        %3724 = vmatprep.subr.bf16.mxu0 %v3689
        %3725 = vmatpush1.bf16.msra.mxu0 %v3688
        %3726 = vmatprep.subr.bf16.mxu0 %v3686
        %3727 = vmatpush1.bf16.msra.mxu0 %v3685
        %3728 = vmatprep.subr.bf16.mxu0 0
        %3729 = vmatpush2.bf16.msra.mxu0 0
        %3730 = vmatprep.subr.bf16.mxu0 0
        %3731 = vmatpush2.bf16.msra.mxu0 0
        %3732 = vmatprep.subr.bf16.mxu0 0
        %3733 = vmatpush2.bf16.msra.mxu0 0
        %3734 = vmatprep.subr.bf16.mxu0 0
        %3735 = vmatpush2.bf16.msra.mxu0 0
        %3736 = vmatprep.subr.bf16.mxu0 0
        %3737 = vmatpush2.bf16.msra.mxu0 0
        %3738 = vmatprep.subr.bf16.mxu0 0
        %3739 = vmatpush2.bf16.msra.mxu0 0
        %3740 = vmatprep.subr.bf16.mxu0 0
        %3741 = vmatpush2.bf16.msra.mxu0 0
        %3742 = vmatprep.subr.bf16.mxu0 0
        %3743 = vmatpush2.bf16.msra.mxu0 0
        %3744 = vmatprep.mubr.bf16.mxu0 0
        %3745 = vmatmul.mubr.bf16.gmra.mxu0 %v3710
        %v3746 = vpop.f32.mrf.mxu0
        %v3747 = vadd.f32 0.0, %v3746
        %v3748 = vpop.f32.mrf.mxu0
        %v3749 = vadd.f32 0.0, %v3748
        %v3750 = vpop.f32.mrf.mxu0
        %v3751 = vpop.f32.mrf.mxu0
        %3752 = vdwg.mxu0
        %3753 = vmatprep.subr.bf16.mxu0 0
        %3754 = vmatpush1.bf16.msra.mxu0 0
        %3755 = vmatprep.subr.bf16.mxu0 0
        %3756 = vmatpush1.bf16.msra.mxu0 0
        %3757 = vmatprep.subr.bf16.mxu0 0
        %3758 = vmatpush1.bf16.msra.mxu0 0
        %3759 = vmatprep.subr.bf16.mxu0 0
        %3760 = vmatpush1.bf16.msra.mxu0 0
        %3761 = vmatprep.subr.bf16.mxu0 0
        %3762 = vmatpush1.bf16.msra.mxu0 %v3696
        %3763 = vmatprep.subr.bf16.mxu0 0
        %3764 = vmatpush1.bf16.msra.mxu0 %v3693
        %3765 = vmatprep.subr.bf16.mxu0 0
        %3766 = vmatpush1.bf16.msra.mxu0 %v3690
        %3767 = vmatprep.subr.bf16.mxu0 0
        %3768 = vmatpush1.bf16.msra.mxu0 %v3687
        %3769 = vmatprep.subr.bf16.mxu0 0
        %3770 = vmatpush2.bf16.msra.mxu0 0
        %3771 = vmatprep.subr.bf16.mxu0 0
        %3772 = vmatpush2.bf16.msra.mxu0 0
        %3773 = vmatprep.subr.bf16.mxu0 0
        %3774 = vmatpush2.bf16.msra.mxu0 0
        %3775 = vmatprep.subr.bf16.mxu0 0
        %3776 = vmatpush2.bf16.msra.mxu0 0
        %3777 = vmatprep.subr.bf16.mxu0 0
        %3778 = vmatpush2.bf16.msra.mxu0 0
        %3779 = vmatprep.subr.bf16.mxu0 0
        %3780 = vmatpush2.bf16.msra.mxu0 0
        %3781 = vmatprep.subr.bf16.mxu0 0
        %3782 = vmatpush2.bf16.msra.mxu0 0
        %3783 = vmatprep.subr.bf16.mxu0 0
        %3784 = vmatpush2.bf16.msra.mxu0 0
        %3785 = vmatprep.mubr.bf16.mxu0 0
        %3786 = vmatmul.mubr.bf16.gmra.mxu0 %v3710
        %v3787 = vpop.f32.mrf.mxu0
        %v3788 = vadd.f32 0.0, %v3787
        %v3789 = vpop.f32.mrf.mxu0
        %v3790 = vpop.f32.mrf.mxu0
        %v3791 = vpop.f32.mrf.mxu0
        %3792 = vdwg.mxu0
        %v3793 = vadd.f32 %v3516, %v3747
        %v3794 = vadd.f32 %v3517, %v3749
        %v3795 = vadd.f32 %v3518, %v3788
        %3797 = vrot.lane.b32.xlu0 %v3519, 64
        %v3798 = vpop.permute.xlu0 %3797
        %3800 = vrot.lane.b32.xlu0 %v3520, 64
        %v3801 = vpop.permute.xlu0 %3800
        %v3803 = vsel %vm2405, %v3798, 0
        %v3806 = vsel %vm2405, %v3801, 0
        %3808 = vmatprep.subr.bf16.mxu0 0
        %3809 = vmatpush1.bf16.xpose.msra.mxu0 0
        %3810 = vmatprep.subr.bf16.mxu0 0
        %3811 = vmatpush1.bf16.xpose.msra.mxu0 0
        %3812 = vmatprep.subr.bf16.mxu0 0
        %3813 = vmatpush1.bf16.xpose.msra.mxu0 0
        %3814 = vmatprep.subr.bf16.mxu0 0
        %3815 = vmatpush1.bf16.xpose.msra.mxu0 0
        %3816 = vmatprep.subr.bf16.mxu0 0
        %3817 = vmatpush1.bf16.xpose.msra.mxu0 0
        %3818 = vmatprep.subr.bf16.mxu0 0
        %3819 = vmatpush1.bf16.xpose.msra.mxu0 0
        %3820 = vmatprep.subr.bf16.mxu0 0
        %3821 = vmatpush1.bf16.xpose.msra.mxu0 0
        %3822 = vmatprep.subr.bf16.mxu0 0
        %3823 = vmatpush1.bf16.xpose.msra.mxu0 %v3806
        %3824 = vmatprep.subr.bf16.mxu0 0
        %3825 = vmatpush2.bf16.xpose.msra.mxu0 0
        %3826 = vmatprep.subr.bf16.mxu0 0
        %3827 = vmatpush2.bf16.xpose.msra.mxu0 0
        %3828 = vmatprep.subr.bf16.mxu0 0
        %3829 = vmatpush2.bf16.xpose.msra.mxu0 0
        %3830 = vmatprep.subr.bf16.mxu0 0
        %3831 = vmatpush2.bf16.xpose.msra.mxu0 0
        %3832 = vmatprep.subr.bf16.mxu0 0
        %3833 = vmatpush2.bf16.xpose.msra.mxu0 0
        %3834 = vmatprep.subr.bf16.mxu0 0
        %3835 = vmatpush2.bf16.xpose.msra.mxu0 0
        %3836 = vmatprep.subr.bf16.mxu0 0
        %3837 = vmatpush2.bf16.xpose.msra.mxu0 0
        %3838 = vmatprep.subr.bf16.mxu0 0
        %3839 = vmatpush2.bf16.xpose.msra.mxu0 0
        %3840 = vmatprep.mubr.bf16.mxu0 0
        %3841 = vmatmul.mubr.bf16.gmra.mxu0 %v3803
        %v3842 = vpop.f32.mrf.mxu0
        %v3843 = vadd.f32 0.0, %v3842
        %v3844 = vpop.f32.mrf.mxu0
        %v3845 = vpop.f32.mrf.mxu0
        %v3846 = vpop.f32.mrf.mxu0
        %3847 = vdwg.mxu0
        %v3848 = vmul.f32 %v3843, 0.05103104
        %v3849 = vsel %vm2401, %v3848, -1e+30
        %v3850 = vsel %vm2454, %v3849, -inf
        %3851 = vmax.xlane.f32.xlu0 %v3850
        %v3852 = vpop.xlane.xlu0 %3851
        %v3853 = vsub.f32 %v3849, %v3852
        %v3854 = vmul.f32 %v3853, 1.442695
        %v3855 = vpow.pop %v3854
        %v3856 = vsel %vm2454, %v3855, 0.0
        %3857 = vadd.xlane.f32.xlu0 %v3856
        %v3858 = vpop.xlane.xlu0 %3857
        %v3859 = vrcp.pop %v3858
        %v3860 = vmul.f32 %v3855, %v3859
        %v3861 = vpack.c.bf16 %v3860, %v3860
        %3863 = vrot.lane.b32.xlu0 %v3521, 64
        %v3864 = vpop.permute.xlu0 %3863
        %v3866 = vsel %vm2454, %v3861, 0
        %v3869 = vsel %vm2470, %v3864, 0
        %3871 = vmatprep.subr.bf16.mxu0 0
        %3872 = vmatpush1.bf16.msra.mxu0 0
        %3873 = vmatprep.subr.bf16.mxu0 0
        %3874 = vmatpush1.bf16.msra.mxu0 0
        %3875 = vmatprep.subr.bf16.mxu0 0
        %3876 = vmatpush1.bf16.msra.mxu0 0
        %3877 = vmatprep.subr.bf16.mxu0 0
        %3878 = vmatpush1.bf16.msra.mxu0 0
        %3879 = vmatprep.subr.bf16.mxu0 0
        %3880 = vmatpush1.bf16.msra.mxu0 0
        %3881 = vmatprep.subr.bf16.mxu0 0
        %3882 = vmatpush1.bf16.msra.mxu0 0
        %3883 = vmatprep.subr.bf16.mxu0 0
        %3884 = vmatpush1.bf16.msra.mxu0 0
        %3885 = vmatprep.subr.bf16.mxu0 0
        %3886 = vmatpush1.bf16.msra.mxu0 %v3869
        %3887 = vmatprep.subr.bf16.mxu0 0
        %3888 = vmatpush2.bf16.msra.mxu0 0
        %3889 = vmatprep.subr.bf16.mxu0 0
        %3890 = vmatpush2.bf16.msra.mxu0 0
        %3891 = vmatprep.subr.bf16.mxu0 0
        %3892 = vmatpush2.bf16.msra.mxu0 0
        %3893 = vmatprep.subr.bf16.mxu0 0
        %3894 = vmatpush2.bf16.msra.mxu0 0
        %3895 = vmatprep.subr.bf16.mxu0 0
        %3896 = vmatpush2.bf16.msra.mxu0 0
        %3897 = vmatprep.subr.bf16.mxu0 0
        %3898 = vmatpush2.bf16.msra.mxu0 0
        %3899 = vmatprep.subr.bf16.mxu0 0
        %3900 = vmatpush2.bf16.msra.mxu0 0
        %3901 = vmatprep.subr.bf16.mxu0 0
        %3902 = vmatpush2.bf16.msra.mxu0 0
        %3903 = vmatprep.mubr.bf16.mxu0 0
        %3904 = vmatmul.mubr.bf16.gmra.mxu0 %v3866
        %v3905 = vpop.f32.mrf.mxu0
        %v3906 = vadd.f32 0.0, %v3905
        %v3907 = vpop.f32.mrf.mxu0
        %v3908 = vpop.f32.mrf.mxu0
        %v3909 = vpop.f32.mrf.mxu0
        %3910 = vdwg.mxu0
        %v3911 = vpack.c.bf16 %v3906, %v3906
        %v3912 = vld [vmem:[#allocation10 + $0x1e0] sm:$0xff]
        %v3913 = vld [vmem:[#allocation10 + $0x1e8] sm:$0xf]
        %v3914 = vld [vmem:[#allocation10 + $0x1ec] sm:$0xff]
        %v3915 = vld [vmem:[#allocation10 + $0x1f4] sm:$0xf]
        %v3916 = vld [vmem:[#allocation10 + $0x1f8] sm:$0xff]
        %v3917 = vld [vmem:[#allocation10 + $0x200] sm:$0xf]
        %v3918 = vld [vmem:[#allocation10 + $0x204] sm:$0xff]
        %v3919 = vld [vmem:[#allocation10 + $0x20c] sm:$0xf]
        %v3920 = vld [vmem:[#allocation10 + $0x210] sm:$0xff]
        %v3921 = vld [vmem:[#allocation10 + $0x218] sm:$0xf]
        %v3922 = vld [vmem:[#allocation10 + $0x21c] sm:$0xff]
        %v3923 = vld [vmem:[#allocation10 + $0x224] sm:$0xf]
        %v3924 = vld [vmem:[#allocation10 + $0x228] sm:$0xff]
        %v3925 = vld [vmem:[#allocation10 + $0x230] sm:$0xf]
        %v3926 = vld [vmem:[#allocation10 + $0x234] sm:$0xff]
        %v3927 = vld [vmem:[#allocation10 + $0x23c] sm:$0xf]
        %v3944 = vunpack.c.l.b16 %v3912
        %v3945 = vunpack.c.h.b16 %v3912
        %v3946 = vunpack.c.l.b16 %v3913
        %v3947 = vunpack.c.l.b16 %v3914
        %v3948 = vunpack.c.h.b16 %v3914
        %v3949 = vunpack.c.l.b16 %v3915
        %v3950 = vunpack.c.l.b16 %v3916
        %v3951 = vunpack.c.h.b16 %v3916
        %v3952 = vunpack.c.l.b16 %v3917
        %v3953 = vunpack.c.l.b16 %v3918
        %v3954 = vunpack.c.h.b16 %v3918
        %v3955 = vunpack.c.l.b16 %v3919
        %v3956 = vunpack.c.l.b16 %v3920
        %v3957 = vunpack.c.h.b16 %v3920
        %v3958 = vunpack.c.l.b16 %v3921
        %v3959 = vunpack.c.l.b16 %v3922
        %v3960 = vunpack.c.h.b16 %v3922
        %v3961 = vunpack.c.l.b16 %v3923
        %v3962 = vunpack.c.l.b16 %v3924
        %v3963 = vunpack.c.h.b16 %v3924
        %v3964 = vunpack.c.l.b16 %v3925
        %v3965 = vunpack.c.l.b16 %v3926
        %v3966 = vunpack.c.h.b16 %v3926
        %v3967 = vunpack.c.l.b16 %v3927
        %v3968 = vpack.c.b16 %v3947, %v3944
        %v3969 = vpack.c.b16 %v3948, %v3945
        %v3970 = vpack.c.b16 %v3949, %v3946
        %v3971 = vpack.c.b16 %v3953, %v3950
        %v3972 = vpack.c.b16 %v3954, %v3951
        %v3973 = vpack.c.b16 %v3955, %v3952
        %v3974 = vpack.c.b16 %v3959, %v3956
        %v3975 = vpack.c.b16 %v3960, %v3957
        %v3976 = vpack.c.b16 %v3961, %v3958
        %v3977 = vpack.c.b16 %v3965, %v3962
        %v3978 = vpack.c.b16 %v3966, %v3963
        %v3979 = vpack.c.b16 %v3967, %v3964
        %v3993 = vsel %vm2405, %v3911, 0
        %3995 = vmatprep.subr.bf16.mxu0 0
        %3996 = vmatpush1.bf16.msra.mxu0 0
        %3997 = vmatprep.subr.bf16.mxu0 0
        %3998 = vmatpush1.bf16.msra.mxu0 0
        %3999 = vmatprep.subr.bf16.mxu0 0
        %4000 = vmatpush1.bf16.msra.mxu0 0
        %4001 = vmatprep.subr.bf16.mxu0 0
        %4002 = vmatpush1.bf16.msra.mxu0 0
        %4003 = vmatprep.subr.bf16.mxu0 %v3978
        %4004 = vmatpush1.bf16.msra.mxu0 %v3977
        %4005 = vmatprep.subr.bf16.mxu0 %v3975
        %4006 = vmatpush1.bf16.msra.mxu0 %v3974
        %4007 = vmatprep.subr.bf16.mxu0 %v3972
        %4008 = vmatpush1.bf16.msra.mxu0 %v3971
        %4009 = vmatprep.subr.bf16.mxu0 %v3969
        %4010 = vmatpush1.bf16.msra.mxu0 %v3968
        %4011 = vmatprep.subr.bf16.mxu0 0
        %4012 = vmatpush2.bf16.msra.mxu0 0
        %4013 = vmatprep.subr.bf16.mxu0 0
        %4014 = vmatpush2.bf16.msra.mxu0 0
        %4015 = vmatprep.subr.bf16.mxu0 0
        %4016 = vmatpush2.bf16.msra.mxu0 0
        %4017 = vmatprep.subr.bf16.mxu0 0
        %4018 = vmatpush2.bf16.msra.mxu0 0
        %4019 = vmatprep.subr.bf16.mxu0 0
        %4020 = vmatpush2.bf16.msra.mxu0 0
        %4021 = vmatprep.subr.bf16.mxu0 0
        %4022 = vmatpush2.bf16.msra.mxu0 0
        %4023 = vmatprep.subr.bf16.mxu0 0
        %4024 = vmatpush2.bf16.msra.mxu0 0
        %4025 = vmatprep.subr.bf16.mxu0 0
        %4026 = vmatpush2.bf16.msra.mxu0 0
        %4027 = vmatprep.mubr.bf16.mxu0 0
        %4028 = vmatmul.mubr.bf16.gmra.mxu0 %v3993
        %v4029 = vpop.f32.mrf.mxu0
        %v4030 = vadd.f32 0.0, %v4029
        %v4031 = vpop.f32.mrf.mxu0
        %v4032 = vadd.f32 0.0, %v4031
        %v4033 = vpop.f32.mrf.mxu0
        %v4034 = vpop.f32.mrf.mxu0
        %4035 = vdwg.mxu0
        %4036 = vmatprep.subr.bf16.mxu0 0
        %4037 = vmatpush1.bf16.msra.mxu0 0
        %4038 = vmatprep.subr.bf16.mxu0 0
        %4039 = vmatpush1.bf16.msra.mxu0 0
        %4040 = vmatprep.subr.bf16.mxu0 0
        %4041 = vmatpush1.bf16.msra.mxu0 0
        %4042 = vmatprep.subr.bf16.mxu0 0
        %4043 = vmatpush1.bf16.msra.mxu0 0
        %4044 = vmatprep.subr.bf16.mxu0 0
        %4045 = vmatpush1.bf16.msra.mxu0 %v3979
        %4046 = vmatprep.subr.bf16.mxu0 0
        %4047 = vmatpush1.bf16.msra.mxu0 %v3976
        %4048 = vmatprep.subr.bf16.mxu0 0
        %4049 = vmatpush1.bf16.msra.mxu0 %v3973
        %4050 = vmatprep.subr.bf16.mxu0 0
        %4051 = vmatpush1.bf16.msra.mxu0 %v3970
        %4052 = vmatprep.subr.bf16.mxu0 0
        %4053 = vmatpush2.bf16.msra.mxu0 0
        %4054 = vmatprep.subr.bf16.mxu0 0
        %4055 = vmatpush2.bf16.msra.mxu0 0
        %4056 = vmatprep.subr.bf16.mxu0 0
        %4057 = vmatpush2.bf16.msra.mxu0 0
        %4058 = vmatprep.subr.bf16.mxu0 0
        %4059 = vmatpush2.bf16.msra.mxu0 0
        %4060 = vmatprep.subr.bf16.mxu0 0
        %4061 = vmatpush2.bf16.msra.mxu0 0
        %4062 = vmatprep.subr.bf16.mxu0 0
        %4063 = vmatpush2.bf16.msra.mxu0 0
        %4064 = vmatprep.subr.bf16.mxu0 0
        %4065 = vmatpush2.bf16.msra.mxu0 0
        %4066 = vmatprep.subr.bf16.mxu0 0
        %4067 = vmatpush2.bf16.msra.mxu0 0
        %4068 = vmatprep.mubr.bf16.mxu0 0
        %4069 = vmatmul.mubr.bf16.gmra.mxu0 %v3993
        %v4070 = vpop.f32.mrf.mxu0
        %v4071 = vadd.f32 0.0, %v4070
        %v4072 = vpop.f32.mrf.mxu0
        %v4073 = vpop.f32.mrf.mxu0
        %v4074 = vpop.f32.mrf.mxu0
        %4075 = vdwg.mxu0
        %v4076 = vadd.f32 %v3793, %v4030
        %v4077 = vadd.f32 %v3794, %v4032
        %v4078 = vadd.f32 %v3795, %v4071
        %v4079 = vadd.f32 %v577, %v4076
        %v4080 = vadd.f32 %v578, %v4077
        %v4081 = vadd.f32 %v579, %v4078
        %v4082 = vld [vmem:[#allocation11] sm:$0x7]
        %v4084 = vlaneseq
        %v4085 = vshrl.u32 %v4084, 7
        %v4086 = vsub.s32 0, %v4085
        %v4087 = vrot.slane %v4082, %v4086
        %v4088 = vlaneseq
        %v4089 = vshrl.u32 %v4088, 7
        %v4090 = vsub.s32 1, %v4089
        %v4091 = vrot.slane %v4082, %v4090
        %v4092 = vlaneseq
        %v4093 = vshrl.u32 %v4092, 7
        %v4094 = vsub.s32 2, %v4093
        %v4095 = vrot.slane %v4082, %v4094
        %v4099 = vadd.f32 %v4079, %v4087
        %v4100 = vadd.f32 %v4080, %v4091
        %v4101 = vadd.f32 %v4081, %v4095
        %v4102 = vld [vmem:[#allocation13] sm:$0x7]
        %v4103 = vld [vmem:[#allocation14] sm:$0x7]
        %v4104 = vadd.f32 %v4099, %v4100
        %v4105 = vadd.f32 %v4104, %v4101
        %4106 = vadd.xlane.f32.xlu0 %v4105
        %v4107 = vpop.xlane.xlu0 %4106
        %v4108 = vmul.f32 %v4107, %v586
        %v4109 = vsub.f32 %v4099, %v4108
        %v4110 = vsub.f32 %v4100, %v4108
        %v4111 = vsub.f32 %v4101, %v4108
        %v4112 = vmul.f32 %v4109, %v4109
        %v4113 = vmul.f32 %v4110, %v4110
        %v4114 = vmul.f32 %v4111, %v4111
        %v4115 = vadd.f32 %v4112, %v4113
        %v4116 = vadd.f32 %v4115, %v4114
        %4117 = vadd.xlane.f32.xlu0 %v4116
        %v4118 = vpop.xlane.xlu0 %4117
        %v4119 = vmul.f32 %v4118, %v586
        %v4120 = vadd.f32 %v4119, 1e-05
        %v4121 = vrsqrt.pop %v4120
        %v4122 = vmul.f32 %v4109, %v4121
        %v4123 = vmul.f32 %v4110, %v4121
        %v4124 = vmul.f32 %v4111, %v4121
        %v4126 = vlaneseq
        %v4127 = vshrl.u32 %v4126, 7
        %v4128 = vsub.s32 0, %v4127
        %v4129 = vrot.slane %v4102, %v4128
        %v4130 = vlaneseq
        %v4131 = vshrl.u32 %v4130, 7
        %v4132 = vsub.s32 1, %v4131
        %v4133 = vrot.slane %v4102, %v4132
        %v4134 = vlaneseq
        %v4135 = vshrl.u32 %v4134, 7
        %v4136 = vsub.s32 2, %v4135
        %v4137 = vrot.slane %v4102, %v4136
        %v4141 = vmul.f32 %v4122, %v4129
        %v4142 = vmul.f32 %v4123, %v4133
        %v4143 = vmul.f32 %v4124, %v4137
        %v4145 = vlaneseq
        %v4146 = vshrl.u32 %v4145, 7
        %v4147 = vsub.s32 0, %v4146
        %v4148 = vrot.slane %v4103, %v4147
        %v4149 = vlaneseq
        %v4150 = vshrl.u32 %v4149, 7
        %v4151 = vsub.s32 1, %v4150
        %v4152 = vrot.slane %v4103, %v4151
        %v4153 = vlaneseq
        %v4154 = vshrl.u32 %v4153, 7
        %v4155 = vsub.s32 2, %v4154
        %v4156 = vrot.slane %v4103, %v4155
        %v4160 = vadd.f32 %v4141, %v4148
        %v4161 = vadd.f32 %v4142, %v4152
        %v4162 = vadd.f32 %v4143, %v4156
        %v4163 = vpack.c.bf16 %v4160, %v4160
        %v4164 = vpack.c.bf16 %v4161, %v4161
        %v4165 = vpack.c.bf16 %v4162, %v4162
        %v4166 = vld [vmem:[#allocation16] sm:$0xff]
        %v4167 = vld [vmem:[#allocation16 + $0x8] sm:$0xff]
        %v4168 = vld [vmem:[#allocation16 + $0x10] sm:$0xff]
        %v4169 = vld [vmem:[#allocation16 + $0x18] sm:$0xff]
        %v4170 = vld [vmem:[#allocation16 + $0x20] sm:$0xff]
        %v4171 = vld [vmem:[#allocation16 + $0x28] sm:$0xff]
        %v4172 = vld [vmem:[#allocation16 + $0x30] sm:$0xff]
        %v4173 = vld [vmem:[#allocation16 + $0x38] sm:$0xff]
        %v4174 = vld [vmem:[#allocation16 + $0x40] sm:$0xff]
        %v4175 = vld [vmem:[#allocation16 + $0x48] sm:$0xff]
        %v4176 = vld [vmem:[#allocation16 + $0x50] sm:$0xff]
        %v4177 = vld [vmem:[#allocation16 + $0x58] sm:$0xff]
        %v4178 = vld [vmem:[#allocation16 + $0x60] sm:$0xff]
        %v4179 = vld [vmem:[#allocation16 + $0x68] sm:$0xff]
        %v4180 = vld [vmem:[#allocation16 + $0x70] sm:$0xff]
        %v4181 = vld [vmem:[#allocation16 + $0x78] sm:$0xff]
        %v4182 = vld [vmem:[#allocation16 + $0x80] sm:$0xff]
        %v4183 = vld [vmem:[#allocation16 + $0x88] sm:$0xff]
        %v4184 = vld [vmem:[#allocation16 + $0x90] sm:$0xff]
        %v4185 = vld [vmem:[#allocation16 + $0x98] sm:$0xff]
        %v4186 = vld [vmem:[#allocation16 + $0xa0] sm:$0xff]
        %v4187 = vld [vmem:[#allocation16 + $0xa8] sm:$0xff]
        %v4188 = vld [vmem:[#allocation16 + $0xb0] sm:$0xff]
        %v4189 = vld [vmem:[#allocation16 + $0xb8] sm:$0xff]
        %v4190 = vld [vmem:[#allocation16 + $0xc0] sm:$0xff]
        %v4191 = vld [vmem:[#allocation16 + $0xc8] sm:$0xff]
        %v4192 = vld [vmem:[#allocation16 + $0xd0] sm:$0xff]
        %v4193 = vld [vmem:[#allocation16 + $0xd8] sm:$0xff]
        %v4194 = vld [vmem:[#allocation16 + $0xe0] sm:$0xff]
        %v4195 = vld [vmem:[#allocation16 + $0xe8] sm:$0xff]
        %v4196 = vld [vmem:[#allocation16 + $0xf0] sm:$0xff]
        %v4197 = vld [vmem:[#allocation16 + $0xf8] sm:$0xff]
        %v4198 = vld [vmem:[#allocation16 + $0x100] sm:$0xff]
        %v4199 = vld [vmem:[#allocation16 + $0x108] sm:$0xff]
        %v4200 = vld [vmem:[#allocation16 + $0x110] sm:$0xff]
        %v4201 = vld [vmem:[#allocation16 + $0x118] sm:$0xff]
        %v4202 = vld [vmem:[#allocation16 + $0x120] sm:$0xff]
        %v4203 = vld [vmem:[#allocation16 + $0x128] sm:$0xff]
        %v4204 = vld [vmem:[#allocation16 + $0x130] sm:$0xff]
        %v4205 = vld [vmem:[#allocation16 + $0x138] sm:$0xff]
        %v4206 = vld [vmem:[#allocation16 + $0x140] sm:$0xff]
        %v4207 = vld [vmem:[#allocation16 + $0x148] sm:$0xff]
        %v4208 = vld [vmem:[#allocation16 + $0x150] sm:$0xff]
        %v4209 = vld [vmem:[#allocation16 + $0x158] sm:$0xff]
        %v4210 = vld [vmem:[#allocation16 + $0x160] sm:$0xff]
        %v4211 = vld [vmem:[#allocation16 + $0x168] sm:$0xff]
        %v4212 = vld [vmem:[#allocation16 + $0x170] sm:$0xff]
        %v4213 = vld [vmem:[#allocation16 + $0x178] sm:$0xff]
        %v4214 = vld [vmem:[#allocation16 + $0x180] sm:$0xff]
        %v4215 = vld [vmem:[#allocation16 + $0x188] sm:$0xff]
        %v4216 = vld [vmem:[#allocation16 + $0x190] sm:$0xff]
        %v4217 = vld [vmem:[#allocation16 + $0x198] sm:$0xff]
        %v4218 = vld [vmem:[#allocation16 + $0x1a0] sm:$0xff]
        %v4219 = vld [vmem:[#allocation16 + $0x1a8] sm:$0xff]
        %v4220 = vld [vmem:[#allocation16 + $0x1b0] sm:$0xff]
        %v4221 = vld [vmem:[#allocation16 + $0x1b8] sm:$0xff]
        %v4222 = vld [vmem:[#allocation16 + $0x1c0] sm:$0xff]
        %v4223 = vld [vmem:[#allocation16 + $0x1c8] sm:$0xff]
        %v4224 = vld [vmem:[#allocation16 + $0x1d0] sm:$0xff]
        %v4225 = vld [vmem:[#allocation16 + $0x1d8] sm:$0xff]
        %v4226 = vld [vmem:[#allocation16 + $0x1e0] sm:$0xff]
        %v4227 = vld [vmem:[#allocation16 + $0x1e8] sm:$0xff]
        %v4228 = vld [vmem:[#allocation16 + $0x1f0] sm:$0xff]
        %v4229 = vld [vmem:[#allocation16 + $0x1f8] sm:$0xff]
        %v4230 = vld [vmem:[#allocation16 + $0x200] sm:$0xff]
        %v4231 = vld [vmem:[#allocation16 + $0x208] sm:$0xff]
        %v4232 = vld [vmem:[#allocation16 + $0x210] sm:$0xff]
        %v4233 = vld [vmem:[#allocation16 + $0x218] sm:$0xff]
        %v4234 = vld [vmem:[#allocation16 + $0x220] sm:$0xff]
        %v4235 = vld [vmem:[#allocation16 + $0x228] sm:$0xff]
        %v4236 = vld [vmem:[#allocation16 + $0x230] sm:$0xff]
        %v4237 = vld [vmem:[#allocation16 + $0x238] sm:$0xff]
        %v4238 = vld [vmem:[#allocation16 + $0x240] sm:$0xff]
        %v4239 = vld [vmem:[#allocation16 + $0x248] sm:$0xff]
        %v4240 = vld [vmem:[#allocation16 + $0x250] sm:$0xff]
        %v4241 = vld [vmem:[#allocation16 + $0x258] sm:$0xff]
        %v4242 = vld [vmem:[#allocation16 + $0x260] sm:$0xff]
        %v4243 = vld [vmem:[#allocation16 + $0x268] sm:$0xff]
        %v4244 = vld [vmem:[#allocation16 + $0x270] sm:$0xff]
        %v4245 = vld [vmem:[#allocation16 + $0x278] sm:$0xff]
        %v4246 = vld [vmem:[#allocation16 + $0x280] sm:$0xff]
        %v4247 = vld [vmem:[#allocation16 + $0x288] sm:$0xff]
        %v4248 = vld [vmem:[#allocation16 + $0x290] sm:$0xff]
        %v4249 = vld [vmem:[#allocation16 + $0x298] sm:$0xff]
        %v4250 = vld [vmem:[#allocation16 + $0x2a0] sm:$0xff]
        %v4251 = vld [vmem:[#allocation16 + $0x2a8] sm:$0xff]
        %v4252 = vld [vmem:[#allocation16 + $0x2b0] sm:$0xff]
        %v4253 = vld [vmem:[#allocation16 + $0x2b8] sm:$0xff]
        %v4254 = vld [vmem:[#allocation16 + $0x2c0] sm:$0xff]
        %v4255 = vld [vmem:[#allocation16 + $0x2c8] sm:$0xff]
        %v4256 = vld [vmem:[#allocation16 + $0x2d0] sm:$0xff]
        %v4257 = vld [vmem:[#allocation16 + $0x2d8] sm:$0xff]
        %v4258 = vld [vmem:[#allocation16 + $0x2e0] sm:$0xff]
        %v4259 = vld [vmem:[#allocation16 + $0x2e8] sm:$0xff]
        %v4260 = vld [vmem:[#allocation16 + $0x2f0] sm:$0xff]
        %v4261 = vld [vmem:[#allocation16 + $0x2f8] sm:$0xff]
        %v4262 = vld [vmem:[#allocation16 + $0x300] sm:$0xff]
        %v4263 = vld [vmem:[#allocation16 + $0x308] sm:$0xff]
        %v4264 = vld [vmem:[#allocation16 + $0x310] sm:$0xff]
        %v4265 = vld [vmem:[#allocation16 + $0x318] sm:$0xff]
        %v4266 = vld [vmem:[#allocation16 + $0x320] sm:$0xff]
        %v4267 = vld [vmem:[#allocation16 + $0x328] sm:$0xff]
        %v4268 = vld [vmem:[#allocation16 + $0x330] sm:$0xff]
        %v4269 = vld [vmem:[#allocation16 + $0x338] sm:$0xff]
        %v4270 = vld [vmem:[#allocation16 + $0x340] sm:$0xff]
        %v4271 = vld [vmem:[#allocation16 + $0x348] sm:$0xff]
        %v4272 = vld [vmem:[#allocation16 + $0x350] sm:$0xff]
        %v4273 = vld [vmem:[#allocation16 + $0x358] sm:$0xff]
        %v4274 = vld [vmem:[#allocation16 + $0x360] sm:$0xff]
        %v4275 = vld [vmem:[#allocation16 + $0x368] sm:$0xff]
        %v4276 = vld [vmem:[#allocation16 + $0x370] sm:$0xff]
        %v4277 = vld [vmem:[#allocation16 + $0x378] sm:$0xff]
        %v4278 = vld [vmem:[#allocation16 + $0x380] sm:$0xff]
        %v4279 = vld [vmem:[#allocation16 + $0x388] sm:$0xff]
        %v4280 = vld [vmem:[#allocation16 + $0x390] sm:$0xff]
        %v4281 = vld [vmem:[#allocation16 + $0x398] sm:$0xff]
        %v4282 = vld [vmem:[#allocation16 + $0x3a0] sm:$0xff]
        %v4283 = vld [vmem:[#allocation16 + $0x3a8] sm:$0xff]
        %v4284 = vld [vmem:[#allocation16 + $0x3b0] sm:$0xff]
        %v4285 = vld [vmem:[#allocation16 + $0x3b8] sm:$0xff]
        %v4286 = vld [vmem:[#allocation16 + $0x3c0] sm:$0xff]
        %v4287 = vld [vmem:[#allocation16 + $0x3c8] sm:$0xff]
        %v4288 = vld [vmem:[#allocation16 + $0x3d0] sm:$0xff]
        %v4289 = vld [vmem:[#allocation16 + $0x3d8] sm:$0xff]
        %v4290 = vld [vmem:[#allocation16 + $0x3e0] sm:$0xff]
        %v4291 = vld [vmem:[#allocation16 + $0x3e8] sm:$0xff]
        %v4292 = vld [vmem:[#allocation16 + $0x3f0] sm:$0xff]
        %v4293 = vld [vmem:[#allocation16 + $0x3f8] sm:$0xff]
        %v4294 = vld [vmem:[#allocation16 + $0x400] sm:$0xff]
        %v4295 = vld [vmem:[#allocation16 + $0x408] sm:$0xff]
        %v4296 = vld [vmem:[#allocation16 + $0x410] sm:$0xff]
        %v4297 = vld [vmem:[#allocation16 + $0x418] sm:$0xff]
        %v4298 = vld [vmem:[#allocation16 + $0x420] sm:$0xff]
        %v4299 = vld [vmem:[#allocation16 + $0x428] sm:$0xff]
        %v4300 = vld [vmem:[#allocation16 + $0x430] sm:$0xff]
        %v4301 = vld [vmem:[#allocation16 + $0x438] sm:$0xff]
        %v4302 = vld [vmem:[#allocation16 + $0x440] sm:$0xff]
        %v4303 = vld [vmem:[#allocation16 + $0x448] sm:$0xff]
        %v4304 = vld [vmem:[#allocation16 + $0x450] sm:$0xff]
        %v4305 = vld [vmem:[#allocation16 + $0x458] sm:$0xff]
        %v4306 = vld [vmem:[#allocation16 + $0x460] sm:$0xff]
        %v4307 = vld [vmem:[#allocation16 + $0x468] sm:$0xff]
        %v4308 = vld [vmem:[#allocation16 + $0x470] sm:$0xff]
        %v4309 = vld [vmem:[#allocation16 + $0x478] sm:$0xff]
        %v4310 = vld [vmem:[#allocation16 + $0x480] sm:$0xff]
        %v4311 = vld [vmem:[#allocation16 + $0x488] sm:$0xff]
        %v4312 = vld [vmem:[#allocation16 + $0x490] sm:$0xff]
        %v4313 = vld [vmem:[#allocation16 + $0x498] sm:$0xff]
        %v4314 = vld [vmem:[#allocation16 + $0x4a0] sm:$0xff]
        %v4315 = vld [vmem:[#allocation16 + $0x4a8] sm:$0xff]
        %v4316 = vld [vmem:[#allocation16 + $0x4b0] sm:$0xff]
        %v4317 = vld [vmem:[#allocation16 + $0x4b8] sm:$0xff]
        %v4318 = vld [vmem:[#allocation16 + $0x4c0] sm:$0xff]
        %v4319 = vld [vmem:[#allocation16 + $0x4c8] sm:$0xff]
        %v4320 = vld [vmem:[#allocation16 + $0x4d0] sm:$0xff]
        %v4321 = vld [vmem:[#allocation16 + $0x4d8] sm:$0xff]
        %v4322 = vld [vmem:[#allocation16 + $0x4e0] sm:$0xff]
        %v4323 = vld [vmem:[#allocation16 + $0x4e8] sm:$0xff]
        %v4324 = vld [vmem:[#allocation16 + $0x4f0] sm:$0xff]
        %v4325 = vld [vmem:[#allocation16 + $0x4f8] sm:$0xff]
        %v4326 = vld [vmem:[#allocation16 + $0x500] sm:$0xff]
        %v4327 = vld [vmem:[#allocation16 + $0x508] sm:$0xff]
        %v4328 = vld [vmem:[#allocation16 + $0x510] sm:$0xff]
        %v4329 = vld [vmem:[#allocation16 + $0x518] sm:$0xff]
        %v4330 = vld [vmem:[#allocation16 + $0x520] sm:$0xff]
        %v4331 = vld [vmem:[#allocation16 + $0x528] sm:$0xff]
        %v4332 = vld [vmem:[#allocation16 + $0x530] sm:$0xff]
        %v4333 = vld [vmem:[#allocation16 + $0x538] sm:$0xff]
        %v4334 = vld [vmem:[#allocation16 + $0x540] sm:$0xff]
        %v4335 = vld [vmem:[#allocation16 + $0x548] sm:$0xff]
        %v4336 = vld [vmem:[#allocation16 + $0x550] sm:$0xff]
        %v4337 = vld [vmem:[#allocation16 + $0x558] sm:$0xff]
        %v4338 = vld [vmem:[#allocation16 + $0x560] sm:$0xff]
        %v4339 = vld [vmem:[#allocation16 + $0x568] sm:$0xff]
        %v4340 = vld [vmem:[#allocation16 + $0x570] sm:$0xff]
        %v4341 = vld [vmem:[#allocation16 + $0x578] sm:$0xff]
        %v4342 = vld [vmem:[#allocation16 + $0x580] sm:$0xff]
        %v4343 = vld [vmem:[#allocation16 + $0x588] sm:$0xff]
        %v4344 = vld [vmem:[#allocation16 + $0x590] sm:$0xff]
        %v4345 = vld [vmem:[#allocation16 + $0x598] sm:$0xff]
        %v4346 = vld [vmem:[#allocation16 + $0x5a0] sm:$0xff]
        %v4347 = vld [vmem:[#allocation16 + $0x5a8] sm:$0xff]
        %v4348 = vld [vmem:[#allocation16 + $0x5b0] sm:$0xff]
        %v4349 = vld [vmem:[#allocation16 + $0x5b8] sm:$0xff]
        %v4350 = vld [vmem:[#allocation16 + $0x5c0] sm:$0xff]
        %v4351 = vld [vmem:[#allocation16 + $0x5c8] sm:$0xff]
        %v4352 = vld [vmem:[#allocation16 + $0x5d0] sm:$0xff]
        %v4353 = vld [vmem:[#allocation16 + $0x5d8] sm:$0xff]
        %v4354 = vld [vmem:[#allocation16 + $0x5e0] sm:$0xff]
        %v4355 = vld [vmem:[#allocation16 + $0x5e8] sm:$0xff]
        %v4356 = vld [vmem:[#allocation16 + $0x5f0] sm:$0xff]
        %v4357 = vld [vmem:[#allocation16 + $0x5f8] sm:$0xff]
        %v4358 = vld [vmem:[#allocation16 + $0x600] sm:$0xff]
        %v4359 = vld [vmem:[#allocation16 + $0x608] sm:$0xff]
        %v4360 = vld [vmem:[#allocation16 + $0x610] sm:$0xff]
        %v4361 = vld [vmem:[#allocation16 + $0x618] sm:$0xff]
        %v4362 = vld [vmem:[#allocation16 + $0x620] sm:$0xff]
        %v4363 = vld [vmem:[#allocation16 + $0x628] sm:$0xff]
        %v4364 = vld [vmem:[#allocation16 + $0x630] sm:$0xff]
        %v4365 = vld [vmem:[#allocation16 + $0x638] sm:$0xff]
        %v4366 = vld [vmem:[#allocation16 + $0x640] sm:$0xff]
        %v4367 = vld [vmem:[#allocation16 + $0x648] sm:$0xff]
        %v4368 = vld [vmem:[#allocation16 + $0x650] sm:$0xff]
        %v4369 = vld [vmem:[#allocation16 + $0x658] sm:$0xff]
        %v4370 = vld [vmem:[#allocation16 + $0x660] sm:$0xff]
        %v4371 = vld [vmem:[#allocation16 + $0x668] sm:$0xff]
        %v4372 = vld [vmem:[#allocation16 + $0x670] sm:$0xff]
        %v4373 = vld [vmem:[#allocation16 + $0x678] sm:$0xff]
        %v4374 = vld [vmem:[#allocation16 + $0x680] sm:$0xff]
        %v4375 = vld [vmem:[#allocation16 + $0x688] sm:$0xff]
        %v4376 = vld [vmem:[#allocation16 + $0x690] sm:$0xff]
        %v4377 = vld [vmem:[#allocation16 + $0x698] sm:$0xff]
        %v4378 = vld [vmem:[#allocation16 + $0x6a0] sm:$0xff]
        %v4379 = vld [vmem:[#allocation16 + $0x6a8] sm:$0xff]
        %v4380 = vld [vmem:[#allocation16 + $0x6b0] sm:$0xff]
        %v4381 = vld [vmem:[#allocation16 + $0x6b8] sm:$0xff]
        %v4382 = vld [vmem:[#allocation16 + $0x6c0] sm:$0xff]
        %v4383 = vld [vmem:[#allocation16 + $0x6c8] sm:$0xff]
        %v4384 = vld [vmem:[#allocation16 + $0x6d0] sm:$0xff]
        %v4385 = vld [vmem:[#allocation16 + $0x6d8] sm:$0xff]
        %v4386 = vld [vmem:[#allocation16 + $0x6e0] sm:$0xff]
        %v4387 = vld [vmem:[#allocation16 + $0x6e8] sm:$0xff]
        %v4388 = vld [vmem:[#allocation16 + $0x6f0] sm:$0xff]
        %v4389 = vld [vmem:[#allocation16 + $0x6f8] sm:$0xff]
        %v4390 = vld [vmem:[#allocation16 + $0x700] sm:$0xff]
        %v4391 = vld [vmem:[#allocation16 + $0x708] sm:$0xff]
        %v4392 = vld [vmem:[#allocation16 + $0x710] sm:$0xff]
        %v4393 = vld [vmem:[#allocation16 + $0x718] sm:$0xff]
        %v4394 = vld [vmem:[#allocation16 + $0x720] sm:$0xff]
        %v4395 = vld [vmem:[#allocation16 + $0x728] sm:$0xff]
        %v4396 = vld [vmem:[#allocation16 + $0x730] sm:$0xff]
        %v4397 = vld [vmem:[#allocation16 + $0x738] sm:$0xff]
        %v4398 = vld [vmem:[#allocation16 + $0x740] sm:$0xff]
        %v4399 = vld [vmem:[#allocation16 + $0x748] sm:$0xff]
        %v4400 = vld [vmem:[#allocation16 + $0x750] sm:$0xff]
        %v4401 = vld [vmem:[#allocation16 + $0x758] sm:$0xff]
        %v4402 = vld [vmem:[#allocation16 + $0x760] sm:$0xff]
        %v4403 = vld [vmem:[#allocation16 + $0x768] sm:$0xff]
        %v4404 = vld [vmem:[#allocation16 + $0x770] sm:$0xff]
        %v4405 = vld [vmem:[#allocation16 + $0x778] sm:$0xff]
        %v4406 = vld [vmem:[#allocation16 + $0x780] sm:$0xff]
        %v4407 = vld [vmem:[#allocation16 + $0x788] sm:$0xff]
        %v4408 = vld [vmem:[#allocation16 + $0x790] sm:$0xff]
        %v4409 = vld [vmem:[#allocation16 + $0x798] sm:$0xff]
        %v4410 = vld [vmem:[#allocation16 + $0x7a0] sm:$0xff]
        %v4411 = vld [vmem:[#allocation16 + $0x7a8] sm:$0xff]
        %v4412 = vld [vmem:[#allocation16 + $0x7b0] sm:$0xff]
        %v4413 = vld [vmem:[#allocation16 + $0x7b8] sm:$0xff]
        %v4414 = vld [vmem:[#allocation16 + $0x7c0] sm:$0xff]
        %v4415 = vld [vmem:[#allocation16 + $0x7c8] sm:$0xff]
        %v4416 = vld [vmem:[#allocation16 + $0x7d0] sm:$0xff]
        %v4417 = vld [vmem:[#allocation16 + $0x7d8] sm:$0xff]
        %v4418 = vld [vmem:[#allocation16 + $0x7e0] sm:$0xff]
        %v4419 = vld [vmem:[#allocation16 + $0x7e8] sm:$0xff]
        %v4420 = vld [vmem:[#allocation16 + $0x7f0] sm:$0xff]
        %v4421 = vld [vmem:[#allocation16 + $0x7f8] sm:$0xff]
        %v4422 = vld [vmem:[#allocation16 + $0x800] sm:$0xff]
        %v4423 = vld [vmem:[#allocation16 + $0x808] sm:$0xff]
        %v4424 = vld [vmem:[#allocation16 + $0x810] sm:$0xff]
        %v4425 = vld [vmem:[#allocation16 + $0x818] sm:$0xff]
        %v4426 = vld [vmem:[#allocation16 + $0x820] sm:$0xff]
        %v4427 = vld [vmem:[#allocation16 + $0x828] sm:$0xff]
        %v4428 = vld [vmem:[#allocation16 + $0x830] sm:$0xff]
        %v4429 = vld [vmem:[#allocation16 + $0x838] sm:$0xff]
        %v4430 = vld [vmem:[#allocation16 + $0x840] sm:$0xff]
        %v4431 = vld [vmem:[#allocation16 + $0x848] sm:$0xff]
        %v4432 = vld [vmem:[#allocation16 + $0x850] sm:$0xff]
        %v4433 = vld [vmem:[#allocation16 + $0x858] sm:$0xff]
        %v4434 = vld [vmem:[#allocation16 + $0x860] sm:$0xff]
        %v4435 = vld [vmem:[#allocation16 + $0x868] sm:$0xff]
        %v4436 = vld [vmem:[#allocation16 + $0x870] sm:$0xff]
        %v4437 = vld [vmem:[#allocation16 + $0x878] sm:$0xff]
        %v4438 = vld [vmem:[#allocation16 + $0x880] sm:$0xff]
        %v4439 = vld [vmem:[#allocation16 + $0x888] sm:$0xff]
        %v4440 = vld [vmem:[#allocation16 + $0x890] sm:$0xff]
        %v4441 = vld [vmem:[#allocation16 + $0x898] sm:$0xff]
        %v4442 = vld [vmem:[#allocation16 + $0x8a0] sm:$0xff]
        %v4443 = vld [vmem:[#allocation16 + $0x8a8] sm:$0xff]
        %v4444 = vld [vmem:[#allocation16 + $0x8b0] sm:$0xff]
        %v4445 = vld [vmem:[#allocation16 + $0x8b8] sm:$0xff]
        %v4446 = vld [vmem:[#allocation16 + $0x8c0] sm:$0xff]
        %v4447 = vld [vmem:[#allocation16 + $0x8c8] sm:$0xff]
        %v4448 = vld [vmem:[#allocation16 + $0x8d0] sm:$0xff]
        %v4449 = vld [vmem:[#allocation16 + $0x8d8] sm:$0xff]
        %v4450 = vld [vmem:[#allocation16 + $0x8e0] sm:$0xff]
        %v4451 = vld [vmem:[#allocation16 + $0x8e8] sm:$0xff]
        %v4452 = vld [vmem:[#allocation16 + $0x8f0] sm:$0xff]
        %v4453 = vld [vmem:[#allocation16 + $0x8f8] sm:$0xff]
        %v4454 = vld [vmem:[#allocation17] sm:$0xff]
        %v4455 = vld [vmem:[#allocation17 + $0x8] sm:$0xf]
        %v4458 = vlaneseq
        %v4459 = vshrl.u32 %v4458, 7
        %v4460 = vsub.s32 0, %v4459
        %v4461 = vrot.slane %v4454, %v4460
        %v4462 = vlaneseq
        %v4463 = vshrl.u32 %v4462, 7
        %v4464 = vsub.s32 1, %v4463
        %v4465 = vrot.slane %v4454, %v4464
        %v4466 = vlaneseq
        %v4467 = vshrl.u32 %v4466, 7
        %v4468 = vsub.s32 2, %v4467
        %v4469 = vrot.slane %v4454, %v4468
        %v4470 = vlaneseq
        %v4471 = vshrl.u32 %v4470, 7
        %v4472 = vsub.s32 3, %v4471
        %v4473 = vrot.slane %v4454, %v4472
        %v4474 = vlaneseq
        %v4475 = vshrl.u32 %v4474, 7
        %v4476 = vsub.s32 4, %v4475
        %v4477 = vrot.slane %v4454, %v4476
        %v4478 = vlaneseq
        %v4479 = vshrl.u32 %v4478, 7
        %v4480 = vsub.s32 5, %v4479
        %v4481 = vrot.slane %v4454, %v4480
        %v4482 = vlaneseq
        %v4483 = vshrl.u32 %v4482, 7
        %v4484 = vsub.s32 6, %v4483
        %v4485 = vrot.slane %v4454, %v4484
        %v4486 = vlaneseq
        %v4487 = vshrl.u32 %v4486, 7
        %v4488 = vsub.s32 7, %v4487
        %v4489 = vrot.slane %v4454, %v4488
        %v4490 = vlaneseq
        %v4491 = vshrl.u32 %v4490, 7
        %v4492 = vsub.s32 0, %v4491
        %v4493 = vrot.slane %v4455, %v4492
        %v4494 = vlaneseq
        %v4495 = vshrl.u32 %v4494, 7
        %v4496 = vsub.s32 1, %v4495
        %v4497 = vrot.slane %v4455, %v4496
        %v4498 = vlaneseq
        %v4499 = vshrl.u32 %v4498, 7
        %v4500 = vsub.s32 2, %v4499
        %v4501 = vrot.slane %v4455, %v4500
        %v4502 = vlaneseq
        %v4503 = vshrl.u32 %v4502, 7
        %v4504 = vsub.s32 3, %v4503
        %v4505 = vrot.slane %v4455, %v4504
        %v4806 = vunpack.c.l.b16 %v4166
        %v4807 = vunpack.c.h.b16 %v4166
        %v4808 = vunpack.c.l.b16 %v4167
        %v4809 = vunpack.c.h.b16 %v4167
        %v4810 = vunpack.c.l.b16 %v4168
        %v4811 = vunpack.c.h.b16 %v4168
        %v4812 = vunpack.c.l.b16 %v4169
        %v4813 = vunpack.c.h.b16 %v4169
        %v4814 = vunpack.c.l.b16 %v4170
        %v4815 = vunpack.c.h.b16 %v4170
        %v4816 = vunpack.c.l.b16 %v4171
        %v4817 = vunpack.c.h.b16 %v4171
        %v4818 = vunpack.c.l.b16 %v4172
        %v4819 = vunpack.c.h.b16 %v4172
        %v4820 = vunpack.c.l.b16 %v4173
        %v4821 = vunpack.c.h.b16 %v4173
        %v4822 = vunpack.c.l.b16 %v4174
        %v4823 = vunpack.c.h.b16 %v4174
        %v4824 = vunpack.c.l.b16 %v4175
        %v4825 = vunpack.c.h.b16 %v4175
        %v4826 = vunpack.c.l.b16 %v4176
        %v4827 = vunpack.c.h.b16 %v4176
        %v4828 = vunpack.c.l.b16 %v4177
        %v4829 = vunpack.c.h.b16 %v4177
        %v4830 = vunpack.c.l.b16 %v4178
        %v4831 = vunpack.c.h.b16 %v4178
        %v4832 = vunpack.c.l.b16 %v4179
        %v4833 = vunpack.c.h.b16 %v4179
        %v4834 = vunpack.c.l.b16 %v4180
        %v4835 = vunpack.c.h.b16 %v4180
        %v4836 = vunpack.c.l.b16 %v4181
        %v4837 = vunpack.c.h.b16 %v4181
        %v4838 = vunpack.c.l.b16 %v4182
        %v4839 = vunpack.c.h.b16 %v4182
        %v4840 = vunpack.c.l.b16 %v4183
        %v4841 = vunpack.c.h.b16 %v4183
        %v4842 = vunpack.c.l.b16 %v4184
        %v4843 = vunpack.c.h.b16 %v4184
        %v4844 = vunpack.c.l.b16 %v4185
        %v4845 = vunpack.c.h.b16 %v4185
        %v4846 = vunpack.c.l.b16 %v4186
        %v4847 = vunpack.c.h.b16 %v4186
        %v4848 = vunpack.c.l.b16 %v4187
        %v4849 = vunpack.c.h.b16 %v4187
        %v4850 = vunpack.c.l.b16 %v4188
        %v4851 = vunpack.c.h.b16 %v4188
        %v4852 = vunpack.c.l.b16 %v4189
        %v4853 = vunpack.c.h.b16 %v4189
        %v4854 = vunpack.c.l.b16 %v4190
        %v4855 = vunpack.c.h.b16 %v4190
        %v4856 = vunpack.c.l.b16 %v4191
        %v4857 = vunpack.c.h.b16 %v4191
        %v4858 = vunpack.c.l.b16 %v4192
        %v4859 = vunpack.c.h.b16 %v4192
        %v4860 = vunpack.c.l.b16 %v4193
        %v4861 = vunpack.c.h.b16 %v4193
        %v4862 = vunpack.c.l.b16 %v4194
        %v4863 = vunpack.c.h.b16 %v4194
        %v4864 = vunpack.c.l.b16 %v4195
        %v4865 = vunpack.c.h.b16 %v4195
        %v4866 = vunpack.c.l.b16 %v4196
        %v4867 = vunpack.c.h.b16 %v4196
        %v4868 = vunpack.c.l.b16 %v4197
        %v4869 = vunpack.c.h.b16 %v4197
        %v4870 = vunpack.c.l.b16 %v4198
        %v4871 = vunpack.c.h.b16 %v4198
        %v4872 = vunpack.c.l.b16 %v4199
        %v4873 = vunpack.c.h.b16 %v4199
        %v4874 = vunpack.c.l.b16 %v4200
        %v4875 = vunpack.c.h.b16 %v4200
        %v4876 = vunpack.c.l.b16 %v4201
        %v4877 = vunpack.c.h.b16 %v4201
        %v4878 = vunpack.c.l.b16 %v4202
        %v4879 = vunpack.c.h.b16 %v4202
        %v4880 = vunpack.c.l.b16 %v4203
        %v4881 = vunpack.c.h.b16 %v4203
        %v4882 = vunpack.c.l.b16 %v4204
        %v4883 = vunpack.c.h.b16 %v4204
        %v4884 = vunpack.c.l.b16 %v4205
        %v4885 = vunpack.c.h.b16 %v4205
        %v4886 = vunpack.c.l.b16 %v4206
        %v4887 = vunpack.c.h.b16 %v4206
        %v4888 = vunpack.c.l.b16 %v4207
        %v4889 = vunpack.c.h.b16 %v4207
        %v4890 = vunpack.c.l.b16 %v4208
        %v4891 = vunpack.c.h.b16 %v4208
        %v4892 = vunpack.c.l.b16 %v4209
        %v4893 = vunpack.c.h.b16 %v4209
        %v4894 = vunpack.c.l.b16 %v4210
        %v4895 = vunpack.c.h.b16 %v4210
        %v4896 = vunpack.c.l.b16 %v4211
        %v4897 = vunpack.c.h.b16 %v4211
        %v4898 = vunpack.c.l.b16 %v4212
        %v4899 = vunpack.c.h.b16 %v4212
        %v4900 = vunpack.c.l.b16 %v4213
        %v4901 = vunpack.c.h.b16 %v4213
        %v4902 = vunpack.c.l.b16 %v4214
        %v4903 = vunpack.c.h.b16 %v4214
        %v4904 = vunpack.c.l.b16 %v4215
        %v4905 = vunpack.c.h.b16 %v4215
        %v4906 = vunpack.c.l.b16 %v4216
        %v4907 = vunpack.c.h.b16 %v4216
        %v4908 = vunpack.c.l.b16 %v4217
        %v4909 = vunpack.c.h.b16 %v4217
        %v4910 = vunpack.c.l.b16 %v4218
        %v4911 = vunpack.c.h.b16 %v4218
        %v4912 = vunpack.c.l.b16 %v4219
        %v4913 = vunpack.c.h.b16 %v4219
        %v4914 = vunpack.c.l.b16 %v4220
        %v4915 = vunpack.c.h.b16 %v4220
        %v4916 = vunpack.c.l.b16 %v4221
        %v4917 = vunpack.c.h.b16 %v4221
        %v4918 = vunpack.c.l.b16 %v4222
        %v4919 = vunpack.c.h.b16 %v4222
        %v4920 = vunpack.c.l.b16 %v4223
        %v4921 = vunpack.c.h.b16 %v4223
        %v4922 = vunpack.c.l.b16 %v4224
        %v4923 = vunpack.c.h.b16 %v4224
        %v4924 = vunpack.c.l.b16 %v4225
        %v4925 = vunpack.c.h.b16 %v4225
        %v4926 = vunpack.c.l.b16 %v4226
        %v4927 = vunpack.c.h.b16 %v4226
        %v4928 = vunpack.c.l.b16 %v4227
        %v4929 = vunpack.c.h.b16 %v4227
        %v4930 = vunpack.c.l.b16 %v4228
        %v4931 = vunpack.c.h.b16 %v4228
        %v4932 = vunpack.c.l.b16 %v4229
        %v4933 = vunpack.c.h.b16 %v4229
        %v4934 = vunpack.c.l.b16 %v4230
        %v4935 = vunpack.c.h.b16 %v4230
        %v4936 = vunpack.c.l.b16 %v4231
        %v4937 = vunpack.c.h.b16 %v4231
        %v4938 = vunpack.c.l.b16 %v4232
        %v4939 = vunpack.c.h.b16 %v4232
        %v4940 = vunpack.c.l.b16 %v4233
        %v4941 = vunpack.c.h.b16 %v4233
        %v4942 = vunpack.c.l.b16 %v4234
        %v4943 = vunpack.c.h.b16 %v4234
        %v4944 = vunpack.c.l.b16 %v4235
        %v4945 = vunpack.c.h.b16 %v4235
        %v4946 = vunpack.c.l.b16 %v4236
        %v4947 = vunpack.c.h.b16 %v4236
        %v4948 = vunpack.c.l.b16 %v4237
        %v4949 = vunpack.c.h.b16 %v4237
        %v4950 = vunpack.c.l.b16 %v4238
        %v4951 = vunpack.c.h.b16 %v4238
        %v4952 = vunpack.c.l.b16 %v4239
        %v4953 = vunpack.c.h.b16 %v4239
        %v4954 = vunpack.c.l.b16 %v4240
        %v4955 = vunpack.c.h.b16 %v4240
        %v4956 = vunpack.c.l.b16 %v4241
        %v4957 = vunpack.c.h.b16 %v4241
        %v4958 = vunpack.c.l.b16 %v4242
        %v4959 = vunpack.c.h.b16 %v4242
        %v4960 = vunpack.c.l.b16 %v4243
        %v4961 = vunpack.c.h.b16 %v4243
        %v4962 = vunpack.c.l.b16 %v4244
        %v4963 = vunpack.c.h.b16 %v4244
        %v4964 = vunpack.c.l.b16 %v4245
        %v4965 = vunpack.c.h.b16 %v4245
        %v4966 = vunpack.c.l.b16 %v4246
        %v4967 = vunpack.c.h.b16 %v4246
        %v4968 = vunpack.c.l.b16 %v4247
        %v4969 = vunpack.c.h.b16 %v4247
        %v4970 = vunpack.c.l.b16 %v4248
        %v4971 = vunpack.c.h.b16 %v4248
        %v4972 = vunpack.c.l.b16 %v4249
        %v4973 = vunpack.c.h.b16 %v4249
        %v4974 = vunpack.c.l.b16 %v4250
        %v4975 = vunpack.c.h.b16 %v4250
        %v4976 = vunpack.c.l.b16 %v4251
        %v4977 = vunpack.c.h.b16 %v4251
        %v4978 = vunpack.c.l.b16 %v4252
        %v4979 = vunpack.c.h.b16 %v4252
        %v4980 = vunpack.c.l.b16 %v4253
        %v4981 = vunpack.c.h.b16 %v4253
        %v4982 = vunpack.c.l.b16 %v4254
        %v4983 = vunpack.c.h.b16 %v4254
        %v4984 = vunpack.c.l.b16 %v4255
        %v4985 = vunpack.c.h.b16 %v4255
        %v4986 = vunpack.c.l.b16 %v4256
        %v4987 = vunpack.c.h.b16 %v4256
        %v4988 = vunpack.c.l.b16 %v4257
        %v4989 = vunpack.c.h.b16 %v4257
        %v4990 = vunpack.c.l.b16 %v4258
        %v4991 = vunpack.c.h.b16 %v4258
        %v4992 = vunpack.c.l.b16 %v4259
        %v4993 = vunpack.c.h.b16 %v4259
        %v4994 = vunpack.c.l.b16 %v4260
        %v4995 = vunpack.c.h.b16 %v4260
        %v4996 = vunpack.c.l.b16 %v4261
        %v4997 = vunpack.c.h.b16 %v4261
        %v4998 = vunpack.c.l.b16 %v4262
        %v4999 = vunpack.c.h.b16 %v4262
        %v5000 = vunpack.c.l.b16 %v4263
        %v5001 = vunpack.c.h.b16 %v4263
        %v5002 = vunpack.c.l.b16 %v4264
        %v5003 = vunpack.c.h.b16 %v4264
        %v5004 = vunpack.c.l.b16 %v4265
        %v5005 = vunpack.c.h.b16 %v4265
        %v5006 = vunpack.c.l.b16 %v4266
        %v5007 = vunpack.c.h.b16 %v4266
        %v5008 = vunpack.c.l.b16 %v4267
        %v5009 = vunpack.c.h.b16 %v4267
        %v5010 = vunpack.c.l.b16 %v4268
        %v5011 = vunpack.c.h.b16 %v4268
        %v5012 = vunpack.c.l.b16 %v4269
        %v5013 = vunpack.c.h.b16 %v4269
        %v5014 = vunpack.c.l.b16 %v4270
        %v5015 = vunpack.c.h.b16 %v4270
        %v5016 = vunpack.c.l.b16 %v4271
        %v5017 = vunpack.c.h.b16 %v4271
        %v5018 = vunpack.c.l.b16 %v4272
        %v5019 = vunpack.c.h.b16 %v4272
        %v5020 = vunpack.c.l.b16 %v4273
        %v5021 = vunpack.c.h.b16 %v4273
        %v5022 = vunpack.c.l.b16 %v4274
        %v5023 = vunpack.c.h.b16 %v4274
        %v5024 = vunpack.c.l.b16 %v4275
        %v5025 = vunpack.c.h.b16 %v4275
        %v5026 = vunpack.c.l.b16 %v4276
        %v5027 = vunpack.c.h.b16 %v4276
        %v5028 = vunpack.c.l.b16 %v4277
        %v5029 = vunpack.c.h.b16 %v4277
        %v5030 = vunpack.c.l.b16 %v4278
        %v5031 = vunpack.c.h.b16 %v4278
        %v5032 = vunpack.c.l.b16 %v4279
        %v5033 = vunpack.c.h.b16 %v4279
        %v5034 = vunpack.c.l.b16 %v4280
        %v5035 = vunpack.c.h.b16 %v4280
        %v5036 = vunpack.c.l.b16 %v4281
        %v5037 = vunpack.c.h.b16 %v4281
        %v5038 = vunpack.c.l.b16 %v4282
        %v5039 = vunpack.c.h.b16 %v4282
        %v5040 = vunpack.c.l.b16 %v4283
        %v5041 = vunpack.c.h.b16 %v4283
        %v5042 = vunpack.c.l.b16 %v4284
        %v5043 = vunpack.c.h.b16 %v4284
        %v5044 = vunpack.c.l.b16 %v4285
        %v5045 = vunpack.c.h.b16 %v4285
        %v5046 = vunpack.c.l.b16 %v4286
        %v5047 = vunpack.c.h.b16 %v4286
        %v5048 = vunpack.c.l.b16 %v4287
        %v5049 = vunpack.c.h.b16 %v4287
        %v5050 = vunpack.c.l.b16 %v4288
        %v5051 = vunpack.c.h.b16 %v4288
        %v5052 = vunpack.c.l.b16 %v4289
        %v5053 = vunpack.c.h.b16 %v4289
        %v5054 = vunpack.c.l.b16 %v4290
        %v5055 = vunpack.c.h.b16 %v4290
        %v5056 = vunpack.c.l.b16 %v4291
        %v5057 = vunpack.c.h.b16 %v4291
        %v5058 = vunpack.c.l.b16 %v4292
        %v5059 = vunpack.c.h.b16 %v4292
        %v5060 = vunpack.c.l.b16 %v4293
        %v5061 = vunpack.c.h.b16 %v4293
        %v5062 = vunpack.c.l.b16 %v4294
        %v5063 = vunpack.c.h.b16 %v4294
        %v5064 = vunpack.c.l.b16 %v4295
        %v5065 = vunpack.c.h.b16 %v4295
        %v5066 = vunpack.c.l.b16 %v4296
        %v5067 = vunpack.c.h.b16 %v4296
        %v5068 = vunpack.c.l.b16 %v4297
        %v5069 = vunpack.c.h.b16 %v4297
        %v5070 = vunpack.c.l.b16 %v4298
        %v5071 = vunpack.c.h.b16 %v4298
        %v5072 = vunpack.c.l.b16 %v4299
        %v5073 = vunpack.c.h.b16 %v4299
        %v5074 = vunpack.c.l.b16 %v4300
        %v5075 = vunpack.c.h.b16 %v4300
        %v5076 = vunpack.c.l.b16 %v4301
        %v5077 = vunpack.c.h.b16 %v4301
        %v5078 = vunpack.c.l.b16 %v4302
        %v5079 = vunpack.c.h.b16 %v4302
        %v5080 = vunpack.c.l.b16 %v4303
        %v5081 = vunpack.c.h.b16 %v4303
        %v5082 = vunpack.c.l.b16 %v4304
        %v5083 = vunpack.c.h.b16 %v4304
        %v5084 = vunpack.c.l.b16 %v4305
        %v5085 = vunpack.c.h.b16 %v4305
        %v5086 = vunpack.c.l.b16 %v4306
        %v5087 = vunpack.c.h.b16 %v4306
        %v5088 = vunpack.c.l.b16 %v4307
        %v5089 = vunpack.c.h.b16 %v4307
        %v5090 = vunpack.c.l.b16 %v4308
        %v5091 = vunpack.c.h.b16 %v4308
        %v5092 = vunpack.c.l.b16 %v4309
        %v5093 = vunpack.c.h.b16 %v4309
        %v5094 = vunpack.c.l.b16 %v4310
        %v5095 = vunpack.c.h.b16 %v4310
        %v5096 = vunpack.c.l.b16 %v4311
        %v5097 = vunpack.c.h.b16 %v4311
        %v5098 = vunpack.c.l.b16 %v4312
        %v5099 = vunpack.c.h.b16 %v4312
        %v5100 = vunpack.c.l.b16 %v4313
        %v5101 = vunpack.c.h.b16 %v4313
        %v5102 = vunpack.c.l.b16 %v4314
        %v5103 = vunpack.c.h.b16 %v4314
        %v5104 = vunpack.c.l.b16 %v4315
        %v5105 = vunpack.c.h.b16 %v4315
        %v5106 = vunpack.c.l.b16 %v4316
        %v5107 = vunpack.c.h.b16 %v4316
        %v5108 = vunpack.c.l.b16 %v4317
        %v5109 = vunpack.c.h.b16 %v4317
        %v5110 = vunpack.c.l.b16 %v4318
        %v5111 = vunpack.c.h.b16 %v4318
        %v5112 = vunpack.c.l.b16 %v4319
        %v5113 = vunpack.c.h.b16 %v4319
        %v5114 = vunpack.c.l.b16 %v4320
        %v5115 = vunpack.c.h.b16 %v4320
        %v5116 = vunpack.c.l.b16 %v4321
        %v5117 = vunpack.c.h.b16 %v4321
        %v5118 = vunpack.c.l.b16 %v4322
        %v5119 = vunpack.c.h.b16 %v4322
        %v5120 = vunpack.c.l.b16 %v4323
        %v5121 = vunpack.c.h.b16 %v4323
        %v5122 = vunpack.c.l.b16 %v4324
        %v5123 = vunpack.c.h.b16 %v4324
        %v5124 = vunpack.c.l.b16 %v4325
        %v5125 = vunpack.c.h.b16 %v4325
        %v5126 = vunpack.c.l.b16 %v4326
        %v5127 = vunpack.c.h.b16 %v4326
        %v5128 = vunpack.c.l.b16 %v4327
        %v5129 = vunpack.c.h.b16 %v4327
        %v5130 = vunpack.c.l.b16 %v4328
        %v5131 = vunpack.c.h.b16 %v4328
        %v5132 = vunpack.c.l.b16 %v4329
        %v5133 = vunpack.c.h.b16 %v4329
        %v5134 = vunpack.c.l.b16 %v4330
        %v5135 = vunpack.c.h.b16 %v4330
        %v5136 = vunpack.c.l.b16 %v4331
        %v5137 = vunpack.c.h.b16 %v4331
        %v5138 = vunpack.c.l.b16 %v4332
        %v5139 = vunpack.c.h.b16 %v4332
        %v5140 = vunpack.c.l.b16 %v4333
        %v5141 = vunpack.c.h.b16 %v4333
        %v5142 = vunpack.c.l.b16 %v4334
        %v5143 = vunpack.c.h.b16 %v4334
        %v5144 = vunpack.c.l.b16 %v4335
        %v5145 = vunpack.c.h.b16 %v4335
        %v5146 = vunpack.c.l.b16 %v4336
        %v5147 = vunpack.c.h.b16 %v4336
        %v5148 = vunpack.c.l.b16 %v4337
        %v5149 = vunpack.c.h.b16 %v4337
        %v5150 = vunpack.c.l.b16 %v4338
        %v5151 = vunpack.c.h.b16 %v4338
        %v5152 = vunpack.c.l.b16 %v4339
        %v5153 = vunpack.c.h.b16 %v4339
        %v5154 = vunpack.c.l.b16 %v4340
        %v5155 = vunpack.c.h.b16 %v4340
        %v5156 = vunpack.c.l.b16 %v4341
        %v5157 = vunpack.c.h.b16 %v4341
        %v5158 = vunpack.c.l.b16 %v4342
        %v5159 = vunpack.c.h.b16 %v4342
        %v5160 = vunpack.c.l.b16 %v4343
        %v5161 = vunpack.c.h.b16 %v4343
        %v5162 = vunpack.c.l.b16 %v4344
        %v5163 = vunpack.c.h.b16 %v4344
        %v5164 = vunpack.c.l.b16 %v4345
        %v5165 = vunpack.c.h.b16 %v4345
        %v5166 = vunpack.c.l.b16 %v4346
        %v5167 = vunpack.c.h.b16 %v4346
        %v5168 = vunpack.c.l.b16 %v4347
        %v5169 = vunpack.c.h.b16 %v4347
        %v5170 = vunpack.c.l.b16 %v4348
        %v5171 = vunpack.c.h.b16 %v4348
        %v5172 = vunpack.c.l.b16 %v4349
        %v5173 = vunpack.c.h.b16 %v4349
        %v5174 = vunpack.c.l.b16 %v4350
        %v5175 = vunpack.c.h.b16 %v4350
        %v5176 = vunpack.c.l.b16 %v4351
        %v5177 = vunpack.c.h.b16 %v4351
        %v5178 = vunpack.c.l.b16 %v4352
        %v5179 = vunpack.c.h.b16 %v4352
        %v5180 = vunpack.c.l.b16 %v4353
        %v5181 = vunpack.c.h.b16 %v4353
        %v5182 = vunpack.c.l.b16 %v4354
        %v5183 = vunpack.c.h.b16 %v4354
        %v5184 = vunpack.c.l.b16 %v4355
        %v5185 = vunpack.c.h.b16 %v4355
        %v5186 = vunpack.c.l.b16 %v4356
        %v5187 = vunpack.c.h.b16 %v4356
        %v5188 = vunpack.c.l.b16 %v4357
        %v5189 = vunpack.c.h.b16 %v4357
        %v5190 = vunpack.c.l.b16 %v4358
        %v5191 = vunpack.c.h.b16 %v4358
        %v5192 = vunpack.c.l.b16 %v4359
        %v5193 = vunpack.c.h.b16 %v4359
        %v5194 = vunpack.c.l.b16 %v4360
        %v5195 = vunpack.c.h.b16 %v4360
        %v5196 = vunpack.c.l.b16 %v4361
        %v5197 = vunpack.c.h.b16 %v4361
        %v5198 = vunpack.c.l.b16 %v4362
        %v5199 = vunpack.c.h.b16 %v4362
        %v5200 = vunpack.c.l.b16 %v4363
        %v5201 = vunpack.c.h.b16 %v4363
        %v5202 = vunpack.c.l.b16 %v4364
        %v5203 = vunpack.c.h.b16 %v4364
        %v5204 = vunpack.c.l.b16 %v4365
        %v5205 = vunpack.c.h.b16 %v4365
        %v5206 = vunpack.c.l.b16 %v4366
        %v5207 = vunpack.c.h.b16 %v4366
        %v5208 = vunpack.c.l.b16 %v4367
        %v5209 = vunpack.c.h.b16 %v4367
        %v5210 = vunpack.c.l.b16 %v4368
        %v5211 = vunpack.c.h.b16 %v4368
        %v5212 = vunpack.c.l.b16 %v4369
        %v5213 = vunpack.c.h.b16 %v4369
        %v5214 = vunpack.c.l.b16 %v4370
        %v5215 = vunpack.c.h.b16 %v4370
        %v5216 = vunpack.c.l.b16 %v4371
        %v5217 = vunpack.c.h.b16 %v4371
        %v5218 = vunpack.c.l.b16 %v4372
        %v5219 = vunpack.c.h.b16 %v4372
        %v5220 = vunpack.c.l.b16 %v4373
        %v5221 = vunpack.c.h.b16 %v4373
        %v5222 = vunpack.c.l.b16 %v4374
        %v5223 = vunpack.c.h.b16 %v4374
        %v5224 = vunpack.c.l.b16 %v4375
        %v5225 = vunpack.c.h.b16 %v4375
        %v5226 = vunpack.c.l.b16 %v4376
        %v5227 = vunpack.c.h.b16 %v4376
        %v5228 = vunpack.c.l.b16 %v4377
        %v5229 = vunpack.c.h.b16 %v4377
        %v5230 = vunpack.c.l.b16 %v4378
        %v5231 = vunpack.c.h.b16 %v4378
        %v5232 = vunpack.c.l.b16 %v4379
        %v5233 = vunpack.c.h.b16 %v4379
        %v5234 = vunpack.c.l.b16 %v4380
        %v5235 = vunpack.c.h.b16 %v4380
        %v5236 = vunpack.c.l.b16 %v4381
        %v5237 = vunpack.c.h.b16 %v4381
        %v5238 = vunpack.c.l.b16 %v4382
        %v5239 = vunpack.c.h.b16 %v4382
        %v5240 = vunpack.c.l.b16 %v4383
        %v5241 = vunpack.c.h.b16 %v4383
        %v5242 = vunpack.c.l.b16 %v4384
        %v5243 = vunpack.c.h.b16 %v4384
        %v5244 = vunpack.c.l.b16 %v4385
        %v5245 = vunpack.c.h.b16 %v4385
        %v5246 = vunpack.c.l.b16 %v4386
        %v5247 = vunpack.c.h.b16 %v4386
        %v5248 = vunpack.c.l.b16 %v4387
        %v5249 = vunpack.c.h.b16 %v4387
        %v5250 = vunpack.c.l.b16 %v4388
        %v5251 = vunpack.c.h.b16 %v4388
        %v5252 = vunpack.c.l.b16 %v4389
        %v5253 = vunpack.c.h.b16 %v4389
        %v5254 = vunpack.c.l.b16 %v4390
        %v5255 = vunpack.c.h.b16 %v4390
        %v5256 = vunpack.c.l.b16 %v4391
        %v5257 = vunpack.c.h.b16 %v4391
        %v5258 = vunpack.c.l.b16 %v4392
        %v5259 = vunpack.c.h.b16 %v4392
        %v5260 = vunpack.c.l.b16 %v4393
        %v5261 = vunpack.c.h.b16 %v4393
        %v5262 = vunpack.c.l.b16 %v4394
        %v5263 = vunpack.c.h.b16 %v4394
        %v5264 = vunpack.c.l.b16 %v4395
        %v5265 = vunpack.c.h.b16 %v4395
        %v5266 = vunpack.c.l.b16 %v4396
        %v5267 = vunpack.c.h.b16 %v4396
        %v5268 = vunpack.c.l.b16 %v4397
        %v5269 = vunpack.c.h.b16 %v4397
        %v5270 = vunpack.c.l.b16 %v4398
        %v5271 = vunpack.c.h.b16 %v4398
        %v5272 = vunpack.c.l.b16 %v4399
        %v5273 = vunpack.c.h.b16 %v4399
        %v5274 = vunpack.c.l.b16 %v4400
        %v5275 = vunpack.c.h.b16 %v4400
        %v5276 = vunpack.c.l.b16 %v4401
        %v5277 = vunpack.c.h.b16 %v4401
        %v5278 = vunpack.c.l.b16 %v4402
        %v5279 = vunpack.c.h.b16 %v4402
        %v5280 = vunpack.c.l.b16 %v4403
        %v5281 = vunpack.c.h.b16 %v4403
        %v5282 = vunpack.c.l.b16 %v4404
        %v5283 = vunpack.c.h.b16 %v4404
        %v5284 = vunpack.c.l.b16 %v4405
        %v5285 = vunpack.c.h.b16 %v4405
        %v5286 = vunpack.c.l.b16 %v4406
        %v5287 = vunpack.c.h.b16 %v4406
        %v5288 = vunpack.c.l.b16 %v4407
        %v5289 = vunpack.c.h.b16 %v4407
        %v5290 = vunpack.c.l.b16 %v4408
        %v5291 = vunpack.c.h.b16 %v4408
        %v5292 = vunpack.c.l.b16 %v4409
        %v5293 = vunpack.c.h.b16 %v4409
        %v5294 = vunpack.c.l.b16 %v4410
        %v5295 = vunpack.c.h.b16 %v4410
        %v5296 = vunpack.c.l.b16 %v4411
        %v5297 = vunpack.c.h.b16 %v4411
        %v5298 = vunpack.c.l.b16 %v4412
        %v5299 = vunpack.c.h.b16 %v4412
        %v5300 = vunpack.c.l.b16 %v4413
        %v5301 = vunpack.c.h.b16 %v4413
        %v5302 = vunpack.c.l.b16 %v4414
        %v5303 = vunpack.c.h.b16 %v4414
        %v5304 = vunpack.c.l.b16 %v4415
        %v5305 = vunpack.c.h.b16 %v4415
        %v5306 = vunpack.c.l.b16 %v4416
        %v5307 = vunpack.c.h.b16 %v4416
        %v5308 = vunpack.c.l.b16 %v4417
        %v5309 = vunpack.c.h.b16 %v4417
        %v5310 = vunpack.c.l.b16 %v4418
        %v5311 = vunpack.c.h.b16 %v4418
        %v5312 = vunpack.c.l.b16 %v4419
        %v5313 = vunpack.c.h.b16 %v4419
        %v5314 = vunpack.c.l.b16 %v4420
        %v5315 = vunpack.c.h.b16 %v4420
        %v5316 = vunpack.c.l.b16 %v4421
        %v5317 = vunpack.c.h.b16 %v4421
        %v5318 = vunpack.c.l.b16 %v4422
        %v5319 = vunpack.c.h.b16 %v4422
        %v5320 = vunpack.c.l.b16 %v4423
        %v5321 = vunpack.c.h.b16 %v4423
        %v5322 = vunpack.c.l.b16 %v4424
        %v5323 = vunpack.c.h.b16 %v4424
        %v5324 = vunpack.c.l.b16 %v4425
        %v5325 = vunpack.c.h.b16 %v4425
        %v5326 = vunpack.c.l.b16 %v4426
        %v5327 = vunpack.c.h.b16 %v4426
        %v5328 = vunpack.c.l.b16 %v4427
        %v5329 = vunpack.c.h.b16 %v4427
        %v5330 = vunpack.c.l.b16 %v4428
        %v5331 = vunpack.c.h.b16 %v4428
        %v5332 = vunpack.c.l.b16 %v4429
        %v5333 = vunpack.c.h.b16 %v4429
        %v5334 = vunpack.c.l.b16 %v4430
        %v5335 = vunpack.c.h.b16 %v4430
        %v5336 = vunpack.c.l.b16 %v4431
        %v5337 = vunpack.c.h.b16 %v4431
        %v5338 = vunpack.c.l.b16 %v4432
        %v5339 = vunpack.c.h.b16 %v4432
        %v5340 = vunpack.c.l.b16 %v4433
        %v5341 = vunpack.c.h.b16 %v4433
        %v5342 = vunpack.c.l.b16 %v4434
        %v5343 = vunpack.c.h.b16 %v4434
        %v5344 = vunpack.c.l.b16 %v4435
        %v5345 = vunpack.c.h.b16 %v4435
        %v5346 = vunpack.c.l.b16 %v4436
        %v5347 = vunpack.c.h.b16 %v4436
        %v5348 = vunpack.c.l.b16 %v4437
        %v5349 = vunpack.c.h.b16 %v4437
        %v5350 = vunpack.c.l.b16 %v4438
        %v5351 = vunpack.c.h.b16 %v4438
        %v5352 = vunpack.c.l.b16 %v4439
        %v5353 = vunpack.c.h.b16 %v4439
        %v5354 = vunpack.c.l.b16 %v4440
        %v5355 = vunpack.c.h.b16 %v4440
        %v5356 = vunpack.c.l.b16 %v4441
        %v5357 = vunpack.c.h.b16 %v4441
        %v5358 = vunpack.c.l.b16 %v4442
        %v5359 = vunpack.c.h.b16 %v4442
        %v5360 = vunpack.c.l.b16 %v4443
        %v5361 = vunpack.c.h.b16 %v4443
        %v5362 = vunpack.c.l.b16 %v4444
        %v5363 = vunpack.c.h.b16 %v4444
        %v5364 = vunpack.c.l.b16 %v4445
        %v5365 = vunpack.c.h.b16 %v4445
        %v5366 = vunpack.c.l.b16 %v4446
        %v5367 = vunpack.c.h.b16 %v4446
        %v5368 = vunpack.c.l.b16 %v4447
        %v5369 = vunpack.c.h.b16 %v4447
        %v5370 = vunpack.c.l.b16 %v4448
        %v5371 = vunpack.c.h.b16 %v4448
        %v5372 = vunpack.c.l.b16 %v4449
        %v5373 = vunpack.c.h.b16 %v4449
        %v5374 = vunpack.c.l.b16 %v4450
        %v5375 = vunpack.c.h.b16 %v4450
        %v5376 = vunpack.c.l.b16 %v4451
        %v5377 = vunpack.c.h.b16 %v4451
        %v5378 = vunpack.c.l.b16 %v4452
        %v5379 = vunpack.c.h.b16 %v4452
        %v5380 = vunpack.c.l.b16 %v4453
        %v5381 = vunpack.c.h.b16 %v4453
        %v5382 = vpack.c.b16 %v4818, %v4806
        %v5383 = vpack.c.b16 %v4819, %v4807
        %v5384 = vpack.c.b16 %v4820, %v4808
        %v5385 = vpack.c.b16 %v4821, %v4809
        %v5386 = vpack.c.b16 %v4822, %v4810
        %v5387 = vpack.c.b16 %v4823, %v4811
        %v5388 = vpack.c.b16 %v4824, %v4812
        %v5389 = vpack.c.b16 %v4825, %v4813
        %v5390 = vpack.c.b16 %v4826, %v4814
        %v5391 = vpack.c.b16 %v4827, %v4815
        %v5392 = vpack.c.b16 %v4828, %v4816
        %v5393 = vpack.c.b16 %v4829, %v4817
        %v5394 = vpack.c.b16 %v4842, %v4830
        %v5395 = vpack.c.b16 %v4843, %v4831
        %v5396 = vpack.c.b16 %v4844, %v4832
        %v5397 = vpack.c.b16 %v4845, %v4833
        %v5398 = vpack.c.b16 %v4846, %v4834
        %v5399 = vpack.c.b16 %v4847, %v4835
        %v5400 = vpack.c.b16 %v4848, %v4836
        %v5401 = vpack.c.b16 %v4849, %v4837
        %v5402 = vpack.c.b16 %v4850, %v4838
        %v5403 = vpack.c.b16 %v4851, %v4839
        %v5404 = vpack.c.b16 %v4852, %v4840
        %v5405 = vpack.c.b16 %v4853, %v4841
        %v5406 = vpack.c.b16 %v4866, %v4854
        %v5407 = vpack.c.b16 %v4867, %v4855
        %v5408 = vpack.c.b16 %v4868, %v4856
        %v5409 = vpack.c.b16 %v4869, %v4857
        %v5410 = vpack.c.b16 %v4870, %v4858
        %v5411 = vpack.c.b16 %v4871, %v4859
        %v5412 = vpack.c.b16 %v4872, %v4860
        %v5413 = vpack.c.b16 %v4873, %v4861
        %v5414 = vpack.c.b16 %v4874, %v4862
        %v5415 = vpack.c.b16 %v4875, %v4863
        %v5416 = vpack.c.b16 %v4876, %v4864
        %v5417 = vpack.c.b16 %v4877, %v4865
        %v5418 = vpack.c.b16 %v4890, %v4878
        %v5419 = vpack.c.b16 %v4891, %v4879
        %v5420 = vpack.c.b16 %v4892, %v4880
        %v5421 = vpack.c.b16 %v4893, %v4881
        %v5422 = vpack.c.b16 %v4894, %v4882
        %v5423 = vpack.c.b16 %v4895, %v4883
        %v5424 = vpack.c.b16 %v4896, %v4884
        %v5425 = vpack.c.b16 %v4897, %v4885
        %v5426 = vpack.c.b16 %v4898, %v4886
        %v5427 = vpack.c.b16 %v4899, %v4887
        %v5428 = vpack.c.b16 %v4900, %v4888
        %v5429 = vpack.c.b16 %v4901, %v4889
        %v5430 = vpack.c.b16 %v4914, %v4902
        %v5431 = vpack.c.b16 %v4915, %v4903
        %v5432 = vpack.c.b16 %v4916, %v4904
        %v5433 = vpack.c.b16 %v4917, %v4905
        %v5434 = vpack.c.b16 %v4918, %v4906
        %v5435 = vpack.c.b16 %v4919, %v4907
        %v5436 = vpack.c.b16 %v4920, %v4908
        %v5437 = vpack.c.b16 %v4921, %v4909
        %v5438 = vpack.c.b16 %v4922, %v4910
        %v5439 = vpack.c.b16 %v4923, %v4911
        %v5440 = vpack.c.b16 %v4924, %v4912
        %v5441 = vpack.c.b16 %v4925, %v4913
        %v5442 = vpack.c.b16 %v4938, %v4926
        %v5443 = vpack.c.b16 %v4939, %v4927
        %v5444 = vpack.c.b16 %v4940, %v4928
        %v5445 = vpack.c.b16 %v4941, %v4929
        %v5446 = vpack.c.b16 %v4942, %v4930
        %v5447 = vpack.c.b16 %v4943, %v4931
        %v5448 = vpack.c.b16 %v4944, %v4932
        %v5449 = vpack.c.b16 %v4945, %v4933
        %v5450 = vpack.c.b16 %v4946, %v4934
        %v5451 = vpack.c.b16 %v4947, %v4935
        %v5452 = vpack.c.b16 %v4948, %v4936
        %v5453 = vpack.c.b16 %v4949, %v4937
        %v5454 = vpack.c.b16 %v4962, %v4950
        %v5455 = vpack.c.b16 %v4963, %v4951
        %v5456 = vpack.c.b16 %v4964, %v4952
        %v5457 = vpack.c.b16 %v4965, %v4953
        %v5458 = vpack.c.b16 %v4966, %v4954
        %v5459 = vpack.c.b16 %v4967, %v4955
        %v5460 = vpack.c.b16 %v4968, %v4956
        %v5461 = vpack.c.b16 %v4969, %v4957
        %v5462 = vpack.c.b16 %v4970, %v4958
        %v5463 = vpack.c.b16 %v4971, %v4959
        %v5464 = vpack.c.b16 %v4972, %v4960
        %v5465 = vpack.c.b16 %v4973, %v4961
        %v5466 = vpack.c.b16 %v4986, %v4974
        %v5467 = vpack.c.b16 %v4987, %v4975
        %v5468 = vpack.c.b16 %v4988, %v4976
        %v5469 = vpack.c.b16 %v4989, %v4977
        %v5470 = vpack.c.b16 %v4990, %v4978
        %v5471 = vpack.c.b16 %v4991, %v4979
        %v5472 = vpack.c.b16 %v4992, %v4980
        %v5473 = vpack.c.b16 %v4993, %v4981
        %v5474 = vpack.c.b16 %v4994, %v4982
        %v5475 = vpack.c.b16 %v4995, %v4983
        %v5476 = vpack.c.b16 %v4996, %v4984
        %v5477 = vpack.c.b16 %v4997, %v4985
        %v5478 = vpack.c.b16 %v5010, %v4998
        %v5479 = vpack.c.b16 %v5011, %v4999
        %v5480 = vpack.c.b16 %v5012, %v5000
        %v5481 = vpack.c.b16 %v5013, %v5001
        %v5482 = vpack.c.b16 %v5014, %v5002
        %v5483 = vpack.c.b16 %v5015, %v5003
        %v5484 = vpack.c.b16 %v5016, %v5004
        %v5485 = vpack.c.b16 %v5017, %v5005
        %v5486 = vpack.c.b16 %v5018, %v5006
        %v5487 = vpack.c.b16 %v5019, %v5007
        %v5488 = vpack.c.b16 %v5020, %v5008
        %v5489 = vpack.c.b16 %v5021, %v5009
        %v5490 = vpack.c.b16 %v5034, %v5022
        %v5491 = vpack.c.b16 %v5035, %v5023
        %v5492 = vpack.c.b16 %v5036, %v5024
        %v5493 = vpack.c.b16 %v5037, %v5025
        %v5494 = vpack.c.b16 %v5038, %v5026
        %v5495 = vpack.c.b16 %v5039, %v5027
        %v5496 = vpack.c.b16 %v5040, %v5028
        %v5497 = vpack.c.b16 %v5041, %v5029
        %v5498 = vpack.c.b16 %v5042, %v5030
        %v5499 = vpack.c.b16 %v5043, %v5031
        %v5500 = vpack.c.b16 %v5044, %v5032
        %v5501 = vpack.c.b16 %v5045, %v5033
        %v5502 = vpack.c.b16 %v5058, %v5046
        %v5503 = vpack.c.b16 %v5059, %v5047
        %v5504 = vpack.c.b16 %v5060, %v5048
        %v5505 = vpack.c.b16 %v5061, %v5049
        %v5506 = vpack.c.b16 %v5062, %v5050
        %v5507 = vpack.c.b16 %v5063, %v5051
        %v5508 = vpack.c.b16 %v5064, %v5052
        %v5509 = vpack.c.b16 %v5065, %v5053
        %v5510 = vpack.c.b16 %v5066, %v5054
        %v5511 = vpack.c.b16 %v5067, %v5055
        %v5512 = vpack.c.b16 %v5068, %v5056
        %v5513 = vpack.c.b16 %v5069, %v5057
        %v5514 = vpack.c.b16 %v5082, %v5070
        %v5515 = vpack.c.b16 %v5083, %v5071
        %v5516 = vpack.c.b16 %v5084, %v5072
        %v5517 = vpack.c.b16 %v5085, %v5073
        %v5518 = vpack.c.b16 %v5086, %v5074
        %v5519 = vpack.c.b16 %v5087, %v5075
        %v5520 = vpack.c.b16 %v5088, %v5076
        %v5521 = vpack.c.b16 %v5089, %v5077
        %v5522 = vpack.c.b16 %v5090, %v5078
        %v5523 = vpack.c.b16 %v5091, %v5079
        %v5524 = vpack.c.b16 %v5092, %v5080
        %v5525 = vpack.c.b16 %v5093, %v5081
        %v5526 = vpack.c.b16 %v5106, %v5094
        %v5527 = vpack.c.b16 %v5107, %v5095
        %v5528 = vpack.c.b16 %v5108, %v5096
        %v5529 = vpack.c.b16 %v5109, %v5097
        %v5530 = vpack.c.b16 %v5110, %v5098
        %v5531 = vpack.c.b16 %v5111, %v5099
        %v5532 = vpack.c.b16 %v5112, %v5100
        %v5533 = vpack.c.b16 %v5113, %v5101
        %v5534 = vpack.c.b16 %v5114, %v5102
        %v5535 = vpack.c.b16 %v5115, %v5103
        %v5536 = vpack.c.b16 %v5116, %v5104
        %v5537 = vpack.c.b16 %v5117, %v5105
        %v5538 = vpack.c.b16 %v5130, %v5118
        %v5539 = vpack.c.b16 %v5131, %v5119
        %v5540 = vpack.c.b16 %v5132, %v5120
        %v5541 = vpack.c.b16 %v5133, %v5121
        %v5542 = vpack.c.b16 %v5134, %v5122
        %v5543 = vpack.c.b16 %v5135, %v5123
        %v5544 = vpack.c.b16 %v5136, %v5124
        %v5545 = vpack.c.b16 %v5137, %v5125
        %v5546 = vpack.c.b16 %v5138, %v5126
        %v5547 = vpack.c.b16 %v5139, %v5127
        %v5548 = vpack.c.b16 %v5140, %v5128
        %v5549 = vpack.c.b16 %v5141, %v5129
        %v5550 = vpack.c.b16 %v5154, %v5142
        %v5551 = vpack.c.b16 %v5155, %v5143
        %v5552 = vpack.c.b16 %v5156, %v5144
        %v5553 = vpack.c.b16 %v5157, %v5145
        %v5554 = vpack.c.b16 %v5158, %v5146
        %v5555 = vpack.c.b16 %v5159, %v5147
        %v5556 = vpack.c.b16 %v5160, %v5148
        %v5557 = vpack.c.b16 %v5161, %v5149
        %v5558 = vpack.c.b16 %v5162, %v5150
        %v5559 = vpack.c.b16 %v5163, %v5151
        %v5560 = vpack.c.b16 %v5164, %v5152
        %v5561 = vpack.c.b16 %v5165, %v5153
        %v5562 = vpack.c.b16 %v5178, %v5166
        %v5563 = vpack.c.b16 %v5179, %v5167
        %v5564 = vpack.c.b16 %v5180, %v5168
        %v5565 = vpack.c.b16 %v5181, %v5169
        %v5566 = vpack.c.b16 %v5182, %v5170
        %v5567 = vpack.c.b16 %v5183, %v5171
        %v5568 = vpack.c.b16 %v5184, %v5172
        %v5569 = vpack.c.b16 %v5185, %v5173
        %v5570 = vpack.c.b16 %v5186, %v5174
        %v5571 = vpack.c.b16 %v5187, %v5175
        %v5572 = vpack.c.b16 %v5188, %v5176
        %v5573 = vpack.c.b16 %v5189, %v5177
        %v5574 = vpack.c.b16 %v5202, %v5190
        %v5575 = vpack.c.b16 %v5203, %v5191
        %v5576 = vpack.c.b16 %v5204, %v5192
        %v5577 = vpack.c.b16 %v5205, %v5193
        %v5578 = vpack.c.b16 %v5206, %v5194
        %v5579 = vpack.c.b16 %v5207, %v5195
        %v5580 = vpack.c.b16 %v5208, %v5196
        %v5581 = vpack.c.b16 %v5209, %v5197
        %v5582 = vpack.c.b16 %v5210, %v5198
        %v5583 = vpack.c.b16 %v5211, %v5199
        %v5584 = vpack.c.b16 %v5212, %v5200
        %v5585 = vpack.c.b16 %v5213, %v5201
        %v5586 = vpack.c.b16 %v5226, %v5214
        %v5587 = vpack.c.b16 %v5227, %v5215
        %v5588 = vpack.c.b16 %v5228, %v5216
        %v5589 = vpack.c.b16 %v5229, %v5217
        %v5590 = vpack.c.b16 %v5230, %v5218
        %v5591 = vpack.c.b16 %v5231, %v5219
        %v5592 = vpack.c.b16 %v5232, %v5220
        %v5593 = vpack.c.b16 %v5233, %v5221
        %v5594 = vpack.c.b16 %v5234, %v5222
        %v5595 = vpack.c.b16 %v5235, %v5223
        %v5596 = vpack.c.b16 %v5236, %v5224
        %v5597 = vpack.c.b16 %v5237, %v5225
        %v5598 = vpack.c.b16 %v5250, %v5238
        %v5599 = vpack.c.b16 %v5251, %v5239
        %v5600 = vpack.c.b16 %v5252, %v5240
        %v5601 = vpack.c.b16 %v5253, %v5241
        %v5602 = vpack.c.b16 %v5254, %v5242
        %v5603 = vpack.c.b16 %v5255, %v5243
        %v5604 = vpack.c.b16 %v5256, %v5244
        %v5605 = vpack.c.b16 %v5257, %v5245
        %v5606 = vpack.c.b16 %v5258, %v5246
        %v5607 = vpack.c.b16 %v5259, %v5247
        %v5608 = vpack.c.b16 %v5260, %v5248
        %v5609 = vpack.c.b16 %v5261, %v5249
        %v5610 = vpack.c.b16 %v5274, %v5262
        %v5611 = vpack.c.b16 %v5275, %v5263
        %v5612 = vpack.c.b16 %v5276, %v5264
        %v5613 = vpack.c.b16 %v5277, %v5265
        %v5614 = vpack.c.b16 %v5278, %v5266
        %v5615 = vpack.c.b16 %v5279, %v5267
        %v5616 = vpack.c.b16 %v5280, %v5268
        %v5617 = vpack.c.b16 %v5281, %v5269
        %v5618 = vpack.c.b16 %v5282, %v5270
        %v5619 = vpack.c.b16 %v5283, %v5271
        %v5620 = vpack.c.b16 %v5284, %v5272
        %v5621 = vpack.c.b16 %v5285, %v5273
        %v5622 = vpack.c.b16 %v5298, %v5286
        %v5623 = vpack.c.b16 %v5299, %v5287
        %v5624 = vpack.c.b16 %v5300, %v5288
        %v5625 = vpack.c.b16 %v5301, %v5289
        %v5626 = vpack.c.b16 %v5302, %v5290
        %v5627 = vpack.c.b16 %v5303, %v5291
        %v5628 = vpack.c.b16 %v5304, %v5292
        %v5629 = vpack.c.b16 %v5305, %v5293
        %v5630 = vpack.c.b16 %v5306, %v5294
        %v5631 = vpack.c.b16 %v5307, %v5295
        %v5632 = vpack.c.b16 %v5308, %v5296
        %v5633 = vpack.c.b16 %v5309, %v5297
        %v5634 = vpack.c.b16 %v5322, %v5310
        %v5635 = vpack.c.b16 %v5323, %v5311
        %v5636 = vpack.c.b16 %v5324, %v5312
        %v5637 = vpack.c.b16 %v5325, %v5313
        %v5638 = vpack.c.b16 %v5326, %v5314
        %v5639 = vpack.c.b16 %v5327, %v5315
        %v5640 = vpack.c.b16 %v5328, %v5316
        %v5641 = vpack.c.b16 %v5329, %v5317
        %v5642 = vpack.c.b16 %v5330, %v5318
        %v5643 = vpack.c.b16 %v5331, %v5319
        %v5644 = vpack.c.b16 %v5332, %v5320
        %v5645 = vpack.c.b16 %v5333, %v5321
        %v5646 = vpack.c.b16 %v5346, %v5334
        %v5647 = vpack.c.b16 %v5347, %v5335
        %v5648 = vpack.c.b16 %v5348, %v5336
        %v5649 = vpack.c.b16 %v5349, %v5337
        %v5650 = vpack.c.b16 %v5350, %v5338
        %v5651 = vpack.c.b16 %v5351, %v5339
        %v5652 = vpack.c.b16 %v5352, %v5340
        %v5653 = vpack.c.b16 %v5353, %v5341
        %v5654 = vpack.c.b16 %v5354, %v5342
        %v5655 = vpack.c.b16 %v5355, %v5343
        %v5656 = vpack.c.b16 %v5356, %v5344
        %v5657 = vpack.c.b16 %v5357, %v5345
        %v5658 = vpack.c.b16 %v5370, %v5358
        %v5659 = vpack.c.b16 %v5371, %v5359
        %v5660 = vpack.c.b16 %v5372, %v5360
        %v5661 = vpack.c.b16 %v5373, %v5361
        %v5662 = vpack.c.b16 %v5374, %v5362
        %v5663 = vpack.c.b16 %v5375, %v5363
        %v5664 = vpack.c.b16 %v5376, %v5364
        %v5665 = vpack.c.b16 %v5377, %v5365
        %v5666 = vpack.c.b16 %v5378, %v5366
        %v5667 = vpack.c.b16 %v5379, %v5367
        %v5668 = vpack.c.b16 %v5380, %v5368
        %v5669 = vpack.c.b16 %v5381, %v5369
        %5958 = vmatprep.subr.bf16.mxu0 %v5467
        %5959 = vmatpush1.bf16.msra.mxu0 %v5466
        %5960 = vmatprep.subr.bf16.mxu0 %v5455
        %5961 = vmatpush1.bf16.msra.mxu0 %v5454
        %5962 = vmatprep.subr.bf16.mxu0 %v5443
        %5963 = vmatpush1.bf16.msra.mxu0 %v5442
        %5964 = vmatprep.subr.bf16.mxu0 %v5431
        %5965 = vmatpush1.bf16.msra.mxu0 %v5430
        %5966 = vmatprep.subr.bf16.mxu0 %v5419
        %5967 = vmatpush1.bf16.msra.mxu0 %v5418
        %5968 = vmatprep.subr.bf16.mxu0 %v5407
        %5969 = vmatpush1.bf16.msra.mxu0 %v5406
        %5970 = vmatprep.subr.bf16.mxu0 %v5395
        %5971 = vmatpush1.bf16.msra.mxu0 %v5394
        %5972 = vmatprep.subr.bf16.mxu0 %v5383
        %5973 = vmatpush1.bf16.msra.mxu0 %v5382
        %5974 = vmatprep.subr.bf16.mxu0 %v5563
        %5975 = vmatpush2.bf16.msra.mxu0 %v5562
        %5976 = vmatprep.subr.bf16.mxu0 %v5551
        %5977 = vmatpush2.bf16.msra.mxu0 %v5550
        %5978 = vmatprep.subr.bf16.mxu0 %v5539
        %5979 = vmatpush2.bf16.msra.mxu0 %v5538
        %5980 = vmatprep.subr.bf16.mxu0 %v5527
        %5981 = vmatpush2.bf16.msra.mxu0 %v5526
        %5982 = vmatprep.subr.bf16.mxu0 %v5515
        %5983 = vmatpush2.bf16.msra.mxu0 %v5514
        %5984 = vmatprep.subr.bf16.mxu0 %v5503
        %5985 = vmatpush2.bf16.msra.mxu0 %v5502
        %5986 = vmatprep.subr.bf16.mxu0 %v5491
        %5987 = vmatpush2.bf16.msra.mxu0 %v5490
        %5988 = vmatprep.subr.bf16.mxu0 %v5479
        %5989 = vmatpush2.bf16.msra.mxu0 %v5478
        %5990 = vmatprep.mubr.bf16.mxu0 %v4164
        %5991 = vmatmul.mubr.bf16.gmra.mxu0 %v4163
        %v5992 = vpop.f32.mrf.mxu0
        %v5993 = vadd.f32 %v4461, %v5992
        %v5994 = vpop.f32.mrf.mxu0
        %v5995 = vadd.f32 %v4465, %v5994
        %v5996 = vpop.f32.mrf.mxu0
        %v5997 = vpop.f32.mrf.mxu0
        %5998 = vdwg.mxu0
        %5999 = vmatprep.subr.bf16.mxu0 %v5659
        %6000 = vmatpush1.bf16.msra.mxu0 %v5658
        %6001 = vmatprep.subr.bf16.mxu0 %v5647
        %6002 = vmatpush1.bf16.msra.mxu0 %v5646
        %6003 = vmatprep.subr.bf16.mxu0 %v5635
        %6004 = vmatpush1.bf16.msra.mxu0 %v5634
        %6005 = vmatprep.subr.bf16.mxu0 %v5623
        %6006 = vmatpush1.bf16.msra.mxu0 %v5622
        %6007 = vmatprep.subr.bf16.mxu0 %v5611
        %6008 = vmatpush1.bf16.msra.mxu0 %v5610
        %6009 = vmatprep.subr.bf16.mxu0 %v5599
        %6010 = vmatpush1.bf16.msra.mxu0 %v5598
        %6011 = vmatprep.subr.bf16.mxu0 %v5587
        %6012 = vmatpush1.bf16.msra.mxu0 %v5586
        %6013 = vmatprep.subr.bf16.mxu0 %v5575
        %6014 = vmatpush1.bf16.msra.mxu0 %v5574
        %6015 = vmatprep.subr.bf16.mxu0 0
        %6016 = vmatpush2.bf16.msra.mxu0 0
        %6017 = vmatprep.subr.bf16.mxu0 0
        %6018 = vmatpush2.bf16.msra.mxu0 0
        %6019 = vmatprep.subr.bf16.mxu0 0
        %6020 = vmatpush2.bf16.msra.mxu0 0
        %6021 = vmatprep.subr.bf16.mxu0 0
        %6022 = vmatpush2.bf16.msra.mxu0 0
        %6023 = vmatprep.subr.bf16.mxu0 0
        %6024 = vmatpush2.bf16.msra.mxu0 0
        %6025 = vmatprep.subr.bf16.mxu0 0
        %6026 = vmatpush2.bf16.msra.mxu0 0
        %6027 = vmatprep.subr.bf16.mxu0 0
        %6028 = vmatpush2.bf16.msra.mxu0 0
        %6029 = vmatprep.subr.bf16.mxu0 0
        %6030 = vmatpush2.bf16.msra.mxu0 0
        %6031 = vmatprep.mubr.bf16.mxu0 0
        %6032 = vmatmul.mubr.bf16.gmra.mxu0 %v4165
        %v6033 = vpop.f32.mrf.mxu0
        %v6034 = vadd.f32 %v5993, %v6033
        %v6035 = vpop.f32.mrf.mxu0
        %v6036 = vadd.f32 %v5995, %v6035
        %v6037 = vpop.f32.mrf.mxu0
        %v6038 = vpop.f32.mrf.mxu0
        %6039 = vdwg.mxu0
        %6040 = vmatprep.subr.bf16.mxu0 %v5469
        %6041 = vmatpush1.bf16.msra.mxu0 %v5468
        %6042 = vmatprep.subr.bf16.mxu0 %v5457
        %6043 = vmatpush1.bf16.msra.mxu0 %v5456
        %6044 = vmatprep.subr.bf16.mxu0 %v5445
        %6045 = vmatpush1.bf16.msra.mxu0 %v5444
        %6046 = vmatprep.subr.bf16.mxu0 %v5433
        %6047 = vmatpush1.bf16.msra.mxu0 %v5432
        %6048 = vmatprep.subr.bf16.mxu0 %v5421
        %6049 = vmatpush1.bf16.msra.mxu0 %v5420
        %6050 = vmatprep.subr.bf16.mxu0 %v5409
        %6051 = vmatpush1.bf16.msra.mxu0 %v5408
        %6052 = vmatprep.subr.bf16.mxu0 %v5397
        %6053 = vmatpush1.bf16.msra.mxu0 %v5396
        %6054 = vmatprep.subr.bf16.mxu0 %v5385
        %6055 = vmatpush1.bf16.msra.mxu0 %v5384
        %6056 = vmatprep.subr.bf16.mxu0 %v5565
        %6057 = vmatpush2.bf16.msra.mxu0 %v5564
        %6058 = vmatprep.subr.bf16.mxu0 %v5553
        %6059 = vmatpush2.bf16.msra.mxu0 %v5552
        %6060 = vmatprep.subr.bf16.mxu0 %v5541
        %6061 = vmatpush2.bf16.msra.mxu0 %v5540
        %6062 = vmatprep.subr.bf16.mxu0 %v5529
        %6063 = vmatpush2.bf16.msra.mxu0 %v5528
        %6064 = vmatprep.subr.bf16.mxu0 %v5517
        %6065 = vmatpush2.bf16.msra.mxu0 %v5516
        %6066 = vmatprep.subr.bf16.mxu0 %v5505
        %6067 = vmatpush2.bf16.msra.mxu0 %v5504
        %6068 = vmatprep.subr.bf16.mxu0 %v5493
        %6069 = vmatpush2.bf16.msra.mxu0 %v5492
        %6070 = vmatprep.subr.bf16.mxu0 %v5481
        %6071 = vmatpush2.bf16.msra.mxu0 %v5480
        %6072 = vmatprep.mubr.bf16.mxu0 %v4164
        %6073 = vmatmul.mubr.bf16.gmra.mxu0 %v4163
        %v6074 = vpop.f32.mrf.mxu0
        %v6075 = vadd.f32 %v4469, %v6074
        %v6076 = vpop.f32.mrf.mxu0
        %v6077 = vadd.f32 %v4473, %v6076
        %v6078 = vpop.f32.mrf.mxu0
        %v6079 = vpop.f32.mrf.mxu0
        %6080 = vdwg.mxu0
        %6081 = vmatprep.subr.bf16.mxu0 %v5661
        %6082 = vmatpush1.bf16.msra.mxu0 %v5660
        %6083 = vmatprep.subr.bf16.mxu0 %v5649
        %6084 = vmatpush1.bf16.msra.mxu0 %v5648
        %6085 = vmatprep.subr.bf16.mxu0 %v5637
        %6086 = vmatpush1.bf16.msra.mxu0 %v5636
        %6087 = vmatprep.subr.bf16.mxu0 %v5625
        %6088 = vmatpush1.bf16.msra.mxu0 %v5624
        %6089 = vmatprep.subr.bf16.mxu0 %v5613
        %6090 = vmatpush1.bf16.msra.mxu0 %v5612
        %6091 = vmatprep.subr.bf16.mxu0 %v5601
        %6092 = vmatpush1.bf16.msra.mxu0 %v5600
        %6093 = vmatprep.subr.bf16.mxu0 %v5589
        %6094 = vmatpush1.bf16.msra.mxu0 %v5588
        %6095 = vmatprep.subr.bf16.mxu0 %v5577
        %6096 = vmatpush1.bf16.msra.mxu0 %v5576
        %6097 = vmatprep.subr.bf16.mxu0 0
        %6098 = vmatpush2.bf16.msra.mxu0 0
        %6099 = vmatprep.subr.bf16.mxu0 0
        %6100 = vmatpush2.bf16.msra.mxu0 0
        %6101 = vmatprep.subr.bf16.mxu0 0
        %6102 = vmatpush2.bf16.msra.mxu0 0
        %6103 = vmatprep.subr.bf16.mxu0 0
        %6104 = vmatpush2.bf16.msra.mxu0 0
        %6105 = vmatprep.subr.bf16.mxu0 0
        %6106 = vmatpush2.bf16.msra.mxu0 0
        %6107 = vmatprep.subr.bf16.mxu0 0
        %6108 = vmatpush2.bf16.msra.mxu0 0
        %6109 = vmatprep.subr.bf16.mxu0 0
        %6110 = vmatpush2.bf16.msra.mxu0 0
        %6111 = vmatprep.subr.bf16.mxu0 0
        %6112 = vmatpush2.bf16.msra.mxu0 0
        %6113 = vmatprep.mubr.bf16.mxu0 0
        %6114 = vmatmul.mubr.bf16.gmra.mxu0 %v4165
        %v6115 = vpop.f32.mrf.mxu0
        %v6116 = vadd.f32 %v6075, %v6115
        %v6117 = vpop.f32.mrf.mxu0
        %v6118 = vadd.f32 %v6077, %v6117
        %v6119 = vpop.f32.mrf.mxu0
        %v6120 = vpop.f32.mrf.mxu0
        %6121 = vdwg.mxu0
        %6122 = vmatprep.subr.bf16.mxu0 %v5471
        %6123 = vmatpush1.bf16.msra.mxu0 %v5470
        %6124 = vmatprep.subr.bf16.mxu0 %v5459
        %6125 = vmatpush1.bf16.msra.mxu0 %v5458
        %6126 = vmatprep.subr.bf16.mxu0 %v5447
        %6127 = vmatpush1.bf16.msra.mxu0 %v5446
        %6128 = vmatprep.subr.bf16.mxu0 %v5435
        %6129 = vmatpush1.bf16.msra.mxu0 %v5434
        %6130 = vmatprep.subr.bf16.mxu0 %v5423
        %6131 = vmatpush1.bf16.msra.mxu0 %v5422
        %6132 = vmatprep.subr.bf16.mxu0 %v5411
        %6133 = vmatpush1.bf16.msra.mxu0 %v5410
        %6134 = vmatprep.subr.bf16.mxu0 %v5399
        %6135 = vmatpush1.bf16.msra.mxu0 %v5398
        %6136 = vmatprep.subr.bf16.mxu0 %v5387
        %6137 = vmatpush1.bf16.msra.mxu0 %v5386
        %6138 = vmatprep.subr.bf16.mxu0 %v5567
        %6139 = vmatpush2.bf16.msra.mxu0 %v5566
        %6140 = vmatprep.subr.bf16.mxu0 %v5555
        %6141 = vmatpush2.bf16.msra.mxu0 %v5554
        %6142 = vmatprep.subr.bf16.mxu0 %v5543
        %6143 = vmatpush2.bf16.msra.mxu0 %v5542
        %6144 = vmatprep.subr.bf16.mxu0 %v5531
        %6145 = vmatpush2.bf16.msra.mxu0 %v5530
        %6146 = vmatprep.subr.bf16.mxu0 %v5519
        %6147 = vmatpush2.bf16.msra.mxu0 %v5518
        %6148 = vmatprep.subr.bf16.mxu0 %v5507
        %6149 = vmatpush2.bf16.msra.mxu0 %v5506
        %6150 = vmatprep.subr.bf16.mxu0 %v5495
        %6151 = vmatpush2.bf16.msra.mxu0 %v5494
        %6152 = vmatprep.subr.bf16.mxu0 %v5483
        %6153 = vmatpush2.bf16.msra.mxu0 %v5482
        %6154 = vmatprep.mubr.bf16.mxu0 %v4164
        %6155 = vmatmul.mubr.bf16.gmra.mxu0 %v4163
        %v6156 = vpop.f32.mrf.mxu0
        %v6157 = vadd.f32 %v4477, %v6156
        %v6158 = vpop.f32.mrf.mxu0
        %v6159 = vadd.f32 %v4481, %v6158
        %v6160 = vpop.f32.mrf.mxu0
        %v6161 = vpop.f32.mrf.mxu0
        %6162 = vdwg.mxu0
        %6163 = vmatprep.subr.bf16.mxu0 %v5663
        %6164 = vmatpush1.bf16.msra.mxu0 %v5662
        %6165 = vmatprep.subr.bf16.mxu0 %v5651
        %6166 = vmatpush1.bf16.msra.mxu0 %v5650
        %6167 = vmatprep.subr.bf16.mxu0 %v5639
        %6168 = vmatpush1.bf16.msra.mxu0 %v5638
        %6169 = vmatprep.subr.bf16.mxu0 %v5627
        %6170 = vmatpush1.bf16.msra.mxu0 %v5626
        %6171 = vmatprep.subr.bf16.mxu0 %v5615
        %6172 = vmatpush1.bf16.msra.mxu0 %v5614
        %6173 = vmatprep.subr.bf16.mxu0 %v5603
        %6174 = vmatpush1.bf16.msra.mxu0 %v5602
        %6175 = vmatprep.subr.bf16.mxu0 %v5591
        %6176 = vmatpush1.bf16.msra.mxu0 %v5590
        %6177 = vmatprep.subr.bf16.mxu0 %v5579
        %6178 = vmatpush1.bf16.msra.mxu0 %v5578
        %6179 = vmatprep.subr.bf16.mxu0 0
        %6180 = vmatpush2.bf16.msra.mxu0 0
        %6181 = vmatprep.subr.bf16.mxu0 0
        %6182 = vmatpush2.bf16.msra.mxu0 0
        %6183 = vmatprep.subr.bf16.mxu0 0
        %6184 = vmatpush2.bf16.msra.mxu0 0
        %6185 = vmatprep.subr.bf16.mxu0 0
        %6186 = vmatpush2.bf16.msra.mxu0 0
        %6187 = vmatprep.subr.bf16.mxu0 0
        %6188 = vmatpush2.bf16.msra.mxu0 0
        %6189 = vmatprep.subr.bf16.mxu0 0
        %6190 = vmatpush2.bf16.msra.mxu0 0
        %6191 = vmatprep.subr.bf16.mxu0 0
        %6192 = vmatpush2.bf16.msra.mxu0 0
        %6193 = vmatprep.subr.bf16.mxu0 0
        %6194 = vmatpush2.bf16.msra.mxu0 0
        %6195 = vmatprep.mubr.bf16.mxu0 0
        %6196 = vmatmul.mubr.bf16.gmra.mxu0 %v4165
        %v6197 = vpop.f32.mrf.mxu0
        %v6198 = vadd.f32 %v6157, %v6197
        %v6199 = vpop.f32.mrf.mxu0
        %v6200 = vadd.f32 %v6159, %v6199
        %v6201 = vpop.f32.mrf.mxu0
        %v6202 = vpop.f32.mrf.mxu0
        %6203 = vdwg.mxu0
        %6204 = vmatprep.subr.bf16.mxu0 %v5473
        %6205 = vmatpush1.bf16.msra.mxu0 %v5472
        %6206 = vmatprep.subr.bf16.mxu0 %v5461
        %6207 = vmatpush1.bf16.msra.mxu0 %v5460
        %6208 = vmatprep.subr.bf16.mxu0 %v5449
        %6209 = vmatpush1.bf16.msra.mxu0 %v5448
        %6210 = vmatprep.subr.bf16.mxu0 %v5437
        %6211 = vmatpush1.bf16.msra.mxu0 %v5436
        %6212 = vmatprep.subr.bf16.mxu0 %v5425
        %6213 = vmatpush1.bf16.msra.mxu0 %v5424
        %6214 = vmatprep.subr.bf16.mxu0 %v5413
        %6215 = vmatpush1.bf16.msra.mxu0 %v5412
        %6216 = vmatprep.subr.bf16.mxu0 %v5401
        %6217 = vmatpush1.bf16.msra.mxu0 %v5400
        %6218 = vmatprep.subr.bf16.mxu0 %v5389
        %6219 = vmatpush1.bf16.msra.mxu0 %v5388
        %6220 = vmatprep.subr.bf16.mxu0 %v5569
        %6221 = vmatpush2.bf16.msra.mxu0 %v5568
        %6222 = vmatprep.subr.bf16.mxu0 %v5557
        %6223 = vmatpush2.bf16.msra.mxu0 %v5556
        %6224 = vmatprep.subr.bf16.mxu0 %v5545
        %6225 = vmatpush2.bf16.msra.mxu0 %v5544
        %6226 = vmatprep.subr.bf16.mxu0 %v5533
        %6227 = vmatpush2.bf16.msra.mxu0 %v5532
        %6228 = vmatprep.subr.bf16.mxu0 %v5521
        %6229 = vmatpush2.bf16.msra.mxu0 %v5520
        %6230 = vmatprep.subr.bf16.mxu0 %v5509
        %6231 = vmatpush2.bf16.msra.mxu0 %v5508
        %6232 = vmatprep.subr.bf16.mxu0 %v5497
        %6233 = vmatpush2.bf16.msra.mxu0 %v5496
        %6234 = vmatprep.subr.bf16.mxu0 %v5485
        %6235 = vmatpush2.bf16.msra.mxu0 %v5484
        %6236 = vmatprep.mubr.bf16.mxu0 %v4164
        %6237 = vmatmul.mubr.bf16.gmra.mxu0 %v4163
        %v6238 = vpop.f32.mrf.mxu0
        %v6239 = vadd.f32 %v4485, %v6238
        %v6240 = vpop.f32.mrf.mxu0
        %v6241 = vadd.f32 %v4489, %v6240
        %v6242 = vpop.f32.mrf.mxu0
        %v6243 = vpop.f32.mrf.mxu0
        %6244 = vdwg.mxu0
        %6245 = vmatprep.subr.bf16.mxu0 %v5665
        %6246 = vmatpush1.bf16.msra.mxu0 %v5664
        %6247 = vmatprep.subr.bf16.mxu0 %v5653
        %6248 = vmatpush1.bf16.msra.mxu0 %v5652
        %6249 = vmatprep.subr.bf16.mxu0 %v5641
        %6250 = vmatpush1.bf16.msra.mxu0 %v5640
        %6251 = vmatprep.subr.bf16.mxu0 %v5629
        %6252 = vmatpush1.bf16.msra.mxu0 %v5628
        %6253 = vmatprep.subr.bf16.mxu0 %v5617
        %6254 = vmatpush1.bf16.msra.mxu0 %v5616
        %6255 = vmatprep.subr.bf16.mxu0 %v5605
        %6256 = vmatpush1.bf16.msra.mxu0 %v5604
        %6257 = vmatprep.subr.bf16.mxu0 %v5593
        %6258 = vmatpush1.bf16.msra.mxu0 %v5592
        %6259 = vmatprep.subr.bf16.mxu0 %v5581
        %6260 = vmatpush1.bf16.msra.mxu0 %v5580
        %6261 = vmatprep.subr.bf16.mxu0 0
        %6262 = vmatpush2.bf16.msra.mxu0 0
        %6263 = vmatprep.subr.bf16.mxu0 0
        %6264 = vmatpush2.bf16.msra.mxu0 0
        %6265 = vmatprep.subr.bf16.mxu0 0
        %6266 = vmatpush2.bf16.msra.mxu0 0
        %6267 = vmatprep.subr.bf16.mxu0 0
        %6268 = vmatpush2.bf16.msra.mxu0 0
        %6269 = vmatprep.subr.bf16.mxu0 0
        %6270 = vmatpush2.bf16.msra.mxu0 0
        %6271 = vmatprep.subr.bf16.mxu0 0
        %6272 = vmatpush2.bf16.msra.mxu0 0
        %6273 = vmatprep.subr.bf16.mxu0 0
        %6274 = vmatpush2.bf16.msra.mxu0 0
        %6275 = vmatprep.subr.bf16.mxu0 0
        %6276 = vmatpush2.bf16.msra.mxu0 0
        %6277 = vmatprep.mubr.bf16.mxu0 0
        %6278 = vmatmul.mubr.bf16.gmra.mxu0 %v4165
        %v6279 = vpop.f32.mrf.mxu0
        %v6280 = vadd.f32 %v6239, %v6279
        %v6281 = vpop.f32.mrf.mxu0
        %v6282 = vadd.f32 %v6241, %v6281
        %v6283 = vpop.f32.mrf.mxu0
        %v6284 = vpop.f32.mrf.mxu0
        %6285 = vdwg.mxu0
        %6286 = vmatprep.subr.bf16.mxu0 %v5475
        %6287 = vmatpush1.bf16.msra.mxu0 %v5474
        %6288 = vmatprep.subr.bf16.mxu0 %v5463
        %6289 = vmatpush1.bf16.msra.mxu0 %v5462
        %6290 = vmatprep.subr.bf16.mxu0 %v5451
        %6291 = vmatpush1.bf16.msra.mxu0 %v5450
        %6292 = vmatprep.subr.bf16.mxu0 %v5439
        %6293 = vmatpush1.bf16.msra.mxu0 %v5438
        %6294 = vmatprep.subr.bf16.mxu0 %v5427
        %6295 = vmatpush1.bf16.msra.mxu0 %v5426
        %6296 = vmatprep.subr.bf16.mxu0 %v5415
        %6297 = vmatpush1.bf16.msra.mxu0 %v5414
        %6298 = vmatprep.subr.bf16.mxu0 %v5403
        %6299 = vmatpush1.bf16.msra.mxu0 %v5402
        %6300 = vmatprep.subr.bf16.mxu0 %v5391
        %6301 = vmatpush1.bf16.msra.mxu0 %v5390
        %6302 = vmatprep.subr.bf16.mxu0 %v5571
        %6303 = vmatpush2.bf16.msra.mxu0 %v5570
        %6304 = vmatprep.subr.bf16.mxu0 %v5559
        %6305 = vmatpush2.bf16.msra.mxu0 %v5558
        %6306 = vmatprep.subr.bf16.mxu0 %v5547
        %6307 = vmatpush2.bf16.msra.mxu0 %v5546
        %6308 = vmatprep.subr.bf16.mxu0 %v5535
        %6309 = vmatpush2.bf16.msra.mxu0 %v5534
        %6310 = vmatprep.subr.bf16.mxu0 %v5523
        %6311 = vmatpush2.bf16.msra.mxu0 %v5522
        %6312 = vmatprep.subr.bf16.mxu0 %v5511
        %6313 = vmatpush2.bf16.msra.mxu0 %v5510
        %6314 = vmatprep.subr.bf16.mxu0 %v5499
        %6315 = vmatpush2.bf16.msra.mxu0 %v5498
        %6316 = vmatprep.subr.bf16.mxu0 %v5487
        %6317 = vmatpush2.bf16.msra.mxu0 %v5486
        %6318 = vmatprep.mubr.bf16.mxu0 %v4164
        %6319 = vmatmul.mubr.bf16.gmra.mxu0 %v4163
        %v6320 = vpop.f32.mrf.mxu0
        %v6321 = vadd.f32 %v4493, %v6320
        %v6322 = vpop.f32.mrf.mxu0
        %v6323 = vadd.f32 %v4497, %v6322
        %v6324 = vpop.f32.mrf.mxu0
        %v6325 = vpop.f32.mrf.mxu0
        %6326 = vdwg.mxu0
        %6327 = vmatprep.subr.bf16.mxu0 %v5667
        %6328 = vmatpush1.bf16.msra.mxu0 %v5666
        %6329 = vmatprep.subr.bf16.mxu0 %v5655
        %6330 = vmatpush1.bf16.msra.mxu0 %v5654
        %6331 = vmatprep.subr.bf16.mxu0 %v5643
        %6332 = vmatpush1.bf16.msra.mxu0 %v5642
        %6333 = vmatprep.subr.bf16.mxu0 %v5631
        %6334 = vmatpush1.bf16.msra.mxu0 %v5630
        %6335 = vmatprep.subr.bf16.mxu0 %v5619
        %6336 = vmatpush1.bf16.msra.mxu0 %v5618
        %6337 = vmatprep.subr.bf16.mxu0 %v5607
        %6338 = vmatpush1.bf16.msra.mxu0 %v5606
        %6339 = vmatprep.subr.bf16.mxu0 %v5595
        %6340 = vmatpush1.bf16.msra.mxu0 %v5594
        %6341 = vmatprep.subr.bf16.mxu0 %v5583
        %6342 = vmatpush1.bf16.msra.mxu0 %v5582
        %6343 = vmatprep.subr.bf16.mxu0 0
        %6344 = vmatpush2.bf16.msra.mxu0 0
        %6345 = vmatprep.subr.bf16.mxu0 0
        %6346 = vmatpush2.bf16.msra.mxu0 0
        %6347 = vmatprep.subr.bf16.mxu0 0
        %6348 = vmatpush2.bf16.msra.mxu0 0
        %6349 = vmatprep.subr.bf16.mxu0 0
        %6350 = vmatpush2.bf16.msra.mxu0 0
        %6351 = vmatprep.subr.bf16.mxu0 0
        %6352 = vmatpush2.bf16.msra.mxu0 0
        %6353 = vmatprep.subr.bf16.mxu0 0
        %6354 = vmatpush2.bf16.msra.mxu0 0
        %6355 = vmatprep.subr.bf16.mxu0 0
        %6356 = vmatpush2.bf16.msra.mxu0 0
        %6357 = vmatprep.subr.bf16.mxu0 0
        %6358 = vmatpush2.bf16.msra.mxu0 0
        %6359 = vmatprep.mubr.bf16.mxu0 0
        %6360 = vmatmul.mubr.bf16.gmra.mxu0 %v4165
        %v6361 = vpop.f32.mrf.mxu0
        %v6362 = vadd.f32 %v6321, %v6361
        %v6363 = vpop.f32.mrf.mxu0
        %v6364 = vadd.f32 %v6323, %v6363
        %v6365 = vpop.f32.mrf.mxu0
        %v6366 = vpop.f32.mrf.mxu0
        %6367 = vdwg.mxu0
        %6368 = vmatprep.subr.bf16.mxu0 %v5477
        %6369 = vmatpush1.bf16.msra.mxu0 %v5476
        %6370 = vmatprep.subr.bf16.mxu0 %v5465
        %6371 = vmatpush1.bf16.msra.mxu0 %v5464
        %6372 = vmatprep.subr.bf16.mxu0 %v5453
        %6373 = vmatpush1.bf16.msra.mxu0 %v5452
        %6374 = vmatprep.subr.bf16.mxu0 %v5441
        %6375 = vmatpush1.bf16.msra.mxu0 %v5440
        %6376 = vmatprep.subr.bf16.mxu0 %v5429
        %6377 = vmatpush1.bf16.msra.mxu0 %v5428
        %6378 = vmatprep.subr.bf16.mxu0 %v5417
        %6379 = vmatpush1.bf16.msra.mxu0 %v5416
        %6380 = vmatprep.subr.bf16.mxu0 %v5405
        %6381 = vmatpush1.bf16.msra.mxu0 %v5404
        %6382 = vmatprep.subr.bf16.mxu0 %v5393
        %6383 = vmatpush1.bf16.msra.mxu0 %v5392
        %6384 = vmatprep.subr.bf16.mxu0 %v5573
        %6385 = vmatpush2.bf16.msra.mxu0 %v5572
        %6386 = vmatprep.subr.bf16.mxu0 %v5561
        %6387 = vmatpush2.bf16.msra.mxu0 %v5560
        %6388 = vmatprep.subr.bf16.mxu0 %v5549
        %6389 = vmatpush2.bf16.msra.mxu0 %v5548
        %6390 = vmatprep.subr.bf16.mxu0 %v5537
        %6391 = vmatpush2.bf16.msra.mxu0 %v5536
        %6392 = vmatprep.subr.bf16.mxu0 %v5525
        %6393 = vmatpush2.bf16.msra.mxu0 %v5524
        %6394 = vmatprep.subr.bf16.mxu0 %v5513
        %6395 = vmatpush2.bf16.msra.mxu0 %v5512
        %6396 = vmatprep.subr.bf16.mxu0 %v5501
        %6397 = vmatpush2.bf16.msra.mxu0 %v5500
        %6398 = vmatprep.subr.bf16.mxu0 %v5489
        %6399 = vmatpush2.bf16.msra.mxu0 %v5488
        %6400 = vmatprep.mubr.bf16.mxu0 %v4164
        %6401 = vmatmul.mubr.bf16.gmra.mxu0 %v4163
        %v6402 = vpop.f32.mrf.mxu0
        %v6403 = vadd.f32 %v4501, %v6402
        %v6404 = vpop.f32.mrf.mxu0
        %v6405 = vadd.f32 %v4505, %v6404
        %v6406 = vpop.f32.mrf.mxu0
        %v6407 = vpop.f32.mrf.mxu0
        %6408 = vdwg.mxu0
        %6409 = vmatprep.subr.bf16.mxu0 %v5669
        %6410 = vmatpush1.bf16.msra.mxu0 %v5668
        %6411 = vmatprep.subr.bf16.mxu0 %v5657
        %6412 = vmatpush1.bf16.msra.mxu0 %v5656
        %6413 = vmatprep.subr.bf16.mxu0 %v5645
        %6414 = vmatpush1.bf16.msra.mxu0 %v5644
        %6415 = vmatprep.subr.bf16.mxu0 %v5633
        %6416 = vmatpush1.bf16.msra.mxu0 %v5632
        %6417 = vmatprep.subr.bf16.mxu0 %v5621
        %6418 = vmatpush1.bf16.msra.mxu0 %v5620
        %6419 = vmatprep.subr.bf16.mxu0 %v5609
        %6420 = vmatpush1.bf16.msra.mxu0 %v5608
        %6421 = vmatprep.subr.bf16.mxu0 %v5597
        %6422 = vmatpush1.bf16.msra.mxu0 %v5596
        %6423 = vmatprep.subr.bf16.mxu0 %v5585
        %6424 = vmatpush1.bf16.msra.mxu0 %v5584
        %6425 = vmatprep.subr.bf16.mxu0 0
        %6426 = vmatpush2.bf16.msra.mxu0 0
        %6427 = vmatprep.subr.bf16.mxu0 0
        %6428 = vmatpush2.bf16.msra.mxu0 0
        %6429 = vmatprep.subr.bf16.mxu0 0
        %6430 = vmatpush2.bf16.msra.mxu0 0
        %6431 = vmatprep.subr.bf16.mxu0 0
        %6432 = vmatpush2.bf16.msra.mxu0 0
        %6433 = vmatprep.subr.bf16.mxu0 0
        %6434 = vmatpush2.bf16.msra.mxu0 0
        %6435 = vmatprep.subr.bf16.mxu0 0
        %6436 = vmatpush2.bf16.msra.mxu0 0
        %6437 = vmatprep.subr.bf16.mxu0 0
        %6438 = vmatpush2.bf16.msra.mxu0 0
        %6439 = vmatprep.subr.bf16.mxu0 0
        %6440 = vmatpush2.bf16.msra.mxu0 0
        %6441 = vmatprep.mubr.bf16.mxu0 0
        %6442 = vmatmul.mubr.bf16.gmra.mxu0 %v4165
        %v6443 = vpop.f32.mrf.mxu0
        %v6444 = vadd.f32 %v6403, %v6443
        %v6445 = vpop.f32.mrf.mxu0
        %v6446 = vadd.f32 %v6405, %v6445
        %v6447 = vpop.f32.mrf.mxu0
        %v6448 = vpop.f32.mrf.mxu0
        %6449 = vdwg.mxu0
        %v6450 = vmax.f32 %v6034, 0.0
        %v6451 = vmax.f32 %v6036, 0.0
        %v6452 = vmax.f32 %v6116, 0.0
        %v6453 = vmax.f32 %v6118, 0.0
        %v6454 = vmax.f32 %v6198, 0.0
        %v6455 = vmax.f32 %v6200, 0.0
        %v6456 = vmax.f32 %v6280, 0.0
        %v6457 = vmax.f32 %v6282, 0.0
        %v6458 = vmax.f32 %v6362, 0.0
        %v6459 = vmax.f32 %v6364, 0.0
        %v6460 = vmax.f32 %v6444, 0.0
        %v6461 = vmax.f32 %v6446, 0.0
        %v6462 = vpack.c.bf16 %v6450, %v6450
        %v6463 = vpack.c.bf16 %v6451, %v6451
        %v6464 = vpack.c.bf16 %v6452, %v6452
        %v6465 = vpack.c.bf16 %v6453, %v6453
        %v6466 = vpack.c.bf16 %v6454, %v6454
        %v6467 = vpack.c.bf16 %v6455, %v6455
        %v6468 = vpack.c.bf16 %v6456, %v6456
        %v6469 = vpack.c.bf16 %v6457, %v6457
        %v6470 = vpack.c.bf16 %v6458, %v6458
        %v6471 = vpack.c.bf16 %v6459, %v6459
        %v6472 = vpack.c.bf16 %v6460, %v6460
        %v6473 = vpack.c.bf16 %v6461, %v6461
        %v6474 = vld [vmem:[#allocation19] sm:$0xff]
        %v6475 = vld [vmem:[#allocation19 + $0x8] sm:$0xf]
        %v6476 = vld [vmem:[#allocation19 + $0xc] sm:$0xff]
        %v6477 = vld [vmem:[#allocation19 + $0x14] sm:$0xf]
        %v6478 = vld [vmem:[#allocation19 + $0x18] sm:$0xff]
        %v6479 = vld [vmem:[#allocation19 + $0x20] sm:$0xf]
        %v6480 = vld [vmem:[#allocation19 + $0x24] sm:$0xff]
        %v6481 = vld [vmem:[#allocation19 + $0x2c] sm:$0xf]
        %v6482 = vld [vmem:[#allocation19 + $0x30] sm:$0xff]
        %v6483 = vld [vmem:[#allocation19 + $0x38] sm:$0xf]
        %v6484 = vld [vmem:[#allocation19 + $0x3c] sm:$0xff]
        %v6485 = vld [vmem:[#allocation19 + $0x44] sm:$0xf]
        %v6486 = vld [vmem:[#allocation19 + $0x48] sm:$0xff]
        %v6487 = vld [vmem:[#allocation19 + $0x50] sm:$0xf]
        %v6488 = vld [vmem:[#allocation19 + $0x54] sm:$0xff]
        %v6489 = vld [vmem:[#allocation19 + $0x5c] sm:$0xf]
        %v6490 = vld [vmem:[#allocation19 + $0x60] sm:$0xff]
        %v6491 = vld [vmem:[#allocation19 + $0x68] sm:$0xf]
        %v6492 = vld [vmem:[#allocation19 + $0x6c] sm:$0xff]
        %v6493 = vld [vmem:[#allocation19 + $0x74] sm:$0xf]
        %v6494 = vld [vmem:[#allocation19 + $0x78] sm:$0xff]
        %v6495 = vld [vmem:[#allocation19 + $0x80] sm:$0xf]
        %v6496 = vld [vmem:[#allocation19 + $0x84] sm:$0xff]
        %v6497 = vld [vmem:[#allocation19 + $0x8c] sm:$0xf]
        %v6498 = vld [vmem:[#allocation19 + $0x90] sm:$0xff]
        %v6499 = vld [vmem:[#allocation19 + $0x98] sm:$0xf]
        %v6500 = vld [vmem:[#allocation19 + $0x9c] sm:$0xff]
        %v6501 = vld [vmem:[#allocation19 + $0xa4] sm:$0xf]
        %v6502 = vld [vmem:[#allocation19 + $0xa8] sm:$0xff]
        %v6503 = vld [vmem:[#allocation19 + $0xb0] sm:$0xf]
        %v6504 = vld [vmem:[#allocation19 + $0xb4] sm:$0xff]
        %v6505 = vld [vmem:[#allocation19 + $0xbc] sm:$0xf]
        %v6506 = vld [vmem:[#allocation19 + $0xc0] sm:$0xff]
        %v6507 = vld [vmem:[#allocation19 + $0xc8] sm:$0xf]
        %v6508 = vld [vmem:[#allocation19 + $0xcc] sm:$0xff]
        %v6509 = vld [vmem:[#allocation19 + $0xd4] sm:$0xf]
        %v6510 = vld [vmem:[#allocation19 + $0xd8] sm:$0xff]
        %v6511 = vld [vmem:[#allocation19 + $0xe0] sm:$0xf]
        %v6512 = vld [vmem:[#allocation19 + $0xe4] sm:$0xff]
        %v6513 = vld [vmem:[#allocation19 + $0xec] sm:$0xf]
        %v6514 = vld [vmem:[#allocation19 + $0xf0] sm:$0xff]
        %v6515 = vld [vmem:[#allocation19 + $0xf8] sm:$0xf]
        %v6516 = vld [vmem:[#allocation19 + $0xfc] sm:$0xff]
        %v6517 = vld [vmem:[#allocation19 + $0x104] sm:$0xf]
        %v6518 = vld [vmem:[#allocation19 + $0x108] sm:$0xff]
        %v6519 = vld [vmem:[#allocation19 + $0x110] sm:$0xf]
        %v6520 = vld [vmem:[#allocation19 + $0x114] sm:$0xff]
        %v6521 = vld [vmem:[#allocation19 + $0x11c] sm:$0xf]
        %v6522 = vld [vmem:[#allocation19 + $0x120] sm:$0xff]
        %v6523 = vld [vmem:[#allocation19 + $0x128] sm:$0xf]
        %v6524 = vld [vmem:[#allocation19 + $0x12c] sm:$0xff]
        %v6525 = vld [vmem:[#allocation19 + $0x134] sm:$0xf]
        %v6526 = vld [vmem:[#allocation19 + $0x138] sm:$0xff]
        %v6527 = vld [vmem:[#allocation19 + $0x140] sm:$0xf]
        %v6528 = vld [vmem:[#allocation19 + $0x144] sm:$0xff]
        %v6529 = vld [vmem:[#allocation19 + $0x14c] sm:$0xf]
        %v6530 = vld [vmem:[#allocation19 + $0x150] sm:$0xff]
        %v6531 = vld [vmem:[#allocation19 + $0x158] sm:$0xf]
        %v6532 = vld [vmem:[#allocation19 + $0x15c] sm:$0xff]
        %v6533 = vld [vmem:[#allocation19 + $0x164] sm:$0xf]
        %v6534 = vld [vmem:[#allocation19 + $0x168] sm:$0xff]
        %v6535 = vld [vmem:[#allocation19 + $0x170] sm:$0xf]
        %v6536 = vld [vmem:[#allocation19 + $0x174] sm:$0xff]
        %v6537 = vld [vmem:[#allocation19 + $0x17c] sm:$0xf]
        %v6538 = vld [vmem:[#allocation19 + $0x180] sm:$0xff]
        %v6539 = vld [vmem:[#allocation19 + $0x188] sm:$0xf]
        %v6540 = vld [vmem:[#allocation19 + $0x18c] sm:$0xff]
        %v6541 = vld [vmem:[#allocation19 + $0x194] sm:$0xf]
        %v6542 = vld [vmem:[#allocation19 + $0x198] sm:$0xff]
        %v6543 = vld [vmem:[#allocation19 + $0x1a0] sm:$0xf]
        %v6544 = vld [vmem:[#allocation19 + $0x1a4] sm:$0xff]
        %v6545 = vld [vmem:[#allocation19 + $0x1ac] sm:$0xf]
        %v6546 = vld [vmem:[#allocation19 + $0x1b0] sm:$0xff]
        %v6547 = vld [vmem:[#allocation19 + $0x1b8] sm:$0xf]
        %v6548 = vld [vmem:[#allocation19 + $0x1bc] sm:$0xff]
        %v6549 = vld [vmem:[#allocation19 + $0x1c4] sm:$0xf]
        %v6550 = vld [vmem:[#allocation19 + $0x1c8] sm:$0xff]
        %v6551 = vld [vmem:[#allocation19 + $0x1d0] sm:$0xf]
        %v6552 = vld [vmem:[#allocation19 + $0x1d4] sm:$0xff]
        %v6553 = vld [vmem:[#allocation19 + $0x1dc] sm:$0xf]
        %v6554 = vld [vmem:[#allocation19 + $0x1e0] sm:$0xff]
        %v6555 = vld [vmem:[#allocation19 + $0x1e8] sm:$0xf]
        %v6556 = vld [vmem:[#allocation19 + $0x1ec] sm:$0xff]
        %v6557 = vld [vmem:[#allocation19 + $0x1f4] sm:$0xf]
        %v6558 = vld [vmem:[#allocation19 + $0x1f8] sm:$0xff]
        %v6559 = vld [vmem:[#allocation19 + $0x200] sm:$0xf]
        %v6560 = vld [vmem:[#allocation19 + $0x204] sm:$0xff]
        %v6561 = vld [vmem:[#allocation19 + $0x20c] sm:$0xf]
        %v6562 = vld [vmem:[#allocation19 + $0x210] sm:$0xff]
        %v6563 = vld [vmem:[#allocation19 + $0x218] sm:$0xf]
        %v6564 = vld [vmem:[#allocation19 + $0x21c] sm:$0xff]
        %v6565 = vld [vmem:[#allocation19 + $0x224] sm:$0xf]
        %v6566 = vld [vmem:[#allocation19 + $0x228] sm:$0xff]
        %v6567 = vld [vmem:[#allocation19 + $0x230] sm:$0xf]
        %v6568 = vld [vmem:[#allocation19 + $0x234] sm:$0xff]
        %v6569 = vld [vmem:[#allocation19 + $0x23c] sm:$0xf]
        %v6570 = vld [vmem:[#allocation19 + $0x240] sm:$0xff]
        %v6571 = vld [vmem:[#allocation19 + $0x248] sm:$0xf]
        %v6572 = vld [vmem:[#allocation19 + $0x24c] sm:$0xff]
        %v6573 = vld [vmem:[#allocation19 + $0x254] sm:$0xf]
        %v6574 = vld [vmem:[#allocation19 + $0x258] sm:$0xff]
        %v6575 = vld [vmem:[#allocation19 + $0x260] sm:$0xf]
        %v6576 = vld [vmem:[#allocation19 + $0x264] sm:$0xff]
        %v6577 = vld [vmem:[#allocation19 + $0x26c] sm:$0xf]
        %v6578 = vld [vmem:[#allocation19 + $0x270] sm:$0xff]
        %v6579 = vld [vmem:[#allocation19 + $0x278] sm:$0xf]
        %v6580 = vld [vmem:[#allocation19 + $0x27c] sm:$0xff]
        %v6581 = vld [vmem:[#allocation19 + $0x284] sm:$0xf]
        %v6582 = vld [vmem:[#allocation19 + $0x288] sm:$0xff]
        %v6583 = vld [vmem:[#allocation19 + $0x290] sm:$0xf]
        %v6584 = vld [vmem:[#allocation19 + $0x294] sm:$0xff]
        %v6585 = vld [vmem:[#allocation19 + $0x29c] sm:$0xf]
        %v6586 = vld [vmem:[#allocation19 + $0x2a0] sm:$0xff]
        %v6587 = vld [vmem:[#allocation19 + $0x2a8] sm:$0xf]
        %v6588 = vld [vmem:[#allocation19 + $0x2ac] sm:$0xff]
        %v6589 = vld [vmem:[#allocation19 + $0x2b4] sm:$0xf]
        %v6590 = vld [vmem:[#allocation19 + $0x2b8] sm:$0xff]
        %v6591 = vld [vmem:[#allocation19 + $0x2c0] sm:$0xf]
        %v6592 = vld [vmem:[#allocation19 + $0x2c4] sm:$0xff]
        %v6593 = vld [vmem:[#allocation19 + $0x2cc] sm:$0xf]
        %v6594 = vld [vmem:[#allocation19 + $0x2d0] sm:$0xff]
        %v6595 = vld [vmem:[#allocation19 + $0x2d8] sm:$0xf]
        %v6596 = vld [vmem:[#allocation19 + $0x2dc] sm:$0xff]
        %v6597 = vld [vmem:[#allocation19 + $0x2e4] sm:$0xf]
        %v6598 = vld [vmem:[#allocation19 + $0x2e8] sm:$0xff]
        %v6599 = vld [vmem:[#allocation19 + $0x2f0] sm:$0xf]
        %v6600 = vld [vmem:[#allocation19 + $0x2f4] sm:$0xff]
        %v6601 = vld [vmem:[#allocation19 + $0x2fc] sm:$0xf]
        %v6602 = vld [vmem:[#allocation19 + $0x300] sm:$0xff]
        %v6603 = vld [vmem:[#allocation19 + $0x308] sm:$0xf]
        %v6604 = vld [vmem:[#allocation19 + $0x30c] sm:$0xff]
        %v6605 = vld [vmem:[#allocation19 + $0x314] sm:$0xf]
        %v6606 = vld [vmem:[#allocation19 + $0x318] sm:$0xff]
        %v6607 = vld [vmem:[#allocation19 + $0x320] sm:$0xf]
        %v6608 = vld [vmem:[#allocation19 + $0x324] sm:$0xff]
        %v6609 = vld [vmem:[#allocation19 + $0x32c] sm:$0xf]
        %v6610 = vld [vmem:[#allocation19 + $0x330] sm:$0xff]
        %v6611 = vld [vmem:[#allocation19 + $0x338] sm:$0xf]
        %v6612 = vld [vmem:[#allocation19 + $0x33c] sm:$0xff]
        %v6613 = vld [vmem:[#allocation19 + $0x344] sm:$0xf]
        %v6614 = vld [vmem:[#allocation19 + $0x348] sm:$0xff]
        %v6615 = vld [vmem:[#allocation19 + $0x350] sm:$0xf]
        %v6616 = vld [vmem:[#allocation19 + $0x354] sm:$0xff]
        %v6617 = vld [vmem:[#allocation19 + $0x35c] sm:$0xf]
        %v6618 = vld [vmem:[#allocation19 + $0x360] sm:$0xff]
        %v6619 = vld [vmem:[#allocation19 + $0x368] sm:$0xf]
        %v6620 = vld [vmem:[#allocation19 + $0x36c] sm:$0xff]
        %v6621 = vld [vmem:[#allocation19 + $0x374] sm:$0xf]
        %v6622 = vld [vmem:[#allocation19 + $0x378] sm:$0xff]
        %v6623 = vld [vmem:[#allocation19 + $0x380] sm:$0xf]
        %v6624 = vld [vmem:[#allocation19 + $0x384] sm:$0xff]
        %v6625 = vld [vmem:[#allocation19 + $0x38c] sm:$0xf]
        %v6626 = vld [vmem:[#allocation19 + $0x390] sm:$0xff]
        %v6627 = vld [vmem:[#allocation19 + $0x398] sm:$0xf]
        %v6628 = vld [vmem:[#allocation19 + $0x39c] sm:$0xff]
        %v6629 = vld [vmem:[#allocation19 + $0x3a4] sm:$0xf]
        %v6630 = vld [vmem:[#allocation19 + $0x3a8] sm:$0xff]
        %v6631 = vld [vmem:[#allocation19 + $0x3b0] sm:$0xf]
        %v6632 = vld [vmem:[#allocation19 + $0x3b4] sm:$0xff]
        %v6633 = vld [vmem:[#allocation19 + $0x3bc] sm:$0xf]
        %v6634 = vld [vmem:[#allocation19 + $0x3c0] sm:$0xff]
        %v6635 = vld [vmem:[#allocation19 + $0x3c8] sm:$0xf]
        %v6636 = vld [vmem:[#allocation19 + $0x3cc] sm:$0xff]
        %v6637 = vld [vmem:[#allocation19 + $0x3d4] sm:$0xf]
        %v6638 = vld [vmem:[#allocation19 + $0x3d8] sm:$0xff]
        %v6639 = vld [vmem:[#allocation19 + $0x3e0] sm:$0xf]
        %v6640 = vld [vmem:[#allocation19 + $0x3e4] sm:$0xff]
        %v6641 = vld [vmem:[#allocation19 + $0x3ec] sm:$0xf]
        %v6642 = vld [vmem:[#allocation19 + $0x3f0] sm:$0xff]
        %v6643 = vld [vmem:[#allocation19 + $0x3f8] sm:$0xf]
        %v6644 = vld [vmem:[#allocation19 + $0x3fc] sm:$0xff]
        %v6645 = vld [vmem:[#allocation19 + $0x404] sm:$0xf]
        %v6646 = vld [vmem:[#allocation19 + $0x408] sm:$0xff]
        %v6647 = vld [vmem:[#allocation19 + $0x410] sm:$0xf]
        %v6648 = vld [vmem:[#allocation19 + $0x414] sm:$0xff]
        %v6649 = vld [vmem:[#allocation19 + $0x41c] sm:$0xf]
        %v6650 = vld [vmem:[#allocation19 + $0x420] sm:$0xff]
        %v6651 = vld [vmem:[#allocation19 + $0x428] sm:$0xf]
        %v6652 = vld [vmem:[#allocation19 + $0x42c] sm:$0xff]
        %v6653 = vld [vmem:[#allocation19 + $0x434] sm:$0xf]
        %v6654 = vld [vmem:[#allocation19 + $0x438] sm:$0xff]
        %v6655 = vld [vmem:[#allocation19 + $0x440] sm:$0xf]
        %v6656 = vld [vmem:[#allocation19 + $0x444] sm:$0xff]
        %v6657 = vld [vmem:[#allocation19 + $0x44c] sm:$0xf]
        %v6658 = vld [vmem:[#allocation19 + $0x450] sm:$0xff]
        %v6659 = vld [vmem:[#allocation19 + $0x458] sm:$0xf]
        %v6660 = vld [vmem:[#allocation19 + $0x45c] sm:$0xff]
        %v6661 = vld [vmem:[#allocation19 + $0x464] sm:$0xf]
        %v6662 = vld [vmem:[#allocation19 + $0x468] sm:$0xff]
        %v6663 = vld [vmem:[#allocation19 + $0x470] sm:$0xf]
        %v6664 = vld [vmem:[#allocation19 + $0x474] sm:$0xff]
        %v6665 = vld [vmem:[#allocation19 + $0x47c] sm:$0xf]
        %v6666 = vld [vmem:[#allocation19 + $0x480] sm:$0xff]
        %v6667 = vld [vmem:[#allocation19 + $0x488] sm:$0xf]
        %v6668 = vld [vmem:[#allocation19 + $0x48c] sm:$0xff]
        %v6669 = vld [vmem:[#allocation19 + $0x494] sm:$0xf]
        %v6670 = vld [vmem:[#allocation19 + $0x498] sm:$0xff]
        %v6671 = vld [vmem:[#allocation19 + $0x4a0] sm:$0xf]
        %v6672 = vld [vmem:[#allocation19 + $0x4a4] sm:$0xff]
        %v6673 = vld [vmem:[#allocation19 + $0x4ac] sm:$0xf]
        %v6674 = vld [vmem:[#allocation19 + $0x4b0] sm:$0xff]
        %v6675 = vld [vmem:[#allocation19 + $0x4b8] sm:$0xf]
        %v6676 = vld [vmem:[#allocation19 + $0x4bc] sm:$0xff]
        %v6677 = vld [vmem:[#allocation19 + $0x4c4] sm:$0xf]
        %v6678 = vld [vmem:[#allocation19 + $0x4c8] sm:$0xff]
        %v6679 = vld [vmem:[#allocation19 + $0x4d0] sm:$0xf]
        %v6680 = vld [vmem:[#allocation19 + $0x4d4] sm:$0xff]
        %v6681 = vld [vmem:[#allocation19 + $0x4dc] sm:$0xf]
        %v6682 = vld [vmem:[#allocation19 + $0x4e0] sm:$0xff]
        %v6683 = vld [vmem:[#allocation19 + $0x4e8] sm:$0xf]
        %v6684 = vld [vmem:[#allocation19 + $0x4ec] sm:$0xff]
        %v6685 = vld [vmem:[#allocation19 + $0x4f4] sm:$0xf]
        %v6686 = vld [vmem:[#allocation19 + $0x4f8] sm:$0xff]
        %v6687 = vld [vmem:[#allocation19 + $0x500] sm:$0xf]
        %v6688 = vld [vmem:[#allocation19 + $0x504] sm:$0xff]
        %v6689 = vld [vmem:[#allocation19 + $0x50c] sm:$0xf]
        %v6690 = vld [vmem:[#allocation19 + $0x510] sm:$0xff]
        %v6691 = vld [vmem:[#allocation19 + $0x518] sm:$0xf]
        %v6692 = vld [vmem:[#allocation19 + $0x51c] sm:$0xff]
        %v6693 = vld [vmem:[#allocation19 + $0x524] sm:$0xf]
        %v6694 = vld [vmem:[#allocation19 + $0x528] sm:$0xff]
        %v6695 = vld [vmem:[#allocation19 + $0x530] sm:$0xf]
        %v6696 = vld [vmem:[#allocation19 + $0x534] sm:$0xff]
        %v6697 = vld [vmem:[#allocation19 + $0x53c] sm:$0xf]
        %v6698 = vld [vmem:[#allocation19 + $0x540] sm:$0xff]
        %v6699 = vld [vmem:[#allocation19 + $0x548] sm:$0xf]
        %v6700 = vld [vmem:[#allocation19 + $0x54c] sm:$0xff]
        %v6701 = vld [vmem:[#allocation19 + $0x554] sm:$0xf]
        %v6702 = vld [vmem:[#allocation19 + $0x558] sm:$0xff]
        %v6703 = vld [vmem:[#allocation19 + $0x560] sm:$0xf]
        %v6704 = vld [vmem:[#allocation19 + $0x564] sm:$0xff]
        %v6705 = vld [vmem:[#allocation19 + $0x56c] sm:$0xf]
        %v6706 = vld [vmem:[#allocation19 + $0x570] sm:$0xff]
        %v6707 = vld [vmem:[#allocation19 + $0x578] sm:$0xf]
        %v6708 = vld [vmem:[#allocation19 + $0x57c] sm:$0xff]
        %v6709 = vld [vmem:[#allocation19 + $0x584] sm:$0xf]
        %v6710 = vld [vmem:[#allocation19 + $0x588] sm:$0xff]
        %v6711 = vld [vmem:[#allocation19 + $0x590] sm:$0xf]
        %v6712 = vld [vmem:[#allocation19 + $0x594] sm:$0xff]
        %v6713 = vld [vmem:[#allocation19 + $0x59c] sm:$0xf]
        %v6714 = vld [vmem:[#allocation19 + $0x5a0] sm:$0xff]
        %v6715 = vld [vmem:[#allocation19 + $0x5a8] sm:$0xf]
        %v6716 = vld [vmem:[#allocation19 + $0x5ac] sm:$0xff]
        %v6717 = vld [vmem:[#allocation19 + $0x5b4] sm:$0xf]
        %v6718 = vld [vmem:[#allocation19 + $0x5b8] sm:$0xff]
        %v6719 = vld [vmem:[#allocation19 + $0x5c0] sm:$0xf]
        %v6720 = vld [vmem:[#allocation19 + $0x5c4] sm:$0xff]
        %v6721 = vld [vmem:[#allocation19 + $0x5cc] sm:$0xf]
        %v6722 = vld [vmem:[#allocation19 + $0x5d0] sm:$0xff]
        %v6723 = vld [vmem:[#allocation19 + $0x5d8] sm:$0xf]
        %v6724 = vld [vmem:[#allocation19 + $0x5dc] sm:$0xff]
        %v6725 = vld [vmem:[#allocation19 + $0x5e4] sm:$0xf]
        %v6726 = vld [vmem:[#allocation19 + $0x5e8] sm:$0xff]
        %v6727 = vld [vmem:[#allocation19 + $0x5f0] sm:$0xf]
        %v6728 = vld [vmem:[#allocation19 + $0x5f4] sm:$0xff]
        %v6729 = vld [vmem:[#allocation19 + $0x5fc] sm:$0xf]
        %v6730 = vld [vmem:[#allocation19 + $0x600] sm:$0xff]
        %v6731 = vld [vmem:[#allocation19 + $0x608] sm:$0xf]
        %v6732 = vld [vmem:[#allocation19 + $0x60c] sm:$0xff]
        %v6733 = vld [vmem:[#allocation19 + $0x614] sm:$0xf]
        %v6734 = vld [vmem:[#allocation19 + $0x618] sm:$0xff]
        %v6735 = vld [vmem:[#allocation19 + $0x620] sm:$0xf]
        %v6736 = vld [vmem:[#allocation19 + $0x624] sm:$0xff]
        %v6737 = vld [vmem:[#allocation19 + $0x62c] sm:$0xf]
        %v6738 = vld [vmem:[#allocation19 + $0x630] sm:$0xff]
        %v6739 = vld [vmem:[#allocation19 + $0x638] sm:$0xf]
        %v6740 = vld [vmem:[#allocation19 + $0x63c] sm:$0xff]
        %v6741 = vld [vmem:[#allocation19 + $0x644] sm:$0xf]
        %v6742 = vld [vmem:[#allocation19 + $0x648] sm:$0xff]
        %v6743 = vld [vmem:[#allocation19 + $0x650] sm:$0xf]
        %v6744 = vld [vmem:[#allocation19 + $0x654] sm:$0xff]
        %v6745 = vld [vmem:[#allocation19 + $0x65c] sm:$0xf]
        %v6746 = vld [vmem:[#allocation19 + $0x660] sm:$0xff]
        %v6747 = vld [vmem:[#allocation19 + $0x668] sm:$0xf]
        %v6748 = vld [vmem:[#allocation19 + $0x66c] sm:$0xff]
        %v6749 = vld [vmem:[#allocation19 + $0x674] sm:$0xf]
        %v6750 = vld [vmem:[#allocation19 + $0x678] sm:$0xff]
        %v6751 = vld [vmem:[#allocation19 + $0x680] sm:$0xf]
        %v6752 = vld [vmem:[#allocation19 + $0x684] sm:$0xff]
        %v6753 = vld [vmem:[#allocation19 + $0x68c] sm:$0xf]
        %v6754 = vld [vmem:[#allocation19 + $0x690] sm:$0xff]
        %v6755 = vld [vmem:[#allocation19 + $0x698] sm:$0xf]
        %v6756 = vld [vmem:[#allocation19 + $0x69c] sm:$0xff]
        %v6757 = vld [vmem:[#allocation19 + $0x6a4] sm:$0xf]
        %v6758 = vld [vmem:[#allocation19 + $0x6a8] sm:$0xff]
        %v6759 = vld [vmem:[#allocation19 + $0x6b0] sm:$0xf]
        %v6760 = vld [vmem:[#allocation19 + $0x6b4] sm:$0xff]
        %v6761 = vld [vmem:[#allocation19 + $0x6bc] sm:$0xf]
        %v6762 = vld [vmem:[#allocation19 + $0x6c0] sm:$0xff]
        %v6763 = vld [vmem:[#allocation19 + $0x6c8] sm:$0xf]
        %v6764 = vld [vmem:[#allocation19 + $0x6cc] sm:$0xff]
        %v6765 = vld [vmem:[#allocation19 + $0x6d4] sm:$0xf]
        %v6766 = vld [vmem:[#allocation19 + $0x6d8] sm:$0xff]
        %v6767 = vld [vmem:[#allocation19 + $0x6e0] sm:$0xf]
        %v6768 = vld [vmem:[#allocation19 + $0x6e4] sm:$0xff]
        %v6769 = vld [vmem:[#allocation19 + $0x6ec] sm:$0xf]
        %v6770 = vld [vmem:[#allocation19 + $0x6f0] sm:$0xff]
        %v6771 = vld [vmem:[#allocation19 + $0x6f8] sm:$0xf]
        %v6772 = vld [vmem:[#allocation19 + $0x6fc] sm:$0xff]
        %v6773 = vld [vmem:[#allocation19 + $0x704] sm:$0xf]
        %v6774 = vld [vmem:[#allocation19 + $0x708] sm:$0xff]
        %v6775 = vld [vmem:[#allocation19 + $0x710] sm:$0xf]
        %v6776 = vld [vmem:[#allocation19 + $0x714] sm:$0xff]
        %v6777 = vld [vmem:[#allocation19 + $0x71c] sm:$0xf]
        %v6778 = vld [vmem:[#allocation19 + $0x720] sm:$0xff]
        %v6779 = vld [vmem:[#allocation19 + $0x728] sm:$0xf]
        %v6780 = vld [vmem:[#allocation19 + $0x72c] sm:$0xff]
        %v6781 = vld [vmem:[#allocation19 + $0x734] sm:$0xf]
        %v6782 = vld [vmem:[#allocation19 + $0x738] sm:$0xff]
        %v6783 = vld [vmem:[#allocation19 + $0x740] sm:$0xf]
        %v6784 = vld [vmem:[#allocation19 + $0x744] sm:$0xff]
        %v6785 = vld [vmem:[#allocation19 + $0x74c] sm:$0xf]
        %v6786 = vld [vmem:[#allocation19 + $0x750] sm:$0xff]
        %v6787 = vld [vmem:[#allocation19 + $0x758] sm:$0xf]
        %v6788 = vld [vmem:[#allocation19 + $0x75c] sm:$0xff]
        %v6789 = vld [vmem:[#allocation19 + $0x764] sm:$0xf]
        %v6790 = vld [vmem:[#allocation19 + $0x768] sm:$0xff]
        %v6791 = vld [vmem:[#allocation19 + $0x770] sm:$0xf]
        %v6792 = vld [vmem:[#allocation19 + $0x774] sm:$0xff]
        %v6793 = vld [vmem:[#allocation19 + $0x77c] sm:$0xf]
        %v6794 = vld [vmem:[#allocation19 + $0x780] sm:$0xff]
        %v6795 = vld [vmem:[#allocation19 + $0x788] sm:$0xf]
        %v6796 = vld [vmem:[#allocation19 + $0x78c] sm:$0xff]
        %v6797 = vld [vmem:[#allocation19 + $0x794] sm:$0xf]
        %v6798 = vld [vmem:[#allocation19 + $0x798] sm:$0xff]
        %v6799 = vld [vmem:[#allocation19 + $0x7a0] sm:$0xf]
        %v6800 = vld [vmem:[#allocation19 + $0x7a4] sm:$0xff]
        %v6801 = vld [vmem:[#allocation19 + $0x7ac] sm:$0xf]
        %v6802 = vld [vmem:[#allocation19 + $0x7b0] sm:$0xff]
        %v6803 = vld [vmem:[#allocation19 + $0x7b8] sm:$0xf]
        %v6804 = vld [vmem:[#allocation19 + $0x7bc] sm:$0xff]
        %v6805 = vld [vmem:[#allocation19 + $0x7c4] sm:$0xf]
        %v6806 = vld [vmem:[#allocation19 + $0x7c8] sm:$0xff]
        %v6807 = vld [vmem:[#allocation19 + $0x7d0] sm:$0xf]
        %v6808 = vld [vmem:[#allocation19 + $0x7d4] sm:$0xff]
        %v6809 = vld [vmem:[#allocation19 + $0x7dc] sm:$0xf]
        %v6810 = vld [vmem:[#allocation19 + $0x7e0] sm:$0xff]
        %v6811 = vld [vmem:[#allocation19 + $0x7e8] sm:$0xf]
        %v6812 = vld [vmem:[#allocation19 + $0x7ec] sm:$0xff]
        %v6813 = vld [vmem:[#allocation19 + $0x7f4] sm:$0xf]
        %v6814 = vld [vmem:[#allocation19 + $0x7f8] sm:$0xff]
        %v6815 = vld [vmem:[#allocation19 + $0x800] sm:$0xf]
        %v6816 = vld [vmem:[#allocation19 + $0x804] sm:$0xff]
        %v6817 = vld [vmem:[#allocation19 + $0x80c] sm:$0xf]
        %v6818 = vld [vmem:[#allocation19 + $0x810] sm:$0xff]
        %v6819 = vld [vmem:[#allocation19 + $0x818] sm:$0xf]
        %v6820 = vld [vmem:[#allocation19 + $0x81c] sm:$0xff]
        %v6821 = vld [vmem:[#allocation19 + $0x824] sm:$0xf]
        %v6822 = vld [vmem:[#allocation19 + $0x828] sm:$0xff]
        %v6823 = vld [vmem:[#allocation19 + $0x830] sm:$0xf]
        %v6824 = vld [vmem:[#allocation19 + $0x834] sm:$0xff]
        %v6825 = vld [vmem:[#allocation19 + $0x83c] sm:$0xf]
        %v6826 = vld [vmem:[#allocation19 + $0x840] sm:$0xff]
        %v6827 = vld [vmem:[#allocation19 + $0x848] sm:$0xf]
        %v6828 = vld [vmem:[#allocation19 + $0x84c] sm:$0xff]
        %v6829 = vld [vmem:[#allocation19 + $0x854] sm:$0xf]
        %v6830 = vld [vmem:[#allocation19 + $0x858] sm:$0xff]
        %v6831 = vld [vmem:[#allocation19 + $0x860] sm:$0xf]
        %v6832 = vld [vmem:[#allocation19 + $0x864] sm:$0xff]
        %v6833 = vld [vmem:[#allocation19 + $0x86c] sm:$0xf]
        %v6834 = vld [vmem:[#allocation19 + $0x870] sm:$0xff]
        %v6835 = vld [vmem:[#allocation19 + $0x878] sm:$0xf]
        %v6836 = vld [vmem:[#allocation19 + $0x87c] sm:$0xff]
        %v6837 = vld [vmem:[#allocation19 + $0x884] sm:$0xf]
        %v6838 = vld [vmem:[#allocation19 + $0x888] sm:$0xff]
        %v6839 = vld [vmem:[#allocation19 + $0x890] sm:$0xf]
        %v6840 = vld [vmem:[#allocation19 + $0x894] sm:$0xff]
        %v6841 = vld [vmem:[#allocation19 + $0x89c] sm:$0xf]
        %v6842 = vld [vmem:[#allocation19 + $0x8a0] sm:$0xff]
        %v6843 = vld [vmem:[#allocation19 + $0x8a8] sm:$0xf]
        %v6844 = vld [vmem:[#allocation19 + $0x8ac] sm:$0xff]
        %v6845 = vld [vmem:[#allocation19 + $0x8b4] sm:$0xf]
        %v6846 = vld [vmem:[#allocation19 + $0x8b8] sm:$0xff]
        %v6847 = vld [vmem:[#allocation19 + $0x8c0] sm:$0xf]
        %v6848 = vld [vmem:[#allocation19 + $0x8c4] sm:$0xff]
        %v6849 = vld [vmem:[#allocation19 + $0x8cc] sm:$0xf]
        %v6850 = vld [vmem:[#allocation19 + $0x8d0] sm:$0xff]
        %v6851 = vld [vmem:[#allocation19 + $0x8d8] sm:$0xf]
        %v6852 = vld [vmem:[#allocation19 + $0x8dc] sm:$0xff]
        %v6853 = vld [vmem:[#allocation19 + $0x8e4] sm:$0xf]
        %v6854 = vld [vmem:[#allocation19 + $0x8e8] sm:$0xff]
        %v6855 = vld [vmem:[#allocation19 + $0x8f0] sm:$0xf]
        %v6856 = vld [vmem:[#allocation19 + $0x8f4] sm:$0xff]
        %v6857 = vld [vmem:[#allocation19 + $0x8fc] sm:$0xf]
        %v6858 = vld [vmem:[#allocation20] sm:$0x7]
        %v6860 = vlaneseq
        %v6861 = vshrl.u32 %v6860, 7
        %v6862 = vsub.s32 0, %v6861
        %v6863 = vrot.slane %v6858, %v6862
        %v6864 = vlaneseq
        %v6865 = vshrl.u32 %v6864, 7
        %v6866 = vsub.s32 1, %v6865
        %v6867 = vrot.slane %v6858, %v6866
        %v6868 = vlaneseq
        %v6869 = vshrl.u32 %v6868, 7
        %v6870 = vsub.s32 2, %v6869
        %v6871 = vrot.slane %v6858, %v6870
        %v7259 = vunpack.c.l.b16 %v6474
        %v7260 = vunpack.c.h.b16 %v6474
        %v7261 = vunpack.c.l.b16 %v6475
        %v7262 = vunpack.c.l.b16 %v6476
        %v7263 = vunpack.c.h.b16 %v6476
        %v7264 = vunpack.c.l.b16 %v6477
        %v7265 = vunpack.c.l.b16 %v6478
        %v7266 = vunpack.c.h.b16 %v6478
        %v7267 = vunpack.c.l.b16 %v6479
        %v7268 = vunpack.c.l.b16 %v6480
        %v7269 = vunpack.c.h.b16 %v6480
        %v7270 = vunpack.c.l.b16 %v6481
        %v7271 = vunpack.c.l.b16 %v6482
        %v7272 = vunpack.c.h.b16 %v6482
        %v7273 = vunpack.c.l.b16 %v6483
        %v7274 = vunpack.c.l.b16 %v6484
        %v7275 = vunpack.c.h.b16 %v6484
        %v7276 = vunpack.c.l.b16 %v6485
        %v7277 = vunpack.c.l.b16 %v6486
        %v7278 = vunpack.c.h.b16 %v6486
        %v7279 = vunpack.c.l.b16 %v6487
        %v7280 = vunpack.c.l.b16 %v6488
        %v7281 = vunpack.c.h.b16 %v6488
        %v7282 = vunpack.c.l.b16 %v6489
        %v7283 = vunpack.c.l.b16 %v6490
        %v7284 = vunpack.c.h.b16 %v6490
        %v7285 = vunpack.c.l.b16 %v6491
        %v7286 = vunpack.c.l.b16 %v6492
        %v7287 = vunpack.c.h.b16 %v6492
        %v7288 = vunpack.c.l.b16 %v6493
        %v7289 = vunpack.c.l.b16 %v6494
        %v7290 = vunpack.c.h.b16 %v6494
        %v7291 = vunpack.c.l.b16 %v6495
        %v7292 = vunpack.c.l.b16 %v6496
        %v7293 = vunpack.c.h.b16 %v6496
        %v7294 = vunpack.c.l.b16 %v6497
        %v7295 = vunpack.c.l.b16 %v6498
        %v7296 = vunpack.c.h.b16 %v6498
        %v7297 = vunpack.c.l.b16 %v6499
        %v7298 = vunpack.c.l.b16 %v6500
        %v7299 = vunpack.c.h.b16 %v6500
        %v7300 = vunpack.c.l.b16 %v6501
        %v7301 = vunpack.c.l.b16 %v6502
        %v7302 = vunpack.c.h.b16 %v6502
        %v7303 = vunpack.c.l.b16 %v6503
        %v7304 = vunpack.c.l.b16 %v6504
        %v7305 = vunpack.c.h.b16 %v6504
        %v7306 = vunpack.c.l.b16 %v6505
        %v7307 = vunpack.c.l.b16 %v6506
        %v7308 = vunpack.c.h.b16 %v6506
        %v7309 = vunpack.c.l.b16 %v6507
        %v7310 = vunpack.c.l.b16 %v6508
        %v7311 = vunpack.c.h.b16 %v6508
        %v7312 = vunpack.c.l.b16 %v6509
        %v7313 = vunpack.c.l.b16 %v6510
        %v7314 = vunpack.c.h.b16 %v6510
        %v7315 = vunpack.c.l.b16 %v6511
        %v7316 = vunpack.c.l.b16 %v6512
        %v7317 = vunpack.c.h.b16 %v6512
        %v7318 = vunpack.c.l.b16 %v6513
        %v7319 = vunpack.c.l.b16 %v6514
        %v7320 = vunpack.c.h.b16 %v6514
        %v7321 = vunpack.c.l.b16 %v6515
        %v7322 = vunpack.c.l.b16 %v6516
        %v7323 = vunpack.c.h.b16 %v6516
        %v7324 = vunpack.c.l.b16 %v6517
        %v7325 = vunpack.c.l.b16 %v6518
        %v7326 = vunpack.c.h.b16 %v6518
        %v7327 = vunpack.c.l.b16 %v6519
        %v7328 = vunpack.c.l.b16 %v6520
        %v7329 = vunpack.c.h.b16 %v6520
        %v7330 = vunpack.c.l.b16 %v6521
        %v7331 = vunpack.c.l.b16 %v6522
        %v7332 = vunpack.c.h.b16 %v6522
        %v7333 = vunpack.c.l.b16 %v6523
        %v7334 = vunpack.c.l.b16 %v6524
        %v7335 = vunpack.c.h.b16 %v6524
        %v7336 = vunpack.c.l.b16 %v6525
        %v7337 = vunpack.c.l.b16 %v6526
        %v7338 = vunpack.c.h.b16 %v6526
        %v7339 = vunpack.c.l.b16 %v6527
        %v7340 = vunpack.c.l.b16 %v6528
        %v7341 = vunpack.c.h.b16 %v6528
        %v7342 = vunpack.c.l.b16 %v6529
        %v7343 = vunpack.c.l.b16 %v6530
        %v7344 = vunpack.c.h.b16 %v6530
        %v7345 = vunpack.c.l.b16 %v6531
        %v7346 = vunpack.c.l.b16 %v6532
        %v7347 = vunpack.c.h.b16 %v6532
        %v7348 = vunpack.c.l.b16 %v6533
        %v7349 = vunpack.c.l.b16 %v6534
        %v7350 = vunpack.c.h.b16 %v6534
        %v7351 = vunpack.c.l.b16 %v6535
        %v7352 = vunpack.c.l.b16 %v6536
        %v7353 = vunpack.c.h.b16 %v6536
        %v7354 = vunpack.c.l.b16 %v6537
        %v7355 = vunpack.c.l.b16 %v6538
        %v7356 = vunpack.c.h.b16 %v6538
        %v7357 = vunpack.c.l.b16 %v6539
        %v7358 = vunpack.c.l.b16 %v6540
        %v7359 = vunpack.c.h.b16 %v6540
        %v7360 = vunpack.c.l.b16 %v6541
        %v7361 = vunpack.c.l.b16 %v6542
        %v7362 = vunpack.c.h.b16 %v6542
        %v7363 = vunpack.c.l.b16 %v6543
        %v7364 = vunpack.c.l.b16 %v6544
        %v7365 = vunpack.c.h.b16 %v6544
        %v7366 = vunpack.c.l.b16 %v6545
        %v7367 = vunpack.c.l.b16 %v6546
        %v7368 = vunpack.c.h.b16 %v6546
        %v7369 = vunpack.c.l.b16 %v6547
        %v7370 = vunpack.c.l.b16 %v6548
        %v7371 = vunpack.c.h.b16 %v6548
        %v7372 = vunpack.c.l.b16 %v6549
        %v7373 = vunpack.c.l.b16 %v6550
        %v7374 = vunpack.c.h.b16 %v6550
        %v7375 = vunpack.c.l.b16 %v6551
        %v7376 = vunpack.c.l.b16 %v6552
        %v7377 = vunpack.c.h.b16 %v6552
        %v7378 = vunpack.c.l.b16 %v6553
        %v7379 = vunpack.c.l.b16 %v6554
        %v7380 = vunpack.c.h.b16 %v6554
        %v7381 = vunpack.c.l.b16 %v6555
        %v7382 = vunpack.c.l.b16 %v6556
        %v7383 = vunpack.c.h.b16 %v6556
        %v7384 = vunpack.c.l.b16 %v6557
        %v7385 = vunpack.c.l.b16 %v6558
        %v7386 = vunpack.c.h.b16 %v6558
        %v7387 = vunpack.c.l.b16 %v6559
        %v7388 = vunpack.c.l.b16 %v6560
        %v7389 = vunpack.c.h.b16 %v6560
        %v7390 = vunpack.c.l.b16 %v6561
        %v7391 = vunpack.c.l.b16 %v6562
        %v7392 = vunpack.c.h.b16 %v6562
        %v7393 = vunpack.c.l.b16 %v6563
        %v7394 = vunpack.c.l.b16 %v6564
        %v7395 = vunpack.c.h.b16 %v6564
        %v7396 = vunpack.c.l.b16 %v6565
        %v7397 = vunpack.c.l.b16 %v6566
        %v7398 = vunpack.c.h.b16 %v6566
        %v7399 = vunpack.c.l.b16 %v6567
        %v7400 = vunpack.c.l.b16 %v6568
        %v7401 = vunpack.c.h.b16 %v6568
        %v7402 = vunpack.c.l.b16 %v6569
        %v7403 = vunpack.c.l.b16 %v6570
        %v7404 = vunpack.c.h.b16 %v6570
        %v7405 = vunpack.c.l.b16 %v6571
        %v7406 = vunpack.c.l.b16 %v6572
        %v7407 = vunpack.c.h.b16 %v6572
        %v7408 = vunpack.c.l.b16 %v6573
        %v7409 = vunpack.c.l.b16 %v6574
        %v7410 = vunpack.c.h.b16 %v6574
        %v7411 = vunpack.c.l.b16 %v6575
        %v7412 = vunpack.c.l.b16 %v6576
        %v7413 = vunpack.c.h.b16 %v6576
        %v7414 = vunpack.c.l.b16 %v6577
        %v7415 = vunpack.c.l.b16 %v6578
        %v7416 = vunpack.c.h.b16 %v6578
        %v7417 = vunpack.c.l.b16 %v6579
        %v7418 = vunpack.c.l.b16 %v6580
        %v7419 = vunpack.c.h.b16 %v6580
        %v7420 = vunpack.c.l.b16 %v6581
        %v7421 = vunpack.c.l.b16 %v6582
        %v7422 = vunpack.c.h.b16 %v6582
        %v7423 = vunpack.c.l.b16 %v6583
        %v7424 = vunpack.c.l.b16 %v6584
        %v7425 = vunpack.c.h.b16 %v6584
        %v7426 = vunpack.c.l.b16 %v6585
        %v7427 = vunpack.c.l.b16 %v6586
        %v7428 = vunpack.c.h.b16 %v6586
        %v7429 = vunpack.c.l.b16 %v6587
        %v7430 = vunpack.c.l.b16 %v6588
        %v7431 = vunpack.c.h.b16 %v6588
        %v7432 = vunpack.c.l.b16 %v6589
        %v7433 = vunpack.c.l.b16 %v6590
        %v7434 = vunpack.c.h.b16 %v6590
        %v7435 = vunpack.c.l.b16 %v6591
        %v7436 = vunpack.c.l.b16 %v6592
        %v7437 = vunpack.c.h.b16 %v6592
        %v7438 = vunpack.c.l.b16 %v6593
        %v7439 = vunpack.c.l.b16 %v6594
        %v7440 = vunpack.c.h.b16 %v6594
        %v7441 = vunpack.c.l.b16 %v6595
        %v7442 = vunpack.c.l.b16 %v6596
        %v7443 = vunpack.c.h.b16 %v6596
        %v7444 = vunpack.c.l.b16 %v6597
        %v7445 = vunpack.c.l.b16 %v6598
        %v7446 = vunpack.c.h.b16 %v6598
        %v7447 = vunpack.c.l.b16 %v6599
        %v7448 = vunpack.c.l.b16 %v6600
        %v7449 = vunpack.c.h.b16 %v6600
        %v7450 = vunpack.c.l.b16 %v6601
        %v7451 = vunpack.c.l.b16 %v6602
        %v7452 = vunpack.c.h.b16 %v6602
        %v7453 = vunpack.c.l.b16 %v6603
        %v7454 = vunpack.c.l.b16 %v6604
        %v7455 = vunpack.c.h.b16 %v6604
        %v7456 = vunpack.c.l.b16 %v6605
        %v7457 = vunpack.c.l.b16 %v6606
        %v7458 = vunpack.c.h.b16 %v6606
        %v7459 = vunpack.c.l.b16 %v6607
        %v7460 = vunpack.c.l.b16 %v6608
        %v7461 = vunpack.c.h.b16 %v6608
        %v7462 = vunpack.c.l.b16 %v6609
        %v7463 = vunpack.c.l.b16 %v6610
        %v7464 = vunpack.c.h.b16 %v6610
        %v7465 = vunpack.c.l.b16 %v6611
        %v7466 = vunpack.c.l.b16 %v6612
        %v7467 = vunpack.c.h.b16 %v6612
        %v7468 = vunpack.c.l.b16 %v6613
        %v7469 = vunpack.c.l.b16 %v6614
        %v7470 = vunpack.c.h.b16 %v6614
        %v7471 = vunpack.c.l.b16 %v6615
        %v7472 = vunpack.c.l.b16 %v6616
        %v7473 = vunpack.c.h.b16 %v6616
        %v7474 = vunpack.c.l.b16 %v6617
        %v7475 = vunpack.c.l.b16 %v6618
        %v7476 = vunpack.c.h.b16 %v6618
        %v7477 = vunpack.c.l.b16 %v6619
        %v7478 = vunpack.c.l.b16 %v6620
        %v7479 = vunpack.c.h.b16 %v6620
        %v7480 = vunpack.c.l.b16 %v6621
        %v7481 = vunpack.c.l.b16 %v6622
        %v7482 = vunpack.c.h.b16 %v6622
        %v7483 = vunpack.c.l.b16 %v6623
        %v7484 = vunpack.c.l.b16 %v6624
        %v7485 = vunpack.c.h.b16 %v6624
        %v7486 = vunpack.c.l.b16 %v6625
        %v7487 = vunpack.c.l.b16 %v6626
        %v7488 = vunpack.c.h.b16 %v6626
        %v7489 = vunpack.c.l.b16 %v6627
        %v7490 = vunpack.c.l.b16 %v6628
        %v7491 = vunpack.c.h.b16 %v6628
        %v7492 = vunpack.c.l.b16 %v6629
        %v7493 = vunpack.c.l.b16 %v6630
        %v7494 = vunpack.c.h.b16 %v6630
        %v7495 = vunpack.c.l.b16 %v6631
        %v7496 = vunpack.c.l.b16 %v6632
        %v7497 = vunpack.c.h.b16 %v6632
        %v7498 = vunpack.c.l.b16 %v6633
        %v7499 = vunpack.c.l.b16 %v6634
        %v7500 = vunpack.c.h.b16 %v6634
        %v7501 = vunpack.c.l.b16 %v6635
        %v7502 = vunpack.c.l.b16 %v6636
        %v7503 = vunpack.c.h.b16 %v6636
        %v7504 = vunpack.c.l.b16 %v6637
        %v7505 = vunpack.c.l.b16 %v6638
        %v7506 = vunpack.c.h.b16 %v6638
        %v7507 = vunpack.c.l.b16 %v6639
        %v7508 = vunpack.c.l.b16 %v6640
        %v7509 = vunpack.c.h.b16 %v6640
        %v7510 = vunpack.c.l.b16 %v6641
        %v7511 = vunpack.c.l.b16 %v6642
        %v7512 = vunpack.c.h.b16 %v6642
        %v7513 = vunpack.c.l.b16 %v6643
        %v7514 = vunpack.c.l.b16 %v6644
        %v7515 = vunpack.c.h.b16 %v6644
        %v7516 = vunpack.c.l.b16 %v6645
        %v7517 = vunpack.c.l.b16 %v6646
        %v7518 = vunpack.c.h.b16 %v6646
        %v7519 = vunpack.c.l.b16 %v6647
        %v7520 = vunpack.c.l.b16 %v6648
        %v7521 = vunpack.c.h.b16 %v6648
        %v7522 = vunpack.c.l.b16 %v6649
        %v7523 = vunpack.c.l.b16 %v6650
        %v7524 = vunpack.c.h.b16 %v6650
        %v7525 = vunpack.c.l.b16 %v6651
        %v7526 = vunpack.c.l.b16 %v6652
        %v7527 = vunpack.c.h.b16 %v6652
        %v7528 = vunpack.c.l.b16 %v6653
        %v7529 = vunpack.c.l.b16 %v6654
        %v7530 = vunpack.c.h.b16 %v6654
        %v7531 = vunpack.c.l.b16 %v6655
        %v7532 = vunpack.c.l.b16 %v6656
        %v7533 = vunpack.c.h.b16 %v6656
        %v7534 = vunpack.c.l.b16 %v6657
        %v7535 = vunpack.c.l.b16 %v6658
        %v7536 = vunpack.c.h.b16 %v6658
        %v7537 = vunpack.c.l.b16 %v6659
        %v7538 = vunpack.c.l.b16 %v6660
        %v7539 = vunpack.c.h.b16 %v6660
        %v7540 = vunpack.c.l.b16 %v6661
        %v7541 = vunpack.c.l.b16 %v6662
        %v7542 = vunpack.c.h.b16 %v6662
        %v7543 = vunpack.c.l.b16 %v6663
        %v7544 = vunpack.c.l.b16 %v6664
        %v7545 = vunpack.c.h.b16 %v6664
        %v7546 = vunpack.c.l.b16 %v6665
        %v7547 = vunpack.c.l.b16 %v6666
        %v7548 = vunpack.c.h.b16 %v6666
        %v7549 = vunpack.c.l.b16 %v6667
        %v7550 = vunpack.c.l.b16 %v6668
        %v7551 = vunpack.c.h.b16 %v6668
        %v7552 = vunpack.c.l.b16 %v6669
        %v7553 = vunpack.c.l.b16 %v6670
        %v7554 = vunpack.c.h.b16 %v6670
        %v7555 = vunpack.c.l.b16 %v6671
        %v7556 = vunpack.c.l.b16 %v6672
        %v7557 = vunpack.c.h.b16 %v6672
        %v7558 = vunpack.c.l.b16 %v6673
        %v7559 = vunpack.c.l.b16 %v6674
        %v7560 = vunpack.c.h.b16 %v6674
        %v7561 = vunpack.c.l.b16 %v6675
        %v7562 = vunpack.c.l.b16 %v6676
        %v7563 = vunpack.c.h.b16 %v6676
        %v7564 = vunpack.c.l.b16 %v6677
        %v7565 = vunpack.c.l.b16 %v6678
        %v7566 = vunpack.c.h.b16 %v6678
        %v7567 = vunpack.c.l.b16 %v6679
        %v7568 = vunpack.c.l.b16 %v6680
        %v7569 = vunpack.c.h.b16 %v6680
        %v7570 = vunpack.c.l.b16 %v6681
        %v7571 = vunpack.c.l.b16 %v6682
        %v7572 = vunpack.c.h.b16 %v6682
        %v7573 = vunpack.c.l.b16 %v6683
        %v7574 = vunpack.c.l.b16 %v6684
        %v7575 = vunpack.c.h.b16 %v6684
        %v7576 = vunpack.c.l.b16 %v6685
        %v7577 = vunpack.c.l.b16 %v6686
        %v7578 = vunpack.c.h.b16 %v6686
        %v7579 = vunpack.c.l.b16 %v6687
        %v7580 = vunpack.c.l.b16 %v6688
        %v7581 = vunpack.c.h.b16 %v6688
        %v7582 = vunpack.c.l.b16 %v6689
        %v7583 = vunpack.c.l.b16 %v6690
        %v7584 = vunpack.c.h.b16 %v6690
        %v7585 = vunpack.c.l.b16 %v6691
        %v7586 = vunpack.c.l.b16 %v6692
        %v7587 = vunpack.c.h.b16 %v6692
        %v7588 = vunpack.c.l.b16 %v6693
        %v7589 = vunpack.c.l.b16 %v6694
        %v7590 = vunpack.c.h.b16 %v6694
        %v7591 = vunpack.c.l.b16 %v6695
        %v7592 = vunpack.c.l.b16 %v6696
        %v7593 = vunpack.c.h.b16 %v6696
        %v7594 = vunpack.c.l.b16 %v6697
        %v7595 = vunpack.c.l.b16 %v6698
        %v7596 = vunpack.c.h.b16 %v6698
        %v7597 = vunpack.c.l.b16 %v6699
        %v7598 = vunpack.c.l.b16 %v6700
        %v7599 = vunpack.c.h.b16 %v6700
        %v7600 = vunpack.c.l.b16 %v6701
        %v7601 = vunpack.c.l.b16 %v6702
        %v7602 = vunpack.c.h.b16 %v6702
        %v7603 = vunpack.c.l.b16 %v6703
        %v7604 = vunpack.c.l.b16 %v6704
        %v7605 = vunpack.c.h.b16 %v6704
        %v7606 = vunpack.c.l.b16 %v6705
        %v7607 = vunpack.c.l.b16 %v6706
        %v7608 = vunpack.c.h.b16 %v6706
        %v7609 = vunpack.c.l.b16 %v6707
        %v7610 = vunpack.c.l.b16 %v6708
        %v7611 = vunpack.c.h.b16 %v6708
        %v7612 = vunpack.c.l.b16 %v6709
        %v7613 = vunpack.c.l.b16 %v6710
        %v7614 = vunpack.c.h.b16 %v6710
        %v7615 = vunpack.c.l.b16 %v6711
        %v7616 = vunpack.c.l.b16 %v6712
        %v7617 = vunpack.c.h.b16 %v6712
        %v7618 = vunpack.c.l.b16 %v6713
        %v7619 = vunpack.c.l.b16 %v6714
        %v7620 = vunpack.c.h.b16 %v6714
        %v7621 = vunpack.c.l.b16 %v6715
        %v7622 = vunpack.c.l.b16 %v6716
        %v7623 = vunpack.c.h.b16 %v6716
        %v7624 = vunpack.c.l.b16 %v6717
        %v7625 = vunpack.c.l.b16 %v6718
        %v7626 = vunpack.c.h.b16 %v6718
        %v7627 = vunpack.c.l.b16 %v6719
        %v7628 = vunpack.c.l.b16 %v6720
        %v7629 = vunpack.c.h.b16 %v6720
        %v7630 = vunpack.c.l.b16 %v6721
        %v7631 = vunpack.c.l.b16 %v6722
        %v7632 = vunpack.c.h.b16 %v6722
        %v7633 = vunpack.c.l.b16 %v6723
        %v7634 = vunpack.c.l.b16 %v6724
        %v7635 = vunpack.c.h.b16 %v6724
        %v7636 = vunpack.c.l.b16 %v6725
        %v7637 = vunpack.c.l.b16 %v6726
        %v7638 = vunpack.c.h.b16 %v6726
        %v7639 = vunpack.c.l.b16 %v6727
        %v7640 = vunpack.c.l.b16 %v6728
        %v7641 = vunpack.c.h.b16 %v6728
        %v7642 = vunpack.c.l.b16 %v6729
        %v7643 = vunpack.c.l.b16 %v6730
        %v7644 = vunpack.c.h.b16 %v6730
        %v7645 = vunpack.c.l.b16 %v6731
        %v7646 = vunpack.c.l.b16 %v6732
        %v7647 = vunpack.c.h.b16 %v6732
        %v7648 = vunpack.c.l.b16 %v6733
        %v7649 = vunpack.c.l.b16 %v6734
        %v7650 = vunpack.c.h.b16 %v6734
        %v7651 = vunpack.c.l.b16 %v6735
        %v7652 = vunpack.c.l.b16 %v6736
        %v7653 = vunpack.c.h.b16 %v6736
        %v7654 = vunpack.c.l.b16 %v6737
        %v7655 = vunpack.c.l.b16 %v6738
        %v7656 = vunpack.c.h.b16 %v6738
        %v7657 = vunpack.c.l.b16 %v6739
        %v7658 = vunpack.c.l.b16 %v6740
        %v7659 = vunpack.c.h.b16 %v6740
        %v7660 = vunpack.c.l.b16 %v6741
        %v7661 = vunpack.c.l.b16 %v6742
        %v7662 = vunpack.c.h.b16 %v6742
        %v7663 = vunpack.c.l.b16 %v6743
        %v7664 = vunpack.c.l.b16 %v6744
        %v7665 = vunpack.c.h.b16 %v6744
        %v7666 = vunpack.c.l.b16 %v6745
        %v7667 = vunpack.c.l.b16 %v6746
        %v7668 = vunpack.c.h.b16 %v6746
        %v7669 = vunpack.c.l.b16 %v6747
        %v7670 = vunpack.c.l.b16 %v6748
        %v7671 = vunpack.c.h.b16 %v6748
        %v7672 = vunpack.c.l.b16 %v6749
        %v7673 = vunpack.c.l.b16 %v6750
        %v7674 = vunpack.c.h.b16 %v6750
        %v7675 = vunpack.c.l.b16 %v6751
        %v7676 = vunpack.c.l.b16 %v6752
        %v7677 = vunpack.c.h.b16 %v6752
        %v7678 = vunpack.c.l.b16 %v6753
        %v7679 = vunpack.c.l.b16 %v6754
        %v7680 = vunpack.c.h.b16 %v6754
        %v7681 = vunpack.c.l.b16 %v6755
        %v7682 = vunpack.c.l.b16 %v6756
        %v7683 = vunpack.c.h.b16 %v6756
        %v7684 = vunpack.c.l.b16 %v6757
        %v7685 = vunpack.c.l.b16 %v6758
        %v7686 = vunpack.c.h.b16 %v6758
        %v7687 = vunpack.c.l.b16 %v6759
        %v7688 = vunpack.c.l.b16 %v6760
        %v7689 = vunpack.c.h.b16 %v6760
        %v7690 = vunpack.c.l.b16 %v6761
        %v7691 = vunpack.c.l.b16 %v6762
        %v7692 = vunpack.c.h.b16 %v6762
        %v7693 = vunpack.c.l.b16 %v6763
        %v7694 = vunpack.c.l.b16 %v6764
        %v7695 = vunpack.c.h.b16 %v6764
        %v7696 = vunpack.c.l.b16 %v6765
        %v7697 = vunpack.c.l.b16 %v6766
        %v7698 = vunpack.c.h.b16 %v6766
        %v7699 = vunpack.c.l.b16 %v6767
        %v7700 = vunpack.c.l.b16 %v6768
        %v7701 = vunpack.c.h.b16 %v6768
        %v7702 = vunpack.c.l.b16 %v6769
        %v7703 = vunpack.c.l.b16 %v6770
        %v7704 = vunpack.c.h.b16 %v6770
        %v7705 = vunpack.c.l.b16 %v6771
        %v7706 = vunpack.c.l.b16 %v6772
        %v7707 = vunpack.c.h.b16 %v6772
        %v7708 = vunpack.c.l.b16 %v6773
        %v7709 = vunpack.c.l.b16 %v6774
        %v7710 = vunpack.c.h.b16 %v6774
        %v7711 = vunpack.c.l.b16 %v6775
        %v7712 = vunpack.c.l.b16 %v6776
        %v7713 = vunpack.c.h.b16 %v6776
        %v7714 = vunpack.c.l.b16 %v6777
        %v7715 = vunpack.c.l.b16 %v6778
        %v7716 = vunpack.c.h.b16 %v6778
        %v7717 = vunpack.c.l.b16 %v6779
        %v7718 = vunpack.c.l.b16 %v6780
        %v7719 = vunpack.c.h.b16 %v6780
        %v7720 = vunpack.c.l.b16 %v6781
        %v7721 = vunpack.c.l.b16 %v6782
        %v7722 = vunpack.c.h.b16 %v6782
        %v7723 = vunpack.c.l.b16 %v6783
        %v7724 = vunpack.c.l.b16 %v6784
        %v7725 = vunpack.c.h.b16 %v6784
        %v7726 = vunpack.c.l.b16 %v6785
        %v7727 = vunpack.c.l.b16 %v6786
        %v7728 = vunpack.c.h.b16 %v6786
        %v7729 = vunpack.c.l.b16 %v6787
        %v7730 = vunpack.c.l.b16 %v6788
        %v7731 = vunpack.c.h.b16 %v6788
        %v7732 = vunpack.c.l.b16 %v6789
        %v7733 = vunpack.c.l.b16 %v6790
        %v7734 = vunpack.c.h.b16 %v6790
        %v7735 = vunpack.c.l.b16 %v6791
        %v7736 = vunpack.c.l.b16 %v6792
        %v7737 = vunpack.c.h.b16 %v6792
        %v7738 = vunpack.c.l.b16 %v6793
        %v7739 = vunpack.c.l.b16 %v6794
        %v7740 = vunpack.c.h.b16 %v6794
        %v7741 = vunpack.c.l.b16 %v6795
        %v7742 = vunpack.c.l.b16 %v6796
        %v7743 = vunpack.c.h.b16 %v6796
        %v7744 = vunpack.c.l.b16 %v6797
        %v7745 = vunpack.c.l.b16 %v6798
        %v7746 = vunpack.c.h.b16 %v6798
        %v7747 = vunpack.c.l.b16 %v6799
        %v7748 = vunpack.c.l.b16 %v6800
        %v7749 = vunpack.c.h.b16 %v6800
        %v7750 = vunpack.c.l.b16 %v6801
        %v7751 = vunpack.c.l.b16 %v6802
        %v7752 = vunpack.c.h.b16 %v6802
        %v7753 = vunpack.c.l.b16 %v6803
        %v7754 = vunpack.c.l.b16 %v6804
        %v7755 = vunpack.c.h.b16 %v6804
        %v7756 = vunpack.c.l.b16 %v6805
        %v7757 = vunpack.c.l.b16 %v6806
        %v7758 = vunpack.c.h.b16 %v6806
        %v7759 = vunpack.c.l.b16 %v6807
        %v7760 = vunpack.c.l.b16 %v6808
        %v7761 = vunpack.c.h.b16 %v6808
        %v7762 = vunpack.c.l.b16 %v6809
        %v7763 = vunpack.c.l.b16 %v6810
        %v7764 = vunpack.c.h.b16 %v6810
        %v7765 = vunpack.c.l.b16 %v6811
        %v7766 = vunpack.c.l.b16 %v6812
        %v7767 = vunpack.c.h.b16 %v6812
        %v7768 = vunpack.c.l.b16 %v6813
        %v7769 = vunpack.c.l.b16 %v6814
        %v7770 = vunpack.c.h.b16 %v6814
        %v7771 = vunpack.c.l.b16 %v6815
        %v7772 = vunpack.c.l.b16 %v6816
        %v7773 = vunpack.c.h.b16 %v6816
        %v7774 = vunpack.c.l.b16 %v6817
        %v7775 = vunpack.c.l.b16 %v6818
        %v7776 = vunpack.c.h.b16 %v6818
        %v7777 = vunpack.c.l.b16 %v6819
        %v7778 = vunpack.c.l.b16 %v6820
        %v7779 = vunpack.c.h.b16 %v6820
        %v7780 = vunpack.c.l.b16 %v6821
        %v7781 = vunpack.c.l.b16 %v6822
        %v7782 = vunpack.c.h.b16 %v6822
        %v7783 = vunpack.c.l.b16 %v6823
        %v7784 = vunpack.c.l.b16 %v6824
        %v7785 = vunpack.c.h.b16 %v6824
        %v7786 = vunpack.c.l.b16 %v6825
        %v7787 = vunpack.c.l.b16 %v6826
        %v7788 = vunpack.c.h.b16 %v6826
        %v7789 = vunpack.c.l.b16 %v6827
        %v7790 = vunpack.c.l.b16 %v6828
        %v7791 = vunpack.c.h.b16 %v6828
        %v7792 = vunpack.c.l.b16 %v6829
        %v7793 = vunpack.c.l.b16 %v6830
        %v7794 = vunpack.c.h.b16 %v6830
        %v7795 = vunpack.c.l.b16 %v6831
        %v7796 = vunpack.c.l.b16 %v6832
        %v7797 = vunpack.c.h.b16 %v6832
        %v7798 = vunpack.c.l.b16 %v6833
        %v7799 = vunpack.c.l.b16 %v6834
        %v7800 = vunpack.c.h.b16 %v6834
        %v7801 = vunpack.c.l.b16 %v6835
        %v7802 = vunpack.c.l.b16 %v6836
        %v7803 = vunpack.c.h.b16 %v6836
        %v7804 = vunpack.c.l.b16 %v6837
        %v7805 = vunpack.c.l.b16 %v6838
        %v7806 = vunpack.c.h.b16 %v6838
        %v7807 = vunpack.c.l.b16 %v6839
        %v7808 = vunpack.c.l.b16 %v6840
        %v7809 = vunpack.c.h.b16 %v6840
        %v7810 = vunpack.c.l.b16 %v6841
        %v7811 = vunpack.c.l.b16 %v6842
        %v7812 = vunpack.c.h.b16 %v6842
        %v7813 = vunpack.c.l.b16 %v6843
        %v7814 = vunpack.c.l.b16 %v6844
        %v7815 = vunpack.c.h.b16 %v6844
        %v7816 = vunpack.c.l.b16 %v6845
        %v7817 = vunpack.c.l.b16 %v6846
        %v7818 = vunpack.c.h.b16 %v6846
        %v7819 = vunpack.c.l.b16 %v6847
        %v7820 = vunpack.c.l.b16 %v6848
        %v7821 = vunpack.c.h.b16 %v6848
        %v7822 = vunpack.c.l.b16 %v6849
        %v7823 = vunpack.c.l.b16 %v6850
        %v7824 = vunpack.c.h.b16 %v6850
        %v7825 = vunpack.c.l.b16 %v6851
        %v7826 = vunpack.c.l.b16 %v6852
        %v7827 = vunpack.c.h.b16 %v6852
        %v7828 = vunpack.c.l.b16 %v6853
        %v7829 = vunpack.c.l.b16 %v6854
        %v7830 = vunpack.c.h.b16 %v6854
        %v7831 = vunpack.c.l.b16 %v6855
        %v7832 = vunpack.c.l.b16 %v6856
        %v7833 = vunpack.c.h.b16 %v6856
        %v7834 = vunpack.c.l.b16 %v6857
        %v7835 = vpack.c.b16 %v7262, %v7259
        %v7836 = vpack.c.b16 %v7263, %v7260
        %v7837 = vpack.c.b16 %v7264, %v7261
        %v7838 = vpack.c.b16 %v7268, %v7265
        %v7839 = vpack.c.b16 %v7269, %v7266
        %v7840 = vpack.c.b16 %v7270, %v7267
        %v7841 = vpack.c.b16 %v7274, %v7271
        %v7842 = vpack.c.b16 %v7275, %v7272
        %v7843 = vpack.c.b16 %v7276, %v7273
        %v7844 = vpack.c.b16 %v7280, %v7277
        %v7845 = vpack.c.b16 %v7281, %v7278
        %v7846 = vpack.c.b16 %v7282, %v7279
        %v7847 = vpack.c.b16 %v7286, %v7283
        %v7848 = vpack.c.b16 %v7287, %v7284
        %v7849 = vpack.c.b16 %v7288, %v7285
        %v7850 = vpack.c.b16 %v7292, %v7289
        %v7851 = vpack.c.b16 %v7293, %v7290
        %v7852 = vpack.c.b16 %v7294, %v7291
        %v7853 = vpack.c.b16 %v7298, %v7295
        %v7854 = vpack.c.b16 %v7299, %v7296
        %v7855 = vpack.c.b16 %v7300, %v7297
        %v7856 = vpack.c.b16 %v7304, %v7301
        %v7857 = vpack.c.b16 %v7305, %v7302
        %v7858 = vpack.c.b16 %v7306, %v7303
        %v7859 = vpack.c.b16 %v7310, %v7307
        %v7860 = vpack.c.b16 %v7311, %v7308
        %v7861 = vpack.c.b16 %v7312, %v7309
        %v7862 = vpack.c.b16 %v7316, %v7313
        %v7863 = vpack.c.b16 %v7317, %v7314
        %v7864 = vpack.c.b16 %v7318, %v7315
        %v7865 = vpack.c.b16 %v7322, %v7319
        %v7866 = vpack.c.b16 %v7323, %v7320
        %v7867 = vpack.c.b16 %v7324, %v7321
        %v7868 = vpack.c.b16 %v7328, %v7325
        %v7869 = vpack.c.b16 %v7329, %v7326
        %v7870 = vpack.c.b16 %v7330, %v7327
        %v7871 = vpack.c.b16 %v7334, %v7331
        %v7872 = vpack.c.b16 %v7335, %v7332
        %v7873 = vpack.c.b16 %v7336, %v7333
        %v7874 = vpack.c.b16 %v7340, %v7337
        %v7875 = vpack.c.b16 %v7341, %v7338
        %v7876 = vpack.c.b16 %v7342, %v7339
        %v7877 = vpack.c.b16 %v7346, %v7343
        %v7878 = vpack.c.b16 %v7347, %v7344
        %v7879 = vpack.c.b16 %v7348, %v7345
        %v7880 = vpack.c.b16 %v7352, %v7349
        %v7881 = vpack.c.b16 %v7353, %v7350
        %v7882 = vpack.c.b16 %v7354, %v7351
        %v7883 = vpack.c.b16 %v7358, %v7355
        %v7884 = vpack.c.b16 %v7359, %v7356
        %v7885 = vpack.c.b16 %v7360, %v7357
        %v7886 = vpack.c.b16 %v7364, %v7361
        %v7887 = vpack.c.b16 %v7365, %v7362
        %v7888 = vpack.c.b16 %v7366, %v7363
        %v7889 = vpack.c.b16 %v7370, %v7367
        %v7890 = vpack.c.b16 %v7371, %v7368
        %v7891 = vpack.c.b16 %v7372, %v7369
        %v7892 = vpack.c.b16 %v7376, %v7373
        %v7893 = vpack.c.b16 %v7377, %v7374
        %v7894 = vpack.c.b16 %v7378, %v7375
        %v7895 = vpack.c.b16 %v7382, %v7379
        %v7896 = vpack.c.b16 %v7383, %v7380
        %v7897 = vpack.c.b16 %v7384, %v7381
        %v7898 = vpack.c.b16 %v7388, %v7385
        %v7899 = vpack.c.b16 %v7389, %v7386
        %v7900 = vpack.c.b16 %v7390, %v7387
        %v7901 = vpack.c.b16 %v7394, %v7391
        %v7902 = vpack.c.b16 %v7395, %v7392
        %v7903 = vpack.c.b16 %v7396, %v7393
        %v7904 = vpack.c.b16 %v7400, %v7397
        %v7905 = vpack.c.b16 %v7401, %v7398
        %v7906 = vpack.c.b16 %v7402, %v7399
        %v7907 = vpack.c.b16 %v7406, %v7403
        %v7908 = vpack.c.b16 %v7407, %v7404
        %v7909 = vpack.c.b16 %v7408, %v7405
        %v7910 = vpack.c.b16 %v7412, %v7409
        %v7911 = vpack.c.b16 %v7413, %v7410
        %v7912 = vpack.c.b16 %v7414, %v7411
        %v7913 = vpack.c.b16 %v7418, %v7415
        %v7914 = vpack.c.b16 %v7419, %v7416
        %v7915 = vpack.c.b16 %v7420, %v7417
        %v7916 = vpack.c.b16 %v7424, %v7421
        %v7917 = vpack.c.b16 %v7425, %v7422
        %v7918 = vpack.c.b16 %v7426, %v7423
        %v7919 = vpack.c.b16 %v7430, %v7427
        %v7920 = vpack.c.b16 %v7431, %v7428
        %v7921 = vpack.c.b16 %v7432, %v7429
        %v7922 = vpack.c.b16 %v7436, %v7433
        %v7923 = vpack.c.b16 %v7437, %v7434
        %v7924 = vpack.c.b16 %v7438, %v7435
        %v7925 = vpack.c.b16 %v7442, %v7439
        %v7926 = vpack.c.b16 %v7443, %v7440
        %v7927 = vpack.c.b16 %v7444, %v7441
        %v7928 = vpack.c.b16 %v7448, %v7445
        %v7929 = vpack.c.b16 %v7449, %v7446
        %v7930 = vpack.c.b16 %v7450, %v7447
        %v7931 = vpack.c.b16 %v7454, %v7451
        %v7932 = vpack.c.b16 %v7455, %v7452
        %v7933 = vpack.c.b16 %v7456, %v7453
        %v7934 = vpack.c.b16 %v7460, %v7457
        %v7935 = vpack.c.b16 %v7461, %v7458
        %v7936 = vpack.c.b16 %v7462, %v7459
        %v7937 = vpack.c.b16 %v7466, %v7463
        %v7938 = vpack.c.b16 %v7467, %v7464
        %v7939 = vpack.c.b16 %v7468, %v7465
        %v7940 = vpack.c.b16 %v7472, %v7469
        %v7941 = vpack.c.b16 %v7473, %v7470
        %v7942 = vpack.c.b16 %v7474, %v7471
        %v7943 = vpack.c.b16 %v7478, %v7475
        %v7944 = vpack.c.b16 %v7479, %v7476
        %v7945 = vpack.c.b16 %v7480, %v7477
        %v7946 = vpack.c.b16 %v7484, %v7481
        %v7947 = vpack.c.b16 %v7485, %v7482
        %v7948 = vpack.c.b16 %v7486, %v7483
        %v7949 = vpack.c.b16 %v7490, %v7487
        %v7950 = vpack.c.b16 %v7491, %v7488
        %v7951 = vpack.c.b16 %v7492, %v7489
        %v7952 = vpack.c.b16 %v7496, %v7493
        %v7953 = vpack.c.b16 %v7497, %v7494
        %v7954 = vpack.c.b16 %v7498, %v7495
        %v7955 = vpack.c.b16 %v7502, %v7499
        %v7956 = vpack.c.b16 %v7503, %v7500
        %v7957 = vpack.c.b16 %v7504, %v7501
        %v7958 = vpack.c.b16 %v7508, %v7505
        %v7959 = vpack.c.b16 %v7509, %v7506
        %v7960 = vpack.c.b16 %v7510, %v7507
        %v7961 = vpack.c.b16 %v7514, %v7511
        %v7962 = vpack.c.b16 %v7515, %v7512
        %v7963 = vpack.c.b16 %v7516, %v7513
        %v7964 = vpack.c.b16 %v7520, %v7517
        %v7965 = vpack.c.b16 %v7521, %v7518
        %v7966 = vpack.c.b16 %v7522, %v7519
        %v7967 = vpack.c.b16 %v7526, %v7523
        %v7968 = vpack.c.b16 %v7527, %v7524
        %v7969 = vpack.c.b16 %v7528, %v7525
        %v7970 = vpack.c.b16 %v7532, %v7529
        %v7971 = vpack.c.b16 %v7533, %v7530
        %v7972 = vpack.c.b16 %v7534, %v7531
        %v7973 = vpack.c.b16 %v7538, %v7535
        %v7974 = vpack.c.b16 %v7539, %v7536
        %v7975 = vpack.c.b16 %v7540, %v7537
        %v7976 = vpack.c.b16 %v7544, %v7541
        %v7977 = vpack.c.b16 %v7545, %v7542
        %v7978 = vpack.c.b16 %v7546, %v7543
        %v7979 = vpack.c.b16 %v7550, %v7547
        %v7980 = vpack.c.b16 %v7551, %v7548
        %v7981 = vpack.c.b16 %v7552, %v7549
        %v7982 = vpack.c.b16 %v7556, %v7553
        %v7983 = vpack.c.b16 %v7557, %v7554
        %v7984 = vpack.c.b16 %v7558, %v7555
        %v7985 = vpack.c.b16 %v7562, %v7559
        %v7986 = vpack.c.b16 %v7563, %v7560
        %v7987 = vpack.c.b16 %v7564, %v7561
        %v7988 = vpack.c.b16 %v7568, %v7565
        %v7989 = vpack.c.b16 %v7569, %v7566
        %v7990 = vpack.c.b16 %v7570, %v7567
        %v7991 = vpack.c.b16 %v7574, %v7571
        %v7992 = vpack.c.b16 %v7575, %v7572
        %v7993 = vpack.c.b16 %v7576, %v7573
        %v7994 = vpack.c.b16 %v7580, %v7577
        %v7995 = vpack.c.b16 %v7581, %v7578
        %v7996 = vpack.c.b16 %v7582, %v7579
        %v7997 = vpack.c.b16 %v7586, %v7583
        %v7998 = vpack.c.b16 %v7587, %v7584
        %v7999 = vpack.c.b16 %v7588, %v7585
        %v8000 = vpack.c.b16 %v7592, %v7589
        %v8001 = vpack.c.b16 %v7593, %v7590
        %v8002 = vpack.c.b16 %v7594, %v7591
        %v8003 = vpack.c.b16 %v7598, %v7595
        %v8004 = vpack.c.b16 %v7599, %v7596
        %v8005 = vpack.c.b16 %v7600, %v7597
        %v8006 = vpack.c.b16 %v7604, %v7601
        %v8007 = vpack.c.b16 %v7605, %v7602
        %v8008 = vpack.c.b16 %v7606, %v7603
        %v8009 = vpack.c.b16 %v7610, %v7607
        %v8010 = vpack.c.b16 %v7611, %v7608
        %v8011 = vpack.c.b16 %v7612, %v7609
        %v8012 = vpack.c.b16 %v7616, %v7613
        %v8013 = vpack.c.b16 %v7617, %v7614
        %v8014 = vpack.c.b16 %v7618, %v7615
        %v8015 = vpack.c.b16 %v7622, %v7619
        %v8016 = vpack.c.b16 %v7623, %v7620
        %v8017 = vpack.c.b16 %v7624, %v7621
        %v8018 = vpack.c.b16 %v7628, %v7625
        %v8019 = vpack.c.b16 %v7629, %v7626
        %v8020 = vpack.c.b16 %v7630, %v7627
        %v8021 = vpack.c.b16 %v7634, %v7631
        %v8022 = vpack.c.b16 %v7635, %v7632
        %v8023 = vpack.c.b16 %v7636, %v7633
        %v8024 = vpack.c.b16 %v7640, %v7637
        %v8025 = vpack.c.b16 %v7641, %v7638
        %v8026 = vpack.c.b16 %v7642, %v7639
        %v8027 = vpack.c.b16 %v7646, %v7643
        %v8028 = vpack.c.b16 %v7647, %v7644
        %v8029 = vpack.c.b16 %v7648, %v7645
        %v8030 = vpack.c.b16 %v7652, %v7649
        %v8031 = vpack.c.b16 %v7653, %v7650
        %v8032 = vpack.c.b16 %v7654, %v7651
        %v8033 = vpack.c.b16 %v7658, %v7655
        %v8034 = vpack.c.b16 %v7659, %v7656
        %v8035 = vpack.c.b16 %v7660, %v7657
        %v8036 = vpack.c.b16 %v7664, %v7661
        %v8037 = vpack.c.b16 %v7665, %v7662
        %v8038 = vpack.c.b16 %v7666, %v7663
        %v8039 = vpack.c.b16 %v7670, %v7667
        %v8040 = vpack.c.b16 %v7671, %v7668
        %v8041 = vpack.c.b16 %v7672, %v7669
        %v8042 = vpack.c.b16 %v7676, %v7673
        %v8043 = vpack.c.b16 %v7677, %v7674
        %v8044 = vpack.c.b16 %v7678, %v7675
        %v8045 = vpack.c.b16 %v7682, %v7679
        %v8046 = vpack.c.b16 %v7683, %v7680
        %v8047 = vpack.c.b16 %v7684, %v7681
        %v8048 = vpack.c.b16 %v7688, %v7685
        %v8049 = vpack.c.b16 %v7689, %v7686
        %v8050 = vpack.c.b16 %v7690, %v7687
        %v8051 = vpack.c.b16 %v7694, %v7691
        %v8052 = vpack.c.b16 %v7695, %v7692
        %v8053 = vpack.c.b16 %v7696, %v7693
        %v8054 = vpack.c.b16 %v7700, %v7697
        %v8055 = vpack.c.b16 %v7701, %v7698
        %v8056 = vpack.c.b16 %v7702, %v7699
        %v8057 = vpack.c.b16 %v7706, %v7703
        %v8058 = vpack.c.b16 %v7707, %v7704
        %v8059 = vpack.c.b16 %v7708, %v7705
        %v8060 = vpack.c.b16 %v7712, %v7709
        %v8061 = vpack.c.b16 %v7713, %v7710
        %v8062 = vpack.c.b16 %v7714, %v7711
        %v8063 = vpack.c.b16 %v7718, %v7715
        %v8064 = vpack.c.b16 %v7719, %v7716
        %v8065 = vpack.c.b16 %v7720, %v7717
        %v8066 = vpack.c.b16 %v7724, %v7721
        %v8067 = vpack.c.b16 %v7725, %v7722
        %v8068 = vpack.c.b16 %v7726, %v7723
        %v8069 = vpack.c.b16 %v7730, %v7727
        %v8070 = vpack.c.b16 %v7731, %v7728
        %v8071 = vpack.c.b16 %v7732, %v7729
        %v8072 = vpack.c.b16 %v7736, %v7733
        %v8073 = vpack.c.b16 %v7737, %v7734
        %v8074 = vpack.c.b16 %v7738, %v7735
        %v8075 = vpack.c.b16 %v7742, %v7739
        %v8076 = vpack.c.b16 %v7743, %v7740
        %v8077 = vpack.c.b16 %v7744, %v7741
        %v8078 = vpack.c.b16 %v7748, %v7745
        %v8079 = vpack.c.b16 %v7749, %v7746
        %v8080 = vpack.c.b16 %v7750, %v7747
        %v8081 = vpack.c.b16 %v7754, %v7751
        %v8082 = vpack.c.b16 %v7755, %v7752
        %v8083 = vpack.c.b16 %v7756, %v7753
        %v8084 = vpack.c.b16 %v7760, %v7757
        %v8085 = vpack.c.b16 %v7761, %v7758
        %v8086 = vpack.c.b16 %v7762, %v7759
        %v8087 = vpack.c.b16 %v7766, %v7763
        %v8088 = vpack.c.b16 %v7767, %v7764
        %v8089 = vpack.c.b16 %v7768, %v7765
        %v8090 = vpack.c.b16 %v7772, %v7769
        %v8091 = vpack.c.b16 %v7773, %v7770
        %v8092 = vpack.c.b16 %v7774, %v7771
        %v8093 = vpack.c.b16 %v7778, %v7775
        %v8094 = vpack.c.b16 %v7779, %v7776
        %v8095 = vpack.c.b16 %v7780, %v7777
        %v8096 = vpack.c.b16 %v7784, %v7781
        %v8097 = vpack.c.b16 %v7785, %v7782
        %v8098 = vpack.c.b16 %v7786, %v7783
        %v8099 = vpack.c.b16 %v7790, %v7787
        %v8100 = vpack.c.b16 %v7791, %v7788
        %v8101 = vpack.c.b16 %v7792, %v7789
        %v8102 = vpack.c.b16 %v7796, %v7793
        %v8103 = vpack.c.b16 %v7797, %v7794
        %v8104 = vpack.c.b16 %v7798, %v7795
        %v8105 = vpack.c.b16 %v7802, %v7799
        %v8106 = vpack.c.b16 %v7803, %v7800
        %v8107 = vpack.c.b16 %v7804, %v7801
        %v8108 = vpack.c.b16 %v7808, %v7805
        %v8109 = vpack.c.b16 %v7809, %v7806
        %v8110 = vpack.c.b16 %v7810, %v7807
        %v8111 = vpack.c.b16 %v7814, %v7811
        %v8112 = vpack.c.b16 %v7815, %v7812
        %v8113 = vpack.c.b16 %v7816, %v7813
        %v8114 = vpack.c.b16 %v7820, %v7817
        %v8115 = vpack.c.b16 %v7821, %v7818
        %v8116 = vpack.c.b16 %v7822, %v7819
        %v8117 = vpack.c.b16 %v7826, %v7823
        %v8118 = vpack.c.b16 %v7827, %v7824
        %v8119 = vpack.c.b16 %v7828, %v7825
        %v8120 = vpack.c.b16 %v7832, %v7829
        %v8121 = vpack.c.b16 %v7833, %v7830
        %v8122 = vpack.c.b16 %v7834, %v7831
        %8411 = vmatprep.subr.bf16.mxu0 %v7857
        %8412 = vmatpush1.bf16.msra.mxu0 %v7856
        %8413 = vmatprep.subr.bf16.mxu0 %v7854
        %8414 = vmatpush1.bf16.msra.mxu0 %v7853
        %8415 = vmatprep.subr.bf16.mxu0 %v7851
        %8416 = vmatpush1.bf16.msra.mxu0 %v7850
        %8417 = vmatprep.subr.bf16.mxu0 %v7848
        %8418 = vmatpush1.bf16.msra.mxu0 %v7847
        %8419 = vmatprep.subr.bf16.mxu0 %v7845
        %8420 = vmatpush1.bf16.msra.mxu0 %v7844
        %8421 = vmatprep.subr.bf16.mxu0 %v7842
        %8422 = vmatpush1.bf16.msra.mxu0 %v7841
        %8423 = vmatprep.subr.bf16.mxu0 %v7839
        %8424 = vmatpush1.bf16.msra.mxu0 %v7838
        %8425 = vmatprep.subr.bf16.mxu0 %v7836
        %8426 = vmatpush1.bf16.msra.mxu0 %v7835
        %8427 = vmatprep.subr.bf16.mxu0 %v7881
        %8428 = vmatpush2.bf16.msra.mxu0 %v7880
        %8429 = vmatprep.subr.bf16.mxu0 %v7878
        %8430 = vmatpush2.bf16.msra.mxu0 %v7877
        %8431 = vmatprep.subr.bf16.mxu0 %v7875
        %8432 = vmatpush2.bf16.msra.mxu0 %v7874
        %8433 = vmatprep.subr.bf16.mxu0 %v7872
        %8434 = vmatpush2.bf16.msra.mxu0 %v7871
        %8435 = vmatprep.subr.bf16.mxu0 %v7869
        %8436 = vmatpush2.bf16.msra.mxu0 %v7868
        %8437 = vmatprep.subr.bf16.mxu0 %v7866
        %8438 = vmatpush2.bf16.msra.mxu0 %v7865
        %8439 = vmatprep.subr.bf16.mxu0 %v7863
        %8440 = vmatpush2.bf16.msra.mxu0 %v7862
        %8441 = vmatprep.subr.bf16.mxu0 %v7860
        %8442 = vmatpush2.bf16.msra.mxu0 %v7859
        %8443 = vmatprep.mubr.bf16.mxu0 %v6463
        %8444 = vmatmul.mubr.bf16.gmra.mxu0 %v6462
        %v8445 = vpop.f32.mrf.mxu0
        %v8446 = vadd.f32 %v6863, %v8445
        %v8447 = vpop.f32.mrf.mxu0
        %v8448 = vadd.f32 %v6867, %v8447
        %v8449 = vpop.f32.mrf.mxu0
        %v8450 = vpop.f32.mrf.mxu0
        %8451 = vdwg.mxu0
        %8452 = vmatprep.subr.bf16.mxu0 %v7905
        %8453 = vmatpush1.bf16.msra.mxu0 %v7904
        %8454 = vmatprep.subr.bf16.mxu0 %v7902
        %8455 = vmatpush1.bf16.msra.mxu0 %v7901
        %8456 = vmatprep.subr.bf16.mxu0 %v7899
        %8457 = vmatpush1.bf16.msra.mxu0 %v7898
        %8458 = vmatprep.subr.bf16.mxu0 %v7896
        %8459 = vmatpush1.bf16.msra.mxu0 %v7895
        %8460 = vmatprep.subr.bf16.mxu0 %v7893
        %8461 = vmatpush1.bf16.msra.mxu0 %v7892
        %8462 = vmatprep.subr.bf16.mxu0 %v7890
        %8463 = vmatpush1.bf16.msra.mxu0 %v7889
        %8464 = vmatprep.subr.bf16.mxu0 %v7887
        %8465 = vmatpush1.bf16.msra.mxu0 %v7886
        %8466 = vmatprep.subr.bf16.mxu0 %v7884
        %8467 = vmatpush1.bf16.msra.mxu0 %v7883
        %8468 = vmatprep.subr.bf16.mxu0 %v7929
        %8469 = vmatpush2.bf16.msra.mxu0 %v7928
        %8470 = vmatprep.subr.bf16.mxu0 %v7926
        %8471 = vmatpush2.bf16.msra.mxu0 %v7925
        %8472 = vmatprep.subr.bf16.mxu0 %v7923
        %8473 = vmatpush2.bf16.msra.mxu0 %v7922
        %8474 = vmatprep.subr.bf16.mxu0 %v7920
        %8475 = vmatpush2.bf16.msra.mxu0 %v7919
        %8476 = vmatprep.subr.bf16.mxu0 %v7917
        %8477 = vmatpush2.bf16.msra.mxu0 %v7916
        %8478 = vmatprep.subr.bf16.mxu0 %v7914
        %8479 = vmatpush2.bf16.msra.mxu0 %v7913
        %8480 = vmatprep.subr.bf16.mxu0 %v7911
        %8481 = vmatpush2.bf16.msra.mxu0 %v7910
        %8482 = vmatprep.subr.bf16.mxu0 %v7908
        %8483 = vmatpush2.bf16.msra.mxu0 %v7907
        %8484 = vmatprep.mubr.bf16.mxu0 %v6465
        %8485 = vmatmul.mubr.bf16.gmra.mxu0 %v6464
        %v8486 = vpop.f32.mrf.mxu0
        %v8487 = vadd.f32 %v8446, %v8486
        %v8488 = vpop.f32.mrf.mxu0
        %v8489 = vadd.f32 %v8448, %v8488
        %v8490 = vpop.f32.mrf.mxu0
        %v8491 = vpop.f32.mrf.mxu0
        %8492 = vdwg.mxu0
        %8493 = vmatprep.subr.bf16.mxu0 %v7953
        %8494 = vmatpush1.bf16.msra.mxu0 %v7952
        %8495 = vmatprep.subr.bf16.mxu0 %v7950
        %8496 = vmatpush1.bf16.msra.mxu0 %v7949
        %8497 = vmatprep.subr.bf16.mxu0 %v7947
        %8498 = vmatpush1.bf16.msra.mxu0 %v7946
        %8499 = vmatprep.subr.bf16.mxu0 %v7944
        %8500 = vmatpush1.bf16.msra.mxu0 %v7943
        %8501 = vmatprep.subr.bf16.mxu0 %v7941
        %8502 = vmatpush1.bf16.msra.mxu0 %v7940
        %8503 = vmatprep.subr.bf16.mxu0 %v7938
        %8504 = vmatpush1.bf16.msra.mxu0 %v7937
        %8505 = vmatprep.subr.bf16.mxu0 %v7935
        %8506 = vmatpush1.bf16.msra.mxu0 %v7934
        %8507 = vmatprep.subr.bf16.mxu0 %v7932
        %8508 = vmatpush1.bf16.msra.mxu0 %v7931
        %8509 = vmatprep.subr.bf16.mxu0 %v7977
        %8510 = vmatpush2.bf16.msra.mxu0 %v7976
        %8511 = vmatprep.subr.bf16.mxu0 %v7974
        %8512 = vmatpush2.bf16.msra.mxu0 %v7973
        %8513 = vmatprep.subr.bf16.mxu0 %v7971
        %8514 = vmatpush2.bf16.msra.mxu0 %v7970
        %8515 = vmatprep.subr.bf16.mxu0 %v7968
        %8516 = vmatpush2.bf16.msra.mxu0 %v7967
        %8517 = vmatprep.subr.bf16.mxu0 %v7965
        %8518 = vmatpush2.bf16.msra.mxu0 %v7964
        %8519 = vmatprep.subr.bf16.mxu0 %v7962
        %8520 = vmatpush2.bf16.msra.mxu0 %v7961
        %8521 = vmatprep.subr.bf16.mxu0 %v7959
        %8522 = vmatpush2.bf16.msra.mxu0 %v7958
        %8523 = vmatprep.subr.bf16.mxu0 %v7956
        %8524 = vmatpush2.bf16.msra.mxu0 %v7955
        %8525 = vmatprep.mubr.bf16.mxu0 %v6467
        %8526 = vmatmul.mubr.bf16.gmra.mxu0 %v6466
        %v8527 = vpop.f32.mrf.mxu0
        %v8528 = vadd.f32 %v8487, %v8527
        %v8529 = vpop.f32.mrf.mxu0
        %v8530 = vadd.f32 %v8489, %v8529
        %v8531 = vpop.f32.mrf.mxu0
        %v8532 = vpop.f32.mrf.mxu0
        %8533 = vdwg.mxu0
        %8534 = vmatprep.subr.bf16.mxu0 %v8001
        %8535 = vmatpush1.bf16.msra.mxu0 %v8000
        %8536 = vmatprep.subr.bf16.mxu0 %v7998
        %8537 = vmatpush1.bf16.msra.mxu0 %v7997
        %8538 = vmatprep.subr.bf16.mxu0 %v7995
        %8539 = vmatpush1.bf16.msra.mxu0 %v7994
        %8540 = vmatprep.subr.bf16.mxu0 %v7992
        %8541 = vmatpush1.bf16.msra.mxu0 %v7991
        %8542 = vmatprep.subr.bf16.mxu0 %v7989
        %8543 = vmatpush1.bf16.msra.mxu0 %v7988
        %8544 = vmatprep.subr.bf16.mxu0 %v7986
        %8545 = vmatpush1.bf16.msra.mxu0 %v7985
        %8546 = vmatprep.subr.bf16.mxu0 %v7983
        %8547 = vmatpush1.bf16.msra.mxu0 %v7982
        %8548 = vmatprep.subr.bf16.mxu0 %v7980
        %8549 = vmatpush1.bf16.msra.mxu0 %v7979
        %8550 = vmatprep.subr.bf16.mxu0 %v8025
        %8551 = vmatpush2.bf16.msra.mxu0 %v8024
        %8552 = vmatprep.subr.bf16.mxu0 %v8022
        %8553 = vmatpush2.bf16.msra.mxu0 %v8021
        %8554 = vmatprep.subr.bf16.mxu0 %v8019
        %8555 = vmatpush2.bf16.msra.mxu0 %v8018
        %8556 = vmatprep.subr.bf16.mxu0 %v8016
        %8557 = vmatpush2.bf16.msra.mxu0 %v8015
        %8558 = vmatprep.subr.bf16.mxu0 %v8013
        %8559 = vmatpush2.bf16.msra.mxu0 %v8012
        %8560 = vmatprep.subr.bf16.mxu0 %v8010
        %8561 = vmatpush2.bf16.msra.mxu0 %v8009
        %8562 = vmatprep.subr.bf16.mxu0 %v8007
        %8563 = vmatpush2.bf16.msra.mxu0 %v8006
        %8564 = vmatprep.subr.bf16.mxu0 %v8004
        %8565 = vmatpush2.bf16.msra.mxu0 %v8003
        %8566 = vmatprep.mubr.bf16.mxu0 %v6469
        %8567 = vmatmul.mubr.bf16.gmra.mxu0 %v6468
        %v8568 = vpop.f32.mrf.mxu0
        %v8569 = vadd.f32 %v8528, %v8568
        %v8570 = vpop.f32.mrf.mxu0
        %v8571 = vadd.f32 %v8530, %v8570
        %v8572 = vpop.f32.mrf.mxu0
        %v8573 = vpop.f32.mrf.mxu0
        %8574 = vdwg.mxu0
        %8575 = vmatprep.subr.bf16.mxu0 %v8049
        %8576 = vmatpush1.bf16.msra.mxu0 %v8048
        %8577 = vmatprep.subr.bf16.mxu0 %v8046
        %8578 = vmatpush1.bf16.msra.mxu0 %v8045
        %8579 = vmatprep.subr.bf16.mxu0 %v8043
        %8580 = vmatpush1.bf16.msra.mxu0 %v8042
        %8581 = vmatprep.subr.bf16.mxu0 %v8040
        %8582 = vmatpush1.bf16.msra.mxu0 %v8039
        %8583 = vmatprep.subr.bf16.mxu0 %v8037
        %8584 = vmatpush1.bf16.msra.mxu0 %v8036
        %8585 = vmatprep.subr.bf16.mxu0 %v8034
        %8586 = vmatpush1.bf16.msra.mxu0 %v8033
        %8587 = vmatprep.subr.bf16.mxu0 %v8031
        %8588 = vmatpush1.bf16.msra.mxu0 %v8030
        %8589 = vmatprep.subr.bf16.mxu0 %v8028
        %8590 = vmatpush1.bf16.msra.mxu0 %v8027
        %8591 = vmatprep.subr.bf16.mxu0 %v8073
        %8592 = vmatpush2.bf16.msra.mxu0 %v8072
        %8593 = vmatprep.subr.bf16.mxu0 %v8070
        %8594 = vmatpush2.bf16.msra.mxu0 %v8069
        %8595 = vmatprep.subr.bf16.mxu0 %v8067
        %8596 = vmatpush2.bf16.msra.mxu0 %v8066
        %8597 = vmatprep.subr.bf16.mxu0 %v8064
        %8598 = vmatpush2.bf16.msra.mxu0 %v8063
        %8599 = vmatprep.subr.bf16.mxu0 %v8061
        %8600 = vmatpush2.bf16.msra.mxu0 %v8060
        %8601 = vmatprep.subr.bf16.mxu0 %v8058
        %8602 = vmatpush2.bf16.msra.mxu0 %v8057
        %8603 = vmatprep.subr.bf16.mxu0 %v8055
        %8604 = vmatpush2.bf16.msra.mxu0 %v8054
        %8605 = vmatprep.subr.bf16.mxu0 %v8052
        %8606 = vmatpush2.bf16.msra.mxu0 %v8051
        %8607 = vmatprep.mubr.bf16.mxu0 %v6471
        %8608 = vmatmul.mubr.bf16.gmra.mxu0 %v6470
        %v8609 = vpop.f32.mrf.mxu0
        %v8610 = vadd.f32 %v8569, %v8609
        %v8611 = vpop.f32.mrf.mxu0
        %v8612 = vadd.f32 %v8571, %v8611
        %v8613 = vpop.f32.mrf.mxu0
        %v8614 = vpop.f32.mrf.mxu0
        %8615 = vdwg.mxu0
        %8616 = vmatprep.subr.bf16.mxu0 %v8097
        %8617 = vmatpush1.bf16.msra.mxu0 %v8096
        %8618 = vmatprep.subr.bf16.mxu0 %v8094
        %8619 = vmatpush1.bf16.msra.mxu0 %v8093
        %8620 = vmatprep.subr.bf16.mxu0 %v8091
        %8621 = vmatpush1.bf16.msra.mxu0 %v8090
        %8622 = vmatprep.subr.bf16.mxu0 %v8088
        %8623 = vmatpush1.bf16.msra.mxu0 %v8087
        %8624 = vmatprep.subr.bf16.mxu0 %v8085
        %8625 = vmatpush1.bf16.msra.mxu0 %v8084
        %8626 = vmatprep.subr.bf16.mxu0 %v8082
        %8627 = vmatpush1.bf16.msra.mxu0 %v8081
        %8628 = vmatprep.subr.bf16.mxu0 %v8079
        %8629 = vmatpush1.bf16.msra.mxu0 %v8078
        %8630 = vmatprep.subr.bf16.mxu0 %v8076
        %8631 = vmatpush1.bf16.msra.mxu0 %v8075
        %8632 = vmatprep.subr.bf16.mxu0 %v8121
        %8633 = vmatpush2.bf16.msra.mxu0 %v8120
        %8634 = vmatprep.subr.bf16.mxu0 %v8118
        %8635 = vmatpush2.bf16.msra.mxu0 %v8117
        %8636 = vmatprep.subr.bf16.mxu0 %v8115
        %8637 = vmatpush2.bf16.msra.mxu0 %v8114
        %8638 = vmatprep.subr.bf16.mxu0 %v8112
        %8639 = vmatpush2.bf16.msra.mxu0 %v8111
        %8640 = vmatprep.subr.bf16.mxu0 %v8109
        %8641 = vmatpush2.bf16.msra.mxu0 %v8108
        %8642 = vmatprep.subr.bf16.mxu0 %v8106
        %8643 = vmatpush2.bf16.msra.mxu0 %v8105
        %8644 = vmatprep.subr.bf16.mxu0 %v8103
        %8645 = vmatpush2.bf16.msra.mxu0 %v8102
        %8646 = vmatprep.subr.bf16.mxu0 %v8100
        %8647 = vmatpush2.bf16.msra.mxu0 %v8099
        %8648 = vmatprep.mubr.bf16.mxu0 %v6473
        %8649 = vmatmul.mubr.bf16.gmra.mxu0 %v6472
        %v8650 = vpop.f32.mrf.mxu0
        %v8651 = vadd.f32 %v8610, %v8650
        %v8652 = vpop.f32.mrf.mxu0
        %v8653 = vadd.f32 %v8612, %v8652
        %v8654 = vpop.f32.mrf.mxu0
        %v8655 = vpop.f32.mrf.mxu0
        %8656 = vdwg.mxu0
        %8657 = vmatprep.subr.bf16.mxu0 0
        %8658 = vmatpush1.bf16.msra.mxu0 %v7858
        %8659 = vmatprep.subr.bf16.mxu0 0
        %8660 = vmatpush1.bf16.msra.mxu0 %v7855
        %8661 = vmatprep.subr.bf16.mxu0 0
        %8662 = vmatpush1.bf16.msra.mxu0 %v7852
        %8663 = vmatprep.subr.bf16.mxu0 0
        %8664 = vmatpush1.bf16.msra.mxu0 %v7849
        %8665 = vmatprep.subr.bf16.mxu0 0
        %8666 = vmatpush1.bf16.msra.mxu0 %v7846
        %8667 = vmatprep.subr.bf16.mxu0 0
        %8668 = vmatpush1.bf16.msra.mxu0 %v7843
        %8669 = vmatprep.subr.bf16.mxu0 0
        %8670 = vmatpush1.bf16.msra.mxu0 %v7840
        %8671 = vmatprep.subr.bf16.mxu0 0
        %8672 = vmatpush1.bf16.msra.mxu0 %v7837
        %8673 = vmatprep.subr.bf16.mxu0 0
        %8674 = vmatpush2.bf16.msra.mxu0 %v7882
        %8675 = vmatprep.subr.bf16.mxu0 0
        %8676 = vmatpush2.bf16.msra.mxu0 %v7879
        %8677 = vmatprep.subr.bf16.mxu0 0
        %8678 = vmatpush2.bf16.msra.mxu0 %v7876
        %8679 = vmatprep.subr.bf16.mxu0 0
        %8680 = vmatpush2.bf16.msra.mxu0 %v7873
        %8681 = vmatprep.subr.bf16.mxu0 0
        %8682 = vmatpush2.bf16.msra.mxu0 %v7870
        %8683 = vmatprep.subr.bf16.mxu0 0
        %8684 = vmatpush2.bf16.msra.mxu0 %v7867
        %8685 = vmatprep.subr.bf16.mxu0 0
        %8686 = vmatpush2.bf16.msra.mxu0 %v7864
        %8687 = vmatprep.subr.bf16.mxu0 0
        %8688 = vmatpush2.bf16.msra.mxu0 %v7861
        %8689 = vmatprep.mubr.bf16.mxu0 %v6463
        %8690 = vmatmul.mubr.bf16.gmra.mxu0 %v6462
        %v8691 = vpop.f32.mrf.mxu0
        %v8692 = vadd.f32 %v6871, %v8691
        %v8693 = vpop.f32.mrf.mxu0
        %v8694 = vpop.f32.mrf.mxu0
        %v8695 = vpop.f32.mrf.mxu0
        %8696 = vdwg.mxu0
        %8697 = vmatprep.subr.bf16.mxu0 0
        %8698 = vmatpush1.bf16.msra.mxu0 %v7906
        %8699 = vmatprep.subr.bf16.mxu0 0
        %8700 = vmatpush1.bf16.msra.mxu0 %v7903
        %8701 = vmatprep.subr.bf16.mxu0 0
        %8702 = vmatpush1.bf16.msra.mxu0 %v7900
        %8703 = vmatprep.subr.bf16.mxu0 0
        %8704 = vmatpush1.bf16.msra.mxu0 %v7897
        %8705 = vmatprep.subr.bf16.mxu0 0
        %8706 = vmatpush1.bf16.msra.mxu0 %v7894
        %8707 = vmatprep.subr.bf16.mxu0 0
        %8708 = vmatpush1.bf16.msra.mxu0 %v7891
        %8709 = vmatprep.subr.bf16.mxu0 0
        %8710 = vmatpush1.bf16.msra.mxu0 %v7888
        %8711 = vmatprep.subr.bf16.mxu0 0
        %8712 = vmatpush1.bf16.msra.mxu0 %v7885
        %8713 = vmatprep.subr.bf16.mxu0 0
        %8714 = vmatpush2.bf16.msra.mxu0 %v7930
        %8715 = vmatprep.subr.bf16.mxu0 0
        %8716 = vmatpush2.bf16.msra.mxu0 %v7927
        %8717 = vmatprep.subr.bf16.mxu0 0
        %8718 = vmatpush2.bf16.msra.mxu0 %v7924
        %8719 = vmatprep.subr.bf16.mxu0 0
        %8720 = vmatpush2.bf16.msra.mxu0 %v7921
        %8721 = vmatprep.subr.bf16.mxu0 0
        %8722 = vmatpush2.bf16.msra.mxu0 %v7918
        %8723 = vmatprep.subr.bf16.mxu0 0
        %8724 = vmatpush2.bf16.msra.mxu0 %v7915
        %8725 = vmatprep.subr.bf16.mxu0 0
        %8726 = vmatpush2.bf16.msra.mxu0 %v7912
        %8727 = vmatprep.subr.bf16.mxu0 0
        %8728 = vmatpush2.bf16.msra.mxu0 %v7909
        %8729 = vmatprep.mubr.bf16.mxu0 %v6465
        %8730 = vmatmul.mubr.bf16.gmra.mxu0 %v6464
        %v8731 = vpop.f32.mrf.mxu0
        %v8732 = vadd.f32 %v8692, %v8731
        %v8733 = vpop.f32.mrf.mxu0
        %v8734 = vpop.f32.mrf.mxu0
        %v8735 = vpop.f32.mrf.mxu0
        %8736 = vdwg.mxu0
        %8737 = vmatprep.subr.bf16.mxu0 0
        %8738 = vmatpush1.bf16.msra.mxu0 %v7954
        %8739 = vmatprep.subr.bf16.mxu0 0
        %8740 = vmatpush1.bf16.msra.mxu0 %v7951
        %8741 = vmatprep.subr.bf16.mxu0 0
        %8742 = vmatpush1.bf16.msra.mxu0 %v7948
        %8743 = vmatprep.subr.bf16.mxu0 0
        %8744 = vmatpush1.bf16.msra.mxu0 %v7945
        %8745 = vmatprep.subr.bf16.mxu0 0
        %8746 = vmatpush1.bf16.msra.mxu0 %v7942
        %8747 = vmatprep.subr.bf16.mxu0 0
        %8748 = vmatpush1.bf16.msra.mxu0 %v7939
        %8749 = vmatprep.subr.bf16.mxu0 0
        %8750 = vmatpush1.bf16.msra.mxu0 %v7936
        %8751 = vmatprep.subr.bf16.mxu0 0
        %8752 = vmatpush1.bf16.msra.mxu0 %v7933
        %8753 = vmatprep.subr.bf16.mxu0 0
        %8754 = vmatpush2.bf16.msra.mxu0 %v7978
        %8755 = vmatprep.subr.bf16.mxu0 0
        %8756 = vmatpush2.bf16.msra.mxu0 %v7975
        %8757 = vmatprep.subr.bf16.mxu0 0
        %8758 = vmatpush2.bf16.msra.mxu0 %v7972
        %8759 = vmatprep.subr.bf16.mxu0 0
        %8760 = vmatpush2.bf16.msra.mxu0 %v7969
        %8761 = vmatprep.subr.bf16.mxu0 0
        %8762 = vmatpush2.bf16.msra.mxu0 %v7966
        %8763 = vmatprep.subr.bf16.mxu0 0
        %8764 = vmatpush2.bf16.msra.mxu0 %v7963
        %8765 = vmatprep.subr.bf16.mxu0 0
        %8766 = vmatpush2.bf16.msra.mxu0 %v7960
        %8767 = vmatprep.subr.bf16.mxu0 0
        %8768 = vmatpush2.bf16.msra.mxu0 %v7957
        %8769 = vmatprep.mubr.bf16.mxu0 %v6467
        %8770 = vmatmul.mubr.bf16.gmra.mxu0 %v6466
        %v8771 = vpop.f32.mrf.mxu0
        %v8772 = vadd.f32 %v8732, %v8771
        %v8773 = vpop.f32.mrf.mxu0
        %v8774 = vpop.f32.mrf.mxu0
        %v8775 = vpop.f32.mrf.mxu0
        %8776 = vdwg.mxu0
        %8777 = vmatprep.subr.bf16.mxu0 0
        %8778 = vmatpush1.bf16.msra.mxu0 %v8002
        %8779 = vmatprep.subr.bf16.mxu0 0
        %8780 = vmatpush1.bf16.msra.mxu0 %v7999
        %8781 = vmatprep.subr.bf16.mxu0 0
        %8782 = vmatpush1.bf16.msra.mxu0 %v7996
        %8783 = vmatprep.subr.bf16.mxu0 0
        %8784 = vmatpush1.bf16.msra.mxu0 %v7993
        %8785 = vmatprep.subr.bf16.mxu0 0
        %8786 = vmatpush1.bf16.msra.mxu0 %v7990
        %8787 = vmatprep.subr.bf16.mxu0 0
        %8788 = vmatpush1.bf16.msra.mxu0 %v7987
        %8789 = vmatprep.subr.bf16.mxu0 0
        %8790 = vmatpush1.bf16.msra.mxu0 %v7984
        %8791 = vmatprep.subr.bf16.mxu0 0
        %8792 = vmatpush1.bf16.msra.mxu0 %v7981
        %8793 = vmatprep.subr.bf16.mxu0 0
        %8794 = vmatpush2.bf16.msra.mxu0 %v8026
        %8795 = vmatprep.subr.bf16.mxu0 0
        %8796 = vmatpush2.bf16.msra.mxu0 %v8023
        %8797 = vmatprep.subr.bf16.mxu0 0
        %8798 = vmatpush2.bf16.msra.mxu0 %v8020
        %8799 = vmatprep.subr.bf16.mxu0 0
        %8800 = vmatpush2.bf16.msra.mxu0 %v8017
        %8801 = vmatprep.subr.bf16.mxu0 0
        %8802 = vmatpush2.bf16.msra.mxu0 %v8014
        %8803 = vmatprep.subr.bf16.mxu0 0
        %8804 = vmatpush2.bf16.msra.mxu0 %v8011
        %8805 = vmatprep.subr.bf16.mxu0 0
        %8806 = vmatpush2.bf16.msra.mxu0 %v8008
        %8807 = vmatprep.subr.bf16.mxu0 0
        %8808 = vmatpush2.bf16.msra.mxu0 %v8005
        %8809 = vmatprep.mubr.bf16.mxu0 %v6469
        %8810 = vmatmul.mubr.bf16.gmra.mxu0 %v6468
        %v8811 = vpop.f32.mrf.mxu0
        %v8812 = vadd.f32 %v8772, %v8811
        %v8813 = vpop.f32.mrf.mxu0
        %v8814 = vpop.f32.mrf.mxu0
        %v8815 = vpop.f32.mrf.mxu0
        %8816 = vdwg.mxu0
        %8817 = vmatprep.subr.bf16.mxu0 0
        %8818 = vmatpush1.bf16.msra.mxu0 %v8050
        %8819 = vmatprep.subr.bf16.mxu0 0
        %8820 = vmatpush1.bf16.msra.mxu0 %v8047
        %8821 = vmatprep.subr.bf16.mxu0 0
        %8822 = vmatpush1.bf16.msra.mxu0 %v8044
        %8823 = vmatprep.subr.bf16.mxu0 0
        %8824 = vmatpush1.bf16.msra.mxu0 %v8041
        %8825 = vmatprep.subr.bf16.mxu0 0
        %8826 = vmatpush1.bf16.msra.mxu0 %v8038
        %8827 = vmatprep.subr.bf16.mxu0 0
        %8828 = vmatpush1.bf16.msra.mxu0 %v8035
        %8829 = vmatprep.subr.bf16.mxu0 0
        %8830 = vmatpush1.bf16.msra.mxu0 %v8032
        %8831 = vmatprep.subr.bf16.mxu0 0
        %8832 = vmatpush1.bf16.msra.mxu0 %v8029
        %8833 = vmatprep.subr.bf16.mxu0 0
        %8834 = vmatpush2.bf16.msra.mxu0 %v8074
        %8835 = vmatprep.subr.bf16.mxu0 0
        %8836 = vmatpush2.bf16.msra.mxu0 %v8071
        %8837 = vmatprep.subr.bf16.mxu0 0
        %8838 = vmatpush2.bf16.msra.mxu0 %v8068
        %8839 = vmatprep.subr.bf16.mxu0 0
        %8840 = vmatpush2.bf16.msra.mxu0 %v8065
        %8841 = vmatprep.subr.bf16.mxu0 0
        %8842 = vmatpush2.bf16.msra.mxu0 %v8062
        %8843 = vmatprep.subr.bf16.mxu0 0
        %8844 = vmatpush2.bf16.msra.mxu0 %v8059
        %8845 = vmatprep.subr.bf16.mxu0 0
        %8846 = vmatpush2.bf16.msra.mxu0 %v8056
        %8847 = vmatprep.subr.bf16.mxu0 0
        %8848 = vmatpush2.bf16.msra.mxu0 %v8053
        %8849 = vmatprep.mubr.bf16.mxu0 %v6471
        %8850 = vmatmul.mubr.bf16.gmra.mxu0 %v6470
        %v8851 = vpop.f32.mrf.mxu0
        %v8852 = vadd.f32 %v8812, %v8851
        %v8853 = vpop.f32.mrf.mxu0
        %v8854 = vpop.f32.mrf.mxu0
        %v8855 = vpop.f32.mrf.mxu0
        %8856 = vdwg.mxu0
        %8857 = vmatprep.subr.bf16.mxu0 0
        %8858 = vmatpush1.bf16.msra.mxu0 %v8098
        %8859 = vmatprep.subr.bf16.mxu0 0
        %8860 = vmatpush1.bf16.msra.mxu0 %v8095
        %8861 = vmatprep.subr.bf16.mxu0 0
        %8862 = vmatpush1.bf16.msra.mxu0 %v8092
        %8863 = vmatprep.subr.bf16.mxu0 0
        %8864 = vmatpush1.bf16.msra.mxu0 %v8089
        %8865 = vmatprep.subr.bf16.mxu0 0
        %8866 = vmatpush1.bf16.msra.mxu0 %v8086
        %8867 = vmatprep.subr.bf16.mxu0 0
        %8868 = vmatpush1.bf16.msra.mxu0 %v8083
        %8869 = vmatprep.subr.bf16.mxu0 0
        %8870 = vmatpush1.bf16.msra.mxu0 %v8080
        %8871 = vmatprep.subr.bf16.mxu0 0
        %8872 = vmatpush1.bf16.msra.mxu0 %v8077
        %8873 = vmatprep.subr.bf16.mxu0 0
        %8874 = vmatpush2.bf16.msra.mxu0 %v8122
        %8875 = vmatprep.subr.bf16.mxu0 0
        %8876 = vmatpush2.bf16.msra.mxu0 %v8119
        %8877 = vmatprep.subr.bf16.mxu0 0
        %8878 = vmatpush2.bf16.msra.mxu0 %v8116
        %8879 = vmatprep.subr.bf16.mxu0 0
        %8880 = vmatpush2.bf16.msra.mxu0 %v8113
        %8881 = vmatprep.subr.bf16.mxu0 0
        %8882 = vmatpush2.bf16.msra.mxu0 %v8110
        %8883 = vmatprep.subr.bf16.mxu0 0
        %8884 = vmatpush2.bf16.msra.mxu0 %v8107
        %8885 = vmatprep.subr.bf16.mxu0 0
        %8886 = vmatpush2.bf16.msra.mxu0 %v8104
        %8887 = vmatprep.subr.bf16.mxu0 0
        %8888 = vmatpush2.bf16.msra.mxu0 %v8101
        %8889 = vmatprep.mubr.bf16.mxu0 %v6473
        %8890 = vmatmul.mubr.bf16.gmra.mxu0 %v6472
        %v8891 = vpop.f32.mrf.mxu0
        %v8892 = vadd.f32 %v8852, %v8891
        %v8893 = vpop.f32.mrf.mxu0
        %v8894 = vpop.f32.mrf.mxu0
        %v8895 = vpop.f32.mrf.mxu0
        %8896 = vdwg.mxu0
        %v8897 = vadd.f32 %v4099, %v8651
        %v8898 = vadd.f32 %v4100, %v8653
        %v8899 = vadd.f32 %v4101, %v8892
        %8900 = vst [vmem:[%s575] sm:$0xff] %v8897
        %8901 = vst [vmem:[%s575 + $0x8] sm:$0xff] %v8898
        %8902 = vst [vmem:[%s575 + $0x10] sm:$0xff] %v8899
        %s8903 = sand.u32 %s300, 1
        %s8904 = scalar_lea.sflag [#allocation4], %s8903
        %s8905 = sand.u32 %s300, 1
        %s8906 = smul.addr %s8905, 24
        %s8907 = scalar_lea.vmem [#allocation22], %s8906
        // Predicated region
        $region117: #{transformer_block.1} parent=67 // pred_check
          %p8908 = pneg %p310
        $region118: #{transformer_block.1} parent=67 // pred_check_branch
          %8910 = sbr.rel (%p8908) target = $region120
        $region119: #{transformer_block.1} parent=67 // pred_region
          %s8912 = ssub.s32 384, 384
          %8913 = vsyncadd %s8904, %s8912
          %s8914 = smul.addr %s35, 3
          %s8915 = smul.addr %s8914, 128
          %s8916 = scalar_lea.hbm %s12, %s8915
          %s8918 = sshll.u32 %s8907, 4
          %s8919 = int_to_ptr.vmem [resolvable:$true] %s8918
          %8921 = dma.vmem_to_hbm [thread:$0]  %s8919, 384, %s8916, %s8904
        $region120: #{transformer_block.1} parent=67 // pred_fallthru
          _
      $region68: #{transformer_block.1} parent=5 // pred_fallthru
        _
      %p8922 = scmp.le.s32.totalorder 2, %s30
      // Predicated region
      $region121: #{transformer_block.1} parent=5 // pred_check
        %p8923 = pneg %p8922
      $region122: #{transformer_block.1} parent=5 // pred_check_branch
        %8925 = sbr.rel (%p8923) target = $region124
      $region123: #{transformer_block.1} parent=5 // pred_region
        %s8926 = ssub.s32 %s30, 2
        // Predicated region
        $region125: #{transformer_block.1} parent=123 // pred_check
          %p8927 = pneg %p316
        $region126: #{transformer_block.1} parent=123 // pred_check_branch
          %8929 = sbr.rel (%p8927) target = $region128
        $region127: #{transformer_block.1} parent=123 // pred_region
          %s8930 = sand.u32 %s301, 1
          %s8931 = scalar_lea.sflag [#allocation4], %s8930
          %s8932 = sand.u32 %s301, 1
          %s8933 = smul.addr %s8932, 24
          %s8934 = scalar_lea.vmem [#allocation22], %s8933
          %8935 = dma.done %s8931, 384
        $region128: #{transformer_block.1} parent=123 // pred_fallthru
          _
      $region124: #{transformer_block.1} parent=5 // pred_fallthru
        _
    $region6: #{transformer_block.1} parent=1 // loop_footer
      %s34 = sadd.s32 1, %s30
    $region7: #{transformer_block.1} parent=1 // loop_footer_branch
      %29 = sbr.rel target = $region3
    $region8: #{transformer_block.1} parent=1 // loop_exit
      _
    %8936 = vsyncpa [#allocation3], 1
    %s8937 = scalar_lea.sflag [#allocation3], 1
    %8938 = vsyncpa %s8937, 1
    %8939 = vsyncpa [#allocation6], 1
    %8940 = vsyncpa [#allocation9], 1
    %8941 = vsyncpa [#allocation12], 1
    %8942 = vsyncpa [#allocation15], 1
    %8943 = vsyncpa [#allocation18], 1
    %8944 = vsyncpa [#allocation21], 1
    %8945 = vsyncpa [#allocation4], 1
    %s8946 = scalar_lea.sflag [#allocation4], 1
    %8947 = vsyncpa %s8946, 1

</llo_original>
